<compile_context>
chip_gen: v7x
topology: tpu7x:2x2x1
jax: 0.10.0
libtpu: 0.0.40
codegen_flags: <defaults>
</compile_context>

<pallas_src>
import functools

import jax
import jax.numpy as jnp
from jax.experimental import pallas as pl
from jax.experimental.pallas import tpu as pltpu


def _attention_kernel(x_ref, wqkv_ref, kmem_ref, wmem_out_ref, wout_t_ref,
                      bout_ref, o_ref, *, heads, dim_head, num_mem_kv):
    f32 = jnp.float32
    bf16 = jnp.bfloat16
    hidden = heads * dim_head

    x = x_ref[...]                                         # (c, n) f32
    c, n = x.shape

    # --- RMSNorm over channels; gain (g * sqrt(dim)) and attn scale are folded
    #     into the qkv weight wrapper-side ---
    sumsq = jnp.sum(x * x, axis=0, keepdims=True)          # (1, n)
    inv_norm = jax.lax.rsqrt(jnp.maximum(sumsq, 1e-24))    # == 1 / max(||x||_2, 1e-12)
    xn = (x * inv_norm).astype(bf16)                       # (c, n) bf16

    # --- to_qkv: 1x1 conv == (3*hidden, c) @ (c, n); bf16 MXU operands, f32 acc ---
    qkv = jnp.dot(wqkv_ref[...], xn, preferred_element_type=f32)   # (3*hidden, n)

    # k stays (hidden, n); q and v are hoisted once to (n, hidden) so every
    # per-head matmul below is in canonical (M,K)@(K,N) orientation.
    q_nh = jnp.transpose(qkv[0 * hidden:1 * hidden]).astype(bf16)  # (n, hidden), pre-scaled
    k_hn = qkv[1 * hidden:2 * hidden].astype(bf16)                 # (hidden, n)
    v_nh = jnp.transpose(qkv[2 * hidden:3 * hidden]).astype(bf16)  # (n, hidden)

    # --- memory-key scores for all heads in ONE matmul (block-diagonal packed
    #     keys built in the wrapper). Column block [h*m:(h+1)*m] == head h. ---
    sim_mem = jnp.dot(q_nh, kmem_ref[...], preferred_element_type=f32)  # (n, heads*m)
    # Global (over all heads' mem columns) per-query max: >= each head's own mem
    # max, so using it inside the per-head shift keeps the softmax exact & stable.
    mem_max = jnp.max(sim_mem, axis=-1, keepdims=True)                  # (n, 1)

    y_nc = jnp.zeros((n, c), dtype=f32)                    # accumulated projected output

    for h in range(heads):                                 # heads=4, unrolled
        lo, hi = h * dim_head, (h + 1) * dim_head
        mlo, mhi = h * num_mem_kv, (h + 1) * num_mem_kv

        qh = q_nh[:, lo:hi]                                # (n, d) bf16
        kh = k_hn[lo:hi]                                   # (d, n) bf16 (sublane-aligned)
        vh = v_nh[:, lo:hi]                                # (n, d) bf16

        # scores: canonical (n,d)@(d,n)
        sim_seq = jnp.dot(qh, kh, preferred_element_type=f32)          # (n, n)

        # joint softmax over [mem | seq] keys (f32 elementwise: safe on v5e too)
        row_max = jnp.maximum(jnp.max(sim_seq, axis=-1, keepdims=True), mem_max)
        e_seq = jnp.exp(sim_seq - row_max)                              # (n, n)
        e_mem = jnp.exp(sim_mem[:, mlo:mhi] - row_max)                  # (n, m)
        denom = (jnp.sum(e_seq, axis=-1, keepdims=True)
                 + jnp.sum(e_mem, axis=-1, keepdims=True))
        inv = pl.reciprocal(denom, approx=True)
        attn_seq = (e_seq * inv).astype(bf16)                           # (n, n)
        attn_mem = (e_mem * inv).astype(bf16)                           # (n, m)

        # PV in (n, d) orientation (attn never transposed), then fold the head
        # concat + output projection: accumulate (n,d)@(d,c) into y_nc.
        out_h = jnp.dot(attn_seq, vh, preferred_element_type=f32)       # (n, d)
        y_nc = y_nc + jnp.dot(out_h.astype(bf16), wout_t_ref[lo:hi],
                              preferred_element_type=f32)               # (n, c)
        # memory-value contribution with wout pre-folded in the wrapper
        y_nc = y_nc + jnp.dot(attn_mem, wmem_out_ref[h],
                              preferred_element_type=f32)               # (n, c)

    # one tiny (n, c) -> (c, n) transpose, add bias, lane-dense store
    o_ref[...] = jnp.transpose(y_nc) + bout_ref[...]


def attention(x, params, *, heads=4, dim_head=32, num_mem_kv=4):
    b, c, h, w = x.shape
    n = h * w
    hidden = heads * dim_head
    scale = dim_head ** -0.5

    x_flat = x.reshape(b, c, n).astype(jnp.float32)

    # Fold RMSNorm gain (g * sqrt(dim)) and the attention scale (q rows only)
    # into the qkv weight in f32, cast to bf16 last.
    g_fold = params["g"].astype(jnp.float32) * (c ** 0.5)                 # (c,)
    wqkv = params["w_qkv"].astype(jnp.float32) * g_fold[None, :]          # (3*hidden, c)
    wqkv = wqkv.at[:hidden].multiply(scale)
    wqkv_bf16 = wqkv.astype(jnp.bfloat16)

    mem_k = params["mem_kv"][0].astype(jnp.float32)                       # (heads, m, d)
    mem_v = params["mem_kv"][1].astype(jnp.float32)                       # (heads, m, d)
    wout = params["w_out"].astype(jnp.float32)                            # (c, hidden)

    # Block-diagonal packed memory keys: (hidden, heads*m); q already carries scale.
    kmem_bd = jnp.zeros((hidden, heads * num_mem_kv), jnp.float32)
    for hh in range(heads):
        kmem_bd = kmem_bd.at[hh * dim_head:(hh + 1) * dim_head,
                             hh * num_mem_kv:(hh + 1) * num_mem_kv].set(mem_k[hh].T)
    kmem_bd = kmem_bd.astype(jnp.bfloat16)

    # Pre-fold memory values with the output projection: M_h = mem_v[h] @ wout_h^T
    wmem_out = jnp.stack(
        [mem_v[hh] @ wout[:, hh * dim_head:(hh + 1) * dim_head].T
         for hh in range(heads)], axis=0).astype(jnp.bfloat16)            # (heads, m, c)

    wout_t = wout.T.astype(jnp.bfloat16)                                  # (hidden, c)
    bout = params["b_out"].reshape(c, 1).astype(jnp.float32)              # (c, 1)

    kernel = functools.partial(_attention_kernel, heads=heads,
                               dim_head=dim_head, num_mem_kv=num_mem_kv)

    out = pl.pallas_call(
        kernel,
        out_shape=jax.ShapeDtypeStruct((b, c, n), jnp.float32),
        grid_spec=pltpu.PrefetchScalarGridSpec(
            num_scalar_prefetch=0,
            grid=(b,),
            in_specs=[
                pl.BlockSpec((pl.Squeezed(), c, n), lambda i: (i, 0, 0)),
                pl.BlockSpec((3 * hidden, c), lambda i: (0, 0)),
                pl.BlockSpec((hidden, heads * num_mem_kv), lambda i: (0, 0)),
                pl.BlockSpec((heads, num_mem_kv, c), lambda i: (0, 0, 0)),
                pl.BlockSpec((hidden, c), lambda i: (0, 0)),
                pl.BlockSpec((c, 1), lambda i: (0, 0)),
            ],
            out_specs=pl.BlockSpec((pl.Squeezed(), c, n), lambda i: (i, 0, 0)),
        ),
        compiler_params=pltpu.CompilerParams(dimension_semantics=("parallel",)),
    )(x_flat, wqkv_bf16, kmem_bd, wmem_out, wout_t, bout)

    return out.reshape(b, c, h, w)


def attention_reference(x, params, *, heads=4, dim_head=32, num_mem_kv=4):
    """Pure-JAX f32 mirror of the PyTorch forward, for validation."""
    b, c, h, w = x.shape
    n = h * w
    hidden = heads * dim_head
    eps = 1e-12
    scale = dim_head ** -0.5

    g = params["g"].reshape(1, c, 1, 1)
    l2 = jnp.sqrt(jnp.sum(x * x, axis=1, keepdims=True))
    xn = x / jnp.maximum(l2, eps) * g * (c ** 0.5)

    qkv = jnp.einsum("oc,bchw->bohw", params["w_qkv"], xn)
    q, k, v = jnp.split(qkv, 3, axis=1)

    def to_heads(t):  # 'b (h c) x y -> b h (x y) c'
        return t.reshape(b, heads, dim_head, n).transpose(0, 1, 3, 2)

    q, k, v = map(to_heads, (q, k, v))

    mk = jnp.broadcast_to(params["mem_kv"][0][None],
                          (b, heads, num_mem_kv, dim_head))
    mv = jnp.broadcast_to(params["mem_kv"][1][None],
                          (b, heads, num_mem_kv, dim_head))
    k = jnp.concatenate([mk, k], axis=-2)
    v = jnp.concatenate([mv, v], axis=-2)

    sim = jnp.einsum("bhid,bhjd->bhij", q, k) * scale
    attn = jax.nn.softmax(sim, axis=-1)
    out = jnp.einsum("bhij,bhjd->bhid", attn, v)          # (b, heads, n, d)

    out = out.transpose(0, 1, 3, 2).reshape(b, hidden, h, w)   # 'b h (x y) d -> b (h d) x y'
    y = (jnp.einsum("oc,bchw->bohw", params["w_out"], out)
         + params["b_out"][None, :, None, None])
    return y


if __name__ == "__main__":
    B, DIM, H, W = 2, 4, 16, 16
    HEADS, DIM_HEAD, NUM_MEM_KV = 4, 32, 4
    HIDDEN = HEADS * DIM_HEAD

    key = jax.random.PRNGKey(0)
    kx, k1, k2, k3, k4 = jax.random.split(key, 5)

    x = jax.random.normal(kx, (B, DIM, H, W), dtype=jnp.float32)

    params = {
        "w_qkv": jax.random.normal(k1, (3 * HIDDEN, DIM), dtype=jnp.float32) * 0.1,
        "mem_kv": jax.random.normal(k2, (2, HEADS, NUM_MEM_KV, DIM_HEAD),
                                    dtype=jnp.float32),
        "w_out": jax.random.normal(k3, (DIM, HIDDEN), dtype=jnp.float32) * 0.1,
        "b_out": jax.random.normal(k4, (DIM,), dtype=jnp.float32) * 0.1,
        "g": jnp.ones((DIM,), dtype=jnp.float32),
    }

    out = attention(x, params, heads=HEADS, dim_head=DIM_HEAD,
                    num_mem_kv=NUM_MEM_KV)
    out = jax.block_until_ready(out)

    ref = attention_reference(x, params, heads=HEADS, dim_head=DIM_HEAD,
                              num_mem_kv=NUM_MEM_KV)
    ref = jax.block_until_ready(ref)

    assert out.shape == (B, DIM, H, W)
    max_err = jnp.max(jnp.abs(out - ref))
    # bf16 MXU operands + approx reciprocal -> slightly loosened tolerance.
    assert jnp.allclose(out, ref, atol=2e-2, rtol=2e-2), f"max abs err {max_err}"

    print("KERNEL_OK")
</pallas_src>

<mosaic_0001>
module attributes {stable_mosaic.version = 11 : i64} {
  func.func @_attention_kernel(%arg0: i32, %arg1: memref<1x4x256xf32, #tpu.memory_space<vmem>>, %arg2: memref<384x4xbf16, #tpu.memory_space<vmem>>, %arg3: memref<128x16xbf16, #tpu.memory_space<vmem>>, %arg4: memref<4x4x4xbf16, #tpu.memory_space<vmem>>, %arg5: memref<128x4xbf16, #tpu.memory_space<vmem>>, %arg6: memref<4x1xf32, #tpu.memory_space<vmem>>, %arg7: memref<1x4x256xf32, #tpu.memory_space<vmem>>) attributes {dimension_semantics = [#tpu.dimension_semantics<parallel>], iteration_bounds = array<i64: 2>, scalar_prefetch = 0 : i64, scratch_operands = 0 : i64, tpu.core_type = #tpu.core_type<tc>, window_params = [{transform_indices = @transform_0, window_bounds = array<i64: 1, 4, 256>}, {pipeline_mode = #tpu.pipeline_mode<synchronous>, transform_indices = @transform_1, window_bounds = array<i64: 384, 4>}, {pipeline_mode = #tpu.pipeline_mode<synchronous>, transform_indices = @transform_2, window_bounds = array<i64: 128, 16>}, {pipeline_mode = #tpu.pipeline_mode<synchronous>, transform_indices = @transform_3, window_bounds = array<i64: 4, 4, 4>}, {pipeline_mode = #tpu.pipeline_mode<synchronous>, transform_indices = @transform_4, window_bounds = array<i64: 128, 4>}, {pipeline_mode = #tpu.pipeline_mode<synchronous>, transform_indices = @transform_5, window_bounds = array<i64: 4, 1>}, {transform_indices = @transform_6, window_bounds = array<i64: 1, 4, 256>}]} {
    %c0 = arith.constant 0 : index
    %c0_0 = arith.constant 0 : index
    %c0_1 = arith.constant 0 : index
    %0 = vector.load %arg1[%c0, %c0_0, %c0_1] : memref<1x4x256xf32, #tpu.memory_space<vmem>>, vector<1x4x256xf32>
    %1 = vector.shape_cast %0 : vector<1x4x256xf32> to vector<4x256xf32>
    %2 = arith.mulf %1, %1 : vector<4x256xf32>
    %cst = arith.constant dense<0.000000e+00> : vector<256xf32>
    %3 = vector.multi_reduction <add>, %2, %cst [0] : vector<4x256xf32> to vector<256xf32>
    %4 = vector.shape_cast %3 : vector<256xf32> to vector<1x256xf32>
    %cst_2 = arith.constant 1.000000e-24 : f32
    %5 = vector.broadcast %cst_2 : f32 to vector<1x256xf32>
    %6 = arith.maximumf %4, %5 : vector<1x256xf32>
    %7 = math.rsqrt %6 : vector<1x256xf32>
    %8 = vector.broadcast %7 : vector<1x256xf32> to vector<4x256xf32>
    %9 = arith.mulf %1, %8 : vector<4x256xf32>
    %10 = arith.truncf %9 : vector<4x256xf32> to vector<4x256xbf16>
    %c0_3 = arith.constant 0 : index
    %c0_4 = arith.constant 0 : index
    %11 = vector.load %arg2[%c0_3, %c0_4] : memref<384x4xbf16, #tpu.memory_space<vmem>>, vector<384x4xbf16>
    %cst_5 = arith.constant dense<0.000000e+00> : vector<384x256xf32>
    %12 = tpu.matmul %11, %10, %cst_5 {dimension_numbers = #tpu.dot_dimension_numbers<[1], [0], [0], [1], [0, 0, 1, 1], [], []>} : vector<384x4xbf16>, vector<4x256xbf16>, vector<384x256xf32> -> vector<384x256xf32>
    %13 = vector.extract_strided_slice %12 {offsets = [0, 0], sizes = [128, 256], strides = [1, 1]} : vector<384x256xf32> to vector<128x256xf32>
    %14 = tpu.transpose %13, [1, 0] : vector<128x256xf32> -> vector<256x128xf32>
    %15 = arith.truncf %14 : vector<256x128xf32> to vector<256x128xbf16>
    %16 = vector.extract_strided_slice %12 {offsets = [128, 0], sizes = [128, 256], strides = [1, 1]} : vector<384x256xf32> to vector<128x256xf32>
    %17 = arith.truncf %16 : vector<128x256xf32> to vector<128x256xbf16>
    %18 = vector.extract_strided_slice %12 {offsets = [256, 0], sizes = [128, 256], strides = [1, 1]} : vector<384x256xf32> to vector<128x256xf32>
    %19 = tpu.transpose %18, [1, 0] : vector<128x256xf32> -> vector<256x128xf32>
    %20 = arith.truncf %19 : vector<256x128xf32> to vector<256x128xbf16>
    %c0_6 = arith.constant 0 : index
    %c0_7 = arith.constant 0 : index
    %21 = vector.load %arg3[%c0_6, %c0_7] : memref<128x16xbf16, #tpu.memory_space<vmem>>, vector<128x16xbf16>
    %cst_8 = arith.constant dense<0.000000e+00> : vector<256x16xf32>
    %22 = tpu.matmul %15, %21, %cst_8 {dimension_numbers = #tpu.dot_dimension_numbers<[1], [0], [0], [1], [0, 0, 1, 1], [], []>} : vector<256x128xbf16>, vector<128x16xbf16>, vector<256x16xf32> -> vector<256x16xf32>
    %cst_9 = arith.constant dense<0xFF800000> : vector<256xf32>
    %23 = vector.multi_reduction <maximumf>, %22, %cst_9 [1] : vector<256x16xf32> to vector<256xf32>
    %24 = vector.shape_cast %23 : vector<256xf32> to vector<256x1xf32>
    %cst_10 = arith.constant 0.000000e+00 : f32
    %25 = vector.broadcast %cst_10 : f32 to vector<256x4xf32>
    %26 = vector.extract_strided_slice %15 {offsets = [0, 0], sizes = [256, 32], strides = [1, 1]} : vector<256x128xbf16> to vector<256x32xbf16>
    %27 = vector.extract_strided_slice %17 {offsets = [0, 0], sizes = [32, 256], strides = [1, 1]} : vector<128x256xbf16> to vector<32x256xbf16>
    %28 = vector.extract_strided_slice %20 {offsets = [0, 0], sizes = [256, 32], strides = [1, 1]} : vector<256x128xbf16> to vector<256x32xbf16>
    %cst_11 = arith.constant dense<0.000000e+00> : vector<256x256xf32>
    %29 = tpu.matmul %26, %27, %cst_11 {dimension_numbers = #tpu.dot_dimension_numbers<[1], [0], [0], [1], [0, 0, 1, 1], [], []>} : vector<256x32xbf16>, vector<32x256xbf16>, vector<256x256xf32> -> vector<256x256xf32>
    %cst_12 = arith.constant dense<0xFF800000> : vector<256xf32>
    %30 = vector.multi_reduction <maximumf>, %29, %cst_12 [1] : vector<256x256xf32> to vector<256xf32>
    %31 = vector.shape_cast %30 : vector<256xf32> to vector<256x1xf32>
    %32 = arith.maximumf %31, %24 : vector<256x1xf32>
    %33 = vector.broadcast %32 : vector<256x1xf32> to vector<256x256xf32>
    %34 = arith.subf %29, %33 : vector<256x256xf32>
    %35 = math.exp %34 : vector<256x256xf32>
    %36 = vector.extract_strided_slice %22 {offsets = [0, 0], sizes = [256, 4], strides = [1, 1]} : vector<256x16xf32> to vector<256x4xf32>
    %37 = vector.broadcast %32 : vector<256x1xf32> to vector<256x4xf32>
    %38 = arith.subf %36, %37 : vector<256x4xf32>
    %39 = math.exp %38 : vector<256x4xf32>
    %cst_13 = arith.constant dense<0.000000e+00> : vector<256xf32>
    %40 = vector.multi_reduction <add>, %35, %cst_13 [1] : vector<256x256xf32> to vector<256xf32>
    %41 = vector.shape_cast %40 : vector<256xf32> to vector<256x1xf32>
    %cst_14 = arith.constant dense<0.000000e+00> : vector<256xf32>
    %42 = vector.multi_reduction <add>, %39, %cst_14 [1] : vector<256x4xf32> to vector<256xf32>
    %43 = vector.shape_cast %42 : vector<256xf32> to vector<256x1xf32>
    %44 = arith.addf %41, %43 : vector<256x1xf32>
    %45 = tpu.reciprocal %44 {approx = true} : vector<256x1xf32> -> vector<256x1xf32>
    %46 = vector.broadcast %45 : vector<256x1xf32> to vector<256x256xf32>
    %47 = arith.mulf %35, %46 : vector<256x256xf32>
    %48 = arith.truncf %47 : vector<256x256xf32> to vector<256x256xbf16>
    %49 = vector.broadcast %45 : vector<256x1xf32> to vector<256x4xf32>
    %50 = arith.mulf %39, %49 : vector<256x4xf32>
    %51 = arith.truncf %50 : vector<256x4xf32> to vector<256x4xbf16>
    %cst_15 = arith.constant dense<0.000000e+00> : vector<256x32xf32>
    %52 = tpu.matmul %48, %28, %cst_15 {dimension_numbers = #tpu.dot_dimension_numbers<[1], [0], [0], [1], [0, 0, 1, 1], [], []>} : vector<256x256xbf16>, vector<256x32xbf16>, vector<256x32xf32> -> vector<256x32xf32>
    %53 = arith.truncf %52 : vector<256x32xf32> to vector<256x32xbf16>
    %c0_16 = arith.constant 0 : index
    %c0_17 = arith.constant 0 : index
    %54 = vector.load %arg5[%c0_16, %c0_17] : memref<128x4xbf16, #tpu.memory_space<vmem>>, vector<32x4xbf16>
    %cst_18 = arith.constant dense<0.000000e+00> : vector<256x4xf32>
    %55 = tpu.matmul %53, %54, %cst_18 {dimension_numbers = #tpu.dot_dimension_numbers<[1], [0], [0], [1], [0, 0, 1, 1], [], []>} : vector<256x32xbf16>, vector<32x4xbf16>, vector<256x4xf32> -> vector<256x4xf32>
    %56 = arith.addf %25, %55 : vector<256x4xf32>
    %c0_19 = arith.constant 0 : index
    %c0_20 = arith.constant 0 : index
    %c0_21 = arith.constant 0 : index
    %57 = vector.load %arg4[%c0_19, %c0_20, %c0_21] : memref<4x4x4xbf16, #tpu.memory_space<vmem>>, vector<1x4x4xbf16>
    %58 = vector.shape_cast %57 : vector<1x4x4xbf16> to vector<4x4xbf16>
    %cst_22 = arith.constant dense<0.000000e+00> : vector<256x4xf32>
    %59 = tpu.matmul %51, %58, %cst_22 {dimension_numbers = #tpu.dot_dimension_numbers<[1], [0], [0], [1], [0, 0, 1, 1], [], []>} : vector<256x4xbf16>, vector<4x4xbf16>, vector<256x4xf32> -> vector<256x4xf32>
    %60 = arith.addf %56, %59 : vector<256x4xf32>
    %61 = vector.extract_strided_slice %15 {offsets = [0, 32], sizes = [256, 32], strides = [1, 1]} : vector<256x128xbf16> to vector<256x32xbf16>
    %62 = vector.extract_strided_slice %17 {offsets = [32, 0], sizes = [32, 256], strides = [1, 1]} : vector<128x256xbf16> to vector<32x256xbf16>
    %63 = vector.extract_strided_slice %20 {offsets = [0, 32], sizes = [256, 32], strides = [1, 1]} : vector<256x128xbf16> to vector<256x32xbf16>
    %cst_23 = arith.constant dense<0.000000e+00> : vector<256x256xf32>
    %64 = tpu.matmul %61, %62, %cst_23 {dimension_numbers = #tpu.dot_dimension_numbers<[1], [0], [0], [1], [0, 0, 1, 1], [], []>} : vector<256x32xbf16>, vector<32x256xbf16>, vector<256x256xf32> -> vector<256x256xf32>
    %cst_24 = arith.constant dense<0xFF800000> : vector<256xf32>
    %65 = vector.multi_reduction <maximumf>, %64, %cst_24 [1] : vector<256x256xf32> to vector<256xf32>
    %66 = vector.shape_cast %65 : vector<256xf32> to vector<256x1xf32>
    %67 = arith.maximumf %66, %24 : vector<256x1xf32>
    %68 = vector.broadcast %67 : vector<256x1xf32> to vector<256x256xf32>
    %69 = arith.subf %64, %68 : vector<256x256xf32>
    %70 = math.exp %69 : vector<256x256xf32>
    %71 = vector.extract_strided_slice %22 {offsets = [0, 4], sizes = [256, 4], strides = [1, 1]} : vector<256x16xf32> to vector<256x4xf32>
    %72 = vector.broadcast %67 : vector<256x1xf32> to vector<256x4xf32>
    %73 = arith.subf %71, %72 : vector<256x4xf32>
    %74 = math.exp %73 : vector<256x4xf32>
    %cst_25 = arith.constant dense<0.000000e+00> : vector<256xf32>
    %75 = vector.multi_reduction <add>, %70, %cst_25 [1] : vector<256x256xf32> to vector<256xf32>
    %76 = vector.shape_cast %75 : vector<256xf32> to vector<256x1xf32>
    %cst_26 = arith.constant dense<0.000000e+00> : vector<256xf32>
    %77 = vector.multi_reduction <add>, %74, %cst_26 [1] : vector<256x4xf32> to vector<256xf32>
    %78 = vector.shape_cast %77 : vector<256xf32> to vector<256x1xf32>
    %79 = arith.addf %76, %78 : vector<256x1xf32>
    %80 = tpu.reciprocal %79 {approx = true} : vector<256x1xf32> -> vector<256x1xf32>
    %81 = vector.broadcast %80 : vector<256x1xf32> to vector<256x256xf32>
    %82 = arith.mulf %70, %81 : vector<256x256xf32>
    %83 = arith.truncf %82 : vector<256x256xf32> to vector<256x256xbf16>
    %84 = vector.broadcast %80 : vector<256x1xf32> to vector<256x4xf32>
    %85 = arith.mulf %74, %84 : vector<256x4xf32>
    %86 = arith.truncf %85 : vector<256x4xf32> to vector<256x4xbf16>
    %cst_27 = arith.constant dense<0.000000e+00> : vector<256x32xf32>
    %87 = tpu.matmul %83, %63, %cst_27 {dimension_numbers = #tpu.dot_dimension_numbers<[1], [0], [0], [1], [0, 0, 1, 1], [], []>} : vector<256x256xbf16>, vector<256x32xbf16>, vector<256x32xf32> -> vector<256x32xf32>
    %88 = arith.truncf %87 : vector<256x32xf32> to vector<256x32xbf16>
    %c32 = arith.constant 32 : index
    %c0_28 = arith.constant 0 : index
    %89 = vector.load %arg5[%c32, %c0_28] : memref<128x4xbf16, #tpu.memory_space<vmem>>, vector<32x4xbf16>
    %cst_29 = arith.constant dense<0.000000e+00> : vector<256x4xf32>
    %90 = tpu.matmul %88, %89, %cst_29 {dimension_numbers = #tpu.dot_dimension_numbers<[1], [0], [0], [1], [0, 0, 1, 1], [], []>} : vector<256x32xbf16>, vector<32x4xbf16>, vector<256x4xf32> -> vector<256x4xf32>
    %91 = arith.addf %60, %90 : vector<256x4xf32>
    %c1 = arith.constant 1 : index
    %c0_30 = arith.constant 0 : index
    %c0_31 = arith.constant 0 : index
    %92 = vector.load %arg4[%c1, %c0_30, %c0_31] : memref<4x4x4xbf16, #tpu.memory_space<vmem>>, vector<1x4x4xbf16>
    %93 = vector.shape_cast %92 : vector<1x4x4xbf16> to vector<4x4xbf16>
    %cst_32 = arith.constant dense<0.000000e+00> : vector<256x4xf32>
    %94 = tpu.matmul %86, %93, %cst_32 {dimension_numbers = #tpu.dot_dimension_numbers<[1], [0], [0], [1], [0, 0, 1, 1], [], []>} : vector<256x4xbf16>, vector<4x4xbf16>, vector<256x4xf32> -> vector<256x4xf32>
    %95 = arith.addf %91, %94 : vector<256x4xf32>
    %96 = vector.extract_strided_slice %15 {offsets = [0, 64], sizes = [256, 32], strides = [1, 1]} : vector<256x128xbf16> to vector<256x32xbf16>
    %97 = vector.extract_strided_slice %17 {offsets = [64, 0], sizes = [32, 256], strides = [1, 1]} : vector<128x256xbf16> to vector<32x256xbf16>
    %98 = vector.extract_strided_slice %20 {offsets = [0, 64], sizes = [256, 32], strides = [1, 1]} : vector<256x128xbf16> to vector<256x32xbf16>
    %cst_33 = arith.constant dense<0.000000e+00> : vector<256x256xf32>
    %99 = tpu.matmul %96, %97, %cst_33 {dimension_numbers = #tpu.dot_dimension_numbers<[1], [0], [0], [1], [0, 0, 1, 1], [], []>} : vector<256x32xbf16>, vector<32x256xbf16>, vector<256x256xf32> -> vector<256x256xf32>
    %cst_34 = arith.constant dense<0xFF800000> : vector<256xf32>
    %100 = vector.multi_reduction <maximumf>, %99, %cst_34 [1] : vector<256x256xf32> to vector<256xf32>
    %101 = vector.shape_cast %100 : vector<256xf32> to vector<256x1xf32>
    %102 = arith.maximumf %101, %24 : vector<256x1xf32>
    %103 = vector.broadcast %102 : vector<256x1xf32> to vector<256x256xf32>
    %104 = arith.subf %99, %103 : vector<256x256xf32>
    %105 = math.exp %104 : vector<256x256xf32>
    %106 = vector.extract_strided_slice %22 {offsets = [0, 8], sizes = [256, 4], strides = [1, 1]} : vector<256x16xf32> to vector<256x4xf32>
    %107 = vector.broadcast %102 : vector<256x1xf32> to vector<256x4xf32>
    %108 = arith.subf %106, %107 : vector<256x4xf32>
    %109 = math.exp %108 : vector<256x4xf32>
    %cst_35 = arith.constant dense<0.000000e+00> : vector<256xf32>
    %110 = vector.multi_reduction <add>, %105, %cst_35 [1] : vector<256x256xf32> to vector<256xf32>
    %111 = vector.shape_cast %110 : vector<256xf32> to vector<256x1xf32>
    %cst_36 = arith.constant dense<0.000000e+00> : vector<256xf32>
    %112 = vector.multi_reduction <add>, %109, %cst_36 [1] : vector<256x4xf32> to vector<256xf32>
    %113 = vector.shape_cast %112 : vector<256xf32> to vector<256x1xf32>
    %114 = arith.addf %111, %113 : vector<256x1xf32>
    %115 = tpu.reciprocal %114 {approx = true} : vector<256x1xf32> -> vector<256x1xf32>
    %116 = vector.broadcast %115 : vector<256x1xf32> to vector<256x256xf32>
    %117 = arith.mulf %105, %116 : vector<256x256xf32>
    %118 = arith.truncf %117 : vector<256x256xf32> to vector<256x256xbf16>
    %119 = vector.broadcast %115 : vector<256x1xf32> to vector<256x4xf32>
    %120 = arith.mulf %109, %119 : vector<256x4xf32>
    %121 = arith.truncf %120 : vector<256x4xf32> to vector<256x4xbf16>
    %cst_37 = arith.constant dense<0.000000e+00> : vector<256x32xf32>
    %122 = tpu.matmul %118, %98, %cst_37 {dimension_numbers = #tpu.dot_dimension_numbers<[1], [0], [0], [1], [0, 0, 1, 1], [], []>} : vector<256x256xbf16>, vector<256x32xbf16>, vector<256x32xf32> -> vector<256x32xf32>
    %123 = arith.truncf %122 : vector<256x32xf32> to vector<256x32xbf16>
    %c64 = arith.constant 64 : index
    %c0_38 = arith.constant 0 : index
    %124 = vector.load %arg5[%c64, %c0_38] : memref<128x4xbf16, #tpu.memory_space<vmem>>, vector<32x4xbf16>
    %cst_39 = arith.constant dense<0.000000e+00> : vector<256x4xf32>
    %125 = tpu.matmul %123, %124, %cst_39 {dimension_numbers = #tpu.dot_dimension_numbers<[1], [0], [0], [1], [0, 0, 1, 1], [], []>} : vector<256x32xbf16>, vector<32x4xbf16>, vector<256x4xf32> -> vector<256x4xf32>
    %126 = arith.addf %95, %125 : vector<256x4xf32>
    %c2 = arith.constant 2 : index
    %c0_40 = arith.constant 0 : index
    %c0_41 = arith.constant 0 : index
    %127 = vector.load %arg4[%c2, %c0_40, %c0_41] : memref<4x4x4xbf16, #tpu.memory_space<vmem>>, vector<1x4x4xbf16>
    %128 = vector.shape_cast %127 : vector<1x4x4xbf16> to vector<4x4xbf16>
    %cst_42 = arith.constant dense<0.000000e+00> : vector<256x4xf32>
    %129 = tpu.matmul %121, %128, %cst_42 {dimension_numbers = #tpu.dot_dimension_numbers<[1], [0], [0], [1], [0, 0, 1, 1], [], []>} : vector<256x4xbf16>, vector<4x4xbf16>, vector<256x4xf32> -> vector<256x4xf32>
    %130 = arith.addf %126, %129 : vector<256x4xf32>
    %131 = vector.extract_strided_slice %15 {offsets = [0, 96], sizes = [256, 32], strides = [1, 1]} : vector<256x128xbf16> to vector<256x32xbf16>
    %132 = vector.extract_strided_slice %17 {offsets = [96, 0], sizes = [32, 256], strides = [1, 1]} : vector<128x256xbf16> to vector<32x256xbf16>
    %133 = vector.extract_strided_slice %20 {offsets = [0, 96], sizes = [256, 32], strides = [1, 1]} : vector<256x128xbf16> to vector<256x32xbf16>
    %cst_43 = arith.constant dense<0.000000e+00> : vector<256x256xf32>
    %134 = tpu.matmul %131, %132, %cst_43 {dimension_numbers = #tpu.dot_dimension_numbers<[1], [0], [0], [1], [0, 0, 1, 1], [], []>} : vector<256x32xbf16>, vector<32x256xbf16>, vector<256x256xf32> -> vector<256x256xf32>
    %cst_44 = arith.constant dense<0xFF800000> : vector<256xf32>
    %135 = vector.multi_reduction <maximumf>, %134, %cst_44 [1] : vector<256x256xf32> to vector<256xf32>
    %136 = vector.shape_cast %135 : vector<256xf32> to vector<256x1xf32>
    %137 = arith.maximumf %136, %24 : vector<256x1xf32>
    %138 = vector.broadcast %137 : vector<256x1xf32> to vector<256x256xf32>
    %139 = arith.subf %134, %138 : vector<256x256xf32>
    %140 = math.exp %139 : vector<256x256xf32>
    %141 = vector.extract_strided_slice %22 {offsets = [0, 12], sizes = [256, 4], strides = [1, 1]} : vector<256x16xf32> to vector<256x4xf32>
    %142 = vector.broadcast %137 : vector<256x1xf32> to vector<256x4xf32>
    %143 = arith.subf %141, %142 : vector<256x4xf32>
    %144 = math.exp %143 : vector<256x4xf32>
    %cst_45 = arith.constant dense<0.000000e+00> : vector<256xf32>
    %145 = vector.multi_reduction <add>, %140, %cst_45 [1] : vector<256x256xf32> to vector<256xf32>
    %146 = vector.shape_cast %145 : vector<256xf32> to vector<256x1xf32>
    %cst_46 = arith.constant dense<0.000000e+00> : vector<256xf32>
    %147 = vector.multi_reduction <add>, %144, %cst_46 [1] : vector<256x4xf32> to vector<256xf32>
    %148 = vector.shape_cast %147 : vector<256xf32> to vector<256x1xf32>
    %149 = arith.addf %146, %148 : vector<256x1xf32>
    %150 = tpu.reciprocal %149 {approx = true} : vector<256x1xf32> -> vector<256x1xf32>
    %151 = vector.broadcast %150 : vector<256x1xf32> to vector<256x256xf32>
    %152 = arith.mulf %140, %151 : vector<256x256xf32>
    %153 = arith.truncf %152 : vector<256x256xf32> to vector<256x256xbf16>
    %154 = vector.broadcast %150 : vector<256x1xf32> to vector<256x4xf32>
    %155 = arith.mulf %144, %154 : vector<256x4xf32>
    %156 = arith.truncf %155 : vector<256x4xf32> to vector<256x4xbf16>
    %cst_47 = arith.constant dense<0.000000e+00> : vector<256x32xf32>
    %157 = tpu.matmul %153, %133, %cst_47 {dimension_numbers = #tpu.dot_dimension_numbers<[1], [0], [0], [1], [0, 0, 1, 1], [], []>} : vector<256x256xbf16>, vector<256x32xbf16>, vector<256x32xf32> -> vector<256x32xf32>
    %158 = arith.truncf %157 : vector<256x32xf32> to vector<256x32xbf16>
    %c96 = arith.constant 96 : index
    %c0_48 = arith.constant 0 : index
    %159 = vector.load %arg5[%c96, %c0_48] : memref<128x4xbf16, #tpu.memory_space<vmem>>, vector<32x4xbf16>
    %cst_49 = arith.constant dense<0.000000e+00> : vector<256x4xf32>
    %160 = tpu.matmul %158, %159, %cst_49 {dimension_numbers = #tpu.dot_dimension_numbers<[1], [0], [0], [1], [0, 0, 1, 1], [], []>} : vector<256x32xbf16>, vector<32x4xbf16>, vector<256x4xf32> -> vector<256x4xf32>
    %161 = arith.addf %130, %160 : vector<256x4xf32>
    %c3 = arith.constant 3 : index
    %c0_50 = arith.constant 0 : index
    %c0_51 = arith.constant 0 : index
    %162 = vector.load %arg4[%c3, %c0_50, %c0_51] : memref<4x4x4xbf16, #tpu.memory_space<vmem>>, vector<1x4x4xbf16>
    %163 = vector.shape_cast %162 : vector<1x4x4xbf16> to vector<4x4xbf16>
    %cst_52 = arith.constant dense<0.000000e+00> : vector<256x4xf32>
    %164 = tpu.matmul %156, %163, %cst_52 {dimension_numbers = #tpu.dot_dimension_numbers<[1], [0], [0], [1], [0, 0, 1, 1], [], []>} : vector<256x4xbf16>, vector<4x4xbf16>, vector<256x4xf32> -> vector<256x4xf32>
    %165 = arith.addf %161, %164 : vector<256x4xf32>
    %166 = tpu.transpose %165, [1, 0] : vector<256x4xf32> -> vector<4x256xf32>
    %c0_53 = arith.constant 0 : index
    %c0_54 = arith.constant 0 : index
    %167 = vector.load %arg6[%c0_53, %c0_54] : memref<4x1xf32, #tpu.memory_space<vmem>>, vector<4x1xf32>
    %168 = vector.broadcast %167 : vector<4x1xf32> to vector<4x256xf32>
    %169 = arith.addf %166, %168 : vector<4x256xf32>
    %c0_55 = arith.constant 0 : index
    %c0_56 = arith.constant 0 : index
    %c0_57 = arith.constant 0 : index
    %170 = vector.load %arg7[%c0_55, %c0_56, %c0_57] : memref<1x4x256xf32, #tpu.memory_space<vmem>>, vector<1x4x256xf32>
    %171 = vector.shape_cast %170 : vector<1x4x256xf32> to vector<4x256xf32>
    %172 = vector.shape_cast %169 : vector<4x256xf32> to vector<1x4x256xf32>
    tpu.vector_store %arg7[%c0_55, %c0_56, %c0_57], %172 {strides = array<i32>} : memref<1x4x256xf32, #tpu.memory_space<vmem>>, vector<1x4x256xf32>,
    return
  }
  func.func @transform_0(%arg0: i32) -> (i32, i32, i32) {
    %c0_i32 = arith.constant 0 : i32
    %c0_i32_0 = arith.constant 0 : i32
    %c0_i32_1 = arith.constant 0 : i32
    return %arg0, %c0_i32, %c0_i32_0 : i32, i32, i32
  }
  func.func @transform_1(%arg0: i32) -> (i32, i32) {
    %c0_i32 = arith.constant 0 : i32
    %c0_i32_0 = arith.constant 0 : i32
    %c0_i32_1 = arith.constant 0 : i32
    return %c0_i32, %c0_i32_0 : i32, i32
  }
  func.func @transform_2(%arg0: i32) -> (i32, i32) {
    %c0_i32 = arith.constant 0 : i32
    %c0_i32_0 = arith.constant 0 : i32
    %c0_i32_1 = arith.constant 0 : i32
    return %c0_i32, %c0_i32_0 : i32, i32
  }
  func.func @transform_3(%arg0: i32) -> (i32, i32, i32) {
    %c0_i32 = arith.constant 0 : i32
    %c0_i32_0 = arith.constant 0 : i32
    %c0_i32_1 = arith.constant 0 : i32
    %c0_i32_2 = arith.constant 0 : i32
    return %c0_i32, %c0_i32_0, %c0_i32_1 : i32, i32, i32
  }
  func.func @transform_4(%arg0: i32) -> (i32, i32) {
    %c0_i32 = arith.constant 0 : i32
    %c0_i32_0 = arith.constant 0 : i32
    %c0_i32_1 = arith.constant 0 : i32
    return %c0_i32, %c0_i32_0 : i32, i32
  }
  func.func @transform_5(%arg0: i32) -> (i32, i32) {
    %c0_i32 = arith.constant 0 : i32
    %c0_i32_0 = arith.constant 0 : i32
    %c0_i32_1 = arith.constant 0 : i32
    return %c0_i32, %c0_i32_0 : i32, i32
  }
  func.func @transform_6(%arg0: i32) -> (i32, i32, i32) {
    %c0_i32 = arith.constant 0 : i32
    %c0_i32_0 = arith.constant 0 : i32
    %c0_i32_1 = arith.constant 0 : i32
    return %arg0, %c0_i32, %c0_i32_0 : i32, i32, i32
  }
}

</mosaic_0001>

<llo_original>
// kernel: tpu_custom_call.1
$region0: #{tpu_custom_call.1}
  #allocation0 [shape = 'u32[]', space=smem, size = 0x4, offset = 0x4, fixed_abs, tag = 'smem constant byte address 0x4 - core index']
  #allocation1 [shape = 'u32[144,128]{1,0:T(1,128)}', space=vmem, size = 0x12000, scoped, tag = 'internal scratch']
  %s0 = inlined_call_operand.vmem [shape: f32[2,4,256], index: 0, kind: input, shape index: {}]
  %s1 = inlined_call_operand.vmem [shape: bf16[384,4], index: 1, kind: input, shape index: {}]
  %s2 = inlined_call_operand.vmem [shape: bf16[128,16], index: 2, kind: input, shape index: {}]
  %s3 = inlined_call_operand.vmem [shape: bf16[4,4,4], index: 3, kind: input, shape index: {}]
  %s4 = inlined_call_operand.vmem [shape: bf16[128,4], index: 4, kind: input, shape index: {}]
  %s5 = inlined_call_operand.vmem [shape: f32[4,1], index: 5, kind: input, shape index: {}]
  %s6 = inlined_call_operand.hbm [shape: f32[2,4,256], index: 6, kind: output, shape index: {}]
  %s7 = sld [smem:[#allocation0]]
  $region57: #{tpu_custom_call.1} parent=0
    _
  %s9 = ssub.s32 1, %s7
  %s10 = scalar_select 0, %s9, %s7
  $region1: #{tpu_custom_call.1} parent=0
    #allocation2 [shape = 'u8[8192]{0}', space=vmem, size = 0x2000, scoped, tag = 'output window, operand 0']
    #allocation3 [shape = 's32[2]{0}', space=sflag, size = 0x8, scoped, tag = 'scoped memory for tpu_custom_call.1']
    %11 = vsyncpa [#allocation3], 0
    %s12 = scalar_lea.sflag [#allocation3], 1
    %13 = vsyncpa %s12, 0
    loop: start=0, step=1, limit=4
    $region2: #{tpu_custom_call.1} parent=1 // loop_pre_header
      _
    $region3: #{tpu_custom_call.1} parent=1 // loop_header
      %s15 = sphi 0, %s19
      %p16 = scmp.ge.s32.totalorder %s15, 4
      %s25 = sphi 0, %s27
      %s28 = sphi 0, %s25
      %s29 = sphi 0, %s28
      %s45 = sphi 0, %s29
      %s49 = sphi 0, %s49
      %s51 = sphi 0, %s49
      %s52 = sphi 0, %s51
      %s66 = sphi 0, %s52
      %s70 = sphi 0, %s70
      %s72 = sphi 0, %s70
      %s73 = sphi 0, %s72
      %s87 = sphi 0, %s73
      %s91 = sphi 0, %s91
      %s93 = sphi 0, %s91
      %s94 = sphi 0, %s93
      %s108 = sphi 0, %s94
      %s112 = sphi 0, %s112
      %s114 = sphi 0, %s112
      %s115 = sphi 0, %s114
      %s129 = sphi 0, %s115
      %s133 = sphi 0, %s133
      %s135 = sphi 0, %s133
      %s136 = sphi 0, %s135
      %s150 = sphi 0, %s136
      %s156 = sphi 0, %s158
      %s159 = sphi 0, %s156
      %s160 = sphi 0, %s159
      %s176 = sphi 0, %s160
    $region4: #{tpu_custom_call.1} parent=1 // loop_header_branch
      %18 = sbr.rel (%p16) target = $region8
    $region5: #{tpu_custom_call.1} parent=1 // loop_body
      %s20 = ssub.s32 %s15, 1
      %s21 = ssub.s32 %s15, 2
      %s22 = sadd.s32 %s15, 1
      %s23 = ssub.s32 %s15, %s22
      %p24 = scmp.eq.s32.totalorder %s23, 0
      %s26 = sadd.s32 %s25, 1
      %s27 = scalar_select %p24, %s25, %s26
      %p30 = pneg %p24
      %p31 = scmp.eq.s32.totalorder %s15, 1
      %p32 = por %p30, %p31
      %p33 = scmp.ne.s32.totalorder %s25, %s28
      %p34 = scmp.eq.s32.totalorder %s15, 0
      %p35 = por %p33, %p34
      %p36 = scmp.ne.s32.totalorder %s25, %s28
      %p37 = scmp.eq.s32.totalorder %s20, 1
      %p38 = por %p36, %p37
      %p39 = scmp.ne.s32.totalorder %s28, %s29
      %p40 = scmp.eq.s32.totalorder %s20, 0
      %p41 = por %p39, %p40
      %p42 = scmp.ne.s32.totalorder %s28, %s29
      %p43 = scmp.eq.s32.totalorder %s21, 1
      %p44 = por %p42, %p43
      %p46 = scmp.ne.s32.totalorder %s29, %s45
      %p47 = scmp.eq.s32.totalorder %s21, 0
      %p48 = por %p46, %p47
      %s50 = sadd.s32 %s49, 1
      %p53 = scmp.eq.s32.totalorder %s15, 1
      %p54 = scmp.ne.s32.totalorder %s49, %s51
      %p55 = scmp.eq.s32.totalorder %s15, 0
      %p56 = por %p54, %p55
      %p57 = scmp.ne.s32.totalorder %s49, %s51
      %p58 = scmp.eq.s32.totalorder %s20, 1
      %p59 = por %p57, %p58
      %p60 = scmp.ne.s32.totalorder %s51, %s52
      %p61 = scmp.eq.s32.totalorder %s20, 0
      %p62 = por %p60, %p61
      %p63 = scmp.ne.s32.totalorder %s51, %s52
      %p64 = scmp.eq.s32.totalorder %s21, 1
      %p65 = por %p63, %p64
      %p67 = scmp.ne.s32.totalorder %s52, %s66
      %p68 = scmp.eq.s32.totalorder %s21, 0
      %p69 = por %p67, %p68
      %s71 = sadd.s32 %s70, 1
      %p74 = scmp.eq.s32.totalorder %s15, 1
      %p75 = scmp.ne.s32.totalorder %s70, %s72
      %p76 = scmp.eq.s32.totalorder %s15, 0
      %p77 = por %p75, %p76
      %p78 = scmp.ne.s32.totalorder %s70, %s72
      %p79 = scmp.eq.s32.totalorder %s20, 1
      %p80 = por %p78, %p79
      %p81 = scmp.ne.s32.totalorder %s72, %s73
      %p82 = scmp.eq.s32.totalorder %s20, 0
      %p83 = por %p81, %p82
      %p84 = scmp.ne.s32.totalorder %s72, %s73
      %p85 = scmp.eq.s32.totalorder %s21, 1
      %p86 = por %p84, %p85
      %p88 = scmp.ne.s32.totalorder %s73, %s87
      %p89 = scmp.eq.s32.totalorder %s21, 0
      %p90 = por %p88, %p89
      %s92 = sadd.s32 %s91, 1
      %p95 = scmp.eq.s32.totalorder %s15, 1
      %p96 = scmp.ne.s32.totalorder %s91, %s93
      %p97 = scmp.eq.s32.totalorder %s15, 0
      %p98 = por %p96, %p97
      %p99 = scmp.ne.s32.totalorder %s91, %s93
      %p100 = scmp.eq.s32.totalorder %s20, 1
      %p101 = por %p99, %p100
      %p102 = scmp.ne.s32.totalorder %s93, %s94
      %p103 = scmp.eq.s32.totalorder %s20, 0
      %p104 = por %p102, %p103
      %p105 = scmp.ne.s32.totalorder %s93, %s94
      %p106 = scmp.eq.s32.totalorder %s21, 1
      %p107 = por %p105, %p106
      %p109 = scmp.ne.s32.totalorder %s94, %s108
      %p110 = scmp.eq.s32.totalorder %s21, 0
      %p111 = por %p109, %p110
      %s113 = sadd.s32 %s112, 1
      %p116 = scmp.eq.s32.totalorder %s15, 1
      %p117 = scmp.ne.s32.totalorder %s112, %s114
      %p118 = scmp.eq.s32.totalorder %s15, 0
      %p119 = por %p117, %p118
      %p120 = scmp.ne.s32.totalorder %s112, %s114
      %p121 = scmp.eq.s32.totalorder %s20, 1
      %p122 = por %p120, %p121
      %p123 = scmp.ne.s32.totalorder %s114, %s115
      %p124 = scmp.eq.s32.totalorder %s20, 0
      %p125 = por %p123, %p124
      %p126 = scmp.ne.s32.totalorder %s114, %s115
      %p127 = scmp.eq.s32.totalorder %s21, 1
      %p128 = por %p126, %p127
      %p130 = scmp.ne.s32.totalorder %s115, %s129
      %p131 = scmp.eq.s32.totalorder %s21, 0
      %p132 = por %p130, %p131
      %s134 = sadd.s32 %s133, 1
      %p137 = scmp.eq.s32.totalorder %s15, 1
      %p138 = scmp.ne.s32.totalorder %s133, %s135
      %p139 = scmp.eq.s32.totalorder %s15, 0
      %p140 = por %p138, %p139
      %p141 = scmp.ne.s32.totalorder %s133, %s135
      %p142 = scmp.eq.s32.totalorder %s20, 1
      %p143 = por %p141, %p142
      %p144 = scmp.ne.s32.totalorder %s135, %s136
      %p145 = scmp.eq.s32.totalorder %s20, 0
      %p146 = por %p144, %p145
      %p147 = scmp.ne.s32.totalorder %s135, %s136
      %p148 = scmp.eq.s32.totalorder %s21, 1
      %p149 = por %p147, %p148
      %p151 = scmp.ne.s32.totalorder %s136, %s150
      %p152 = scmp.eq.s32.totalorder %s21, 0
      %p153 = por %p151, %p152
      %s154 = ssub.s32 %s15, %s22
      %p155 = scmp.eq.s32.totalorder %s154, 0
      %s157 = sadd.s32 %s156, 1
      %s158 = scalar_select %p155, %s156, %s157
      %p161 = pneg %p155
      %p162 = scmp.eq.s32.totalorder %s15, 1
      %p163 = por %p161, %p162
      %p164 = scmp.ne.s32.totalorder %s156, %s159
      %p165 = scmp.eq.s32.totalorder %s15, 0
      %p166 = por %p164, %p165
      %p167 = scmp.ne.s32.totalorder %s156, %s159
      %p168 = scmp.eq.s32.totalorder %s20, 1
      %p169 = por %p167, %p168
      %p170 = scmp.ne.s32.totalorder %s159, %s160
      %p171 = scmp.eq.s32.totalorder %s20, 0
      %p172 = por %p170, %p171
      %p173 = scmp.ne.s32.totalorder %s159, %s160
      %p174 = scmp.eq.s32.totalorder %s21, 1
      %p175 = por %p173, %p174
      %p177 = scmp.ne.s32.totalorder %s160, %s176
      %p178 = scmp.eq.s32.totalorder %s21, 0
      %p179 = por %p177, %p178
      %p180 = scmp.le.s32.totalorder 1, %s15
      %p181 = scmp.lt.s32.totalorder %s15, 3
      %p182 = pnand %p180, %p181
      %p183 = pneg %p182
      // Predicated region
      $region9: #{tpu_custom_call.1} parent=5 // pred_check
        _
      $region10: #{tpu_custom_call.1} parent=5 // pred_check_branch
        %185 = sbr.rel (%p182) target = $region12
      $region11: #{tpu_custom_call.1} parent=5 // pred_region
        %s186 = ssub.s32 %s15, 1
        // Predicated region
        $region13: #{tpu_custom_call.1} parent=11 // pred_check
          %p187 = pneg %p62
        $region14: #{tpu_custom_call.1} parent=11 // pred_check_branch
          %189 = sbr.rel (%p187) target = $region16
        $region15: #{tpu_custom_call.1} parent=11 // pred_region
          _
        $region16: #{tpu_custom_call.1} parent=11 // pred_fallthru
          _
        // Predicated region
        $region17: #{tpu_custom_call.1} parent=11 // pred_check
          %p190 = pneg %p83
        $region18: #{tpu_custom_call.1} parent=11 // pred_check_branch
          %192 = sbr.rel (%p190) target = $region20
        $region19: #{tpu_custom_call.1} parent=11 // pred_region
          _
        $region20: #{tpu_custom_call.1} parent=11 // pred_fallthru
          _
        // Predicated region
        $region21: #{tpu_custom_call.1} parent=11 // pred_check
          %p193 = pneg %p104
        $region22: #{tpu_custom_call.1} parent=11 // pred_check_branch
          %195 = sbr.rel (%p193) target = $region24
        $region23: #{tpu_custom_call.1} parent=11 // pred_region
          _
        $region24: #{tpu_custom_call.1} parent=11 // pred_fallthru
          _
        // Predicated region
        $region25: #{tpu_custom_call.1} parent=11 // pred_check
          %p196 = pneg %p125
        $region26: #{tpu_custom_call.1} parent=11 // pred_check_branch
          %198 = sbr.rel (%p196) target = $region28
        $region27: #{tpu_custom_call.1} parent=11 // pred_region
          _
        $region28: #{tpu_custom_call.1} parent=11 // pred_fallthru
          _
        // Predicated region
        $region29: #{tpu_custom_call.1} parent=11 // pred_check
          %p199 = pneg %p146
        $region30: #{tpu_custom_call.1} parent=11 // pred_check_branch
          %201 = sbr.rel (%p199) target = $region32
        $region31: #{tpu_custom_call.1} parent=11 // pred_region
          _
        $region32: #{tpu_custom_call.1} parent=11 // pred_fallthru
          _
      $region12: #{tpu_custom_call.1} parent=5 // pred_fallthru
        _
      %p202 = scmp.lt.s32.totalorder %s15, 2
      // Predicated region
      $region33: #{tpu_custom_call.1} parent=5 // pred_check
        %p203 = pneg %p202
      $region34: #{tpu_custom_call.1} parent=5 // pred_check_branch
        %205 = sbr.rel (%p203) target = $region36
      $region35: #{tpu_custom_call.1} parent=5 // pred_region
        // Predicated region
        $region37: #{tpu_custom_call.1} parent=35 // pred_check
          %p206 = pneg %p35
        $region38: #{tpu_custom_call.1} parent=35 // pred_check_branch
          %208 = sbr.rel (%p206) target = $region40
        $region39: #{tpu_custom_call.1} parent=35 // pred_region
          %p209 = scmp.lt.s32.totalorder %s15, 1
          %s210 = scalar_select %p209, %s15, 1
          %s211 = smul.addr %s210, 2
          %s212 = smul.addr %s211, 4
          %s213 = scalar_lea.vmem %s0, %s212
        $region40: #{tpu_custom_call.1} parent=35 // pred_fallthru
          _
      $region36: #{tpu_custom_call.1} parent=5 // pred_fallthru
        _
      %p214 = scmp.le.s32.totalorder 1, %s15
      %p215 = scmp.lt.s32.totalorder %s15, 3
      %p216 = pnand %p214, %p215
      %p217 = pneg %p216
      // Predicated region
      $region41: #{tpu_custom_call.1} parent=5 // pred_check
        _
      $region42: #{tpu_custom_call.1} parent=5 // pred_check_branch
        %219 = sbr.rel (%p216) target = $region44
      $region43: #{tpu_custom_call.1} parent=5 // pred_region
        %s220 = ssub.s32 %s15, 1
        %p221 = scmp.lt.s32.totalorder %s20, 1
        %s222 = scalar_select %p221, %s20, 1
        %s223 = smul.addr %s222, 2
        %s224 = smul.addr %s223, 4
        %s225 = scalar_lea.vmem %s0, %s224
        %p226 = pneg %p41
        %p227 = pneg %p38
        %p228 = pneg %p62
        %p229 = pneg %p59
        %p230 = pneg %p83
        %p231 = pneg %p80
        %p232 = pneg %p104
        %p233 = pneg %p101
        %p234 = pneg %p125
        %p235 = pneg %p122
        %p236 = pneg %p146
        %p237 = pneg %p143
        %p238 = pneg %p172
        %p239 = pneg %p169
        %s240 = sand.u32 %s159, 1
        %s241 = scalar_lea.sflag [#allocation3], %s240
        %s242 = sand.u32 %s159, 1
        %s243 = smul.addr %s242, 8
        %s244 = scalar_lea.vmem [#allocation2], %s243
        %p245 = scmp.lt.s32.totalorder %s20, 1
        %s246 = scalar_select %p245, %s20, 1
        %s247 = smul.addr %s246, 2
        %s248 = smul.addr %s247, 4
        %s249 = scalar_lea.vmem %s0, %s248
        %v251 = vld [vmem:[%s249] sm:$0xff]
        %v252 = vmul.f32 %v251, %v251
        %v254 = vcombine.high %v252, %v252
        %vm256 = vcmask 1043456
        %v257 = vsel %vm256, %v252, 0.0
        %v258 = vrot.slane %v257, 4
        %v259 = vadd.f32 %v257, %v258
        %v260 = vrot.slane %v259, 2
        %v261 = vadd.f32 %v259, %v260
        %v262 = vrot.slane %v261, 1
        %v263 = vadd.f32 %v261, %v262
        %v264 = vsel %vm256, %v254, 0.0
        %v265 = vrot.slane %v264, 4
        %v266 = vadd.f32 %v264, %v265
        %v267 = vrot.slane %v266, 2
        %v268 = vadd.f32 %v266, %v267
        %v269 = vrot.slane %v268, 1
        %v270 = vadd.f32 %v268, %v269
        %v271 = vmax.f32 %v263, 1e-24
        %v272 = vmax.f32 %v270, 1e-24
        %v273 = vrsqrt.pop %v271
        %v274 = vrsqrt.pop %v272
        %v277 = vcombine.low %v273, %v274
        %v279 = vmul.f32 %v251, %v277
        %v281 = vcombine.high %v279, %v279
        %v283 = vpack.c.bf16 %v279, %v279
        %v284 = vpack.c.bf16 %v281, %v281
        %v285 = vld [vmem:[%s1] sm:$0xf]
        %v286 = vld [vmem:[%s1 + $0x4] sm:$0xf]
        %v287 = vld [vmem:[%s1 + $0x8] sm:$0xf]
        %v288 = vld [vmem:[%s1 + $0xc] sm:$0xf]
        %v289 = vld [vmem:[%s1 + $0x10] sm:$0xf]
        %v290 = vld [vmem:[%s1 + $0x14] sm:$0xf]
        %v291 = vld [vmem:[%s1 + $0x18] sm:$0xf]
        %v292 = vld [vmem:[%s1 + $0x1c] sm:$0xf]
        %v293 = vld [vmem:[%s1 + $0x20] sm:$0xf]
        %v294 = vld [vmem:[%s1 + $0x24] sm:$0xf]
        %v295 = vld [vmem:[%s1 + $0x28] sm:$0xf]
        %v296 = vld [vmem:[%s1 + $0x2c] sm:$0xf]
        %v297 = vld [vmem:[%s1 + $0x30] sm:$0xf]
        %v298 = vld [vmem:[%s1 + $0x34] sm:$0xf]
        %v299 = vld [vmem:[%s1 + $0x38] sm:$0xf]
        %v300 = vld [vmem:[%s1 + $0x3c] sm:$0xf]
        %v301 = vld [vmem:[%s1 + $0x40] sm:$0xf]
        %v302 = vld [vmem:[%s1 + $0x44] sm:$0xf]
        %v303 = vld [vmem:[%s1 + $0x48] sm:$0xf]
        %v304 = vld [vmem:[%s1 + $0x4c] sm:$0xf]
        %v305 = vld [vmem:[%s1 + $0x50] sm:$0xf]
        %v306 = vld [vmem:[%s1 + $0x54] sm:$0xf]
        %v307 = vld [vmem:[%s1 + $0x58] sm:$0xf]
        %v308 = vld [vmem:[%s1 + $0x5c] sm:$0xf]
        %v309 = vld [vmem:[%s1 + $0x60] sm:$0xf]
        %v310 = vld [vmem:[%s1 + $0x64] sm:$0xf]
        %v311 = vld [vmem:[%s1 + $0x68] sm:$0xf]
        %v312 = vld [vmem:[%s1 + $0x6c] sm:$0xf]
        %v313 = vld [vmem:[%s1 + $0x70] sm:$0xf]
        %v314 = vld [vmem:[%s1 + $0x74] sm:$0xf]
        %v315 = vld [vmem:[%s1 + $0x78] sm:$0xf]
        %v316 = vld [vmem:[%s1 + $0x7c] sm:$0xf]
        %v317 = vld [vmem:[%s1 + $0x80] sm:$0xf]
        %v318 = vld [vmem:[%s1 + $0x84] sm:$0xf]
        %v319 = vld [vmem:[%s1 + $0x88] sm:$0xf]
        %v320 = vld [vmem:[%s1 + $0x8c] sm:$0xf]
        %v321 = vld [vmem:[%s1 + $0x90] sm:$0xf]
        %v322 = vld [vmem:[%s1 + $0x94] sm:$0xf]
        %v323 = vld [vmem:[%s1 + $0x98] sm:$0xf]
        %v324 = vld [vmem:[%s1 + $0x9c] sm:$0xf]
        %v325 = vld [vmem:[%s1 + $0xa0] sm:$0xf]
        %v326 = vld [vmem:[%s1 + $0xa4] sm:$0xf]
        %v327 = vld [vmem:[%s1 + $0xa8] sm:$0xf]
        %v328 = vld [vmem:[%s1 + $0xac] sm:$0xf]
        %v329 = vld [vmem:[%s1 + $0xb0] sm:$0xf]
        %v330 = vld [vmem:[%s1 + $0xb4] sm:$0xf]
        %v331 = vld [vmem:[%s1 + $0xb8] sm:$0xf]
        %v332 = vld [vmem:[%s1 + $0xbc] sm:$0xf]
        %v381 = vunpack.c.l.b16 %v285
        %v382 = vunpack.c.l.b16 %v286
        %v383 = vunpack.c.l.b16 %v287
        %v384 = vunpack.c.l.b16 %v288
        %v385 = vunpack.c.l.b16 %v289
        %v386 = vunpack.c.l.b16 %v290
        %v387 = vunpack.c.l.b16 %v291
        %v388 = vunpack.c.l.b16 %v292
        %v389 = vunpack.c.l.b16 %v293
        %v390 = vunpack.c.l.b16 %v294
        %v391 = vunpack.c.l.b16 %v295
        %v392 = vunpack.c.l.b16 %v296
        %v393 = vunpack.c.l.b16 %v297
        %v394 = vunpack.c.l.b16 %v298
        %v395 = vunpack.c.l.b16 %v299
        %v396 = vunpack.c.l.b16 %v300
        %v397 = vunpack.c.l.b16 %v301
        %v398 = vunpack.c.l.b16 %v302
        %v399 = vunpack.c.l.b16 %v303
        %v400 = vunpack.c.l.b16 %v304
        %v401 = vunpack.c.l.b16 %v305
        %v402 = vunpack.c.l.b16 %v306
        %v403 = vunpack.c.l.b16 %v307
        %v404 = vunpack.c.l.b16 %v308
        %v405 = vunpack.c.l.b16 %v309
        %v406 = vunpack.c.l.b16 %v310
        %v407 = vunpack.c.l.b16 %v311
        %v408 = vunpack.c.l.b16 %v312
        %v409 = vunpack.c.l.b16 %v313
        %v410 = vunpack.c.l.b16 %v314
        %v411 = vunpack.c.l.b16 %v315
        %v412 = vunpack.c.l.b16 %v316
        %v413 = vunpack.c.l.b16 %v317
        %v414 = vunpack.c.l.b16 %v318
        %v415 = vunpack.c.l.b16 %v319
        %v416 = vunpack.c.l.b16 %v320
        %v417 = vunpack.c.l.b16 %v321
        %v418 = vunpack.c.l.b16 %v322
        %v419 = vunpack.c.l.b16 %v323
        %v420 = vunpack.c.l.b16 %v324
        %v421 = vunpack.c.l.b16 %v325
        %v422 = vunpack.c.l.b16 %v326
        %v423 = vunpack.c.l.b16 %v327
        %v424 = vunpack.c.l.b16 %v328
        %v425 = vunpack.c.l.b16 %v329
        %v426 = vunpack.c.l.b16 %v330
        %v427 = vunpack.c.l.b16 %v331
        %v428 = vunpack.c.l.b16 %v332
        %v429 = vpack.c.b16 %v382, %v381
        %v430 = vpack.c.b16 %v384, %v383
        %v431 = vpack.c.b16 %v386, %v385
        %v432 = vpack.c.b16 %v388, %v387
        %v433 = vpack.c.b16 %v390, %v389
        %v434 = vpack.c.b16 %v392, %v391
        %v435 = vpack.c.b16 %v394, %v393
        %v436 = vpack.c.b16 %v396, %v395
        %v437 = vpack.c.b16 %v398, %v397
        %v438 = vpack.c.b16 %v400, %v399
        %v439 = vpack.c.b16 %v402, %v401
        %v440 = vpack.c.b16 %v404, %v403
        %v441 = vpack.c.b16 %v406, %v405
        %v442 = vpack.c.b16 %v408, %v407
        %v443 = vpack.c.b16 %v410, %v409
        %v444 = vpack.c.b16 %v412, %v411
        %v445 = vpack.c.b16 %v414, %v413
        %v446 = vpack.c.b16 %v416, %v415
        %v447 = vpack.c.b16 %v418, %v417
        %v448 = vpack.c.b16 %v420, %v419
        %v449 = vpack.c.b16 %v422, %v421
        %v450 = vpack.c.b16 %v424, %v423
        %v451 = vpack.c.b16 %v426, %v425
        %v452 = vpack.c.b16 %v428, %v427
        %vm453 = vcmask 31744
        %v455 = vsel %vm453, %v429, 0
        %v458 = vsel %vm453, %v430, 0
        %v461 = vsel %vm453, %v431, 0
        %v464 = vsel %vm453, %v432, 0
        %v467 = vsel %vm453, %v433, 0
        %v470 = vsel %vm453, %v434, 0
        %v473 = vsel %vm453, %v435, 0
        %v476 = vsel %vm453, %v436, 0
        %v479 = vsel %vm453, %v437, 0
        %v482 = vsel %vm453, %v438, 0
        %v485 = vsel %vm453, %v439, 0
        %v488 = vsel %vm453, %v440, 0
        %v491 = vsel %vm453, %v441, 0
        %v494 = vsel %vm453, %v442, 0
        %v497 = vsel %vm453, %v443, 0
        %v500 = vsel %vm453, %v444, 0
        %v503 = vsel %vm453, %v445, 0
        %v506 = vsel %vm453, %v446, 0
        %v509 = vsel %vm453, %v447, 0
        %v512 = vsel %vm453, %v448, 0
        %v515 = vsel %vm453, %v449, 0
        %v518 = vsel %vm453, %v450, 0
        %v521 = vsel %vm453, %v451, 0
        %v524 = vsel %vm453, %v452, 0
        %vm526 = vcmask 1041408
        %v528 = vsel %vm526, %v283, 0
        %v531 = vsel %vm526, %v284, 0
        %533 = vmatprep.subr.bf16.mxu0 %v531
        %534 = vmatpush1.bf16.msra.mxu0 %v528
        %535 = vmatprep.subr.bf16.mxu0 0
        %536 = vmatpush1.bf16.msra.mxu0 0
        %537 = vmatprep.subr.bf16.mxu0 0
        %538 = vmatpush1.bf16.msra.mxu0 0
        %539 = vmatprep.subr.bf16.mxu0 0
        %540 = vmatpush1.bf16.msra.mxu0 0
        %541 = vmatprep.subr.bf16.mxu0 0
        %542 = vmatpush1.bf16.msra.mxu0 0
        %543 = vmatprep.subr.bf16.mxu0 0
        %544 = vmatpush1.bf16.msra.mxu0 0
        %545 = vmatprep.subr.bf16.mxu0 0
        %546 = vmatpush1.bf16.msra.mxu0 0
        %547 = vmatprep.subr.bf16.mxu0 0
        %548 = vmatpush1.bf16.msra.mxu0 0
        %549 = vmatprep.subr.bf16.mxu0 0
        %550 = vmatpush1.bf16.msra.mxu0 0
        %551 = vmatprep.subr.bf16.mxu0 0
        %552 = vmatpush1.bf16.msra.mxu0 0
        %553 = vmatprep.subr.bf16.mxu0 0
        %554 = vmatpush1.bf16.msra.mxu0 0
        %555 = vmatprep.subr.bf16.mxu0 0
        %556 = vmatpush1.bf16.msra.mxu0 0
        %557 = vmatprep.subr.bf16.mxu0 0
        %558 = vmatpush1.bf16.msra.mxu0 0
        %559 = vmatprep.subr.bf16.mxu0 0
        %560 = vmatpush1.bf16.msra.mxu0 0
        %561 = vmatprep.subr.bf16.mxu0 0
        %562 = vmatpush1.bf16.msra.mxu0 0
        %563 = vmatprep.subr.bf16.mxu0 0
        %564 = vmatpush1.bf16.msra.mxu0 0
        %565 = vmatprep.mubr.bf16.mxu0 0
        %566 = vmatmul.mubr.bf16.gmra.mrb[0].mxu0 %v455
        %v567 = vpop.f32.mrb[0].mxu0
        %v568 = vadd.f32 0.0, %v567
        %v569 = vpop.f32.mrb[0].mxu0
        %v570 = vadd.f32 0.0, %v569
        %v571 = vpop.f32.mrb[0].mxu0
        %v572 = vadd.f32 0.0, %v571
        %v573 = vpop.f32.mrb[0].mxu0
        %v574 = vadd.f32 0.0, %v573
        %575 = vmatprep.mubr.bf16.mxu0 0
        %576 = vmatmul.mubr.bf16.gmra.mrb[0].mxu0 %v458
        %v577 = vpop.f32.mrb[0].mxu0
        %v578 = vadd.f32 0.0, %v577
        %v579 = vpop.f32.mrb[0].mxu0
        %v580 = vadd.f32 0.0, %v579
        %v581 = vpop.f32.mrb[0].mxu0
        %v582 = vadd.f32 0.0, %v581
        %v583 = vpop.f32.mrb[0].mxu0
        %v584 = vadd.f32 0.0, %v583
        %585 = vmatprep.mubr.bf16.mxu0 0
        %586 = vmatmul.mubr.bf16.gmra.mrb[0].mxu0 %v461
        %v587 = vpop.f32.mrb[0].mxu0
        %v588 = vadd.f32 0.0, %v587
        %v589 = vpop.f32.mrb[0].mxu0
        %v590 = vadd.f32 0.0, %v589
        %v591 = vpop.f32.mrb[0].mxu0
        %v592 = vadd.f32 0.0, %v591
        %v593 = vpop.f32.mrb[0].mxu0
        %v594 = vadd.f32 0.0, %v593
        %595 = vmatprep.mubr.bf16.mxu0 0
        %596 = vmatmul.mubr.bf16.gmra.mrb[0].mxu0 %v464
        %v597 = vpop.f32.mrb[0].mxu0
        %v598 = vadd.f32 0.0, %v597
        %v599 = vpop.f32.mrb[0].mxu0
        %v600 = vadd.f32 0.0, %v599
        %v601 = vpop.f32.mrb[0].mxu0
        %v602 = vadd.f32 0.0, %v601
        %v603 = vpop.f32.mrb[0].mxu0
        %v604 = vadd.f32 0.0, %v603
        %605 = vmatprep.mubr.bf16.mxu0 0
        %606 = vmatmul.mubr.bf16.gmra.mrb[0].mxu0 %v467
        %v607 = vpop.f32.mrb[0].mxu0
        %v608 = vadd.f32 0.0, %v607
        %v609 = vpop.f32.mrb[0].mxu0
        %v610 = vadd.f32 0.0, %v609
        %v611 = vpop.f32.mrb[0].mxu0
        %v612 = vadd.f32 0.0, %v611
        %v613 = vpop.f32.mrb[0].mxu0
        %v614 = vadd.f32 0.0, %v613
        %615 = vmatprep.mubr.bf16.mxu0 0
        %616 = vmatmul.mubr.bf16.gmra.mrb[0].mxu0 %v470
        %v617 = vpop.f32.mrb[0].mxu0
        %v618 = vadd.f32 0.0, %v617
        %v619 = vpop.f32.mrb[0].mxu0
        %v620 = vadd.f32 0.0, %v619
        %v621 = vpop.f32.mrb[0].mxu0
        %v622 = vadd.f32 0.0, %v621
        %v623 = vpop.f32.mrb[0].mxu0
        %v624 = vadd.f32 0.0, %v623
        %625 = vmatprep.mubr.bf16.mxu0 0
        %626 = vmatmul.mubr.bf16.gmra.mrb[0].mxu0 %v473
        %v627 = vpop.f32.mrb[0].mxu0
        %v628 = vadd.f32 0.0, %v627
        %v629 = vpop.f32.mrb[0].mxu0
        %v630 = vadd.f32 0.0, %v629
        %v631 = vpop.f32.mrb[0].mxu0
        %v632 = vadd.f32 0.0, %v631
        %v633 = vpop.f32.mrb[0].mxu0
        %v634 = vadd.f32 0.0, %v633
        %635 = vmatprep.mubr.bf16.mxu0 0
        %636 = vmatmul.mubr.bf16.gmra.mrb[0].mxu0 %v476
        %v637 = vpop.f32.mrb[0].mxu0
        %v638 = vadd.f32 0.0, %v637
        %v639 = vpop.f32.mrb[0].mxu0
        %v640 = vadd.f32 0.0, %v639
        %v641 = vpop.f32.mrb[0].mxu0
        %v642 = vadd.f32 0.0, %v641
        %v643 = vpop.f32.mrb[0].mxu0
        %v644 = vadd.f32 0.0, %v643
        %645 = vmatprep.mubr.bf16.mxu0 0
        %646 = vmatmul.mubr.bf16.gmra.mrb[0].mxu0 %v479
        %v647 = vpop.f32.mrb[0].mxu0
        %v648 = vadd.f32 0.0, %v647
        %v649 = vpop.f32.mrb[0].mxu0
        %v650 = vadd.f32 0.0, %v649
        %v651 = vpop.f32.mrb[0].mxu0
        %v652 = vadd.f32 0.0, %v651
        %v653 = vpop.f32.mrb[0].mxu0
        %v654 = vadd.f32 0.0, %v653
        %655 = vmatprep.mubr.bf16.mxu0 0
        %656 = vmatmul.mubr.bf16.gmra.mrb[0].mxu0 %v482
        %v657 = vpop.f32.mrb[0].mxu0
        %v658 = vadd.f32 0.0, %v657
        %v659 = vpop.f32.mrb[0].mxu0
        %v660 = vadd.f32 0.0, %v659
        %v661 = vpop.f32.mrb[0].mxu0
        %v662 = vadd.f32 0.0, %v661
        %v663 = vpop.f32.mrb[0].mxu0
        %v664 = vadd.f32 0.0, %v663
        %665 = vmatprep.mubr.bf16.mxu0 0
        %666 = vmatmul.mubr.bf16.gmra.mrb[0].mxu0 %v485
        %v667 = vpop.f32.mrb[0].mxu0
        %v668 = vadd.f32 0.0, %v667
        %v669 = vpop.f32.mrb[0].mxu0
        %v670 = vadd.f32 0.0, %v669
        %v671 = vpop.f32.mrb[0].mxu0
        %v672 = vadd.f32 0.0, %v671
        %v673 = vpop.f32.mrb[0].mxu0
        %v674 = vadd.f32 0.0, %v673
        %675 = vmatprep.mubr.bf16.mxu0 0
        %676 = vmatmul.mubr.bf16.gmra.mrb[0].mxu0 %v488
        %v677 = vpop.f32.mrb[0].mxu0
        %v678 = vadd.f32 0.0, %v677
        %v679 = vpop.f32.mrb[0].mxu0
        %v680 = vadd.f32 0.0, %v679
        %v681 = vpop.f32.mrb[0].mxu0
        %v682 = vadd.f32 0.0, %v681
        %v683 = vpop.f32.mrb[0].mxu0
        %v684 = vadd.f32 0.0, %v683
        %685 = vmatprep.mubr.bf16.mxu0 0
        %686 = vmatmul.mubr.bf16.gmra.mrb[0].mxu0 %v491
        %v687 = vpop.f32.mrb[0].mxu0
        %v688 = vadd.f32 0.0, %v687
        %v689 = vpop.f32.mrb[0].mxu0
        %v690 = vadd.f32 0.0, %v689
        %v691 = vpop.f32.mrb[0].mxu0
        %v692 = vadd.f32 0.0, %v691
        %v693 = vpop.f32.mrb[0].mxu0
        %v694 = vadd.f32 0.0, %v693
        %695 = vmatprep.mubr.bf16.mxu0 0
        %696 = vmatmul.mubr.bf16.gmra.mrb[0].mxu0 %v494
        %v697 = vpop.f32.mrb[0].mxu0
        %v698 = vadd.f32 0.0, %v697
        %v699 = vpop.f32.mrb[0].mxu0
        %v700 = vadd.f32 0.0, %v699
        %v701 = vpop.f32.mrb[0].mxu0
        %v702 = vadd.f32 0.0, %v701
        %v703 = vpop.f32.mrb[0].mxu0
        %v704 = vadd.f32 0.0, %v703
        %705 = vmatprep.mubr.bf16.mxu0 0
        %706 = vmatmul.mubr.bf16.gmra.mrb[0].mxu0 %v497
        %v707 = vpop.f32.mrb[0].mxu0
        %v708 = vadd.f32 0.0, %v707
        %v709 = vpop.f32.mrb[0].mxu0
        %v710 = vadd.f32 0.0, %v709
        %v711 = vpop.f32.mrb[0].mxu0
        %v712 = vadd.f32 0.0, %v711
        %v713 = vpop.f32.mrb[0].mxu0
        %v714 = vadd.f32 0.0, %v713
        %715 = vmatprep.mubr.bf16.mxu0 0
        %716 = vmatmul.mubr.bf16.gmra.mrb[0].mxu0 %v500
        %v717 = vpop.f32.mrb[0].mxu0
        %v718 = vadd.f32 0.0, %v717
        %v719 = vpop.f32.mrb[0].mxu0
        %v720 = vadd.f32 0.0, %v719
        %v721 = vpop.f32.mrb[0].mxu0
        %v722 = vadd.f32 0.0, %v721
        %v723 = vpop.f32.mrb[0].mxu0
        %v724 = vadd.f32 0.0, %v723
        %725 = vmatprep.mubr.bf16.mxu0 0
        %726 = vmatmul.mubr.bf16.gmra.mrb[0].mxu0 %v503
        %v727 = vpop.f32.mrb[0].mxu0
        %v728 = vadd.f32 0.0, %v727
        %v729 = vpop.f32.mrb[0].mxu0
        %v730 = vadd.f32 0.0, %v729
        %v731 = vpop.f32.mrb[0].mxu0
        %v732 = vadd.f32 0.0, %v731
        %v733 = vpop.f32.mrb[0].mxu0
        %v734 = vadd.f32 0.0, %v733
        %735 = vmatprep.mubr.bf16.mxu0 0
        %736 = vmatmul.mubr.bf16.gmra.mrb[0].mxu0 %v506
        %v737 = vpop.f32.mrb[0].mxu0
        %v738 = vadd.f32 0.0, %v737
        %v739 = vpop.f32.mrb[0].mxu0
        %v740 = vadd.f32 0.0, %v739
        %v741 = vpop.f32.mrb[0].mxu0
        %v742 = vadd.f32 0.0, %v741
        %v743 = vpop.f32.mrb[0].mxu0
        %v744 = vadd.f32 0.0, %v743
        %745 = vmatprep.mubr.bf16.mxu0 0
        %746 = vmatmul.mubr.bf16.gmra.mrb[0].mxu0 %v509
        %v747 = vpop.f32.mrb[0].mxu0
        %v748 = vadd.f32 0.0, %v747
        %v749 = vpop.f32.mrb[0].mxu0
        %v750 = vadd.f32 0.0, %v749
        %v751 = vpop.f32.mrb[0].mxu0
        %v752 = vadd.f32 0.0, %v751
        %v753 = vpop.f32.mrb[0].mxu0
        %v754 = vadd.f32 0.0, %v753
        %755 = vmatprep.mubr.bf16.mxu0 0
        %756 = vmatmul.mubr.bf16.gmra.mrb[0].mxu0 %v512
        %v757 = vpop.f32.mrb[0].mxu0
        %v758 = vadd.f32 0.0, %v757
        %v759 = vpop.f32.mrb[0].mxu0
        %v760 = vadd.f32 0.0, %v759
        %v761 = vpop.f32.mrb[0].mxu0
        %v762 = vadd.f32 0.0, %v761
        %v763 = vpop.f32.mrb[0].mxu0
        %v764 = vadd.f32 0.0, %v763
        %765 = vmatprep.mubr.bf16.mxu0 0
        %766 = vmatmul.mubr.bf16.gmra.mrb[0].mxu0 %v515
        %v767 = vpop.f32.mrb[0].mxu0
        %v768 = vadd.f32 0.0, %v767
        %v769 = vpop.f32.mrb[0].mxu0
        %v770 = vadd.f32 0.0, %v769
        %v771 = vpop.f32.mrb[0].mxu0
        %v772 = vadd.f32 0.0, %v771
        %v773 = vpop.f32.mrb[0].mxu0
        %v774 = vadd.f32 0.0, %v773
        %775 = vmatprep.mubr.bf16.mxu0 0
        %776 = vmatmul.mubr.bf16.gmra.mrb[0].mxu0 %v518
        %v777 = vpop.f32.mrb[0].mxu0
        %v778 = vadd.f32 0.0, %v777
        %v779 = vpop.f32.mrb[0].mxu0
        %v780 = vadd.f32 0.0, %v779
        %v781 = vpop.f32.mrb[0].mxu0
        %v782 = vadd.f32 0.0, %v781
        %v783 = vpop.f32.mrb[0].mxu0
        %v784 = vadd.f32 0.0, %v783
        %785 = vmatprep.mubr.bf16.mxu0 0
        %786 = vmatmul.mubr.bf16.gmra.mrb[0].mxu0 %v521
        %v787 = vpop.f32.mrb[0].mxu0
        %v788 = vadd.f32 0.0, %v787
        %v789 = vpop.f32.mrb[0].mxu0
        %v790 = vadd.f32 0.0, %v789
        %v791 = vpop.f32.mrb[0].mxu0
        %v792 = vadd.f32 0.0, %v791
        %v793 = vpop.f32.mrb[0].mxu0
        %v794 = vadd.f32 0.0, %v793
        %795 = vmatprep.mubr.bf16.mxu0 0
        %796 = vmatmul.mubr.bf16.gmra.mrb[0].mxu0 %v524
        %v797 = vpop.f32.mrb[0].mxu0
        %v798 = vadd.f32 0.0, %v797
        %v799 = vpop.f32.mrb[0].mxu0
        %v800 = vadd.f32 0.0, %v799
        %v801 = vpop.f32.mrb[0].mxu0
        %v802 = vadd.f32 0.0, %v801
        %v803 = vpop.f32.mrb[0].mxu0
        %v804 = vadd.f32 0.0, %v803
        %805 = vdwg.mxu0
        %806 = vxpose.xlu0.b32.start [1/16] %v568, 128
        %807 = vxpose.xlu0.b32.cont [2/16] %v572, 128
        %808 = vxpose.xlu0.b32.cont [3/16] %v578, 128
        %809 = vxpose.xlu0.b32.cont [4/16] %v582, 128
        %810 = vxpose.xlu0.b32.cont [5/16] %v588, 128
        %811 = vxpose.xlu0.b32.cont [6/16] %v592, 128
        %812 = vxpose.xlu0.b32.cont [7/16] %v598, 128
        %813 = vxpose.xlu0.b32.cont [8/16] %v602, 128
        %814 = vxpose.xlu0.b32.cont [9/16] %v608, 128
        %815 = vxpose.xlu0.b32.cont [10/16] %v612, 128
        %816 = vxpose.xlu0.b32.cont [11/16] %v618, 128
        %817 = vxpose.xlu0.b32.cont [12/16] %v622, 128
        %818 = vxpose.xlu0.b32.cont [13/16] %v628, 128
        %819 = vxpose.xlu0.b32.cont [14/16] %v632, 128
        %820 = vxpose.xlu0.b32.cont [15/16] %v638, 128
        %821 = vxpose.xlu0.b32.end [16/16] %v642, 128
        %v822 = vpop.trf.xlu0
        %v823 = vpop.trf.xlu0
        %v824 = vpop.trf.xlu0
        %v825 = vpop.trf.xlu0
        %v826 = vpop.trf.xlu0
        %v827 = vpop.trf.xlu0
        %v828 = vpop.trf.xlu0
        %v829 = vpop.trf.xlu0
        %v830 = vpop.trf.xlu0
        %v831 = vpop.trf.xlu0
        %v832 = vpop.trf.xlu0
        %v833 = vpop.trf.xlu0
        %v834 = vpop.trf.xlu0
        %v835 = vpop.trf.xlu0
        %v836 = vpop.trf.xlu0
        %v837 = vpop.trf.xlu0
        %838 = vxpose.xlu0.b32.start [1/16] %v570, 128
        %839 = vxpose.xlu0.b32.cont [2/16] %v574, 128
        %840 = vxpose.xlu0.b32.cont [3/16] %v580, 128
        %841 = vxpose.xlu0.b32.cont [4/16] %v584, 128
        %842 = vxpose.xlu0.b32.cont [5/16] %v590, 128
        %843 = vxpose.xlu0.b32.cont [6/16] %v594, 128
        %844 = vxpose.xlu0.b32.cont [7/16] %v600, 128
        %845 = vxpose.xlu0.b32.cont [8/16] %v604, 128
        %846 = vxpose.xlu0.b32.cont [9/16] %v610, 128
        %847 = vxpose.xlu0.b32.cont [10/16] %v614, 128
        %848 = vxpose.xlu0.b32.cont [11/16] %v620, 128
        %849 = vxpose.xlu0.b32.cont [12/16] %v624, 128
        %850 = vxpose.xlu0.b32.cont [13/16] %v630, 128
        %851 = vxpose.xlu0.b32.cont [14/16] %v634, 128
        %852 = vxpose.xlu0.b32.cont [15/16] %v640, 128
        %853 = vxpose.xlu0.b32.end [16/16] %v644, 128
        %v854 = vpop.trf.xlu0
        %v855 = vpop.trf.xlu0
        %v856 = vpop.trf.xlu0
        %v857 = vpop.trf.xlu0
        %v858 = vpop.trf.xlu0
        %v859 = vpop.trf.xlu0
        %v860 = vpop.trf.xlu0
        %v861 = vpop.trf.xlu0
        %v862 = vpop.trf.xlu0
        %v863 = vpop.trf.xlu0
        %v864 = vpop.trf.xlu0
        %v865 = vpop.trf.xlu0
        %v866 = vpop.trf.xlu0
        %v867 = vpop.trf.xlu0
        %v868 = vpop.trf.xlu0
        %v869 = vpop.trf.xlu0
        %v870 = vpack.c.bf16 %v823, %v822
        %v871 = vpack.c.bf16 %v825, %v824
        %v872 = vpack.c.bf16 %v827, %v826
        %v873 = vpack.c.bf16 %v829, %v828
        %v874 = vpack.c.bf16 %v831, %v830
        %v875 = vpack.c.bf16 %v833, %v832
        %v876 = vpack.c.bf16 %v835, %v834
        %v877 = vpack.c.bf16 %v837, %v836
        %v878 = vpack.c.bf16 %v855, %v854
        %v879 = vpack.c.bf16 %v857, %v856
        %v880 = vpack.c.bf16 %v859, %v858
        %v881 = vpack.c.bf16 %v861, %v860
        %v882 = vpack.c.bf16 %v863, %v862
        %v883 = vpack.c.bf16 %v865, %v864
        %v884 = vpack.c.bf16 %v867, %v866
        %v885 = vpack.c.bf16 %v869, %v868
        %v886 = vpack.c.bf16 %v652, %v648
        %v887 = vpack.c.bf16 %v654, %v650
        %v888 = vpack.c.bf16 %v662, %v658
        %v889 = vpack.c.bf16 %v664, %v660
        %v890 = vpack.c.bf16 %v672, %v668
        %v891 = vpack.c.bf16 %v674, %v670
        %v892 = vpack.c.bf16 %v682, %v678
        %v893 = vpack.c.bf16 %v684, %v680
        %v894 = vpack.c.bf16 %v692, %v688
        %v895 = vpack.c.bf16 %v694, %v690
        %v896 = vpack.c.bf16 %v702, %v698
        %v897 = vpack.c.bf16 %v704, %v700
        %v898 = vpack.c.bf16 %v712, %v708
        %v899 = vpack.c.bf16 %v714, %v710
        %v900 = vpack.c.bf16 %v722, %v718
        %v901 = vpack.c.bf16 %v724, %v720
        %902 = vxpose.xlu0.b32.start [1/16] %v728, 128
        %903 = vxpose.xlu0.b32.cont [2/16] %v732, 128
        %904 = vxpose.xlu0.b32.cont [3/16] %v738, 128
        %905 = vxpose.xlu0.b32.cont [4/16] %v742, 128
        %906 = vxpose.xlu0.b32.cont [5/16] %v748, 128
        %907 = vxpose.xlu0.b32.cont [6/16] %v752, 128
        %908 = vxpose.xlu0.b32.cont [7/16] %v758, 128
        %909 = vxpose.xlu0.b32.cont [8/16] %v762, 128
        %910 = vxpose.xlu0.b32.cont [9/16] %v768, 128
        %911 = vxpose.xlu0.b32.cont [10/16] %v772, 128
        %912 = vxpose.xlu0.b32.cont [11/16] %v778, 128
        %913 = vxpose.xlu0.b32.cont [12/16] %v782, 128
        %914 = vxpose.xlu0.b32.cont [13/16] %v788, 128
        %915 = vxpose.xlu0.b32.cont [14/16] %v792, 128
        %916 = vxpose.xlu0.b32.cont [15/16] %v798, 128
        %917 = vxpose.xlu0.b32.end [16/16] %v802, 128
        %v918 = vpop.trf.xlu0
        %v919 = vpop.trf.xlu0
        %v920 = vpop.trf.xlu0
        %v921 = vpop.trf.xlu0
        %v922 = vpop.trf.xlu0
        %v923 = vpop.trf.xlu0
        %v924 = vpop.trf.xlu0
        %v925 = vpop.trf.xlu0
        %v926 = vpop.trf.xlu0
        %v927 = vpop.trf.xlu0
        %v928 = vpop.trf.xlu0
        %v929 = vpop.trf.xlu0
        %v930 = vpop.trf.xlu0
        %v931 = vpop.trf.xlu0
        %v932 = vpop.trf.xlu0
        %v933 = vpop.trf.xlu0
        %934 = vxpose.xlu0.b32.start [1/16] %v730, 128
        %935 = vxpose.xlu0.b32.cont [2/16] %v734, 128
        %936 = vxpose.xlu0.b32.cont [3/16] %v740, 128
        %937 = vxpose.xlu0.b32.cont [4/16] %v744, 128
        %938 = vxpose.xlu0.b32.cont [5/16] %v750, 128
        %939 = vxpose.xlu0.b32.cont [6/16] %v754, 128
        %940 = vxpose.xlu0.b32.cont [7/16] %v760, 128
        %941 = vxpose.xlu0.b32.cont [8/16] %v764, 128
        %942 = vxpose.xlu0.b32.cont [9/16] %v770, 128
        %943 = vxpose.xlu0.b32.cont [10/16] %v774, 128
        %944 = vxpose.xlu0.b32.cont [11/16] %v780, 128
        %945 = vxpose.xlu0.b32.cont [12/16] %v784, 128
        %946 = vxpose.xlu0.b32.cont [13/16] %v790, 128
        %947 = vxpose.xlu0.b32.cont [14/16] %v794, 128
        %948 = vxpose.xlu0.b32.cont [15/16] %v800, 128
        %949 = vxpose.xlu0.b32.end [16/16] %v804, 128
        %v950 = vpop.trf.xlu0
        %v951 = vpop.trf.xlu0
        %v952 = vpop.trf.xlu0
        %v953 = vpop.trf.xlu0
        %v954 = vpop.trf.xlu0
        %v955 = vpop.trf.xlu0
        %v956 = vpop.trf.xlu0
        %v957 = vpop.trf.xlu0
        %v958 = vpop.trf.xlu0
        %v959 = vpop.trf.xlu0
        %v960 = vpop.trf.xlu0
        %v961 = vpop.trf.xlu0
        %v962 = vpop.trf.xlu0
        %v963 = vpop.trf.xlu0
        %v964 = vpop.trf.xlu0
        %v965 = vpop.trf.xlu0
        %v966 = vpack.c.bf16 %v919, %v918
        %v967 = vpack.c.bf16 %v921, %v920
        %v968 = vpack.c.bf16 %v923, %v922
        %v969 = vpack.c.bf16 %v925, %v924
        %v970 = vpack.c.bf16 %v927, %v926
        %v971 = vpack.c.bf16 %v929, %v928
        %v972 = vpack.c.bf16 %v931, %v930
        %v973 = vpack.c.bf16 %v933, %v932
        %v974 = vpack.c.bf16 %v951, %v950
        %v975 = vpack.c.bf16 %v953, %v952
        %v976 = vpack.c.bf16 %v955, %v954
        %v977 = vpack.c.bf16 %v957, %v956
        %v978 = vpack.c.bf16 %v959, %v958
        %v979 = vpack.c.bf16 %v961, %v960
        %v980 = vpack.c.bf16 %v963, %v962
        %v981 = vpack.c.bf16 %v965, %v964
        %v982 = vld [vmem:[%s2] sm:$0xf]
        %v983 = vld [vmem:[%s2 + $0x4] sm:$0xf]
        %v984 = vld [vmem:[%s2 + $0x8] sm:$0xf]
        %v985 = vld [vmem:[%s2 + $0xc] sm:$0xf]
        %v986 = vld [vmem:[%s2 + $0x10] sm:$0xf]
        %v987 = vld [vmem:[%s2 + $0x14] sm:$0xf]
        %v988 = vld [vmem:[%s2 + $0x18] sm:$0xf]
        %v989 = vld [vmem:[%s2 + $0x1c] sm:$0xf]
        %v990 = vld [vmem:[%s2 + $0x20] sm:$0xf]
        %v991 = vld [vmem:[%s2 + $0x24] sm:$0xf]
        %v992 = vld [vmem:[%s2 + $0x28] sm:$0xf]
        %v993 = vld [vmem:[%s2 + $0x2c] sm:$0xf]
        %v994 = vld [vmem:[%s2 + $0x30] sm:$0xf]
        %v995 = vld [vmem:[%s2 + $0x34] sm:$0xf]
        %v996 = vld [vmem:[%s2 + $0x38] sm:$0xf]
        %v997 = vld [vmem:[%s2 + $0x3c] sm:$0xf]
        %v1014 = vunpack.c.l.b16 %v982
        %v1015 = vunpack.c.l.b16 %v983
        %v1016 = vunpack.c.l.b16 %v984
        %v1017 = vunpack.c.l.b16 %v985
        %v1018 = vunpack.c.l.b16 %v986
        %v1019 = vunpack.c.l.b16 %v987
        %v1020 = vunpack.c.l.b16 %v988
        %v1021 = vunpack.c.l.b16 %v989
        %v1022 = vunpack.c.l.b16 %v990
        %v1023 = vunpack.c.l.b16 %v991
        %v1024 = vunpack.c.l.b16 %v992
        %v1025 = vunpack.c.l.b16 %v993
        %v1026 = vunpack.c.l.b16 %v994
        %v1027 = vunpack.c.l.b16 %v995
        %v1028 = vunpack.c.l.b16 %v996
        %v1029 = vunpack.c.l.b16 %v997
        %v1030 = vpack.c.b16 %v1015, %v1014
        %v1031 = vpack.c.b16 %v1017, %v1016
        %v1032 = vpack.c.b16 %v1019, %v1018
        %v1033 = vpack.c.b16 %v1021, %v1020
        %v1034 = vpack.c.b16 %v1023, %v1022
        %v1035 = vpack.c.b16 %v1025, %v1024
        %v1036 = vpack.c.b16 %v1027, %v1026
        %v1037 = vpack.c.b16 %v1029, %v1028
        %1046 = vmatprep.subr.bf16.mxu0 0
        %1047 = vmatpush1.bf16.msra.mxu0 %v1030
        %1048 = vmatprep.subr.bf16.mxu0 0
        %1049 = vmatpush1.bf16.msra.mxu0 %v1031
        %1050 = vmatprep.subr.bf16.mxu0 0
        %1051 = vmatpush1.bf16.msra.mxu0 %v1032
        %1052 = vmatprep.subr.bf16.mxu0 0
        %1053 = vmatpush1.bf16.msra.mxu0 %v1033
        %1054 = vmatprep.subr.bf16.mxu0 0
        %1055 = vmatpush1.bf16.msra.mxu0 %v1034
        %1056 = vmatprep.subr.bf16.mxu0 0
        %1057 = vmatpush1.bf16.msra.mxu0 %v1035
        %1058 = vmatprep.subr.bf16.mxu0 0
        %1059 = vmatpush1.bf16.msra.mxu0 %v1036
        %1060 = vmatprep.subr.bf16.mxu0 0
        %1061 = vmatpush1.bf16.msra.mxu0 %v1037
        %1062 = vmatprep.subr.bf16.mxu0 0
        %1063 = vmatpush1.bf16.msra.mxu0 0
        %1064 = vmatprep.subr.bf16.mxu0 0
        %1065 = vmatpush1.bf16.msra.mxu0 0
        %1066 = vmatprep.subr.bf16.mxu0 0
        %1067 = vmatpush1.bf16.msra.mxu0 0
        %1068 = vmatprep.subr.bf16.mxu0 0
        %1069 = vmatpush1.bf16.msra.mxu0 0
        %1070 = vmatprep.subr.bf16.mxu0 0
        %1071 = vmatpush1.bf16.msra.mxu0 0
        %1072 = vmatprep.subr.bf16.mxu0 0
        %1073 = vmatpush1.bf16.msra.mxu0 0
        %1074 = vmatprep.subr.bf16.mxu0 0
        %1075 = vmatpush1.bf16.msra.mxu0 0
        %1076 = vmatprep.subr.bf16.mxu0 0
        %1077 = vmatpush1.bf16.msra.mxu0 0
        %1078 = vmatprep.mubr.bf16.mxu0 0
        %1079 = vmatmul.mubr.bf16.gmra.mrb[0].mxu0 %v870
        %v1080 = vpop.f32.mrb[0].mxu0
        %v1081 = vadd.f32 0.0, %v1080
        %v1082 = vpop.f32.mrb[0].mxu0
        %v1083 = vpop.f32.mrb[0].mxu0
        %v1084 = vadd.f32 0.0, %v1083
        %v1085 = vpop.f32.mrb[0].mxu0
        %1086 = vmatprep.mubr.bf16.mxu0 0
        %1087 = vmatmul.mubr.bf16.gmra.mrb[0].mxu0 %v871
        %v1088 = vpop.f32.mrb[0].mxu0
        %v1089 = vadd.f32 0.0, %v1088
        %v1090 = vpop.f32.mrb[0].mxu0
        %v1091 = vpop.f32.mrb[0].mxu0
        %v1092 = vadd.f32 0.0, %v1091
        %v1093 = vpop.f32.mrb[0].mxu0
        %1094 = vmatprep.mubr.bf16.mxu0 0
        %1095 = vmatmul.mubr.bf16.gmra.mrb[0].mxu0 %v872
        %v1096 = vpop.f32.mrb[0].mxu0
        %v1097 = vadd.f32 0.0, %v1096
        %v1098 = vpop.f32.mrb[0].mxu0
        %v1099 = vpop.f32.mrb[0].mxu0
        %v1100 = vadd.f32 0.0, %v1099
        %v1101 = vpop.f32.mrb[0].mxu0
        %1102 = vmatprep.mubr.bf16.mxu0 0
        %1103 = vmatmul.mubr.bf16.gmra.mrb[0].mxu0 %v873
        %v1104 = vpop.f32.mrb[0].mxu0
        %v1105 = vadd.f32 0.0, %v1104
        %v1106 = vpop.f32.mrb[0].mxu0
        %v1107 = vpop.f32.mrb[0].mxu0
        %v1108 = vadd.f32 0.0, %v1107
        %v1109 = vpop.f32.mrb[0].mxu0
        %1110 = vmatprep.mubr.bf16.mxu0 0
        %1111 = vmatmul.mubr.bf16.gmra.mrb[0].mxu0 %v874
        %v1112 = vpop.f32.mrb[0].mxu0
        %v1113 = vadd.f32 0.0, %v1112
        %v1114 = vpop.f32.mrb[0].mxu0
        %v1115 = vpop.f32.mrb[0].mxu0
        %v1116 = vadd.f32 0.0, %v1115
        %v1117 = vpop.f32.mrb[0].mxu0
        %1118 = vmatprep.mubr.bf16.mxu0 0
        %1119 = vmatmul.mubr.bf16.gmra.mrb[0].mxu0 %v875
        %v1120 = vpop.f32.mrb[0].mxu0
        %v1121 = vadd.f32 0.0, %v1120
        %v1122 = vpop.f32.mrb[0].mxu0
        %v1123 = vpop.f32.mrb[0].mxu0
        %v1124 = vadd.f32 0.0, %v1123
        %v1125 = vpop.f32.mrb[0].mxu0
        %1126 = vmatprep.mubr.bf16.mxu0 0
        %1127 = vmatmul.mubr.bf16.gmra.mrb[0].mxu0 %v876
        %v1128 = vpop.f32.mrb[0].mxu0
        %v1129 = vadd.f32 0.0, %v1128
        %v1130 = vpop.f32.mrb[0].mxu0
        %v1131 = vpop.f32.mrb[0].mxu0
        %v1132 = vadd.f32 0.0, %v1131
        %v1133 = vpop.f32.mrb[0].mxu0
        %1134 = vmatprep.mubr.bf16.mxu0 0
        %1135 = vmatmul.mubr.bf16.gmra.mrb[0].mxu0 %v877
        %v1136 = vpop.f32.mrb[0].mxu0
        %v1137 = vadd.f32 0.0, %v1136
        %v1138 = vpop.f32.mrb[0].mxu0
        %v1139 = vpop.f32.mrb[0].mxu0
        %v1140 = vadd.f32 0.0, %v1139
        %v1141 = vpop.f32.mrb[0].mxu0
        %1142 = vmatprep.mubr.bf16.mxu0 0
        %1143 = vmatmul.mubr.bf16.gmra.mrb[0].mxu0 %v878
        %v1144 = vpop.f32.mrb[0].mxu0
        %v1145 = vadd.f32 0.0, %v1144
        %v1146 = vpop.f32.mrb[0].mxu0
        %v1147 = vpop.f32.mrb[0].mxu0
        %v1148 = vadd.f32 0.0, %v1147
        %v1149 = vpop.f32.mrb[0].mxu0
        %1150 = vmatprep.mubr.bf16.mxu0 0
        %1151 = vmatmul.mubr.bf16.gmra.mrb[0].mxu0 %v879
        %v1152 = vpop.f32.mrb[0].mxu0
        %v1153 = vadd.f32 0.0, %v1152
        %v1154 = vpop.f32.mrb[0].mxu0
        %v1155 = vpop.f32.mrb[0].mxu0
        %v1156 = vadd.f32 0.0, %v1155
        %v1157 = vpop.f32.mrb[0].mxu0
        %1158 = vmatprep.mubr.bf16.mxu0 0
        %1159 = vmatmul.mubr.bf16.gmra.mrb[0].mxu0 %v880
        %v1160 = vpop.f32.mrb[0].mxu0
        %v1161 = vadd.f32 0.0, %v1160
        %v1162 = vpop.f32.mrb[0].mxu0
        %v1163 = vpop.f32.mrb[0].mxu0
        %v1164 = vadd.f32 0.0, %v1163
        %v1165 = vpop.f32.mrb[0].mxu0
        %1166 = vmatprep.mubr.bf16.mxu0 0
        %1167 = vmatmul.mubr.bf16.gmra.mrb[0].mxu0 %v881
        %v1168 = vpop.f32.mrb[0].mxu0
        %v1169 = vadd.f32 0.0, %v1168
        %v1170 = vpop.f32.mrb[0].mxu0
        %v1171 = vpop.f32.mrb[0].mxu0
        %v1172 = vadd.f32 0.0, %v1171
        %v1173 = vpop.f32.mrb[0].mxu0
        %1174 = vmatprep.mubr.bf16.mxu0 0
        %1175 = vmatmul.mubr.bf16.gmra.mrb[0].mxu0 %v882
        %v1176 = vpop.f32.mrb[0].mxu0
        %v1177 = vadd.f32 0.0, %v1176
        %v1178 = vpop.f32.mrb[0].mxu0
        %v1179 = vpop.f32.mrb[0].mxu0
        %v1180 = vadd.f32 0.0, %v1179
        %v1181 = vpop.f32.mrb[0].mxu0
        %1182 = vmatprep.mubr.bf16.mxu0 0
        %1183 = vmatmul.mubr.bf16.gmra.mrb[0].mxu0 %v883
        %v1184 = vpop.f32.mrb[0].mxu0
        %v1185 = vadd.f32 0.0, %v1184
        %v1186 = vpop.f32.mrb[0].mxu0
        %v1187 = vpop.f32.mrb[0].mxu0
        %v1188 = vadd.f32 0.0, %v1187
        %v1189 = vpop.f32.mrb[0].mxu0
        %1190 = vmatprep.mubr.bf16.mxu0 0
        %1191 = vmatmul.mubr.bf16.gmra.mrb[0].mxu0 %v884
        %v1192 = vpop.f32.mrb[0].mxu0
        %v1193 = vadd.f32 0.0, %v1192
        %v1194 = vpop.f32.mrb[0].mxu0
        %v1195 = vpop.f32.mrb[0].mxu0
        %v1196 = vadd.f32 0.0, %v1195
        %v1197 = vpop.f32.mrb[0].mxu0
        %1198 = vmatprep.mubr.bf16.mxu0 0
        %1199 = vmatmul.mubr.bf16.gmra.mrb[0].mxu0 %v885
        %v1200 = vpop.f32.mrb[0].mxu0
        %v1201 = vadd.f32 0.0, %v1200
        %v1202 = vpop.f32.mrb[0].mxu0
        %v1203 = vpop.f32.mrb[0].mxu0
        %v1204 = vadd.f32 0.0, %v1203
        %v1205 = vpop.f32.mrb[0].mxu0
        %1206 = vdwg.mxu0
        %vm1207 = vcmask 130048
        %v1208 = vsel %vm1207, %v1081, -inf
        %1209 = vmax.xlane.f32.xlu0 %v1208
        %v1210 = vpop.xlane.xlu0 %1209
        %v1211 = vsel %vm1207, %v1084, -inf
        %1212 = vmax.xlane.f32.xlu0 %v1211
        %v1213 = vpop.xlane.xlu0 %1212
        %v1214 = vsel %vm1207, %v1089, -inf
        %1215 = vmax.xlane.f32.xlu0 %v1214
        %v1216 = vpop.xlane.xlu0 %1215
        %v1217 = vsel %vm1207, %v1092, -inf
        %1218 = vmax.xlane.f32.xlu0 %v1217
        %v1219 = vpop.xlane.xlu0 %1218
        %v1220 = vsel %vm1207, %v1097, -inf
        %1221 = vmax.xlane.f32.xlu0 %v1220
        %v1222 = vpop.xlane.xlu0 %1221
        %v1223 = vsel %vm1207, %v1100, -inf
        %1224 = vmax.xlane.f32.xlu0 %v1223
        %v1225 = vpop.xlane.xlu0 %1224
        %v1226 = vsel %vm1207, %v1105, -inf
        %1227 = vmax.xlane.f32.xlu0 %v1226
        %v1228 = vpop.xlane.xlu0 %1227
        %v1229 = vsel %vm1207, %v1108, -inf
        %1230 = vmax.xlane.f32.xlu0 %v1229
        %v1231 = vpop.xlane.xlu0 %1230
        %v1232 = vsel %vm1207, %v1113, -inf
        %1233 = vmax.xlane.f32.xlu0 %v1232
        %v1234 = vpop.xlane.xlu0 %1233
        %v1235 = vsel %vm1207, %v1116, -inf
        %1236 = vmax.xlane.f32.xlu0 %v1235
        %v1237 = vpop.xlane.xlu0 %1236
        %v1238 = vsel %vm1207, %v1121, -inf
        %1239 = vmax.xlane.f32.xlu0 %v1238
        %v1240 = vpop.xlane.xlu0 %1239
        %v1241 = vsel %vm1207, %v1124, -inf
        %1242 = vmax.xlane.f32.xlu0 %v1241
        %v1243 = vpop.xlane.xlu0 %1242
        %v1244 = vsel %vm1207, %v1129, -inf
        %1245 = vmax.xlane.f32.xlu0 %v1244
        %v1246 = vpop.xlane.xlu0 %1245
        %v1247 = vsel %vm1207, %v1132, -inf
        %1248 = vmax.xlane.f32.xlu0 %v1247
        %v1249 = vpop.xlane.xlu0 %1248
        %v1250 = vsel %vm1207, %v1137, -inf
        %1251 = vmax.xlane.f32.xlu0 %v1250
        %v1252 = vpop.xlane.xlu0 %1251
        %v1253 = vsel %vm1207, %v1140, -inf
        %1254 = vmax.xlane.f32.xlu0 %v1253
        %v1255 = vpop.xlane.xlu0 %1254
        %v1256 = vsel %vm1207, %v1145, -inf
        %1257 = vmax.xlane.f32.xlu0 %v1256
        %v1258 = vpop.xlane.xlu0 %1257
        %v1259 = vsel %vm1207, %v1148, -inf
        %1260 = vmax.xlane.f32.xlu0 %v1259
        %v1261 = vpop.xlane.xlu0 %1260
        %v1262 = vsel %vm1207, %v1153, -inf
        %1263 = vmax.xlane.f32.xlu0 %v1262
        %v1264 = vpop.xlane.xlu0 %1263
        %v1265 = vsel %vm1207, %v1156, -inf
        %1266 = vmax.xlane.f32.xlu0 %v1265
        %v1267 = vpop.xlane.xlu0 %1266
        %v1268 = vsel %vm1207, %v1161, -inf
        %1269 = vmax.xlane.f32.xlu0 %v1268
        %v1270 = vpop.xlane.xlu0 %1269
        %v1271 = vsel %vm1207, %v1164, -inf
        %1272 = vmax.xlane.f32.xlu0 %v1271
        %v1273 = vpop.xlane.xlu0 %1272
        %v1274 = vsel %vm1207, %v1169, -inf
        %1275 = vmax.xlane.f32.xlu0 %v1274
        %v1276 = vpop.xlane.xlu0 %1275
        %v1277 = vsel %vm1207, %v1172, -inf
        %1278 = vmax.xlane.f32.xlu0 %v1277
        %v1279 = vpop.xlane.xlu0 %1278
        %v1280 = vsel %vm1207, %v1177, -inf
        %1281 = vmax.xlane.f32.xlu0 %v1280
        %v1282 = vpop.xlane.xlu0 %1281
        %v1283 = vsel %vm1207, %v1180, -inf
        %1284 = vmax.xlane.f32.xlu0 %v1283
        %v1285 = vpop.xlane.xlu0 %1284
        %v1286 = vsel %vm1207, %v1185, -inf
        %1287 = vmax.xlane.f32.xlu0 %v1286
        %v1288 = vpop.xlane.xlu0 %1287
        %v1289 = vsel %vm1207, %v1188, -inf
        %1290 = vmax.xlane.f32.xlu0 %v1289
        %v1291 = vpop.xlane.xlu0 %1290
        %v1292 = vsel %vm1207, %v1193, -inf
        %1293 = vmax.xlane.f32.xlu0 %v1292
        %v1294 = vpop.xlane.xlu0 %1293
        %v1295 = vsel %vm1207, %v1196, -inf
        %1296 = vmax.xlane.f32.xlu0 %v1295
        %v1297 = vpop.xlane.xlu0 %1296
        %v1298 = vsel %vm1207, %v1201, -inf
        %1299 = vmax.xlane.f32.xlu0 %v1298
        %v1300 = vpop.xlane.xlu0 %1299
        %v1301 = vsel %vm1207, %v1204, -inf
        %1302 = vmax.xlane.f32.xlu0 %v1301
        %v1303 = vpop.xlane.xlu0 %1302
        %vm1304 = vcmask 261120
        %v1306 = vsel %vm1304, %v870, 0
        %v1309 = vsel %vm1304, %v871, 0
        %v1312 = vsel %vm1304, %v872, 0
        %v1315 = vsel %vm1304, %v873, 0
        %v1318 = vsel %vm1304, %v874, 0
        %v1321 = vsel %vm1304, %v875, 0
        %v1324 = vsel %vm1304, %v876, 0
        %v1327 = vsel %vm1304, %v877, 0
        %v1330 = vsel %vm1304, %v878, 0
        %v1333 = vsel %vm1304, %v879, 0
        %v1336 = vsel %vm1304, %v880, 0
        %v1339 = vsel %vm1304, %v881, 0
        %v1342 = vsel %vm1304, %v882, 0
        %v1345 = vsel %vm1304, %v883, 0
        %v1348 = vsel %vm1304, %v884, 0
        %v1351 = vsel %vm1304, %v885, 0
        %1353 = vmatprep.subr.bf16.mxu0 %v887
        %1354 = vmatpush1.bf16.msra.mxu0 %v886
        %1355 = vmatprep.subr.bf16.mxu0 %v889
        %1356 = vmatpush1.bf16.msra.mxu0 %v888
        %1357 = vmatprep.subr.bf16.mxu0 0
        %1358 = vmatpush1.bf16.msra.mxu0 0
        %1359 = vmatprep.subr.bf16.mxu0 0
        %1360 = vmatpush1.bf16.msra.mxu0 0
        %1361 = vmatprep.subr.bf16.mxu0 0
        %1362 = vmatpush1.bf16.msra.mxu0 0
        %1363 = vmatprep.subr.bf16.mxu0 0
        %1364 = vmatpush1.bf16.msra.mxu0 0
        %1365 = vmatprep.subr.bf16.mxu0 0
        %1366 = vmatpush1.bf16.msra.mxu0 0
        %1367 = vmatprep.subr.bf16.mxu0 0
        %1368 = vmatpush1.bf16.msra.mxu0 0
        %1369 = vmatprep.subr.bf16.mxu0 0
        %1370 = vmatpush1.bf16.msra.mxu0 0
        %1371 = vmatprep.subr.bf16.mxu0 0
        %1372 = vmatpush1.bf16.msra.mxu0 0
        %1373 = vmatprep.subr.bf16.mxu0 0
        %1374 = vmatpush1.bf16.msra.mxu0 0
        %1375 = vmatprep.subr.bf16.mxu0 0
        %1376 = vmatpush1.bf16.msra.mxu0 0
        %1377 = vmatprep.subr.bf16.mxu0 0
        %1378 = vmatpush1.bf16.msra.mxu0 0
        %1379 = vmatprep.subr.bf16.mxu0 0
        %1380 = vmatpush1.bf16.msra.mxu0 0
        %1381 = vmatprep.subr.bf16.mxu0 0
        %1382 = vmatpush1.bf16.msra.mxu0 0
        %1383 = vmatprep.subr.bf16.mxu0 0
        %1384 = vmatpush1.bf16.msra.mxu0 0
        %1385 = vmatprep.mubr.bf16.mxu0 0
        %1386 = vmatmul.mubr.bf16.gmra.mrb[0].mxu0 %v1306
        %v1387 = vpop.f32.mrb[0].mxu0
        %v1388 = vadd.f32 0.0, %v1387
        %v1389 = vpop.f32.mrb[0].mxu0
        %v1390 = vadd.f32 0.0, %v1389
        %v1391 = vpop.f32.mrb[0].mxu0
        %v1392 = vadd.f32 0.0, %v1391
        %v1393 = vpop.f32.mrb[0].mxu0
        %v1394 = vadd.f32 0.0, %v1393
        %1395 = vmatprep.mubr.bf16.mxu0 0
        %1396 = vmatmul.mubr.bf16.gmra.mrb[0].mxu0 %v1309
        %v1397 = vpop.f32.mrb[0].mxu0
        %v1398 = vadd.f32 0.0, %v1397
        %v1399 = vpop.f32.mrb[0].mxu0
        %v1400 = vadd.f32 0.0, %v1399
        %v1401 = vpop.f32.mrb[0].mxu0
        %v1402 = vadd.f32 0.0, %v1401
        %v1403 = vpop.f32.mrb[0].mxu0
        %v1404 = vadd.f32 0.0, %v1403
        %1405 = vmatprep.mubr.bf16.mxu0 0
        %1406 = vmatmul.mubr.bf16.gmra.mrb[0].mxu0 %v1312
        %v1407 = vpop.f32.mrb[0].mxu0
        %v1408 = vadd.f32 0.0, %v1407
        %v1409 = vpop.f32.mrb[0].mxu0
        %v1410 = vadd.f32 0.0, %v1409
        %v1411 = vpop.f32.mrb[0].mxu0
        %v1412 = vadd.f32 0.0, %v1411
        %v1413 = vpop.f32.mrb[0].mxu0
        %v1414 = vadd.f32 0.0, %v1413
        %1415 = vmatprep.mubr.bf16.mxu0 0
        %1416 = vmatmul.mubr.bf16.gmra.mrb[0].mxu0 %v1315
        %v1417 = vpop.f32.mrb[0].mxu0
        %v1418 = vadd.f32 0.0, %v1417
        %v1419 = vpop.f32.mrb[0].mxu0
        %v1420 = vadd.f32 0.0, %v1419
        %v1421 = vpop.f32.mrb[0].mxu0
        %v1422 = vadd.f32 0.0, %v1421
        %v1423 = vpop.f32.mrb[0].mxu0
        %v1424 = vadd.f32 0.0, %v1423
        %1425 = vmatprep.mubr.bf16.mxu0 0
        %1426 = vmatmul.mubr.bf16.gmra.mrb[0].mxu0 %v1318
        %v1427 = vpop.f32.mrb[0].mxu0
        %v1428 = vadd.f32 0.0, %v1427
        %v1429 = vpop.f32.mrb[0].mxu0
        %v1430 = vadd.f32 0.0, %v1429
        %v1431 = vpop.f32.mrb[0].mxu0
        %v1432 = vadd.f32 0.0, %v1431
        %v1433 = vpop.f32.mrb[0].mxu0
        %v1434 = vadd.f32 0.0, %v1433
        %1435 = vmatprep.mubr.bf16.mxu0 0
        %1436 = vmatmul.mubr.bf16.gmra.mrb[0].mxu0 %v1321
        %v1437 = vpop.f32.mrb[0].mxu0
        %v1438 = vadd.f32 0.0, %v1437
        %v1439 = vpop.f32.mrb[0].mxu0
        %v1440 = vadd.f32 0.0, %v1439
        %v1441 = vpop.f32.mrb[0].mxu0
        %v1442 = vadd.f32 0.0, %v1441
        %v1443 = vpop.f32.mrb[0].mxu0
        %v1444 = vadd.f32 0.0, %v1443
        %1445 = vmatprep.mubr.bf16.mxu0 0
        %1446 = vmatmul.mubr.bf16.gmra.mrb[0].mxu0 %v1324
        %v1447 = vpop.f32.mrb[0].mxu0
        %v1448 = vadd.f32 0.0, %v1447
        %v1449 = vpop.f32.mrb[0].mxu0
        %v1450 = vadd.f32 0.0, %v1449
        %v1451 = vpop.f32.mrb[0].mxu0
        %v1452 = vadd.f32 0.0, %v1451
        %v1453 = vpop.f32.mrb[0].mxu0
        %v1454 = vadd.f32 0.0, %v1453
        %1455 = vmatprep.mubr.bf16.mxu0 0
        %1456 = vmatmul.mubr.bf16.gmra.mrb[0].mxu0 %v1327
        %v1457 = vpop.f32.mrb[0].mxu0
        %v1458 = vadd.f32 0.0, %v1457
        %v1459 = vpop.f32.mrb[0].mxu0
        %v1460 = vadd.f32 0.0, %v1459
        %v1461 = vpop.f32.mrb[0].mxu0
        %v1462 = vadd.f32 0.0, %v1461
        %v1463 = vpop.f32.mrb[0].mxu0
        %v1464 = vadd.f32 0.0, %v1463
        %1465 = vmatprep.mubr.bf16.mxu0 0
        %1466 = vmatmul.mubr.bf16.gmra.mrb[0].mxu0 %v1330
        %v1467 = vpop.f32.mrb[0].mxu0
        %v1468 = vadd.f32 0.0, %v1467
        %v1469 = vpop.f32.mrb[0].mxu0
        %v1470 = vadd.f32 0.0, %v1469
        %v1471 = vpop.f32.mrb[0].mxu0
        %v1472 = vadd.f32 0.0, %v1471
        %v1473 = vpop.f32.mrb[0].mxu0
        %v1474 = vadd.f32 0.0, %v1473
        %1475 = vmatprep.mubr.bf16.mxu0 0
        %1476 = vmatmul.mubr.bf16.gmra.mrb[0].mxu0 %v1333
        %v1477 = vpop.f32.mrb[0].mxu0
        %v1478 = vadd.f32 0.0, %v1477
        %v1479 = vpop.f32.mrb[0].mxu0
        %v1480 = vadd.f32 0.0, %v1479
        %v1481 = vpop.f32.mrb[0].mxu0
        %v1482 = vadd.f32 0.0, %v1481
        %v1483 = vpop.f32.mrb[0].mxu0
        %v1484 = vadd.f32 0.0, %v1483
        %1485 = vmatprep.mubr.bf16.mxu0 0
        %1486 = vmatmul.mubr.bf16.gmra.mrb[0].mxu0 %v1336
        %v1487 = vpop.f32.mrb[0].mxu0
        %v1488 = vadd.f32 0.0, %v1487
        %v1489 = vpop.f32.mrb[0].mxu0
        %v1490 = vadd.f32 0.0, %v1489
        %v1491 = vpop.f32.mrb[0].mxu0
        %v1492 = vadd.f32 0.0, %v1491
        %v1493 = vpop.f32.mrb[0].mxu0
        %v1494 = vadd.f32 0.0, %v1493
        %1495 = vmatprep.mubr.bf16.mxu0 0
        %1496 = vmatmul.mubr.bf16.gmra.mrb[0].mxu0 %v1339
        %v1497 = vpop.f32.mrb[0].mxu0
        %v1498 = vadd.f32 0.0, %v1497
        %v1499 = vpop.f32.mrb[0].mxu0
        %v1500 = vadd.f32 0.0, %v1499
        %v1501 = vpop.f32.mrb[0].mxu0
        %v1502 = vadd.f32 0.0, %v1501
        %v1503 = vpop.f32.mrb[0].mxu0
        %v1504 = vadd.f32 0.0, %v1503
        %1505 = vmatprep.mubr.bf16.mxu0 0
        %1506 = vmatmul.mubr.bf16.gmra.mrb[0].mxu0 %v1342
        %v1507 = vpop.f32.mrb[0].mxu0
        %v1508 = vadd.f32 0.0, %v1507
        %v1509 = vpop.f32.mrb[0].mxu0
        %v1510 = vadd.f32 0.0, %v1509
        %v1511 = vpop.f32.mrb[0].mxu0
        %v1512 = vadd.f32 0.0, %v1511
        %v1513 = vpop.f32.mrb[0].mxu0
        %v1514 = vadd.f32 0.0, %v1513
        %1515 = vmatprep.mubr.bf16.mxu0 0
        %1516 = vmatmul.mubr.bf16.gmra.mrb[0].mxu0 %v1345
        %v1517 = vpop.f32.mrb[0].mxu0
        %v1518 = vadd.f32 0.0, %v1517
        %v1519 = vpop.f32.mrb[0].mxu0
        %v1520 = vadd.f32 0.0, %v1519
        %v1521 = vpop.f32.mrb[0].mxu0
        %v1522 = vadd.f32 0.0, %v1521
        %v1523 = vpop.f32.mrb[0].mxu0
        %v1524 = vadd.f32 0.0, %v1523
        %1525 = vmatprep.mubr.bf16.mxu0 0
        %1526 = vmatmul.mubr.bf16.gmra.mrb[0].mxu0 %v1348
        %v1527 = vpop.f32.mrb[0].mxu0
        %v1528 = vadd.f32 0.0, %v1527
        %v1529 = vpop.f32.mrb[0].mxu0
        %v1530 = vadd.f32 0.0, %v1529
        %v1531 = vpop.f32.mrb[0].mxu0
        %v1532 = vadd.f32 0.0, %v1531
        %v1533 = vpop.f32.mrb[0].mxu0
        %v1534 = vadd.f32 0.0, %v1533
        %1535 = vmatprep.mubr.bf16.mxu0 0
        %1536 = vmatmul.mubr.bf16.gmra.mrb[0].mxu0 %v1351
        %v1537 = vpop.f32.mrb[0].mxu0
        %v1538 = vadd.f32 0.0, %v1537
        %v1539 = vpop.f32.mrb[0].mxu0
        %v1540 = vadd.f32 0.0, %v1539
        %v1541 = vpop.f32.mrb[0].mxu0
        %v1542 = vadd.f32 0.0, %v1541
        %v1543 = vpop.f32.mrb[0].mxu0
        %v1544 = vadd.f32 0.0, %v1543
        %1545 = vdwg.mxu0
        %v1546 = vmax.f32 %v1388, %v1390
        %1547 = vmax.xlane.f32.xlu0 %v1546
        %v1548 = vpop.xlane.xlu0 %1547
        %v1549 = vmax.f32 %v1392, %v1394
        %1550 = vmax.xlane.f32.xlu0 %v1549
        %v1551 = vpop.xlane.xlu0 %1550
        %v1552 = vmax.f32 %v1398, %v1400
        %1553 = vmax.xlane.f32.xlu0 %v1552
        %v1554 = vpop.xlane.xlu0 %1553
        %v1555 = vmax.f32 %v1402, %v1404
        %1556 = vmax.xlane.f32.xlu0 %v1555
        %v1557 = vpop.xlane.xlu0 %1556
        %v1558 = vmax.f32 %v1408, %v1410
        %1559 = vmax.xlane.f32.xlu0 %v1558
        %v1560 = vpop.xlane.xlu0 %1559
        %v1561 = vmax.f32 %v1412, %v1414
        %1562 = vmax.xlane.f32.xlu0 %v1561
        %v1563 = vpop.xlane.xlu0 %1562
        %v1564 = vmax.f32 %v1418, %v1420
        %1565 = vmax.xlane.f32.xlu0 %v1564
        %v1566 = vpop.xlane.xlu0 %1565
        %v1567 = vmax.f32 %v1422, %v1424
        %1568 = vmax.xlane.f32.xlu0 %v1567
        %v1569 = vpop.xlane.xlu0 %1568
        %v1570 = vmax.f32 %v1428, %v1430
        %1571 = vmax.xlane.f32.xlu0 %v1570
        %v1572 = vpop.xlane.xlu0 %1571
        %v1573 = vmax.f32 %v1432, %v1434
        %1574 = vmax.xlane.f32.xlu0 %v1573
        %v1575 = vpop.xlane.xlu0 %1574
        %v1576 = vmax.f32 %v1438, %v1440
        %1577 = vmax.xlane.f32.xlu0 %v1576
        %v1578 = vpop.xlane.xlu0 %1577
        %v1579 = vmax.f32 %v1442, %v1444
        %1580 = vmax.xlane.f32.xlu0 %v1579
        %v1581 = vpop.xlane.xlu0 %1580
        %v1582 = vmax.f32 %v1448, %v1450
        %1583 = vmax.xlane.f32.xlu0 %v1582
        %v1584 = vpop.xlane.xlu0 %1583
        %v1585 = vmax.f32 %v1452, %v1454
        %1586 = vmax.xlane.f32.xlu0 %v1585
        %v1587 = vpop.xlane.xlu0 %1586
        %v1588 = vmax.f32 %v1458, %v1460
        %1589 = vmax.xlane.f32.xlu0 %v1588
        %v1590 = vpop.xlane.xlu0 %1589
        %v1591 = vmax.f32 %v1462, %v1464
        %1592 = vmax.xlane.f32.xlu0 %v1591
        %v1593 = vpop.xlane.xlu0 %1592
        %v1594 = vmax.f32 %v1468, %v1470
        %1595 = vmax.xlane.f32.xlu0 %v1594
        %v1596 = vpop.xlane.xlu0 %1595
        %v1597 = vmax.f32 %v1472, %v1474
        %1598 = vmax.xlane.f32.xlu0 %v1597
        %v1599 = vpop.xlane.xlu0 %1598
        %v1600 = vmax.f32 %v1478, %v1480
        %1601 = vmax.xlane.f32.xlu0 %v1600
        %v1602 = vpop.xlane.xlu0 %1601
        %v1603 = vmax.f32 %v1482, %v1484
        %1604 = vmax.xlane.f32.xlu0 %v1603
        %v1605 = vpop.xlane.xlu0 %1604
        %v1606 = vmax.f32 %v1488, %v1490
        %1607 = vmax.xlane.f32.xlu0 %v1606
        %v1608 = vpop.xlane.xlu0 %1607
        %v1609 = vmax.f32 %v1492, %v1494
        %1610 = vmax.xlane.f32.xlu0 %v1609
        %v1611 = vpop.xlane.xlu0 %1610
        %v1612 = vmax.f32 %v1498, %v1500
        %1613 = vmax.xlane.f32.xlu0 %v1612
        %v1614 = vpop.xlane.xlu0 %1613
        %v1615 = vmax.f32 %v1502, %v1504
        %1616 = vmax.xlane.f32.xlu0 %v1615
        %v1617 = vpop.xlane.xlu0 %1616
        %v1618 = vmax.f32 %v1508, %v1510
        %1619 = vmax.xlane.f32.xlu0 %v1618
        %v1620 = vpop.xlane.xlu0 %1619
        %v1621 = vmax.f32 %v1512, %v1514
        %1622 = vmax.xlane.f32.xlu0 %v1621
        %v1623 = vpop.xlane.xlu0 %1622
        %v1624 = vmax.f32 %v1518, %v1520
        %1625 = vmax.xlane.f32.xlu0 %v1624
        %v1626 = vpop.xlane.xlu0 %1625
        %v1627 = vmax.f32 %v1522, %v1524
        %1628 = vmax.xlane.f32.xlu0 %v1627
        %v1629 = vpop.xlane.xlu0 %1628
        %v1630 = vmax.f32 %v1528, %v1530
        %1631 = vmax.xlane.f32.xlu0 %v1630
        %v1632 = vpop.xlane.xlu0 %1631
        %v1633 = vmax.f32 %v1532, %v1534
        %1634 = vmax.xlane.f32.xlu0 %v1633
        %v1635 = vpop.xlane.xlu0 %1634
        %v1636 = vmax.f32 %v1538, %v1540
        %1637 = vmax.xlane.f32.xlu0 %v1636
        %v1638 = vpop.xlane.xlu0 %1637
        %v1639 = vmax.f32 %v1542, %v1544
        %1640 = vmax.xlane.f32.xlu0 %v1639
        %v1641 = vpop.xlane.xlu0 %1640
        %v1642 = vmax.f32 %v1548, %v1210
        %v1643 = vmax.f32 %v1551, %v1213
        %v1644 = vmax.f32 %v1554, %v1216
        %v1645 = vmax.f32 %v1557, %v1219
        %v1646 = vmax.f32 %v1560, %v1222
        %v1647 = vmax.f32 %v1563, %v1225
        %v1648 = vmax.f32 %v1566, %v1228
        %v1649 = vmax.f32 %v1569, %v1231
        %v1650 = vmax.f32 %v1572, %v1234
        %v1651 = vmax.f32 %v1575, %v1237
        %v1652 = vmax.f32 %v1578, %v1240
        %v1653 = vmax.f32 %v1581, %v1243
        %v1654 = vmax.f32 %v1584, %v1246
        %v1655 = vmax.f32 %v1587, %v1249
        %v1656 = vmax.f32 %v1590, %v1252
        %v1657 = vmax.f32 %v1593, %v1255
        %v1658 = vmax.f32 %v1596, %v1258
        %v1659 = vmax.f32 %v1599, %v1261
        %v1660 = vmax.f32 %v1602, %v1264
        %v1661 = vmax.f32 %v1605, %v1267
        %v1662 = vmax.f32 %v1608, %v1270
        %v1663 = vmax.f32 %v1611, %v1273
        %v1664 = vmax.f32 %v1614, %v1276
        %v1665 = vmax.f32 %v1617, %v1279
        %v1666 = vmax.f32 %v1620, %v1282
        %v1667 = vmax.f32 %v1623, %v1285
        %v1668 = vmax.f32 %v1626, %v1288
        %v1669 = vmax.f32 %v1629, %v1291
        %v1670 = vmax.f32 %v1632, %v1294
        %v1671 = vmax.f32 %v1635, %v1297
        %v1672 = vmax.f32 %v1638, %v1300
        %v1673 = vmax.f32 %v1641, %v1303
        %v1674 = vsub.f32 %v1388, %v1642
        %v1675 = vsub.f32 %v1390, %v1642
        %v1676 = vsub.f32 %v1392, %v1643
        %v1677 = vsub.f32 %v1394, %v1643
        %v1678 = vsub.f32 %v1398, %v1644
        %v1679 = vsub.f32 %v1400, %v1644
        %v1680 = vsub.f32 %v1402, %v1645
        %v1681 = vsub.f32 %v1404, %v1645
        %v1682 = vsub.f32 %v1408, %v1646
        %v1683 = vsub.f32 %v1410, %v1646
        %v1684 = vsub.f32 %v1412, %v1647
        %v1685 = vsub.f32 %v1414, %v1647
        %v1686 = vsub.f32 %v1418, %v1648
        %v1687 = vsub.f32 %v1420, %v1648
        %v1688 = vsub.f32 %v1422, %v1649
        %v1689 = vsub.f32 %v1424, %v1649
        %v1690 = vsub.f32 %v1428, %v1650
        %v1691 = vsub.f32 %v1430, %v1650
        %v1692 = vsub.f32 %v1432, %v1651
        %v1693 = vsub.f32 %v1434, %v1651
        %v1694 = vsub.f32 %v1438, %v1652
        %v1695 = vsub.f32 %v1440, %v1652
        %v1696 = vsub.f32 %v1442, %v1653
        %v1697 = vsub.f32 %v1444, %v1653
        %v1698 = vsub.f32 %v1448, %v1654
        %v1699 = vsub.f32 %v1450, %v1654
        %v1700 = vsub.f32 %v1452, %v1655
        %v1701 = vsub.f32 %v1454, %v1655
        %v1702 = vsub.f32 %v1458, %v1656
        %v1703 = vsub.f32 %v1460, %v1656
        %v1704 = vsub.f32 %v1462, %v1657
        %v1705 = vsub.f32 %v1464, %v1657
        %v1706 = vsub.f32 %v1468, %v1658
        %v1707 = vsub.f32 %v1470, %v1658
        %v1708 = vsub.f32 %v1472, %v1659
        %v1709 = vsub.f32 %v1474, %v1659
        %v1710 = vsub.f32 %v1478, %v1660
        %v1711 = vsub.f32 %v1480, %v1660
        %v1712 = vsub.f32 %v1482, %v1661
        %v1713 = vsub.f32 %v1484, %v1661
        %v1714 = vsub.f32 %v1488, %v1662
        %v1715 = vsub.f32 %v1490, %v1662
        %v1716 = vsub.f32 %v1492, %v1663
        %v1717 = vsub.f32 %v1494, %v1663
        %v1718 = vsub.f32 %v1498, %v1664
        %v1719 = vsub.f32 %v1500, %v1664
        %v1720 = vsub.f32 %v1502, %v1665
        %v1721 = vsub.f32 %v1504, %v1665
        %v1722 = vsub.f32 %v1508, %v1666
        %v1723 = vsub.f32 %v1510, %v1666
        %v1724 = vsub.f32 %v1512, %v1667
        %v1725 = vsub.f32 %v1514, %v1667
        %v1726 = vsub.f32 %v1518, %v1668
        %v1727 = vsub.f32 %v1520, %v1668
        %v1728 = vsub.f32 %v1522, %v1669
        %v1729 = vsub.f32 %v1524, %v1669
        %v1730 = vsub.f32 %v1528, %v1670
        %v1731 = vsub.f32 %v1530, %v1670
        %v1732 = vsub.f32 %v1532, %v1671
        %v1733 = vsub.f32 %v1534, %v1671
        %v1734 = vsub.f32 %v1538, %v1672
        %v1735 = vsub.f32 %v1540, %v1672
        %v1736 = vsub.f32 %v1542, %v1673
        %v1737 = vsub.f32 %v1544, %v1673
        %v1738 = vmul.f32 %v1674, 1.442695
        %v1739 = vpow.pop %v1738
        %v1740 = vmul.f32 %v1675, 1.442695
        %v1741 = vpow.pop %v1740
        %v1742 = vmul.f32 %v1676, 1.442695
        %v1743 = vpow.pop %v1742
        %v1744 = vmul.f32 %v1677, 1.442695
        %v1745 = vpow.pop %v1744
        %v1746 = vmul.f32 %v1678, 1.442695
        %v1747 = vpow.pop %v1746
        %v1748 = vmul.f32 %v1679, 1.442695
        %v1749 = vpow.pop %v1748
        %v1750 = vmul.f32 %v1680, 1.442695
        %v1751 = vpow.pop %v1750
        %v1752 = vmul.f32 %v1681, 1.442695
        %v1753 = vpow.pop %v1752
        %v1754 = vmul.f32 %v1682, 1.442695
        %v1755 = vpow.pop %v1754
        %v1756 = vmul.f32 %v1683, 1.442695
        %v1757 = vpow.pop %v1756
        %v1758 = vmul.f32 %v1684, 1.442695
        %v1759 = vpow.pop %v1758
        %v1760 = vmul.f32 %v1685, 1.442695
        %v1761 = vpow.pop %v1760
        %v1762 = vmul.f32 %v1686, 1.442695
        %v1763 = vpow.pop %v1762
        %v1764 = vmul.f32 %v1687, 1.442695
        %v1765 = vpow.pop %v1764
        %v1766 = vmul.f32 %v1688, 1.442695
        %v1767 = vpow.pop %v1766
        %v1768 = vmul.f32 %v1689, 1.442695
        %v1769 = vpow.pop %v1768
        %v1770 = vmul.f32 %v1690, 1.442695
        %v1771 = vpow.pop %v1770
        %v1772 = vmul.f32 %v1691, 1.442695
        %v1773 = vpow.pop %v1772
        %v1774 = vmul.f32 %v1692, 1.442695
        %v1775 = vpow.pop %v1774
        %v1776 = vmul.f32 %v1693, 1.442695
        %v1777 = vpow.pop %v1776
        %v1778 = vmul.f32 %v1694, 1.442695
        %v1779 = vpow.pop %v1778
        %v1780 = vmul.f32 %v1695, 1.442695
        %v1781 = vpow.pop %v1780
        %v1782 = vmul.f32 %v1696, 1.442695
        %v1783 = vpow.pop %v1782
        %v1784 = vmul.f32 %v1697, 1.442695
        %v1785 = vpow.pop %v1784
        %v1786 = vmul.f32 %v1698, 1.442695
        %v1787 = vpow.pop %v1786
        %v1788 = vmul.f32 %v1699, 1.442695
        %v1789 = vpow.pop %v1788
        %v1790 = vmul.f32 %v1700, 1.442695
        %v1791 = vpow.pop %v1790
        %v1792 = vmul.f32 %v1701, 1.442695
        %v1793 = vpow.pop %v1792
        %v1794 = vmul.f32 %v1702, 1.442695
        %v1795 = vpow.pop %v1794
        %v1796 = vmul.f32 %v1703, 1.442695
        %v1797 = vpow.pop %v1796
        %v1798 = vmul.f32 %v1704, 1.442695
        %v1799 = vpow.pop %v1798
        %v1800 = vmul.f32 %v1705, 1.442695
        %v1801 = vpow.pop %v1800
        %v1802 = vmul.f32 %v1706, 1.442695
        %v1803 = vpow.pop %v1802
        %v1804 = vmul.f32 %v1707, 1.442695
        %v1805 = vpow.pop %v1804
        %v1806 = vmul.f32 %v1708, 1.442695
        %v1807 = vpow.pop %v1806
        %v1808 = vmul.f32 %v1709, 1.442695
        %v1809 = vpow.pop %v1808
        %v1810 = vmul.f32 %v1710, 1.442695
        %v1811 = vpow.pop %v1810
        %v1812 = vmul.f32 %v1711, 1.442695
        %v1813 = vpow.pop %v1812
        %v1814 = vmul.f32 %v1712, 1.442695
        %v1815 = vpow.pop %v1814
        %v1816 = vmul.f32 %v1713, 1.442695
        %v1817 = vpow.pop %v1816
        %v1818 = vmul.f32 %v1714, 1.442695
        %v1819 = vpow.pop %v1818
        %v1820 = vmul.f32 %v1715, 1.442695
        %v1821 = vpow.pop %v1820
        %v1822 = vmul.f32 %v1716, 1.442695
        %v1823 = vpow.pop %v1822
        %v1824 = vmul.f32 %v1717, 1.442695
        %v1825 = vpow.pop %v1824
        %v1826 = vmul.f32 %v1718, 1.442695
        %v1827 = vpow.pop %v1826
        %v1828 = vmul.f32 %v1719, 1.442695
        %v1829 = vpow.pop %v1828
        %v1830 = vmul.f32 %v1720, 1.442695
        %v1831 = vpow.pop %v1830
        %v1832 = vmul.f32 %v1721, 1.442695
        %v1833 = vpow.pop %v1832
        %v1834 = vmul.f32 %v1722, 1.442695
        %v1835 = vpow.pop %v1834
        %v1836 = vmul.f32 %v1723, 1.442695
        %v1837 = vpow.pop %v1836
        %v1838 = vmul.f32 %v1724, 1.442695
        %v1839 = vpow.pop %v1838
        %v1840 = vmul.f32 %v1725, 1.442695
        %v1841 = vpow.pop %v1840
        %v1842 = vmul.f32 %v1726, 1.442695
        %v1843 = vpow.pop %v1842
        %v1844 = vmul.f32 %v1727, 1.442695
        %v1845 = vpow.pop %v1844
        %v1846 = vmul.f32 %v1728, 1.442695
        %v1847 = vpow.pop %v1846
        %v1848 = vmul.f32 %v1729, 1.442695
        %v1849 = vpow.pop %v1848
        %v1850 = vmul.f32 %v1730, 1.442695
        %v1851 = vpow.pop %v1850
        %v1852 = vmul.f32 %v1731, 1.442695
        %v1853 = vpow.pop %v1852
        %v1854 = vmul.f32 %v1732, 1.442695
        %v1855 = vpow.pop %v1854
        %v1856 = vmul.f32 %v1733, 1.442695
        %v1857 = vpow.pop %v1856
        %v1858 = vmul.f32 %v1734, 1.442695
        %v1859 = vpow.pop %v1858
        %v1860 = vmul.f32 %v1735, 1.442695
        %v1861 = vpow.pop %v1860
        %v1862 = vmul.f32 %v1736, 1.442695
        %v1863 = vpow.pop %v1862
        %v1864 = vmul.f32 %v1737, 1.442695
        %v1865 = vpow.pop %v1864
        %v1866 = vsub.f32 %v1081, %v1642
        %v1867 = vsub.f32 %v1084, %v1643
        %v1868 = vsub.f32 %v1089, %v1644
        %v1869 = vsub.f32 %v1092, %v1645
        %v1870 = vsub.f32 %v1097, %v1646
        %v1871 = vsub.f32 %v1100, %v1647
        %v1872 = vsub.f32 %v1105, %v1648
        %v1873 = vsub.f32 %v1108, %v1649
        %v1874 = vsub.f32 %v1113, %v1650
        %v1875 = vsub.f32 %v1116, %v1651
        %v1876 = vsub.f32 %v1121, %v1652
        %v1877 = vsub.f32 %v1124, %v1653
        %v1878 = vsub.f32 %v1129, %v1654
        %v1879 = vsub.f32 %v1132, %v1655
        %v1880 = vsub.f32 %v1137, %v1656
        %v1881 = vsub.f32 %v1140, %v1657
        %v1882 = vsub.f32 %v1145, %v1658
        %v1883 = vsub.f32 %v1148, %v1659
        %v1884 = vsub.f32 %v1153, %v1660
        %v1885 = vsub.f32 %v1156, %v1661
        %v1886 = vsub.f32 %v1161, %v1662
        %v1887 = vsub.f32 %v1164, %v1663
        %v1888 = vsub.f32 %v1169, %v1664
        %v1889 = vsub.f32 %v1172, %v1665
        %v1890 = vsub.f32 %v1177, %v1666
        %v1891 = vsub.f32 %v1180, %v1667
        %v1892 = vsub.f32 %v1185, %v1668
        %v1893 = vsub.f32 %v1188, %v1669
        %v1894 = vsub.f32 %v1193, %v1670
        %v1895 = vsub.f32 %v1196, %v1671
        %v1896 = vsub.f32 %v1201, %v1672
        %v1897 = vsub.f32 %v1204, %v1673
        %v1898 = vmul.f32 %v1866, 1.442695
        %v1899 = vpow.pop %v1898
        %v1900 = vmul.f32 %v1867, 1.442695
        %v1901 = vpow.pop %v1900
        %v1902 = vmul.f32 %v1868, 1.442695
        %v1903 = vpow.pop %v1902
        %v1904 = vmul.f32 %v1869, 1.442695
        %v1905 = vpow.pop %v1904
        %v1906 = vmul.f32 %v1870, 1.442695
        %v1907 = vpow.pop %v1906
        %v1908 = vmul.f32 %v1871, 1.442695
        %v1909 = vpow.pop %v1908
        %v1910 = vmul.f32 %v1872, 1.442695
        %v1911 = vpow.pop %v1910
        %v1912 = vmul.f32 %v1873, 1.442695
        %v1913 = vpow.pop %v1912
        %v1914 = vmul.f32 %v1874, 1.442695
        %v1915 = vpow.pop %v1914
        %v1916 = vmul.f32 %v1875, 1.442695
        %v1917 = vpow.pop %v1916
        %v1918 = vmul.f32 %v1876, 1.442695
        %v1919 = vpow.pop %v1918
        %v1920 = vmul.f32 %v1877, 1.442695
        %v1921 = vpow.pop %v1920
        %v1922 = vmul.f32 %v1878, 1.442695
        %v1923 = vpow.pop %v1922
        %v1924 = vmul.f32 %v1879, 1.442695
        %v1925 = vpow.pop %v1924
        %v1926 = vmul.f32 %v1880, 1.442695
        %v1927 = vpow.pop %v1926
        %v1928 = vmul.f32 %v1881, 1.442695
        %v1929 = vpow.pop %v1928
        %v1930 = vmul.f32 %v1882, 1.442695
        %v1931 = vpow.pop %v1930
        %v1932 = vmul.f32 %v1883, 1.442695
        %v1933 = vpow.pop %v1932
        %v1934 = vmul.f32 %v1884, 1.442695
        %v1935 = vpow.pop %v1934
        %v1936 = vmul.f32 %v1885, 1.442695
        %v1937 = vpow.pop %v1936
        %v1938 = vmul.f32 %v1886, 1.442695
        %v1939 = vpow.pop %v1938
        %v1940 = vmul.f32 %v1887, 1.442695
        %v1941 = vpow.pop %v1940
        %v1942 = vmul.f32 %v1888, 1.442695
        %v1943 = vpow.pop %v1942
        %v1944 = vmul.f32 %v1889, 1.442695
        %v1945 = vpow.pop %v1944
        %v1946 = vmul.f32 %v1890, 1.442695
        %v1947 = vpow.pop %v1946
        %v1948 = vmul.f32 %v1891, 1.442695
        %v1949 = vpow.pop %v1948
        %v1950 = vmul.f32 %v1892, 1.442695
        %v1951 = vpow.pop %v1950
        %v1952 = vmul.f32 %v1893, 1.442695
        %v1953 = vpow.pop %v1952
        %v1954 = vmul.f32 %v1894, 1.442695
        %v1955 = vpow.pop %v1954
        %v1956 = vmul.f32 %v1895, 1.442695
        %v1957 = vpow.pop %v1956
        %v1958 = vmul.f32 %v1896, 1.442695
        %v1959 = vpow.pop %v1958
        %v1960 = vmul.f32 %v1897, 1.442695
        %v1961 = vpow.pop %v1960
        %v1962 = vadd.f32 %v1739, %v1741
        %1963 = vadd.xlane.f32.xlu0 %v1962
        %v1964 = vpop.xlane.xlu0 %1963
        %v1965 = vadd.f32 %v1743, %v1745
        %1966 = vadd.xlane.f32.xlu0 %v1965
        %v1967 = vpop.xlane.xlu0 %1966
        %v1968 = vadd.f32 %v1747, %v1749
        %1969 = vadd.xlane.f32.xlu0 %v1968
        %v1970 = vpop.xlane.xlu0 %1969
        %v1971 = vadd.f32 %v1751, %v1753
        %1972 = vadd.xlane.f32.xlu0 %v1971
        %v1973 = vpop.xlane.xlu0 %1972
        %v1974 = vadd.f32 %v1755, %v1757
        %1975 = vadd.xlane.f32.xlu0 %v1974
        %v1976 = vpop.xlane.xlu0 %1975
        %v1977 = vadd.f32 %v1759, %v1761
        %1978 = vadd.xlane.f32.xlu0 %v1977
        %v1979 = vpop.xlane.xlu0 %1978
        %v1980 = vadd.f32 %v1763, %v1765
        %1981 = vadd.xlane.f32.xlu0 %v1980
        %v1982 = vpop.xlane.xlu0 %1981
        %v1983 = vadd.f32 %v1767, %v1769
        %1984 = vadd.xlane.f32.xlu0 %v1983
        %v1985 = vpop.xlane.xlu0 %1984
        %v1986 = vadd.f32 %v1771, %v1773
        %1987 = vadd.xlane.f32.xlu0 %v1986
        %v1988 = vpop.xlane.xlu0 %1987
        %v1989 = vadd.f32 %v1775, %v1777
        %1990 = vadd.xlane.f32.xlu0 %v1989
        %v1991 = vpop.xlane.xlu0 %1990
        %v1992 = vadd.f32 %v1779, %v1781
        %1993 = vadd.xlane.f32.xlu0 %v1992
        %v1994 = vpop.xlane.xlu0 %1993
        %v1995 = vadd.f32 %v1783, %v1785
        %1996 = vadd.xlane.f32.xlu0 %v1995
        %v1997 = vpop.xlane.xlu0 %1996
        %v1998 = vadd.f32 %v1787, %v1789
        %1999 = vadd.xlane.f32.xlu0 %v1998
        %v2000 = vpop.xlane.xlu0 %1999
        %v2001 = vadd.f32 %v1791, %v1793
        %2002 = vadd.xlane.f32.xlu0 %v2001
        %v2003 = vpop.xlane.xlu0 %2002
        %v2004 = vadd.f32 %v1795, %v1797
        %2005 = vadd.xlane.f32.xlu0 %v2004
        %v2006 = vpop.xlane.xlu0 %2005
        %v2007 = vadd.f32 %v1799, %v1801
        %2008 = vadd.xlane.f32.xlu0 %v2007
        %v2009 = vpop.xlane.xlu0 %2008
        %v2010 = vadd.f32 %v1803, %v1805
        %2011 = vadd.xlane.f32.xlu0 %v2010
        %v2012 = vpop.xlane.xlu0 %2011
        %v2013 = vadd.f32 %v1807, %v1809
        %2014 = vadd.xlane.f32.xlu0 %v2013
        %v2015 = vpop.xlane.xlu0 %2014
        %v2016 = vadd.f32 %v1811, %v1813
        %2017 = vadd.xlane.f32.xlu0 %v2016
        %v2018 = vpop.xlane.xlu0 %2017
        %v2019 = vadd.f32 %v1815, %v1817
        %2020 = vadd.xlane.f32.xlu0 %v2019
        %v2021 = vpop.xlane.xlu0 %2020
        %v2022 = vadd.f32 %v1819, %v1821
        %2023 = vadd.xlane.f32.xlu0 %v2022
        %v2024 = vpop.xlane.xlu0 %2023
        %v2025 = vadd.f32 %v1823, %v1825
        %2026 = vadd.xlane.f32.xlu0 %v2025
        %v2027 = vpop.xlane.xlu0 %2026
        %v2028 = vadd.f32 %v1827, %v1829
        %2029 = vadd.xlane.f32.xlu0 %v2028
        %v2030 = vpop.xlane.xlu0 %2029
        %v2031 = vadd.f32 %v1831, %v1833
        %2032 = vadd.xlane.f32.xlu0 %v2031
        %v2033 = vpop.xlane.xlu0 %2032
        %v2034 = vadd.f32 %v1835, %v1837
        %2035 = vadd.xlane.f32.xlu0 %v2034
        %v2036 = vpop.xlane.xlu0 %2035
        %v2037 = vadd.f32 %v1839, %v1841
        %2038 = vadd.xlane.f32.xlu0 %v2037
        %v2039 = vpop.xlane.xlu0 %2038
        %v2040 = vadd.f32 %v1843, %v1845
        %2041 = vadd.xlane.f32.xlu0 %v2040
        %v2042 = vpop.xlane.xlu0 %2041
        %v2043 = vadd.f32 %v1847, %v1849
        %2044 = vadd.xlane.f32.xlu0 %v2043
        %v2045 = vpop.xlane.xlu0 %2044
        %v2046 = vadd.f32 %v1851, %v1853
        %2047 = vadd.xlane.f32.xlu0 %v2046
        %v2048 = vpop.xlane.xlu0 %2047
        %v2049 = vadd.f32 %v1855, %v1857
        %2050 = vadd.xlane.f32.xlu0 %v2049
        %v2051 = vpop.xlane.xlu0 %2050
        %v2052 = vadd.f32 %v1859, %v1861
        %2053 = vadd.xlane.f32.xlu0 %v2052
        %v2054 = vpop.xlane.xlu0 %2053
        %v2055 = vadd.f32 %v1863, %v1865
        %2056 = vadd.xlane.f32.xlu0 %v2055
        %v2057 = vpop.xlane.xlu0 %2056
        %v2058 = vsel %vm453, %v1899, 0.0
        %2059 = vadd.xlane.f32.xlu0 %v2058
        %v2060 = vpop.xlane.xlu0 %2059
        %v2061 = vsel %vm453, %v1901, 0.0
        %2062 = vadd.xlane.f32.xlu0 %v2061
        %v2063 = vpop.xlane.xlu0 %2062
        %v2064 = vsel %vm453, %v1903, 0.0
        %2065 = vadd.xlane.f32.xlu0 %v2064
        %v2066 = vpop.xlane.xlu0 %2065
        %v2067 = vsel %vm453, %v1905, 0.0
        %2068 = vadd.xlane.f32.xlu0 %v2067
        %v2069 = vpop.xlane.xlu0 %2068
        %v2070 = vsel %vm453, %v1907, 0.0
        %2071 = vadd.xlane.f32.xlu0 %v2070
        %v2072 = vpop.xlane.xlu0 %2071
        %v2073 = vsel %vm453, %v1909, 0.0
        %2074 = vadd.xlane.f32.xlu0 %v2073
        %v2075 = vpop.xlane.xlu0 %2074
        %v2076 = vsel %vm453, %v1911, 0.0
        %2077 = vadd.xlane.f32.xlu0 %v2076
        %v2078 = vpop.xlane.xlu0 %2077
        %v2079 = vsel %vm453, %v1913, 0.0
        %2080 = vadd.xlane.f32.xlu0 %v2079
        %v2081 = vpop.xlane.xlu0 %2080
        %v2082 = vsel %vm453, %v1915, 0.0
        %2083 = vadd.xlane.f32.xlu0 %v2082
        %v2084 = vpop.xlane.xlu0 %2083
        %v2085 = vsel %vm453, %v1917, 0.0
        %2086 = vadd.xlane.f32.xlu0 %v2085
        %v2087 = vpop.xlane.xlu0 %2086
        %v2088 = vsel %vm453, %v1919, 0.0
        %2089 = vadd.xlane.f32.xlu0 %v2088
        %v2090 = vpop.xlane.xlu0 %2089
        %v2091 = vsel %vm453, %v1921, 0.0
        %2092 = vadd.xlane.f32.xlu0 %v2091
        %v2093 = vpop.xlane.xlu0 %2092
        %v2094 = vsel %vm453, %v1923, 0.0
        %2095 = vadd.xlane.f32.xlu0 %v2094
        %v2096 = vpop.xlane.xlu0 %2095
        %v2097 = vsel %vm453, %v1925, 0.0
        %2098 = vadd.xlane.f32.xlu0 %v2097
        %v2099 = vpop.xlane.xlu0 %2098
        %v2100 = vsel %vm453, %v1927, 0.0
        %2101 = vadd.xlane.f32.xlu0 %v2100
        %v2102 = vpop.xlane.xlu0 %2101
        %v2103 = vsel %vm453, %v1929, 0.0
        %2104 = vadd.xlane.f32.xlu0 %v2103
        %v2105 = vpop.xlane.xlu0 %2104
        %v2106 = vsel %vm453, %v1931, 0.0
        %2107 = vadd.xlane.f32.xlu0 %v2106
        %v2108 = vpop.xlane.xlu0 %2107
        %v2109 = vsel %vm453, %v1933, 0.0
        %2110 = vadd.xlane.f32.xlu0 %v2109
        %v2111 = vpop.xlane.xlu0 %2110
        %v2112 = vsel %vm453, %v1935, 0.0
        %2113 = vadd.xlane.f32.xlu0 %v2112
        %v2114 = vpop.xlane.xlu0 %2113
        %v2115 = vsel %vm453, %v1937, 0.0
        %2116 = vadd.xlane.f32.xlu0 %v2115
        %v2117 = vpop.xlane.xlu0 %2116
        %v2118 = vsel %vm453, %v1939, 0.0
        %2119 = vadd.xlane.f32.xlu0 %v2118
        %v2120 = vpop.xlane.xlu0 %2119
        %v2121 = vsel %vm453, %v1941, 0.0
        %2122 = vadd.xlane.f32.xlu0 %v2121
        %v2123 = vpop.xlane.xlu0 %2122
        %v2124 = vsel %vm453, %v1943, 0.0
        %2125 = vadd.xlane.f32.xlu0 %v2124
        %v2126 = vpop.xlane.xlu0 %2125
        %v2127 = vsel %vm453, %v1945, 0.0
        %2128 = vadd.xlane.f32.xlu0 %v2127
        %v2129 = vpop.xlane.xlu0 %2128
        %v2130 = vsel %vm453, %v1947, 0.0
        %2131 = vadd.xlane.f32.xlu0 %v2130
        %v2132 = vpop.xlane.xlu0 %2131
        %v2133 = vsel %vm453, %v1949, 0.0
        %2134 = vadd.xlane.f32.xlu0 %v2133
        %v2135 = vpop.xlane.xlu0 %2134
        %v2136 = vsel %vm453, %v1951, 0.0
        %2137 = vadd.xlane.f32.xlu0 %v2136
        %v2138 = vpop.xlane.xlu0 %2137
        %v2139 = vsel %vm453, %v1953, 0.0
        %2140 = vadd.xlane.f32.xlu0 %v2139
        %v2141 = vpop.xlane.xlu0 %2140
        %v2142 = vsel %vm453, %v1955, 0.0
        %2143 = vadd.xlane.f32.xlu0 %v2142
        %v2144 = vpop.xlane.xlu0 %2143
        %v2145 = vsel %vm453, %v1957, 0.0
        %2146 = vadd.xlane.f32.xlu0 %v2145
        %v2147 = vpop.xlane.xlu0 %2146
        %v2148 = vsel %vm453, %v1959, 0.0
        %2149 = vadd.xlane.f32.xlu0 %v2148
        %v2150 = vpop.xlane.xlu0 %2149
        %v2151 = vsel %vm453, %v1961, 0.0
        %2152 = vadd.xlane.f32.xlu0 %v2151
        %v2153 = vpop.xlane.xlu0 %2152
        %v2154 = vadd.f32 %v1964, %v2060
        %v2155 = vadd.f32 %v1967, %v2063
        %v2156 = vadd.f32 %v1970, %v2066
        %v2157 = vadd.f32 %v1973, %v2069
        %v2158 = vadd.f32 %v1976, %v2072
        %v2159 = vadd.f32 %v1979, %v2075
        %v2160 = vadd.f32 %v1982, %v2078
        %v2161 = vadd.f32 %v1985, %v2081
        %v2162 = vadd.f32 %v1988, %v2084
        %v2163 = vadd.f32 %v1991, %v2087
        %v2164 = vadd.f32 %v1994, %v2090
        %v2165 = vadd.f32 %v1997, %v2093
        %v2166 = vadd.f32 %v2000, %v2096
        %v2167 = vadd.f32 %v2003, %v2099
        %v2168 = vadd.f32 %v2006, %v2102
        %v2169 = vadd.f32 %v2009, %v2105
        %v2170 = vadd.f32 %v2012, %v2108
        %v2171 = vadd.f32 %v2015, %v2111
        %v2172 = vadd.f32 %v2018, %v2114
        %v2173 = vadd.f32 %v2021, %v2117
        %v2174 = vadd.f32 %v2024, %v2120
        %v2175 = vadd.f32 %v2027, %v2123
        %v2176 = vadd.f32 %v2030, %v2126
        %v2177 = vadd.f32 %v2033, %v2129
        %v2178 = vadd.f32 %v2036, %v2132
        %v2179 = vadd.f32 %v2039, %v2135
        %v2180 = vadd.f32 %v2042, %v2138
        %v2181 = vadd.f32 %v2045, %v2141
        %v2182 = vadd.f32 %v2048, %v2144
        %v2183 = vadd.f32 %v2051, %v2147
        %v2184 = vadd.f32 %v2054, %v2150
        %v2185 = vadd.f32 %v2057, %v2153
        %v2186 = vrcp.pop %v2154
        %v2187 = vrcp.pop %v2155
        %v2188 = vrcp.pop %v2156
        %v2189 = vrcp.pop %v2157
        %v2190 = vrcp.pop %v2158
        %v2191 = vrcp.pop %v2159
        %v2192 = vrcp.pop %v2160
        %v2193 = vrcp.pop %v2161
        %v2194 = vrcp.pop %v2162
        %v2195 = vrcp.pop %v2163
        %v2196 = vrcp.pop %v2164
        %v2197 = vrcp.pop %v2165
        %v2198 = vrcp.pop %v2166
        %v2199 = vrcp.pop %v2167
        %v2200 = vrcp.pop %v2168
        %v2201 = vrcp.pop %v2169
        %v2202 = vrcp.pop %v2170
        %v2203 = vrcp.pop %v2171
        %v2204 = vrcp.pop %v2172
        %v2205 = vrcp.pop %v2173
        %v2206 = vrcp.pop %v2174
        %v2207 = vrcp.pop %v2175
        %v2208 = vrcp.pop %v2176
        %v2209 = vrcp.pop %v2177
        %v2210 = vrcp.pop %v2178
        %v2211 = vrcp.pop %v2179
        %v2212 = vrcp.pop %v2180
        %v2213 = vrcp.pop %v2181
        %v2214 = vrcp.pop %v2182
        %v2215 = vrcp.pop %v2183
        %v2216 = vrcp.pop %v2184
        %v2217 = vrcp.pop %v2185
        %v2218 = vmul.f32 %v1739, %v2186
        %v2219 = vmul.f32 %v1741, %v2186
        %v2220 = vmul.f32 %v1743, %v2187
        %v2221 = vmul.f32 %v1745, %v2187
        %v2222 = vmul.f32 %v1747, %v2188
        %v2223 = vmul.f32 %v1749, %v2188
        %v2224 = vmul.f32 %v1751, %v2189
        %v2225 = vmul.f32 %v1753, %v2189
        %v2226 = vmul.f32 %v1755, %v2190
        %v2227 = vmul.f32 %v1757, %v2190
        %v2228 = vmul.f32 %v1759, %v2191
        %v2229 = vmul.f32 %v1761, %v2191
        %v2230 = vmul.f32 %v1763, %v2192
        %v2231 = vmul.f32 %v1765, %v2192
        %v2232 = vmul.f32 %v1767, %v2193
        %v2233 = vmul.f32 %v1769, %v2193
        %v2234 = vmul.f32 %v1771, %v2194
        %v2235 = vmul.f32 %v1773, %v2194
        %v2236 = vmul.f32 %v1775, %v2195
        %v2237 = vmul.f32 %v1777, %v2195
        %v2238 = vmul.f32 %v1779, %v2196
        %v2239 = vmul.f32 %v1781, %v2196
        %v2240 = vmul.f32 %v1783, %v2197
        %v2241 = vmul.f32 %v1785, %v2197
        %v2242 = vmul.f32 %v1787, %v2198
        %v2243 = vmul.f32 %v1789, %v2198
        %v2244 = vmul.f32 %v1791, %v2199
        %v2245 = vmul.f32 %v1793, %v2199
        %v2246 = vmul.f32 %v1795, %v2200
        %v2247 = vmul.f32 %v1797, %v2200
        %v2248 = vmul.f32 %v1799, %v2201
        %v2249 = vmul.f32 %v1801, %v2201
        %v2250 = vmul.f32 %v1803, %v2202
        %v2251 = vmul.f32 %v1805, %v2202
        %v2252 = vmul.f32 %v1807, %v2203
        %v2253 = vmul.f32 %v1809, %v2203
        %v2254 = vmul.f32 %v1811, %v2204
        %v2255 = vmul.f32 %v1813, %v2204
        %v2256 = vmul.f32 %v1815, %v2205
        %v2257 = vmul.f32 %v1817, %v2205
        %v2258 = vmul.f32 %v1819, %v2206
        %v2259 = vmul.f32 %v1821, %v2206
        %v2260 = vmul.f32 %v1823, %v2207
        %v2261 = vmul.f32 %v1825, %v2207
        %v2262 = vmul.f32 %v1827, %v2208
        %v2263 = vmul.f32 %v1829, %v2208
        %v2264 = vmul.f32 %v1831, %v2209
        %v2265 = vmul.f32 %v1833, %v2209
        %v2266 = vmul.f32 %v1835, %v2210
        %v2267 = vmul.f32 %v1837, %v2210
        %v2268 = vmul.f32 %v1839, %v2211
        %v2269 = vmul.f32 %v1841, %v2211
        %v2270 = vmul.f32 %v1843, %v2212
        %v2271 = vmul.f32 %v1845, %v2212
        %v2272 = vmul.f32 %v1847, %v2213
        %v2273 = vmul.f32 %v1849, %v2213
        %v2274 = vmul.f32 %v1851, %v2214
        %v2275 = vmul.f32 %v1853, %v2214
        %v2276 = vmul.f32 %v1855, %v2215
        %v2277 = vmul.f32 %v1857, %v2215
        %v2278 = vmul.f32 %v1859, %v2216
        %v2279 = vmul.f32 %v1861, %v2216
        %v2280 = vmul.f32 %v1863, %v2217
        %v2281 = vmul.f32 %v1865, %v2217
        %v2282 = vpack.c.bf16 %v2220, %v2218
        %v2283 = vpack.c.bf16 %v2221, %v2219
        %v2284 = vpack.c.bf16 %v2224, %v2222
        %v2285 = vpack.c.bf16 %v2225, %v2223
        %v2286 = vpack.c.bf16 %v2228, %v2226
        %v2287 = vpack.c.bf16 %v2229, %v2227
        %v2288 = vpack.c.bf16 %v2232, %v2230
        %v2289 = vpack.c.bf16 %v2233, %v2231
        %v2290 = vpack.c.bf16 %v2236, %v2234
        %v2291 = vpack.c.bf16 %v2237, %v2235
        %v2292 = vpack.c.bf16 %v2240, %v2238
        %v2293 = vpack.c.bf16 %v2241, %v2239
        %v2294 = vpack.c.bf16 %v2244, %v2242
        %v2295 = vpack.c.bf16 %v2245, %v2243
        %v2296 = vpack.c.bf16 %v2248, %v2246
        %v2297 = vpack.c.bf16 %v2249, %v2247
        %v2298 = vpack.c.bf16 %v2252, %v2250
        %v2299 = vpack.c.bf16 %v2253, %v2251
        %v2300 = vpack.c.bf16 %v2256, %v2254
        %v2301 = vpack.c.bf16 %v2257, %v2255
        %v2302 = vpack.c.bf16 %v2260, %v2258
        %v2303 = vpack.c.bf16 %v2261, %v2259
        %v2304 = vpack.c.bf16 %v2264, %v2262
        %v2305 = vpack.c.bf16 %v2265, %v2263
        %v2306 = vpack.c.bf16 %v2268, %v2266
        %v2307 = vpack.c.bf16 %v2269, %v2267
        %v2308 = vpack.c.bf16 %v2272, %v2270
        %v2309 = vpack.c.bf16 %v2273, %v2271
        %v2310 = vpack.c.bf16 %v2276, %v2274
        %v2311 = vpack.c.bf16 %v2277, %v2275
        %v2312 = vpack.c.bf16 %v2280, %v2278
        %v2313 = vpack.c.bf16 %v2281, %v2279
        %v2314 = vmul.f32 %v1899, %v2186
        %v2315 = vmul.f32 %v1901, %v2187
        %v2316 = vmul.f32 %v1903, %v2188
        %v2317 = vmul.f32 %v1905, %v2189
        %v2318 = vmul.f32 %v1907, %v2190
        %v2319 = vmul.f32 %v1909, %v2191
        %v2320 = vmul.f32 %v1911, %v2192
        %v2321 = vmul.f32 %v1913, %v2193
        %v2322 = vmul.f32 %v1915, %v2194
        %v2323 = vmul.f32 %v1917, %v2195
        %v2324 = vmul.f32 %v1919, %v2196
        %v2325 = vmul.f32 %v1921, %v2197
        %v2326 = vmul.f32 %v1923, %v2198
        %v2327 = vmul.f32 %v1925, %v2199
        %v2328 = vmul.f32 %v1927, %v2200
        %v2329 = vmul.f32 %v1929, %v2201
        %v2330 = vmul.f32 %v1931, %v2202
        %v2331 = vmul.f32 %v1933, %v2203
        %v2332 = vmul.f32 %v1935, %v2204
        %v2333 = vmul.f32 %v1937, %v2205
        %v2334 = vmul.f32 %v1939, %v2206
        %v2335 = vmul.f32 %v1941, %v2207
        %v2336 = vmul.f32 %v1943, %v2208
        %v2337 = vmul.f32 %v1945, %v2209
        %v2338 = vmul.f32 %v1947, %v2210
        %v2339 = vmul.f32 %v1949, %v2211
        %v2340 = vmul.f32 %v1951, %v2212
        %v2341 = vmul.f32 %v1953, %v2213
        %v2342 = vmul.f32 %v1955, %v2214
        %v2343 = vmul.f32 %v1957, %v2215
        %v2344 = vmul.f32 %v1959, %v2216
        %v2345 = vmul.f32 %v1961, %v2217
        %v2346 = vpack.c.bf16 %v2315, %v2314
        %v2347 = vpack.c.bf16 %v2317, %v2316
        %v2348 = vpack.c.bf16 %v2319, %v2318
        %v2349 = vpack.c.bf16 %v2321, %v2320
        %v2350 = vpack.c.bf16 %v2323, %v2322
        %v2351 = vpack.c.bf16 %v2325, %v2324
        %v2352 = vpack.c.bf16 %v2327, %v2326
        %v2353 = vpack.c.bf16 %v2329, %v2328
        %v2354 = vpack.c.bf16 %v2331, %v2330
        %v2355 = vpack.c.bf16 %v2333, %v2332
        %v2356 = vpack.c.bf16 %v2335, %v2334
        %v2357 = vpack.c.bf16 %v2337, %v2336
        %v2358 = vpack.c.bf16 %v2339, %v2338
        %v2359 = vpack.c.bf16 %v2341, %v2340
        %v2360 = vpack.c.bf16 %v2343, %v2342
        %v2361 = vpack.c.bf16 %v2345, %v2344
        %2362 = vmatprep.subr.bf16.mxu0 0
        %2363 = vmatpush1.bf16.msra.mxu0 %v966
        %2364 = vmatprep.subr.bf16.mxu0 0
        %2365 = vmatpush1.bf16.msra.mxu0 %v967
        %2366 = vmatprep.subr.bf16.mxu0 0
        %2367 = vmatpush1.bf16.msra.mxu0 %v968
        %2368 = vmatprep.subr.bf16.mxu0 0
        %2369 = vmatpush1.bf16.msra.mxu0 %v969
        %2370 = vmatprep.subr.bf16.mxu0 0
        %2371 = vmatpush1.bf16.msra.mxu0 %v970
        %2372 = vmatprep.subr.bf16.mxu0 0
        %2373 = vmatpush1.bf16.msra.mxu0 %v971
        %2374 = vmatprep.subr.bf16.mxu0 0
        %2375 = vmatpush1.bf16.msra.mxu0 %v972
        %2376 = vmatprep.subr.bf16.mxu0 0
        %2377 = vmatpush1.bf16.msra.mxu0 %v973
        %2378 = vmatprep.subr.bf16.mxu0 0
        %2379 = vmatpush1.bf16.msra.mxu0 %v974
        %2380 = vmatprep.subr.bf16.mxu0 0
        %2381 = vmatpush1.bf16.msra.mxu0 %v975
        %2382 = vmatprep.subr.bf16.mxu0 0
        %2383 = vmatpush1.bf16.msra.mxu0 %v976
        %2384 = vmatprep.subr.bf16.mxu0 0
        %2385 = vmatpush1.bf16.msra.mxu0 %v977
        %2386 = vmatprep.subr.bf16.mxu0 0
        %2387 = vmatpush1.bf16.msra.mxu0 %v978
        %2388 = vmatprep.subr.bf16.mxu0 0
        %2389 = vmatpush1.bf16.msra.mxu0 %v979
        %2390 = vmatprep.subr.bf16.mxu0 0
        %2391 = vmatpush1.bf16.msra.mxu0 %v980
        %2392 = vmatprep.subr.bf16.mxu0 0
        %2393 = vmatpush1.bf16.msra.mxu0 %v981
        %2394 = vmatprep.mubr.bf16.mxu0 %v2283
        %2395 = vmatmul.mubr.bf16.gmra.mrb[0].mxu0 %v2282
        %v2396 = vpop.f32.mrb[0].mxu0
        %v2397 = vadd.f32 0.0, %v2396
        %v2398 = vpop.f32.mrb[0].mxu0
        %v2399 = vpop.f32.mrb[0].mxu0
        %v2400 = vadd.f32 0.0, %v2399
        %v2401 = vpop.f32.mrb[0].mxu0
        %2402 = vmatprep.mubr.bf16.mxu0 %v2285
        %2403 = vmatmul.mubr.bf16.gmra.mrb[0].mxu0 %v2284
        %v2404 = vpop.f32.mrb[0].mxu0
        %v2405 = vadd.f32 0.0, %v2404
        %v2406 = vpop.f32.mrb[0].mxu0
        %v2407 = vpop.f32.mrb[0].mxu0
        %v2408 = vadd.f32 0.0, %v2407
        %v2409 = vpop.f32.mrb[0].mxu0
        %2410 = vmatprep.mubr.bf16.mxu0 %v2287
        %2411 = vmatmul.mubr.bf16.gmra.mrb[0].mxu0 %v2286
        %v2412 = vpop.f32.mrb[0].mxu0
        %v2413 = vadd.f32 0.0, %v2412
        %v2414 = vpop.f32.mrb[0].mxu0
        %v2415 = vpop.f32.mrb[0].mxu0
        %v2416 = vadd.f32 0.0, %v2415
        %v2417 = vpop.f32.mrb[0].mxu0
        %2418 = vmatprep.mubr.bf16.mxu0 %v2289
        %2419 = vmatmul.mubr.bf16.gmra.mrb[0].mxu0 %v2288
        %v2420 = vpop.f32.mrb[0].mxu0
        %v2421 = vadd.f32 0.0, %v2420
        %v2422 = vpop.f32.mrb[0].mxu0
        %v2423 = vpop.f32.mrb[0].mxu0
        %v2424 = vadd.f32 0.0, %v2423
        %v2425 = vpop.f32.mrb[0].mxu0
        %2426 = vmatprep.mubr.bf16.mxu0 %v2291
        %2427 = vmatmul.mubr.bf16.gmra.mrb[0].mxu0 %v2290
        %v2428 = vpop.f32.mrb[0].mxu0
        %v2429 = vadd.f32 0.0, %v2428
        %v2430 = vpop.f32.mrb[0].mxu0
        %v2431 = vpop.f32.mrb[0].mxu0
        %v2432 = vadd.f32 0.0, %v2431
        %v2433 = vpop.f32.mrb[0].mxu0
        %2434 = vmatprep.mubr.bf16.mxu0 %v2293
        %2435 = vmatmul.mubr.bf16.gmra.mrb[0].mxu0 %v2292
        %v2436 = vpop.f32.mrb[0].mxu0
        %v2437 = vadd.f32 0.0, %v2436
        %v2438 = vpop.f32.mrb[0].mxu0
        %v2439 = vpop.f32.mrb[0].mxu0
        %v2440 = vadd.f32 0.0, %v2439
        %v2441 = vpop.f32.mrb[0].mxu0
        %2442 = vmatprep.mubr.bf16.mxu0 %v2295
        %2443 = vmatmul.mubr.bf16.gmra.mrb[0].mxu0 %v2294
        %v2444 = vpop.f32.mrb[0].mxu0
        %v2445 = vadd.f32 0.0, %v2444
        %v2446 = vpop.f32.mrb[0].mxu0
        %v2447 = vpop.f32.mrb[0].mxu0
        %v2448 = vadd.f32 0.0, %v2447
        %v2449 = vpop.f32.mrb[0].mxu0
        %2450 = vmatprep.mubr.bf16.mxu0 %v2297
        %2451 = vmatmul.mubr.bf16.gmra.mrb[0].mxu0 %v2296
        %v2452 = vpop.f32.mrb[0].mxu0
        %v2453 = vadd.f32 0.0, %v2452
        %v2454 = vpop.f32.mrb[0].mxu0
        %v2455 = vpop.f32.mrb[0].mxu0
        %v2456 = vadd.f32 0.0, %v2455
        %v2457 = vpop.f32.mrb[0].mxu0
        %2458 = vmatprep.mubr.bf16.mxu0 %v2299
        %2459 = vmatmul.mubr.bf16.gmra.mrb[0].mxu0 %v2298
        %v2460 = vpop.f32.mrb[0].mxu0
        %v2461 = vadd.f32 0.0, %v2460
        %v2462 = vpop.f32.mrb[0].mxu0
        %v2463 = vpop.f32.mrb[0].mxu0
        %v2464 = vadd.f32 0.0, %v2463
        %v2465 = vpop.f32.mrb[0].mxu0
        %2466 = vmatprep.mubr.bf16.mxu0 %v2301
        %2467 = vmatmul.mubr.bf16.gmra.mrb[0].mxu0 %v2300
        %v2468 = vpop.f32.mrb[0].mxu0
        %v2469 = vadd.f32 0.0, %v2468
        %v2470 = vpop.f32.mrb[0].mxu0
        %v2471 = vpop.f32.mrb[0].mxu0
        %v2472 = vadd.f32 0.0, %v2471
        %v2473 = vpop.f32.mrb[0].mxu0
        %2474 = vmatprep.mubr.bf16.mxu0 %v2303
        %2475 = vmatmul.mubr.bf16.gmra.mrb[0].mxu0 %v2302
        %v2476 = vpop.f32.mrb[0].mxu0
        %v2477 = vadd.f32 0.0, %v2476
        %v2478 = vpop.f32.mrb[0].mxu0
        %v2479 = vpop.f32.mrb[0].mxu0
        %v2480 = vadd.f32 0.0, %v2479
        %v2481 = vpop.f32.mrb[0].mxu0
        %2482 = vmatprep.mubr.bf16.mxu0 %v2305
        %2483 = vmatmul.mubr.bf16.gmra.mrb[0].mxu0 %v2304
        %v2484 = vpop.f32.mrb[0].mxu0
        %v2485 = vadd.f32 0.0, %v2484
        %v2486 = vpop.f32.mrb[0].mxu0
        %v2487 = vpop.f32.mrb[0].mxu0
        %v2488 = vadd.f32 0.0, %v2487
        %v2489 = vpop.f32.mrb[0].mxu0
        %2490 = vmatprep.mubr.bf16.mxu0 %v2307
        %2491 = vmatmul.mubr.bf16.gmra.mrb[0].mxu0 %v2306
        %v2492 = vpop.f32.mrb[0].mxu0
        %v2493 = vadd.f32 0.0, %v2492
        %v2494 = vpop.f32.mrb[0].mxu0
        %v2495 = vpop.f32.mrb[0].mxu0
        %v2496 = vadd.f32 0.0, %v2495
        %v2497 = vpop.f32.mrb[0].mxu0
        %2498 = vmatprep.mubr.bf16.mxu0 %v2309
        %2499 = vmatmul.mubr.bf16.gmra.mrb[0].mxu0 %v2308
        %v2500 = vpop.f32.mrb[0].mxu0
        %v2501 = vadd.f32 0.0, %v2500
        %v2502 = vpop.f32.mrb[0].mxu0
        %v2503 = vpop.f32.mrb[0].mxu0
        %v2504 = vadd.f32 0.0, %v2503
        %v2505 = vpop.f32.mrb[0].mxu0
        %2506 = vmatprep.mubr.bf16.mxu0 %v2311
        %2507 = vmatmul.mubr.bf16.gmra.mrb[0].mxu0 %v2310
        %v2508 = vpop.f32.mrb[0].mxu0
        %v2509 = vadd.f32 0.0, %v2508
        %v2510 = vpop.f32.mrb[0].mxu0
        %v2511 = vpop.f32.mrb[0].mxu0
        %v2512 = vadd.f32 0.0, %v2511
        %v2513 = vpop.f32.mrb[0].mxu0
        %2514 = vmatprep.mubr.bf16.mxu0 %v2313
        %2515 = vmatmul.mubr.bf16.gmra.mrb[0].mxu0 %v2312
        %v2516 = vpop.f32.mrb[0].mxu0
        %v2517 = vadd.f32 0.0, %v2516
        %v2518 = vpop.f32.mrb[0].mxu0
        %v2519 = vpop.f32.mrb[0].mxu0
        %v2520 = vadd.f32 0.0, %v2519
        %v2521 = vpop.f32.mrb[0].mxu0
        %2522 = vdwg.mxu0
        %v2523 = vpack.c.bf16 %v2400, %v2397
        %v2524 = vpack.c.bf16 %v2408, %v2405
        %v2525 = vpack.c.bf16 %v2416, %v2413
        %v2526 = vpack.c.bf16 %v2424, %v2421
        %v2527 = vpack.c.bf16 %v2432, %v2429
        %v2528 = vpack.c.bf16 %v2440, %v2437
        %v2529 = vpack.c.bf16 %v2448, %v2445
        %v2530 = vpack.c.bf16 %v2456, %v2453
        %v2531 = vpack.c.bf16 %v2464, %v2461
        %v2532 = vpack.c.bf16 %v2472, %v2469
        %v2533 = vpack.c.bf16 %v2480, %v2477
        %v2534 = vpack.c.bf16 %v2488, %v2485
        %v2535 = vpack.c.bf16 %v2496, %v2493
        %v2536 = vpack.c.bf16 %v2504, %v2501
        %v2537 = vpack.c.bf16 %v2512, %v2509
        %v2538 = vpack.c.bf16 %v2520, %v2517
        %v2539 = vld [vmem:[%s4] sm:$0xf]
        %v2540 = vld [vmem:[%s4 + $0x4] sm:$0xf]
        %v2541 = vld [vmem:[%s4 + $0x8] sm:$0xf]
        %v2542 = vld [vmem:[%s4 + $0xc] sm:$0xf]
        %v2543 = vld [vmem:[%s3] sm:$0x3]
        %v2545 = vsel %vm453, %v2346, 0
        %v2548 = vsel %vm453, %v2347, 0
        %v2551 = vsel %vm453, %v2348, 0
        %v2554 = vsel %vm453, %v2349, 0
        %v2557 = vsel %vm453, %v2350, 0
        %v2560 = vsel %vm453, %v2351, 0
        %v2563 = vsel %vm453, %v2352, 0
        %v2566 = vsel %vm453, %v2353, 0
        %v2569 = vsel %vm453, %v2354, 0
        %v2572 = vsel %vm453, %v2355, 0
        %v2575 = vsel %vm453, %v2356, 0
        %v2578 = vsel %vm453, %v2357, 0
        %v2581 = vsel %vm453, %v2358, 0
        %v2584 = vsel %vm453, %v2359, 0
        %v2587 = vsel %vm453, %v2360, 0
        %v2590 = vsel %vm453, %v2361, 0
        %v2593 = vsel %vm526, %v2543, 0
        %2595 = vmatprep.subr.bf16.mxu0 0
        %2596 = vmatpush1.bf16.msra.mxu0 %v2593
        %2597 = vmatprep.subr.bf16.mxu0 0
        %2598 = vmatpush1.bf16.msra.mxu0 0
        %2599 = vmatprep.subr.bf16.mxu0 0
        %2600 = vmatpush1.bf16.msra.mxu0 0
        %2601 = vmatprep.subr.bf16.mxu0 0
        %2602 = vmatpush1.bf16.msra.mxu0 0
        %2603 = vmatprep.subr.bf16.mxu0 0
        %2604 = vmatpush1.bf16.msra.mxu0 0
        %2605 = vmatprep.subr.bf16.mxu0 0
        %2606 = vmatpush1.bf16.msra.mxu0 0
        %2607 = vmatprep.subr.bf16.mxu0 0
        %2608 = vmatpush1.bf16.msra.mxu0 0
        %2609 = vmatprep.subr.bf16.mxu0 0
        %2610 = vmatpush1.bf16.msra.mxu0 0
        %2611 = vmatprep.subr.bf16.mxu0 0
        %2612 = vmatpush1.bf16.msra.mxu0 0
        %2613 = vmatprep.subr.bf16.mxu0 0
        %2614 = vmatpush1.bf16.msra.mxu0 0
        %2615 = vmatprep.subr.bf16.mxu0 0
        %2616 = vmatpush1.bf16.msra.mxu0 0
        %2617 = vmatprep.subr.bf16.mxu0 0
        %2618 = vmatpush1.bf16.msra.mxu0 0
        %2619 = vmatprep.subr.bf16.mxu0 0
        %2620 = vmatpush1.bf16.msra.mxu0 0
        %2621 = vmatprep.subr.bf16.mxu0 0
        %2622 = vmatpush1.bf16.msra.mxu0 0
        %2623 = vmatprep.subr.bf16.mxu0 0
        %2624 = vmatpush1.bf16.msra.mxu0 0
        %2625 = vmatprep.subr.bf16.mxu0 0
        %2626 = vmatpush1.bf16.msra.mxu0 0
        %2627 = vmatprep.mubr.bf16.mxu0 0
        %2628 = vmatmul.mubr.bf16.gmra.mrb[0].mxu0 %v2545
        %v2629 = vpop.f32.mrb[0].mxu0
        %v2630 = vadd.f32 0.0, %v2629
        %v2631 = vpop.f32.mrb[0].mxu0
        %v2632 = vpop.f32.mrb[0].mxu0
        %v2633 = vadd.f32 0.0, %v2632
        %v2634 = vpop.f32.mrb[0].mxu0
        %2635 = vmatprep.mubr.bf16.mxu0 0
        %2636 = vmatmul.mubr.bf16.gmra.mrb[0].mxu0 %v2548
        %v2637 = vpop.f32.mrb[0].mxu0
        %v2638 = vadd.f32 0.0, %v2637
        %v2639 = vpop.f32.mrb[0].mxu0
        %v2640 = vpop.f32.mrb[0].mxu0
        %v2641 = vadd.f32 0.0, %v2640
        %v2642 = vpop.f32.mrb[0].mxu0
        %2643 = vmatprep.mubr.bf16.mxu0 0
        %2644 = vmatmul.mubr.bf16.gmra.mrb[0].mxu0 %v2551
        %v2645 = vpop.f32.mrb[0].mxu0
        %v2646 = vadd.f32 0.0, %v2645
        %v2647 = vpop.f32.mrb[0].mxu0
        %v2648 = vpop.f32.mrb[0].mxu0
        %v2649 = vadd.f32 0.0, %v2648
        %v2650 = vpop.f32.mrb[0].mxu0
        %2651 = vmatprep.mubr.bf16.mxu0 0
        %2652 = vmatmul.mubr.bf16.gmra.mrb[0].mxu0 %v2554
        %v2653 = vpop.f32.mrb[0].mxu0
        %v2654 = vadd.f32 0.0, %v2653
        %v2655 = vpop.f32.mrb[0].mxu0
        %v2656 = vpop.f32.mrb[0].mxu0
        %v2657 = vadd.f32 0.0, %v2656
        %v2658 = vpop.f32.mrb[0].mxu0
        %2659 = vmatprep.mubr.bf16.mxu0 0
        %2660 = vmatmul.mubr.bf16.gmra.mrb[0].mxu0 %v2557
        %v2661 = vpop.f32.mrb[0].mxu0
        %v2662 = vadd.f32 0.0, %v2661
        %v2663 = vpop.f32.mrb[0].mxu0
        %v2664 = vpop.f32.mrb[0].mxu0
        %v2665 = vadd.f32 0.0, %v2664
        %v2666 = vpop.f32.mrb[0].mxu0
        %2667 = vmatprep.mubr.bf16.mxu0 0
        %2668 = vmatmul.mubr.bf16.gmra.mrb[0].mxu0 %v2560
        %v2669 = vpop.f32.mrb[0].mxu0
        %v2670 = vadd.f32 0.0, %v2669
        %v2671 = vpop.f32.mrb[0].mxu0
        %v2672 = vpop.f32.mrb[0].mxu0
        %v2673 = vadd.f32 0.0, %v2672
        %v2674 = vpop.f32.mrb[0].mxu0
        %2675 = vmatprep.mubr.bf16.mxu0 0
        %2676 = vmatmul.mubr.bf16.gmra.mrb[0].mxu0 %v2563
        %v2677 = vpop.f32.mrb[0].mxu0
        %v2678 = vadd.f32 0.0, %v2677
        %v2679 = vpop.f32.mrb[0].mxu0
        %v2680 = vpop.f32.mrb[0].mxu0
        %v2681 = vadd.f32 0.0, %v2680
        %v2682 = vpop.f32.mrb[0].mxu0
        %2683 = vmatprep.mubr.bf16.mxu0 0
        %2684 = vmatmul.mubr.bf16.gmra.mrb[0].mxu0 %v2566
        %v2685 = vpop.f32.mrb[0].mxu0
        %v2686 = vadd.f32 0.0, %v2685
        %v2687 = vpop.f32.mrb[0].mxu0
        %v2688 = vpop.f32.mrb[0].mxu0
        %v2689 = vadd.f32 0.0, %v2688
        %v2690 = vpop.f32.mrb[0].mxu0
        %2691 = vmatprep.mubr.bf16.mxu0 0
        %2692 = vmatmul.mubr.bf16.gmra.mrb[0].mxu0 %v2569
        %v2693 = vpop.f32.mrb[0].mxu0
        %v2694 = vadd.f32 0.0, %v2693
        %v2695 = vpop.f32.mrb[0].mxu0
        %v2696 = vpop.f32.mrb[0].mxu0
        %v2697 = vadd.f32 0.0, %v2696
        %v2698 = vpop.f32.mrb[0].mxu0
        %2699 = vmatprep.mubr.bf16.mxu0 0
        %2700 = vmatmul.mubr.bf16.gmra.mrb[0].mxu0 %v2572
        %v2701 = vpop.f32.mrb[0].mxu0
        %v2702 = vadd.f32 0.0, %v2701
        %v2703 = vpop.f32.mrb[0].mxu0
        %v2704 = vpop.f32.mrb[0].mxu0
        %v2705 = vadd.f32 0.0, %v2704
        %v2706 = vpop.f32.mrb[0].mxu0
        %2707 = vmatprep.mubr.bf16.mxu0 0
        %2708 = vmatmul.mubr.bf16.gmra.mrb[0].mxu0 %v2575
        %v2709 = vpop.f32.mrb[0].mxu0
        %v2710 = vadd.f32 0.0, %v2709
        %v2711 = vpop.f32.mrb[0].mxu0
        %v2712 = vpop.f32.mrb[0].mxu0
        %v2713 = vadd.f32 0.0, %v2712
        %v2714 = vpop.f32.mrb[0].mxu0
        %2715 = vmatprep.mubr.bf16.mxu0 0
        %2716 = vmatmul.mubr.bf16.gmra.mrb[0].mxu0 %v2578
        %v2717 = vpop.f32.mrb[0].mxu0
        %v2718 = vadd.f32 0.0, %v2717
        %v2719 = vpop.f32.mrb[0].mxu0
        %v2720 = vpop.f32.mrb[0].mxu0
        %v2721 = vadd.f32 0.0, %v2720
        %v2722 = vpop.f32.mrb[0].mxu0
        %2723 = vmatprep.mubr.bf16.mxu0 0
        %2724 = vmatmul.mubr.bf16.gmra.mrb[0].mxu0 %v2581
        %v2725 = vpop.f32.mrb[0].mxu0
        %v2726 = vadd.f32 0.0, %v2725
        %v2727 = vpop.f32.mrb[0].mxu0
        %v2728 = vpop.f32.mrb[0].mxu0
        %v2729 = vadd.f32 0.0, %v2728
        %v2730 = vpop.f32.mrb[0].mxu0
        %2731 = vmatprep.mubr.bf16.mxu0 0
        %2732 = vmatmul.mubr.bf16.gmra.mrb[0].mxu0 %v2584
        %v2733 = vpop.f32.mrb[0].mxu0
        %v2734 = vadd.f32 0.0, %v2733
        %v2735 = vpop.f32.mrb[0].mxu0
        %v2736 = vpop.f32.mrb[0].mxu0
        %v2737 = vadd.f32 0.0, %v2736
        %v2738 = vpop.f32.mrb[0].mxu0
        %2739 = vmatprep.mubr.bf16.mxu0 0
        %2740 = vmatmul.mubr.bf16.gmra.mrb[0].mxu0 %v2587
        %v2741 = vpop.f32.mrb[0].mxu0
        %v2742 = vadd.f32 0.0, %v2741
        %v2743 = vpop.f32.mrb[0].mxu0
        %v2744 = vpop.f32.mrb[0].mxu0
        %v2745 = vadd.f32 0.0, %v2744
        %v2746 = vpop.f32.mrb[0].mxu0
        %2747 = vmatprep.mubr.bf16.mxu0 0
        %2748 = vmatmul.mubr.bf16.gmra.mrb[0].mxu0 %v2590
        %v2749 = vpop.f32.mrb[0].mxu0
        %v2750 = vadd.f32 0.0, %v2749
        %v2751 = vpop.f32.mrb[0].mxu0
        %v2752 = vpop.f32.mrb[0].mxu0
        %v2753 = vadd.f32 0.0, %v2752
        %v2754 = vpop.f32.mrb[0].mxu0
        %2755 = vdwg.mxu0
        %v2760 = vunpack.c.l.b16 %v2539
        %v2761 = vunpack.c.l.b16 %v2540
        %v2762 = vunpack.c.l.b16 %v2541
        %v2763 = vunpack.c.l.b16 %v2542
        %v2764 = vpack.c.b16 %v2761, %v2760
        %v2765 = vpack.c.b16 %v2763, %v2762
        %v2769 = vsel %vm1304, %v2523, 0
        %v2772 = vsel %vm1304, %v2524, 0
        %v2775 = vsel %vm1304, %v2525, 0
        %v2778 = vsel %vm1304, %v2526, 0
        %v2781 = vsel %vm1304, %v2527, 0
        %v2784 = vsel %vm1304, %v2528, 0
        %v2787 = vsel %vm1304, %v2529, 0
        %v2790 = vsel %vm1304, %v2530, 0
        %v2793 = vsel %vm1304, %v2531, 0
        %v2796 = vsel %vm1304, %v2532, 0
        %v2799 = vsel %vm1304, %v2533, 0
        %v2802 = vsel %vm1304, %v2534, 0
        %v2805 = vsel %vm1304, %v2535, 0
        %v2808 = vsel %vm1304, %v2536, 0
        %v2811 = vsel %vm1304, %v2537, 0
        %v2814 = vsel %vm1304, %v2538, 0
        %2816 = vmatprep.subr.bf16.mxu0 0
        %2817 = vmatpush1.bf16.msra.mxu0 %v2764
        %2818 = vmatprep.subr.bf16.mxu0 0
        %2819 = vmatpush1.bf16.msra.mxu0 %v2765
        %2820 = vmatprep.subr.bf16.mxu0 0
        %2821 = vmatpush1.bf16.msra.mxu0 0
        %2822 = vmatprep.subr.bf16.mxu0 0
        %2823 = vmatpush1.bf16.msra.mxu0 0
        %2824 = vmatprep.subr.bf16.mxu0 0
        %2825 = vmatpush1.bf16.msra.mxu0 0
        %2826 = vmatprep.subr.bf16.mxu0 0
        %2827 = vmatpush1.bf16.msra.mxu0 0
        %2828 = vmatprep.subr.bf16.mxu0 0
        %2829 = vmatpush1.bf16.msra.mxu0 0
        %2830 = vmatprep.subr.bf16.mxu0 0
        %2831 = vmatpush1.bf16.msra.mxu0 0
        %2832 = vmatprep.subr.bf16.mxu0 0
        %2833 = vmatpush1.bf16.msra.mxu0 0
        %2834 = vmatprep.subr.bf16.mxu0 0
        %2835 = vmatpush1.bf16.msra.mxu0 0
        %2836 = vmatprep.subr.bf16.mxu0 0
        %2837 = vmatpush1.bf16.msra.mxu0 0
        %2838 = vmatprep.subr.bf16.mxu0 0
        %2839 = vmatpush1.bf16.msra.mxu0 0
        %2840 = vmatprep.subr.bf16.mxu0 0
        %2841 = vmatpush1.bf16.msra.mxu0 0
        %2842 = vmatprep.subr.bf16.mxu0 0
        %2843 = vmatpush1.bf16.msra.mxu0 0
        %2844 = vmatprep.subr.bf16.mxu0 0
        %2845 = vmatpush1.bf16.msra.mxu0 0
        %2846 = vmatprep.subr.bf16.mxu0 0
        %2847 = vmatpush1.bf16.msra.mxu0 0
        %2848 = vmatprep.mubr.bf16.mxu0 0
        %2849 = vmatmul.mubr.bf16.gmra.mrb[0].mxu0 %v2769
        %v2850 = vpop.f32.mrb[0].mxu0
        %v2851 = vadd.f32 %v2630, %v2850
        %v2852 = vpop.f32.mrb[0].mxu0
        %v2853 = vpop.f32.mrb[0].mxu0
        %v2854 = vadd.f32 %v2633, %v2853
        %v2855 = vpop.f32.mrb[0].mxu0
        %2856 = vmatprep.mubr.bf16.mxu0 0
        %2857 = vmatmul.mubr.bf16.gmra.mrb[0].mxu0 %v2772
        %v2858 = vpop.f32.mrb[0].mxu0
        %v2859 = vadd.f32 %v2638, %v2858
        %v2860 = vpop.f32.mrb[0].mxu0
        %v2861 = vpop.f32.mrb[0].mxu0
        %v2862 = vadd.f32 %v2641, %v2861
        %v2863 = vpop.f32.mrb[0].mxu0
        %2864 = vmatprep.mubr.bf16.mxu0 0
        %2865 = vmatmul.mubr.bf16.gmra.mrb[0].mxu0 %v2775
        %v2866 = vpop.f32.mrb[0].mxu0
        %v2867 = vadd.f32 %v2646, %v2866
        %v2868 = vpop.f32.mrb[0].mxu0
        %v2869 = vpop.f32.mrb[0].mxu0
        %v2870 = vadd.f32 %v2649, %v2869
        %v2871 = vpop.f32.mrb[0].mxu0
        %2872 = vmatprep.mubr.bf16.mxu0 0
        %2873 = vmatmul.mubr.bf16.gmra.mrb[0].mxu0 %v2778
        %v2874 = vpop.f32.mrb[0].mxu0
        %v2875 = vadd.f32 %v2654, %v2874
        %v2876 = vpop.f32.mrb[0].mxu0
        %v2877 = vpop.f32.mrb[0].mxu0
        %v2878 = vadd.f32 %v2657, %v2877
        %v2879 = vpop.f32.mrb[0].mxu0
        %2880 = vmatprep.mubr.bf16.mxu0 0
        %2881 = vmatmul.mubr.bf16.gmra.mrb[0].mxu0 %v2781
        %v2882 = vpop.f32.mrb[0].mxu0
        %v2883 = vadd.f32 %v2662, %v2882
        %v2884 = vpop.f32.mrb[0].mxu0
        %v2885 = vpop.f32.mrb[0].mxu0
        %v2886 = vadd.f32 %v2665, %v2885
        %v2887 = vpop.f32.mrb[0].mxu0
        %2888 = vmatprep.mubr.bf16.mxu0 0
        %2889 = vmatmul.mubr.bf16.gmra.mrb[0].mxu0 %v2784
        %v2890 = vpop.f32.mrb[0].mxu0
        %v2891 = vadd.f32 %v2670, %v2890
        %v2892 = vpop.f32.mrb[0].mxu0
        %v2893 = vpop.f32.mrb[0].mxu0
        %v2894 = vadd.f32 %v2673, %v2893
        %v2895 = vpop.f32.mrb[0].mxu0
        %2896 = vmatprep.mubr.bf16.mxu0 0
        %2897 = vmatmul.mubr.bf16.gmra.mrb[0].mxu0 %v2787
        %v2898 = vpop.f32.mrb[0].mxu0
        %v2899 = vadd.f32 %v2678, %v2898
        %v2900 = vpop.f32.mrb[0].mxu0
        %v2901 = vpop.f32.mrb[0].mxu0
        %v2902 = vadd.f32 %v2681, %v2901
        %v2903 = vpop.f32.mrb[0].mxu0
        %2904 = vmatprep.mubr.bf16.mxu0 0
        %2905 = vmatmul.mubr.bf16.gmra.mrb[0].mxu0 %v2790
        %v2906 = vpop.f32.mrb[0].mxu0
        %v2907 = vadd.f32 %v2686, %v2906
        %v2908 = vpop.f32.mrb[0].mxu0
        %v2909 = vpop.f32.mrb[0].mxu0
        %v2910 = vadd.f32 %v2689, %v2909
        %v2911 = vpop.f32.mrb[0].mxu0
        %2912 = vmatprep.mubr.bf16.mxu0 0
        %2913 = vmatmul.mubr.bf16.gmra.mrb[0].mxu0 %v2793
        %v2914 = vpop.f32.mrb[0].mxu0
        %v2915 = vadd.f32 %v2694, %v2914
        %v2916 = vpop.f32.mrb[0].mxu0
        %v2917 = vpop.f32.mrb[0].mxu0
        %v2918 = vadd.f32 %v2697, %v2917
        %v2919 = vpop.f32.mrb[0].mxu0
        %2920 = vmatprep.mubr.bf16.mxu0 0
        %2921 = vmatmul.mubr.bf16.gmra.mrb[0].mxu0 %v2796
        %v2922 = vpop.f32.mrb[0].mxu0
        %v2923 = vadd.f32 %v2702, %v2922
        %v2924 = vpop.f32.mrb[0].mxu0
        %v2925 = vpop.f32.mrb[0].mxu0
        %v2926 = vadd.f32 %v2705, %v2925
        %v2927 = vpop.f32.mrb[0].mxu0
        %2928 = vmatprep.mubr.bf16.mxu0 0
        %2929 = vmatmul.mubr.bf16.gmra.mrb[0].mxu0 %v2799
        %v2930 = vpop.f32.mrb[0].mxu0
        %v2931 = vadd.f32 %v2710, %v2930
        %v2932 = vpop.f32.mrb[0].mxu0
        %v2933 = vpop.f32.mrb[0].mxu0
        %v2934 = vadd.f32 %v2713, %v2933
        %v2935 = vpop.f32.mrb[0].mxu0
        %2936 = vmatprep.mubr.bf16.mxu0 0
        %2937 = vmatmul.mubr.bf16.gmra.mrb[0].mxu0 %v2802
        %v2938 = vpop.f32.mrb[0].mxu0
        %v2939 = vadd.f32 %v2718, %v2938
        %v2940 = vpop.f32.mrb[0].mxu0
        %v2941 = vpop.f32.mrb[0].mxu0
        %v2942 = vadd.f32 %v2721, %v2941
        %v2943 = vpop.f32.mrb[0].mxu0
        %2944 = vmatprep.mubr.bf16.mxu0 0
        %2945 = vmatmul.mubr.bf16.gmra.mrb[0].mxu0 %v2805
        %v2946 = vpop.f32.mrb[0].mxu0
        %v2947 = vadd.f32 %v2726, %v2946
        %v2948 = vpop.f32.mrb[0].mxu0
        %v2949 = vpop.f32.mrb[0].mxu0
        %v2950 = vadd.f32 %v2729, %v2949
        %v2951 = vpop.f32.mrb[0].mxu0
        %2952 = vmatprep.mubr.bf16.mxu0 0
        %2953 = vmatmul.mubr.bf16.gmra.mrb[0].mxu0 %v2808
        %v2954 = vpop.f32.mrb[0].mxu0
        %v2955 = vadd.f32 %v2734, %v2954
        %v2956 = vpop.f32.mrb[0].mxu0
        %v2957 = vpop.f32.mrb[0].mxu0
        %v2958 = vadd.f32 %v2737, %v2957
        %v2959 = vpop.f32.mrb[0].mxu0
        %2960 = vmatprep.mubr.bf16.mxu0 0
        %2961 = vmatmul.mubr.bf16.gmra.mrb[0].mxu0 %v2811
        %v2962 = vpop.f32.mrb[0].mxu0
        %v2963 = vadd.f32 %v2742, %v2962
        %v2964 = vpop.f32.mrb[0].mxu0
        %v2965 = vpop.f32.mrb[0].mxu0
        %v2966 = vadd.f32 %v2745, %v2965
        %v2967 = vpop.f32.mrb[0].mxu0
        %2968 = vmatprep.mubr.bf16.mxu0 0
        %2969 = vmatmul.mubr.bf16.gmra.mrb[0].mxu0 %v2814
        %v2970 = vpop.f32.mrb[0].mxu0
        %v2971 = vadd.f32 %v2750, %v2970
        %v2972 = vpop.f32.mrb[0].mxu0
        %v2973 = vpop.f32.mrb[0].mxu0
        %v2974 = vadd.f32 %v2753, %v2973
        %v2975 = vpop.f32.mrb[0].mxu0
        %2976 = vdwg.mxu0
        %2993 = vrot.lane.b32.xlu0 %v870, 96
        %v2994 = vpop.permute.xlu0 %2993
        %2995 = vrot.lane.b32.xlu0 %v871, 96
        %v2996 = vpop.permute.xlu0 %2995
        %2997 = vrot.lane.b32.xlu0 %v872, 96
        %v2998 = vpop.permute.xlu0 %2997
        %2999 = vrot.lane.b32.xlu0 %v873, 96
        %v3000 = vpop.permute.xlu0 %2999
        %3001 = vrot.lane.b32.xlu0 %v874, 96
        %v3002 = vpop.permute.xlu0 %3001
        %3003 = vrot.lane.b32.xlu0 %v875, 96
        %v3004 = vpop.permute.xlu0 %3003
        %3005 = vrot.lane.b32.xlu0 %v876, 96
        %v3006 = vpop.permute.xlu0 %3005
        %3007 = vrot.lane.b32.xlu0 %v877, 96
        %v3008 = vpop.permute.xlu0 %3007
        %3009 = vrot.lane.b32.xlu0 %v878, 96
        %v3010 = vpop.permute.xlu0 %3009
        %3011 = vrot.lane.b32.xlu0 %v879, 96
        %v3012 = vpop.permute.xlu0 %3011
        %3013 = vrot.lane.b32.xlu0 %v880, 96
        %v3014 = vpop.permute.xlu0 %3013
        %3015 = vrot.lane.b32.xlu0 %v881, 96
        %v3016 = vpop.permute.xlu0 %3015
        %3017 = vrot.lane.b32.xlu0 %v882, 96
        %v3018 = vpop.permute.xlu0 %3017
        %3019 = vrot.lane.b32.xlu0 %v883, 96
        %v3020 = vpop.permute.xlu0 %3019
        %3021 = vrot.lane.b32.xlu0 %v884, 96
        %v3022 = vpop.permute.xlu0 %3021
        %3023 = vrot.lane.b32.xlu0 %v885, 96
        %v3024 = vpop.permute.xlu0 %3023
        %v3026 = vsel %vm1304, %v2994, 0
        %v3029 = vsel %vm1304, %v2996, 0
        %v3032 = vsel %vm1304, %v2998, 0
        %v3035 = vsel %vm1304, %v3000, 0
        %v3038 = vsel %vm1304, %v3002, 0
        %v3041 = vsel %vm1304, %v3004, 0
        %v3044 = vsel %vm1304, %v3006, 0
        %v3047 = vsel %vm1304, %v3008, 0
        %v3050 = vsel %vm1304, %v3010, 0
        %v3053 = vsel %vm1304, %v3012, 0
        %v3056 = vsel %vm1304, %v3014, 0
        %v3059 = vsel %vm1304, %v3016, 0
        %v3062 = vsel %vm1304, %v3018, 0
        %v3065 = vsel %vm1304, %v3020, 0
        %v3068 = vsel %vm1304, %v3022, 0
        %v3071 = vsel %vm1304, %v3024, 0
        %3073 = vmatprep.subr.bf16.mxu0 %v891
        %3074 = vmatpush1.bf16.msra.mxu0 %v890
        %3075 = vmatprep.subr.bf16.mxu0 %v893
        %3076 = vmatpush1.bf16.msra.mxu0 %v892
        %3077 = vmatprep.subr.bf16.mxu0 0
        %3078 = vmatpush1.bf16.msra.mxu0 0
        %3079 = vmatprep.subr.bf16.mxu0 0
        %3080 = vmatpush1.bf16.msra.mxu0 0
        %3081 = vmatprep.subr.bf16.mxu0 0
        %3082 = vmatpush1.bf16.msra.mxu0 0
        %3083 = vmatprep.subr.bf16.mxu0 0
        %3084 = vmatpush1.bf16.msra.mxu0 0
        %3085 = vmatprep.subr.bf16.mxu0 0
        %3086 = vmatpush1.bf16.msra.mxu0 0
        %3087 = vmatprep.subr.bf16.mxu0 0
        %3088 = vmatpush1.bf16.msra.mxu0 0
        %3089 = vmatprep.subr.bf16.mxu0 0
        %3090 = vmatpush1.bf16.msra.mxu0 0
        %3091 = vmatprep.subr.bf16.mxu0 0
        %3092 = vmatpush1.bf16.msra.mxu0 0
        %3093 = vmatprep.subr.bf16.mxu0 0
        %3094 = vmatpush1.bf16.msra.mxu0 0
        %3095 = vmatprep.subr.bf16.mxu0 0
        %3096 = vmatpush1.bf16.msra.mxu0 0
        %3097 = vmatprep.subr.bf16.mxu0 0
        %3098 = vmatpush1.bf16.msra.mxu0 0
        %3099 = vmatprep.subr.bf16.mxu0 0
        %3100 = vmatpush1.bf16.msra.mxu0 0
        %3101 = vmatprep.subr.bf16.mxu0 0
        %3102 = vmatpush1.bf16.msra.mxu0 0
        %3103 = vmatprep.subr.bf16.mxu0 0
        %3104 = vmatpush1.bf16.msra.mxu0 0
        %3105 = vmatprep.mubr.bf16.mxu0 0
        %3106 = vmatmul.mubr.bf16.gmra.mrb[0].mxu0 %v3026
        %v3107 = vpop.f32.mrb[0].mxu0
        %v3108 = vadd.f32 0.0, %v3107
        %v3109 = vpop.f32.mrb[0].mxu0
        %v3110 = vadd.f32 0.0, %v3109
        %v3111 = vpop.f32.mrb[0].mxu0
        %v3112 = vadd.f32 0.0, %v3111
        %v3113 = vpop.f32.mrb[0].mxu0
        %v3114 = vadd.f32 0.0, %v3113
        %3115 = vmatprep.mubr.bf16.mxu0 0
        %3116 = vmatmul.mubr.bf16.gmra.mrb[0].mxu0 %v3029
        %v3117 = vpop.f32.mrb[0].mxu0
        %v3118 = vadd.f32 0.0, %v3117
        %v3119 = vpop.f32.mrb[0].mxu0
        %v3120 = vadd.f32 0.0, %v3119
        %v3121 = vpop.f32.mrb[0].mxu0
        %v3122 = vadd.f32 0.0, %v3121
        %v3123 = vpop.f32.mrb[0].mxu0
        %v3124 = vadd.f32 0.0, %v3123
        %3125 = vmatprep.mubr.bf16.mxu0 0
        %3126 = vmatmul.mubr.bf16.gmra.mrb[0].mxu0 %v3032
        %v3127 = vpop.f32.mrb[0].mxu0
        %v3128 = vadd.f32 0.0, %v3127
        %v3129 = vpop.f32.mrb[0].mxu0
        %v3130 = vadd.f32 0.0, %v3129
        %v3131 = vpop.f32.mrb[0].mxu0
        %v3132 = vadd.f32 0.0, %v3131
        %v3133 = vpop.f32.mrb[0].mxu0
        %v3134 = vadd.f32 0.0, %v3133
        %3135 = vmatprep.mubr.bf16.mxu0 0
        %3136 = vmatmul.mubr.bf16.gmra.mrb[0].mxu0 %v3035
        %v3137 = vpop.f32.mrb[0].mxu0
        %v3138 = vadd.f32 0.0, %v3137
        %v3139 = vpop.f32.mrb[0].mxu0
        %v3140 = vadd.f32 0.0, %v3139
        %v3141 = vpop.f32.mrb[0].mxu0
        %v3142 = vadd.f32 0.0, %v3141
        %v3143 = vpop.f32.mrb[0].mxu0
        %v3144 = vadd.f32 0.0, %v3143
        %3145 = vmatprep.mubr.bf16.mxu0 0
        %3146 = vmatmul.mubr.bf16.gmra.mrb[0].mxu0 %v3038
        %v3147 = vpop.f32.mrb[0].mxu0
        %v3148 = vadd.f32 0.0, %v3147
        %v3149 = vpop.f32.mrb[0].mxu0
        %v3150 = vadd.f32 0.0, %v3149
        %v3151 = vpop.f32.mrb[0].mxu0
        %v3152 = vadd.f32 0.0, %v3151
        %v3153 = vpop.f32.mrb[0].mxu0
        %v3154 = vadd.f32 0.0, %v3153
        %3155 = vmatprep.mubr.bf16.mxu0 0
        %3156 = vmatmul.mubr.bf16.gmra.mrb[0].mxu0 %v3041
        %v3157 = vpop.f32.mrb[0].mxu0
        %v3158 = vadd.f32 0.0, %v3157
        %v3159 = vpop.f32.mrb[0].mxu0
        %v3160 = vadd.f32 0.0, %v3159
        %v3161 = vpop.f32.mrb[0].mxu0
        %v3162 = vadd.f32 0.0, %v3161
        %v3163 = vpop.f32.mrb[0].mxu0
        %v3164 = vadd.f32 0.0, %v3163
        %3165 = vmatprep.mubr.bf16.mxu0 0
        %3166 = vmatmul.mubr.bf16.gmra.mrb[0].mxu0 %v3044
        %v3167 = vpop.f32.mrb[0].mxu0
        %v3168 = vadd.f32 0.0, %v3167
        %v3169 = vpop.f32.mrb[0].mxu0
        %v3170 = vadd.f32 0.0, %v3169
        %v3171 = vpop.f32.mrb[0].mxu0
        %v3172 = vadd.f32 0.0, %v3171
        %v3173 = vpop.f32.mrb[0].mxu0
        %v3174 = vadd.f32 0.0, %v3173
        %3175 = vmatprep.mubr.bf16.mxu0 0
        %3176 = vmatmul.mubr.bf16.gmra.mrb[0].mxu0 %v3047
        %v3177 = vpop.f32.mrb[0].mxu0
        %v3178 = vadd.f32 0.0, %v3177
        %v3179 = vpop.f32.mrb[0].mxu0
        %v3180 = vadd.f32 0.0, %v3179
        %v3181 = vpop.f32.mrb[0].mxu0
        %v3182 = vadd.f32 0.0, %v3181
        %v3183 = vpop.f32.mrb[0].mxu0
        %v3184 = vadd.f32 0.0, %v3183
        %3185 = vmatprep.mubr.bf16.mxu0 0
        %3186 = vmatmul.mubr.bf16.gmra.mrb[0].mxu0 %v3050
        %v3187 = vpop.f32.mrb[0].mxu0
        %v3188 = vadd.f32 0.0, %v3187
        %v3189 = vpop.f32.mrb[0].mxu0
        %v3190 = vadd.f32 0.0, %v3189
        %v3191 = vpop.f32.mrb[0].mxu0
        %v3192 = vadd.f32 0.0, %v3191
        %v3193 = vpop.f32.mrb[0].mxu0
        %v3194 = vadd.f32 0.0, %v3193
        %3195 = vmatprep.mubr.bf16.mxu0 0
        %3196 = vmatmul.mubr.bf16.gmra.mrb[0].mxu0 %v3053
        %v3197 = vpop.f32.mrb[0].mxu0
        %v3198 = vadd.f32 0.0, %v3197
        %v3199 = vpop.f32.mrb[0].mxu0
        %v3200 = vadd.f32 0.0, %v3199
        %v3201 = vpop.f32.mrb[0].mxu0
        %v3202 = vadd.f32 0.0, %v3201
        %v3203 = vpop.f32.mrb[0].mxu0
        %v3204 = vadd.f32 0.0, %v3203
        %3205 = vmatprep.mubr.bf16.mxu0 0
        %3206 = vmatmul.mubr.bf16.gmra.mrb[0].mxu0 %v3056
        %v3207 = vpop.f32.mrb[0].mxu0
        %v3208 = vadd.f32 0.0, %v3207
        %v3209 = vpop.f32.mrb[0].mxu0
        %v3210 = vadd.f32 0.0, %v3209
        %v3211 = vpop.f32.mrb[0].mxu0
        %v3212 = vadd.f32 0.0, %v3211
        %v3213 = vpop.f32.mrb[0].mxu0
        %v3214 = vadd.f32 0.0, %v3213
        %3215 = vmatprep.mubr.bf16.mxu0 0
        %3216 = vmatmul.mubr.bf16.gmra.mrb[0].mxu0 %v3059
        %v3217 = vpop.f32.mrb[0].mxu0
        %v3218 = vadd.f32 0.0, %v3217
        %v3219 = vpop.f32.mrb[0].mxu0
        %v3220 = vadd.f32 0.0, %v3219
        %v3221 = vpop.f32.mrb[0].mxu0
        %v3222 = vadd.f32 0.0, %v3221
        %v3223 = vpop.f32.mrb[0].mxu0
        %v3224 = vadd.f32 0.0, %v3223
        %3225 = vmatprep.mubr.bf16.mxu0 0
        %3226 = vmatmul.mubr.bf16.gmra.mrb[0].mxu0 %v3062
        %v3227 = vpop.f32.mrb[0].mxu0
        %v3228 = vadd.f32 0.0, %v3227
        %v3229 = vpop.f32.mrb[0].mxu0
        %v3230 = vadd.f32 0.0, %v3229
        %v3231 = vpop.f32.mrb[0].mxu0
        %v3232 = vadd.f32 0.0, %v3231
        %v3233 = vpop.f32.mrb[0].mxu0
        %v3234 = vadd.f32 0.0, %v3233
        %3235 = vmatprep.mubr.bf16.mxu0 0
        %3236 = vmatmul.mubr.bf16.gmra.mrb[0].mxu0 %v3065
        %v3237 = vpop.f32.mrb[0].mxu0
        %v3238 = vadd.f32 0.0, %v3237
        %v3239 = vpop.f32.mrb[0].mxu0
        %v3240 = vadd.f32 0.0, %v3239
        %v3241 = vpop.f32.mrb[0].mxu0
        %v3242 = vadd.f32 0.0, %v3241
        %v3243 = vpop.f32.mrb[0].mxu0
        %v3244 = vadd.f32 0.0, %v3243
        %3245 = vmatprep.mubr.bf16.mxu0 0
        %3246 = vmatmul.mubr.bf16.gmra.mrb[0].mxu0 %v3068
        %v3247 = vpop.f32.mrb[0].mxu0
        %v3248 = vadd.f32 0.0, %v3247
        %v3249 = vpop.f32.mrb[0].mxu0
        %v3250 = vadd.f32 0.0, %v3249
        %v3251 = vpop.f32.mrb[0].mxu0
        %v3252 = vadd.f32 0.0, %v3251
        %v3253 = vpop.f32.mrb[0].mxu0
        %v3254 = vadd.f32 0.0, %v3253
        %3255 = vmatprep.mubr.bf16.mxu0 0
        %3256 = vmatmul.mubr.bf16.gmra.mrb[0].mxu0 %v3071
        %v3257 = vpop.f32.mrb[0].mxu0
        %v3258 = vadd.f32 0.0, %v3257
        %v3259 = vpop.f32.mrb[0].mxu0
        %v3260 = vadd.f32 0.0, %v3259
        %v3261 = vpop.f32.mrb[0].mxu0
        %v3262 = vadd.f32 0.0, %v3261
        %v3263 = vpop.f32.mrb[0].mxu0
        %v3264 = vadd.f32 0.0, %v3263
        %3265 = vdwg.mxu0
        %v3266 = vmax.f32 %v3108, %v3110
        %3267 = vmax.xlane.f32.xlu0 %v3266
        %v3268 = vpop.xlane.xlu0 %3267
        %v3269 = vmax.f32 %v3112, %v3114
        %3270 = vmax.xlane.f32.xlu0 %v3269
        %v3271 = vpop.xlane.xlu0 %3270
        %v3272 = vmax.f32 %v3118, %v3120
        %3273 = vmax.xlane.f32.xlu0 %v3272
        %v3274 = vpop.xlane.xlu0 %3273
        %v3275 = vmax.f32 %v3122, %v3124
        %3276 = vmax.xlane.f32.xlu0 %v3275
        %v3277 = vpop.xlane.xlu0 %3276
        %v3278 = vmax.f32 %v3128, %v3130
        %3279 = vmax.xlane.f32.xlu0 %v3278
        %v3280 = vpop.xlane.xlu0 %3279
        %v3281 = vmax.f32 %v3132, %v3134
        %3282 = vmax.xlane.f32.xlu0 %v3281
        %v3283 = vpop.xlane.xlu0 %3282
        %v3284 = vmax.f32 %v3138, %v3140
        %3285 = vmax.xlane.f32.xlu0 %v3284
        %v3286 = vpop.xlane.xlu0 %3285
        %v3287 = vmax.f32 %v3142, %v3144
        %3288 = vmax.xlane.f32.xlu0 %v3287
        %v3289 = vpop.xlane.xlu0 %3288
        %v3290 = vmax.f32 %v3148, %v3150
        %3291 = vmax.xlane.f32.xlu0 %v3290
        %v3292 = vpop.xlane.xlu0 %3291
        %v3293 = vmax.f32 %v3152, %v3154
        %3294 = vmax.xlane.f32.xlu0 %v3293
        %v3295 = vpop.xlane.xlu0 %3294
        %v3296 = vmax.f32 %v3158, %v3160
        %3297 = vmax.xlane.f32.xlu0 %v3296
        %v3298 = vpop.xlane.xlu0 %3297
        %v3299 = vmax.f32 %v3162, %v3164
        %3300 = vmax.xlane.f32.xlu0 %v3299
        %v3301 = vpop.xlane.xlu0 %3300
        %v3302 = vmax.f32 %v3168, %v3170
        %3303 = vmax.xlane.f32.xlu0 %v3302
        %v3304 = vpop.xlane.xlu0 %3303
        %v3305 = vmax.f32 %v3172, %v3174
        %3306 = vmax.xlane.f32.xlu0 %v3305
        %v3307 = vpop.xlane.xlu0 %3306
        %v3308 = vmax.f32 %v3178, %v3180
        %3309 = vmax.xlane.f32.xlu0 %v3308
        %v3310 = vpop.xlane.xlu0 %3309
        %v3311 = vmax.f32 %v3182, %v3184
        %3312 = vmax.xlane.f32.xlu0 %v3311
        %v3313 = vpop.xlane.xlu0 %3312
        %v3314 = vmax.f32 %v3188, %v3190
        %3315 = vmax.xlane.f32.xlu0 %v3314
        %v3316 = vpop.xlane.xlu0 %3315
        %v3317 = vmax.f32 %v3192, %v3194
        %3318 = vmax.xlane.f32.xlu0 %v3317
        %v3319 = vpop.xlane.xlu0 %3318
        %v3320 = vmax.f32 %v3198, %v3200
        %3321 = vmax.xlane.f32.xlu0 %v3320
        %v3322 = vpop.xlane.xlu0 %3321
        %v3323 = vmax.f32 %v3202, %v3204
        %3324 = vmax.xlane.f32.xlu0 %v3323
        %v3325 = vpop.xlane.xlu0 %3324
        %v3326 = vmax.f32 %v3208, %v3210
        %3327 = vmax.xlane.f32.xlu0 %v3326
        %v3328 = vpop.xlane.xlu0 %3327
        %v3329 = vmax.f32 %v3212, %v3214
        %3330 = vmax.xlane.f32.xlu0 %v3329
        %v3331 = vpop.xlane.xlu0 %3330
        %v3332 = vmax.f32 %v3218, %v3220
        %3333 = vmax.xlane.f32.xlu0 %v3332
        %v3334 = vpop.xlane.xlu0 %3333
        %v3335 = vmax.f32 %v3222, %v3224
        %3336 = vmax.xlane.f32.xlu0 %v3335
        %v3337 = vpop.xlane.xlu0 %3336
        %v3338 = vmax.f32 %v3228, %v3230
        %3339 = vmax.xlane.f32.xlu0 %v3338
        %v3340 = vpop.xlane.xlu0 %3339
        %v3341 = vmax.f32 %v3232, %v3234
        %3342 = vmax.xlane.f32.xlu0 %v3341
        %v3343 = vpop.xlane.xlu0 %3342
        %v3344 = vmax.f32 %v3238, %v3240
        %3345 = vmax.xlane.f32.xlu0 %v3344
        %v3346 = vpop.xlane.xlu0 %3345
        %v3347 = vmax.f32 %v3242, %v3244
        %3348 = vmax.xlane.f32.xlu0 %v3347
        %v3349 = vpop.xlane.xlu0 %3348
        %v3350 = vmax.f32 %v3248, %v3250
        %3351 = vmax.xlane.f32.xlu0 %v3350
        %v3352 = vpop.xlane.xlu0 %3351
        %v3353 = vmax.f32 %v3252, %v3254
        %3354 = vmax.xlane.f32.xlu0 %v3353
        %v3355 = vpop.xlane.xlu0 %3354
        %v3356 = vmax.f32 %v3258, %v3260
        %3357 = vmax.xlane.f32.xlu0 %v3356
        %v3358 = vpop.xlane.xlu0 %3357
        %v3359 = vmax.f32 %v3262, %v3264
        %3360 = vmax.xlane.f32.xlu0 %v3359
        %v3361 = vpop.xlane.xlu0 %3360
        %v3362 = vmax.f32 %v3268, %v1210
        %v3363 = vmax.f32 %v3271, %v1213
        %v3364 = vmax.f32 %v3274, %v1216
        %v3365 = vmax.f32 %v3277, %v1219
        %v3366 = vmax.f32 %v3280, %v1222
        %v3367 = vmax.f32 %v3283, %v1225
        %v3368 = vmax.f32 %v3286, %v1228
        %v3369 = vmax.f32 %v3289, %v1231
        %v3370 = vmax.f32 %v3292, %v1234
        %v3371 = vmax.f32 %v3295, %v1237
        %v3372 = vmax.f32 %v3298, %v1240
        %v3373 = vmax.f32 %v3301, %v1243
        %v3374 = vmax.f32 %v3304, %v1246
        %v3375 = vmax.f32 %v3307, %v1249
        %v3376 = vmax.f32 %v3310, %v1252
        %v3377 = vmax.f32 %v3313, %v1255
        %v3378 = vmax.f32 %v3316, %v1258
        %v3379 = vmax.f32 %v3319, %v1261
        %v3380 = vmax.f32 %v3322, %v1264
        %v3381 = vmax.f32 %v3325, %v1267
        %v3382 = vmax.f32 %v3328, %v1270
        %v3383 = vmax.f32 %v3331, %v1273
        %v3384 = vmax.f32 %v3334, %v1276
        %v3385 = vmax.f32 %v3337, %v1279
        %v3386 = vmax.f32 %v3340, %v1282
        %v3387 = vmax.f32 %v3343, %v1285
        %v3388 = vmax.f32 %v3346, %v1288
        %v3389 = vmax.f32 %v3349, %v1291
        %v3390 = vmax.f32 %v3352, %v1294
        %v3391 = vmax.f32 %v3355, %v1297
        %v3392 = vmax.f32 %v3358, %v1300
        %v3393 = vmax.f32 %v3361, %v1303
        %v3394 = vsub.f32 %v3108, %v3362
        %v3395 = vsub.f32 %v3110, %v3362
        %v3396 = vsub.f32 %v3112, %v3363
        %v3397 = vsub.f32 %v3114, %v3363
        %v3398 = vsub.f32 %v3118, %v3364
        %v3399 = vsub.f32 %v3120, %v3364
        %v3400 = vsub.f32 %v3122, %v3365
        %v3401 = vsub.f32 %v3124, %v3365
        %v3402 = vsub.f32 %v3128, %v3366
        %v3403 = vsub.f32 %v3130, %v3366
        %v3404 = vsub.f32 %v3132, %v3367
        %v3405 = vsub.f32 %v3134, %v3367
        %v3406 = vsub.f32 %v3138, %v3368
        %v3407 = vsub.f32 %v3140, %v3368
        %v3408 = vsub.f32 %v3142, %v3369
        %v3409 = vsub.f32 %v3144, %v3369
        %v3410 = vsub.f32 %v3148, %v3370
        %v3411 = vsub.f32 %v3150, %v3370
        %v3412 = vsub.f32 %v3152, %v3371
        %v3413 = vsub.f32 %v3154, %v3371
        %v3414 = vsub.f32 %v3158, %v3372
        %v3415 = vsub.f32 %v3160, %v3372
        %v3416 = vsub.f32 %v3162, %v3373
        %v3417 = vsub.f32 %v3164, %v3373
        %v3418 = vsub.f32 %v3168, %v3374
        %v3419 = vsub.f32 %v3170, %v3374
        %v3420 = vsub.f32 %v3172, %v3375
        %v3421 = vsub.f32 %v3174, %v3375
        %v3422 = vsub.f32 %v3178, %v3376
        %v3423 = vsub.f32 %v3180, %v3376
        %v3424 = vsub.f32 %v3182, %v3377
        %v3425 = vsub.f32 %v3184, %v3377
        %v3426 = vsub.f32 %v3188, %v3378
        %v3427 = vsub.f32 %v3190, %v3378
        %v3428 = vsub.f32 %v3192, %v3379
        %v3429 = vsub.f32 %v3194, %v3379
        %v3430 = vsub.f32 %v3198, %v3380
        %v3431 = vsub.f32 %v3200, %v3380
        %v3432 = vsub.f32 %v3202, %v3381
        %v3433 = vsub.f32 %v3204, %v3381
        %v3434 = vsub.f32 %v3208, %v3382
        %v3435 = vsub.f32 %v3210, %v3382
        %v3436 = vsub.f32 %v3212, %v3383
        %v3437 = vsub.f32 %v3214, %v3383
        %v3438 = vsub.f32 %v3218, %v3384
        %v3439 = vsub.f32 %v3220, %v3384
        %v3440 = vsub.f32 %v3222, %v3385
        %v3441 = vsub.f32 %v3224, %v3385
        %v3442 = vsub.f32 %v3228, %v3386
        %v3443 = vsub.f32 %v3230, %v3386
        %v3444 = vsub.f32 %v3232, %v3387
        %v3445 = vsub.f32 %v3234, %v3387
        %v3446 = vsub.f32 %v3238, %v3388
        %v3447 = vsub.f32 %v3240, %v3388
        %v3448 = vsub.f32 %v3242, %v3389
        %v3449 = vsub.f32 %v3244, %v3389
        %v3450 = vsub.f32 %v3248, %v3390
        %v3451 = vsub.f32 %v3250, %v3390
        %v3452 = vsub.f32 %v3252, %v3391
        %v3453 = vsub.f32 %v3254, %v3391
        %v3454 = vsub.f32 %v3258, %v3392
        %v3455 = vsub.f32 %v3260, %v3392
        %v3456 = vsub.f32 %v3262, %v3393
        %v3457 = vsub.f32 %v3264, %v3393
        %v3458 = vmul.f32 %v3394, 1.442695
        %v3459 = vpow.pop %v3458
        %v3460 = vmul.f32 %v3395, 1.442695
        %v3461 = vpow.pop %v3460
        %v3462 = vmul.f32 %v3396, 1.442695
        %v3463 = vpow.pop %v3462
        %v3464 = vmul.f32 %v3397, 1.442695
        %v3465 = vpow.pop %v3464
        %v3466 = vmul.f32 %v3398, 1.442695
        %v3467 = vpow.pop %v3466
        %v3468 = vmul.f32 %v3399, 1.442695
        %v3469 = vpow.pop %v3468
        %v3470 = vmul.f32 %v3400, 1.442695
        %v3471 = vpow.pop %v3470
        %v3472 = vmul.f32 %v3401, 1.442695
        %v3473 = vpow.pop %v3472
        %v3474 = vmul.f32 %v3402, 1.442695
        %v3475 = vpow.pop %v3474
        %v3476 = vmul.f32 %v3403, 1.442695
        %v3477 = vpow.pop %v3476
        %v3478 = vmul.f32 %v3404, 1.442695
        %v3479 = vpow.pop %v3478
        %v3480 = vmul.f32 %v3405, 1.442695
        %v3481 = vpow.pop %v3480
        %v3482 = vmul.f32 %v3406, 1.442695
        %v3483 = vpow.pop %v3482
        %v3484 = vmul.f32 %v3407, 1.442695
        %v3485 = vpow.pop %v3484
        %v3486 = vmul.f32 %v3408, 1.442695
        %v3487 = vpow.pop %v3486
        %v3488 = vmul.f32 %v3409, 1.442695
        %v3489 = vpow.pop %v3488
        %v3490 = vmul.f32 %v3410, 1.442695
        %v3491 = vpow.pop %v3490
        %v3492 = vmul.f32 %v3411, 1.442695
        %v3493 = vpow.pop %v3492
        %v3494 = vmul.f32 %v3412, 1.442695
        %v3495 = vpow.pop %v3494
        %v3496 = vmul.f32 %v3413, 1.442695
        %v3497 = vpow.pop %v3496
        %v3498 = vmul.f32 %v3414, 1.442695
        %v3499 = vpow.pop %v3498
        %v3500 = vmul.f32 %v3415, 1.442695
        %v3501 = vpow.pop %v3500
        %v3502 = vmul.f32 %v3416, 1.442695
        %v3503 = vpow.pop %v3502
        %v3504 = vmul.f32 %v3417, 1.442695
        %v3505 = vpow.pop %v3504
        %v3506 = vmul.f32 %v3418, 1.442695
        %v3507 = vpow.pop %v3506
        %v3508 = vmul.f32 %v3419, 1.442695
        %v3509 = vpow.pop %v3508
        %v3510 = vmul.f32 %v3420, 1.442695
        %v3511 = vpow.pop %v3510
        %v3512 = vmul.f32 %v3421, 1.442695
        %v3513 = vpow.pop %v3512
        %v3514 = vmul.f32 %v3422, 1.442695
        %v3515 = vpow.pop %v3514
        %v3516 = vmul.f32 %v3423, 1.442695
        %v3517 = vpow.pop %v3516
        %v3518 = vmul.f32 %v3424, 1.442695
        %v3519 = vpow.pop %v3518
        %v3520 = vmul.f32 %v3425, 1.442695
        %v3521 = vpow.pop %v3520
        %v3522 = vmul.f32 %v3426, 1.442695
        %v3523 = vpow.pop %v3522
        %v3524 = vmul.f32 %v3427, 1.442695
        %v3525 = vpow.pop %v3524
        %v3526 = vmul.f32 %v3428, 1.442695
        %v3527 = vpow.pop %v3526
        %v3528 = vmul.f32 %v3429, 1.442695
        %v3529 = vpow.pop %v3528
        %v3530 = vmul.f32 %v3430, 1.442695
        %v3531 = vpow.pop %v3530
        %v3532 = vmul.f32 %v3431, 1.442695
        %v3533 = vpow.pop %v3532
        %v3534 = vmul.f32 %v3432, 1.442695
        %v3535 = vpow.pop %v3534
        %v3536 = vmul.f32 %v3433, 1.442695
        %v3537 = vpow.pop %v3536
        %v3538 = vmul.f32 %v3434, 1.442695
        %v3539 = vpow.pop %v3538
        %v3540 = vmul.f32 %v3435, 1.442695
        %v3541 = vpow.pop %v3540
        %v3542 = vmul.f32 %v3436, 1.442695
        %v3543 = vpow.pop %v3542
        %v3544 = vmul.f32 %v3437, 1.442695
        %v3545 = vpow.pop %v3544
        %v3546 = vmul.f32 %v3438, 1.442695
        %v3547 = vpow.pop %v3546
        %v3548 = vmul.f32 %v3439, 1.442695
        %v3549 = vpow.pop %v3548
        %v3550 = vmul.f32 %v3440, 1.442695
        %v3551 = vpow.pop %v3550
        %v3552 = vmul.f32 %v3441, 1.442695
        %v3553 = vpow.pop %v3552
        %v3554 = vmul.f32 %v3442, 1.442695
        %v3555 = vpow.pop %v3554
        %v3556 = vmul.f32 %v3443, 1.442695
        %v3557 = vpow.pop %v3556
        %v3558 = vmul.f32 %v3444, 1.442695
        %v3559 = vpow.pop %v3558
        %v3560 = vmul.f32 %v3445, 1.442695
        %v3561 = vpow.pop %v3560
        %v3562 = vmul.f32 %v3446, 1.442695
        %v3563 = vpow.pop %v3562
        %v3564 = vmul.f32 %v3447, 1.442695
        %v3565 = vpow.pop %v3564
        %v3566 = vmul.f32 %v3448, 1.442695
        %v3567 = vpow.pop %v3566
        %v3568 = vmul.f32 %v3449, 1.442695
        %v3569 = vpow.pop %v3568
        %v3570 = vmul.f32 %v3450, 1.442695
        %v3571 = vpow.pop %v3570
        %v3572 = vmul.f32 %v3451, 1.442695
        %v3573 = vpow.pop %v3572
        %v3574 = vmul.f32 %v3452, 1.442695
        %v3575 = vpow.pop %v3574
        %v3576 = vmul.f32 %v3453, 1.442695
        %v3577 = vpow.pop %v3576
        %v3578 = vmul.f32 %v3454, 1.442695
        %v3579 = vpow.pop %v3578
        %v3580 = vmul.f32 %v3455, 1.442695
        %v3581 = vpow.pop %v3580
        %v3582 = vmul.f32 %v3456, 1.442695
        %v3583 = vpow.pop %v3582
        %v3584 = vmul.f32 %v3457, 1.442695
        %v3585 = vpow.pop %v3584
        %v3586 = vsub.f32 %v1081, %v3362
        %v3587 = vsub.f32 %v1084, %v3363
        %v3588 = vsub.f32 %v1089, %v3364
        %v3589 = vsub.f32 %v1092, %v3365
        %v3590 = vsub.f32 %v1097, %v3366
        %v3591 = vsub.f32 %v1100, %v3367
        %v3592 = vsub.f32 %v1105, %v3368
        %v3593 = vsub.f32 %v1108, %v3369
        %v3594 = vsub.f32 %v1113, %v3370
        %v3595 = vsub.f32 %v1116, %v3371
        %v3596 = vsub.f32 %v1121, %v3372
        %v3597 = vsub.f32 %v1124, %v3373
        %v3598 = vsub.f32 %v1129, %v3374
        %v3599 = vsub.f32 %v1132, %v3375
        %v3600 = vsub.f32 %v1137, %v3376
        %v3601 = vsub.f32 %v1140, %v3377
        %v3602 = vsub.f32 %v1145, %v3378
        %v3603 = vsub.f32 %v1148, %v3379
        %v3604 = vsub.f32 %v1153, %v3380
        %v3605 = vsub.f32 %v1156, %v3381
        %v3606 = vsub.f32 %v1161, %v3382
        %v3607 = vsub.f32 %v1164, %v3383
        %v3608 = vsub.f32 %v1169, %v3384
        %v3609 = vsub.f32 %v1172, %v3385
        %v3610 = vsub.f32 %v1177, %v3386
        %v3611 = vsub.f32 %v1180, %v3387
        %v3612 = vsub.f32 %v1185, %v3388
        %v3613 = vsub.f32 %v1188, %v3389
        %v3614 = vsub.f32 %v1193, %v3390
        %v3615 = vsub.f32 %v1196, %v3391
        %v3616 = vsub.f32 %v1201, %v3392
        %v3617 = vsub.f32 %v1204, %v3393
        %v3618 = vmul.f32 %v3586, 1.442695
        %v3619 = vpow.pop %v3618
        %v3620 = vmul.f32 %v3587, 1.442695
        %v3621 = vpow.pop %v3620
        %v3622 = vmul.f32 %v3588, 1.442695
        %v3623 = vpow.pop %v3622
        %v3624 = vmul.f32 %v3589, 1.442695
        %v3625 = vpow.pop %v3624
        %v3626 = vmul.f32 %v3590, 1.442695
        %v3627 = vpow.pop %v3626
        %v3628 = vmul.f32 %v3591, 1.442695
        %v3629 = vpow.pop %v3628
        %v3630 = vmul.f32 %v3592, 1.442695
        %v3631 = vpow.pop %v3630
        %v3632 = vmul.f32 %v3593, 1.442695
        %v3633 = vpow.pop %v3632
        %v3634 = vmul.f32 %v3594, 1.442695
        %v3635 = vpow.pop %v3634
        %v3636 = vmul.f32 %v3595, 1.442695
        %v3637 = vpow.pop %v3636
        %v3638 = vmul.f32 %v3596, 1.442695
        %v3639 = vpow.pop %v3638
        %v3640 = vmul.f32 %v3597, 1.442695
        %v3641 = vpow.pop %v3640
        %v3642 = vmul.f32 %v3598, 1.442695
        %v3643 = vpow.pop %v3642
        %v3644 = vmul.f32 %v3599, 1.442695
        %v3645 = vpow.pop %v3644
        %v3646 = vmul.f32 %v3600, 1.442695
        %v3647 = vpow.pop %v3646
        %v3648 = vmul.f32 %v3601, 1.442695
        %v3649 = vpow.pop %v3648
        %v3650 = vmul.f32 %v3602, 1.442695
        %v3651 = vpow.pop %v3650
        %v3652 = vmul.f32 %v3603, 1.442695
        %v3653 = vpow.pop %v3652
        %v3654 = vmul.f32 %v3604, 1.442695
        %v3655 = vpow.pop %v3654
        %v3656 = vmul.f32 %v3605, 1.442695
        %v3657 = vpow.pop %v3656
        %v3658 = vmul.f32 %v3606, 1.442695
        %v3659 = vpow.pop %v3658
        %v3660 = vmul.f32 %v3607, 1.442695
        %v3661 = vpow.pop %v3660
        %v3662 = vmul.f32 %v3608, 1.442695
        %v3663 = vpow.pop %v3662
        %v3664 = vmul.f32 %v3609, 1.442695
        %v3665 = vpow.pop %v3664
        %v3666 = vmul.f32 %v3610, 1.442695
        %v3667 = vpow.pop %v3666
        %v3668 = vmul.f32 %v3611, 1.442695
        %v3669 = vpow.pop %v3668
        %v3670 = vmul.f32 %v3612, 1.442695
        %v3671 = vpow.pop %v3670
        %v3672 = vmul.f32 %v3613, 1.442695
        %v3673 = vpow.pop %v3672
        %v3674 = vmul.f32 %v3614, 1.442695
        %v3675 = vpow.pop %v3674
        %v3676 = vmul.f32 %v3615, 1.442695
        %v3677 = vpow.pop %v3676
        %v3678 = vmul.f32 %v3616, 1.442695
        %v3679 = vpow.pop %v3678
        %v3680 = vmul.f32 %v3617, 1.442695
        %v3681 = vpow.pop %v3680
        %v3682 = vadd.f32 %v3459, %v3461
        %3683 = vadd.xlane.f32.xlu0 %v3682
        %v3684 = vpop.xlane.xlu0 %3683
        %v3685 = vadd.f32 %v3463, %v3465
        %3686 = vadd.xlane.f32.xlu0 %v3685
        %v3687 = vpop.xlane.xlu0 %3686
        %v3688 = vadd.f32 %v3467, %v3469
        %3689 = vadd.xlane.f32.xlu0 %v3688
        %v3690 = vpop.xlane.xlu0 %3689
        %v3691 = vadd.f32 %v3471, %v3473
        %3692 = vadd.xlane.f32.xlu0 %v3691
        %v3693 = vpop.xlane.xlu0 %3692
        %v3694 = vadd.f32 %v3475, %v3477
        %3695 = vadd.xlane.f32.xlu0 %v3694
        %v3696 = vpop.xlane.xlu0 %3695
        %v3697 = vadd.f32 %v3479, %v3481
        %3698 = vadd.xlane.f32.xlu0 %v3697
        %v3699 = vpop.xlane.xlu0 %3698
        %v3700 = vadd.f32 %v3483, %v3485
        %3701 = vadd.xlane.f32.xlu0 %v3700
        %v3702 = vpop.xlane.xlu0 %3701
        %v3703 = vadd.f32 %v3487, %v3489
        %3704 = vadd.xlane.f32.xlu0 %v3703
        %v3705 = vpop.xlane.xlu0 %3704
        %v3706 = vadd.f32 %v3491, %v3493
        %3707 = vadd.xlane.f32.xlu0 %v3706
        %v3708 = vpop.xlane.xlu0 %3707
        %v3709 = vadd.f32 %v3495, %v3497
        %3710 = vadd.xlane.f32.xlu0 %v3709
        %v3711 = vpop.xlane.xlu0 %3710
        %v3712 = vadd.f32 %v3499, %v3501
        %3713 = vadd.xlane.f32.xlu0 %v3712
        %v3714 = vpop.xlane.xlu0 %3713
        %v3715 = vadd.f32 %v3503, %v3505
        %3716 = vadd.xlane.f32.xlu0 %v3715
        %v3717 = vpop.xlane.xlu0 %3716
        %v3718 = vadd.f32 %v3507, %v3509
        %3719 = vadd.xlane.f32.xlu0 %v3718
        %v3720 = vpop.xlane.xlu0 %3719
        %v3721 = vadd.f32 %v3511, %v3513
        %3722 = vadd.xlane.f32.xlu0 %v3721
        %v3723 = vpop.xlane.xlu0 %3722
        %v3724 = vadd.f32 %v3515, %v3517
        %3725 = vadd.xlane.f32.xlu0 %v3724
        %v3726 = vpop.xlane.xlu0 %3725
        %v3727 = vadd.f32 %v3519, %v3521
        %3728 = vadd.xlane.f32.xlu0 %v3727
        %v3729 = vpop.xlane.xlu0 %3728
        %v3730 = vadd.f32 %v3523, %v3525
        %3731 = vadd.xlane.f32.xlu0 %v3730
        %v3732 = vpop.xlane.xlu0 %3731
        %v3733 = vadd.f32 %v3527, %v3529
        %3734 = vadd.xlane.f32.xlu0 %v3733
        %v3735 = vpop.xlane.xlu0 %3734
        %v3736 = vadd.f32 %v3531, %v3533
        %3737 = vadd.xlane.f32.xlu0 %v3736
        %v3738 = vpop.xlane.xlu0 %3737
        %v3739 = vadd.f32 %v3535, %v3537
        %3740 = vadd.xlane.f32.xlu0 %v3739
        %v3741 = vpop.xlane.xlu0 %3740
        %v3742 = vadd.f32 %v3539, %v3541
        %3743 = vadd.xlane.f32.xlu0 %v3742
        %v3744 = vpop.xlane.xlu0 %3743
        %v3745 = vadd.f32 %v3543, %v3545
        %3746 = vadd.xlane.f32.xlu0 %v3745
        %v3747 = vpop.xlane.xlu0 %3746
        %v3748 = vadd.f32 %v3547, %v3549
        %3749 = vadd.xlane.f32.xlu0 %v3748
        %v3750 = vpop.xlane.xlu0 %3749
        %v3751 = vadd.f32 %v3551, %v3553
        %3752 = vadd.xlane.f32.xlu0 %v3751
        %v3753 = vpop.xlane.xlu0 %3752
        %v3754 = vadd.f32 %v3555, %v3557
        %3755 = vadd.xlane.f32.xlu0 %v3754
        %v3756 = vpop.xlane.xlu0 %3755
        %v3757 = vadd.f32 %v3559, %v3561
        %3758 = vadd.xlane.f32.xlu0 %v3757
        %v3759 = vpop.xlane.xlu0 %3758
        %v3760 = vadd.f32 %v3563, %v3565
        %3761 = vadd.xlane.f32.xlu0 %v3760
        %v3762 = vpop.xlane.xlu0 %3761
        %v3763 = vadd.f32 %v3567, %v3569
        %3764 = vadd.xlane.f32.xlu0 %v3763
        %v3765 = vpop.xlane.xlu0 %3764
        %v3766 = vadd.f32 %v3571, %v3573
        %3767 = vadd.xlane.f32.xlu0 %v3766
        %v3768 = vpop.xlane.xlu0 %3767
        %v3769 = vadd.f32 %v3575, %v3577
        %3770 = vadd.xlane.f32.xlu0 %v3769
        %v3771 = vpop.xlane.xlu0 %3770
        %v3772 = vadd.f32 %v3579, %v3581
        %3773 = vadd.xlane.f32.xlu0 %v3772
        %v3774 = vpop.xlane.xlu0 %3773
        %v3775 = vadd.f32 %v3583, %v3585
        %3776 = vadd.xlane.f32.xlu0 %v3775
        %v3777 = vpop.xlane.xlu0 %3776
        %3810 = vrot.lane.b32.xlu0 %v3619, 124
        %v3811 = vpop.permute.xlu0 %3810
        %3812 = vrot.lane.b32.xlu0 %v3621, 124
        %v3813 = vpop.permute.xlu0 %3812
        %3814 = vrot.lane.b32.xlu0 %v3623, 124
        %v3815 = vpop.permute.xlu0 %3814
        %3816 = vrot.lane.b32.xlu0 %v3625, 124
        %v3817 = vpop.permute.xlu0 %3816
        %3818 = vrot.lane.b32.xlu0 %v3627, 124
        %v3819 = vpop.permute.xlu0 %3818
        %3820 = vrot.lane.b32.xlu0 %v3629, 124
        %v3821 = vpop.permute.xlu0 %3820
        %3822 = vrot.lane.b32.xlu0 %v3631, 124
        %v3823 = vpop.permute.xlu0 %3822
        %3824 = vrot.lane.b32.xlu0 %v3633, 124
        %v3825 = vpop.permute.xlu0 %3824
        %3826 = vrot.lane.b32.xlu0 %v3635, 124
        %v3827 = vpop.permute.xlu0 %3826
        %3828 = vrot.lane.b32.xlu0 %v3637, 124
        %v3829 = vpop.permute.xlu0 %3828
        %3830 = vrot.lane.b32.xlu0 %v3639, 124
        %v3831 = vpop.permute.xlu0 %3830
        %3832 = vrot.lane.b32.xlu0 %v3641, 124
        %v3833 = vpop.permute.xlu0 %3832
        %3834 = vrot.lane.b32.xlu0 %v3643, 124
        %v3835 = vpop.permute.xlu0 %3834
        %3836 = vrot.lane.b32.xlu0 %v3645, 124
        %v3837 = vpop.permute.xlu0 %3836
        %3838 = vrot.lane.b32.xlu0 %v3647, 124
        %v3839 = vpop.permute.xlu0 %3838
        %3840 = vrot.lane.b32.xlu0 %v3649, 124
        %v3841 = vpop.permute.xlu0 %3840
        %3842 = vrot.lane.b32.xlu0 %v3651, 124
        %v3843 = vpop.permute.xlu0 %3842
        %3844 = vrot.lane.b32.xlu0 %v3653, 124
        %v3845 = vpop.permute.xlu0 %3844
        %3846 = vrot.lane.b32.xlu0 %v3655, 124
        %v3847 = vpop.permute.xlu0 %3846
        %3848 = vrot.lane.b32.xlu0 %v3657, 124
        %v3849 = vpop.permute.xlu0 %3848
        %3850 = vrot.lane.b32.xlu0 %v3659, 124
        %v3851 = vpop.permute.xlu0 %3850
        %3852 = vrot.lane.b32.xlu0 %v3661, 124
        %v3853 = vpop.permute.xlu0 %3852
        %3854 = vrot.lane.b32.xlu0 %v3663, 124
        %v3855 = vpop.permute.xlu0 %3854
        %3856 = vrot.lane.b32.xlu0 %v3665, 124
        %v3857 = vpop.permute.xlu0 %3856
        %3858 = vrot.lane.b32.xlu0 %v3667, 124
        %v3859 = vpop.permute.xlu0 %3858
        %3860 = vrot.lane.b32.xlu0 %v3669, 124
        %v3861 = vpop.permute.xlu0 %3860
        %3862 = vrot.lane.b32.xlu0 %v3671, 124
        %v3863 = vpop.permute.xlu0 %3862
        %3864 = vrot.lane.b32.xlu0 %v3673, 124
        %v3865 = vpop.permute.xlu0 %3864
        %3866 = vrot.lane.b32.xlu0 %v3675, 124
        %v3867 = vpop.permute.xlu0 %3866
        %3868 = vrot.lane.b32.xlu0 %v3677, 124
        %v3869 = vpop.permute.xlu0 %3868
        %3870 = vrot.lane.b32.xlu0 %v3679, 124
        %v3871 = vpop.permute.xlu0 %3870
        %3872 = vrot.lane.b32.xlu0 %v3681, 124
        %v3873 = vpop.permute.xlu0 %3872
        %v3906 = vsel %vm453, %v3811, 0.0
        %3907 = vadd.xlane.f32.xlu0 %v3906
        %v3908 = vpop.xlane.xlu0 %3907
        %v3909 = vsel %vm453, %v3813, 0.0
        %3910 = vadd.xlane.f32.xlu0 %v3909
        %v3911 = vpop.xlane.xlu0 %3910
        %v3912 = vsel %vm453, %v3815, 0.0
        %3913 = vadd.xlane.f32.xlu0 %v3912
        %v3914 = vpop.xlane.xlu0 %3913
        %v3915 = vsel %vm453, %v3817, 0.0
        %3916 = vadd.xlane.f32.xlu0 %v3915
        %v3917 = vpop.xlane.xlu0 %3916
        %v3918 = vsel %vm453, %v3819, 0.0
        %3919 = vadd.xlane.f32.xlu0 %v3918
        %v3920 = vpop.xlane.xlu0 %3919
        %v3921 = vsel %vm453, %v3821, 0.0
        %3922 = vadd.xlane.f32.xlu0 %v3921
        %v3923 = vpop.xlane.xlu0 %3922
        %v3924 = vsel %vm453, %v3823, 0.0
        %3925 = vadd.xlane.f32.xlu0 %v3924
        %v3926 = vpop.xlane.xlu0 %3925
        %v3927 = vsel %vm453, %v3825, 0.0
        %3928 = vadd.xlane.f32.xlu0 %v3927
        %v3929 = vpop.xlane.xlu0 %3928
        %v3930 = vsel %vm453, %v3827, 0.0
        %3931 = vadd.xlane.f32.xlu0 %v3930
        %v3932 = vpop.xlane.xlu0 %3931
        %v3933 = vsel %vm453, %v3829, 0.0
        %3934 = vadd.xlane.f32.xlu0 %v3933
        %v3935 = vpop.xlane.xlu0 %3934
        %v3936 = vsel %vm453, %v3831, 0.0
        %3937 = vadd.xlane.f32.xlu0 %v3936
        %v3938 = vpop.xlane.xlu0 %3937
        %v3939 = vsel %vm453, %v3833, 0.0
        %3940 = vadd.xlane.f32.xlu0 %v3939
        %v3941 = vpop.xlane.xlu0 %3940
        %v3942 = vsel %vm453, %v3835, 0.0
        %3943 = vadd.xlane.f32.xlu0 %v3942
        %v3944 = vpop.xlane.xlu0 %3943
        %v3945 = vsel %vm453, %v3837, 0.0
        %3946 = vadd.xlane.f32.xlu0 %v3945
        %v3947 = vpop.xlane.xlu0 %3946
        %v3948 = vsel %vm453, %v3839, 0.0
        %3949 = vadd.xlane.f32.xlu0 %v3948
        %v3950 = vpop.xlane.xlu0 %3949
        %v3951 = vsel %vm453, %v3841, 0.0
        %3952 = vadd.xlane.f32.xlu0 %v3951
        %v3953 = vpop.xlane.xlu0 %3952
        %v3954 = vsel %vm453, %v3843, 0.0
        %3955 = vadd.xlane.f32.xlu0 %v3954
        %v3956 = vpop.xlane.xlu0 %3955
        %v3957 = vsel %vm453, %v3845, 0.0
        %3958 = vadd.xlane.f32.xlu0 %v3957
        %v3959 = vpop.xlane.xlu0 %3958
        %v3960 = vsel %vm453, %v3847, 0.0
        %3961 = vadd.xlane.f32.xlu0 %v3960
        %v3962 = vpop.xlane.xlu0 %3961
        %v3963 = vsel %vm453, %v3849, 0.0
        %3964 = vadd.xlane.f32.xlu0 %v3963
        %v3965 = vpop.xlane.xlu0 %3964
        %v3966 = vsel %vm453, %v3851, 0.0
        %3967 = vadd.xlane.f32.xlu0 %v3966
        %v3968 = vpop.xlane.xlu0 %3967
        %v3969 = vsel %vm453, %v3853, 0.0
        %3970 = vadd.xlane.f32.xlu0 %v3969
        %v3971 = vpop.xlane.xlu0 %3970
        %v3972 = vsel %vm453, %v3855, 0.0
        %3973 = vadd.xlane.f32.xlu0 %v3972
        %v3974 = vpop.xlane.xlu0 %3973
        %v3975 = vsel %vm453, %v3857, 0.0
        %3976 = vadd.xlane.f32.xlu0 %v3975
        %v3977 = vpop.xlane.xlu0 %3976
        %v3978 = vsel %vm453, %v3859, 0.0
        %3979 = vadd.xlane.f32.xlu0 %v3978
        %v3980 = vpop.xlane.xlu0 %3979
        %v3981 = vsel %vm453, %v3861, 0.0
        %3982 = vadd.xlane.f32.xlu0 %v3981
        %v3983 = vpop.xlane.xlu0 %3982
        %v3984 = vsel %vm453, %v3863, 0.0
        %3985 = vadd.xlane.f32.xlu0 %v3984
        %v3986 = vpop.xlane.xlu0 %3985
        %v3987 = vsel %vm453, %v3865, 0.0
        %3988 = vadd.xlane.f32.xlu0 %v3987
        %v3989 = vpop.xlane.xlu0 %3988
        %v3990 = vsel %vm453, %v3867, 0.0
        %3991 = vadd.xlane.f32.xlu0 %v3990
        %v3992 = vpop.xlane.xlu0 %3991
        %v3993 = vsel %vm453, %v3869, 0.0
        %3994 = vadd.xlane.f32.xlu0 %v3993
        %v3995 = vpop.xlane.xlu0 %3994
        %v3996 = vsel %vm453, %v3871, 0.0
        %3997 = vadd.xlane.f32.xlu0 %v3996
        %v3998 = vpop.xlane.xlu0 %3997
        %v3999 = vsel %vm453, %v3873, 0.0
        %4000 = vadd.xlane.f32.xlu0 %v3999
        %v4001 = vpop.xlane.xlu0 %4000
        %v4002 = vadd.f32 %v3684, %v3908
        %v4003 = vadd.f32 %v3687, %v3911
        %v4004 = vadd.f32 %v3690, %v3914
        %v4005 = vadd.f32 %v3693, %v3917
        %v4006 = vadd.f32 %v3696, %v3920
        %v4007 = vadd.f32 %v3699, %v3923
        %v4008 = vadd.f32 %v3702, %v3926
        %v4009 = vadd.f32 %v3705, %v3929
        %v4010 = vadd.f32 %v3708, %v3932
        %v4011 = vadd.f32 %v3711, %v3935
        %v4012 = vadd.f32 %v3714, %v3938
        %v4013 = vadd.f32 %v3717, %v3941
        %v4014 = vadd.f32 %v3720, %v3944
        %v4015 = vadd.f32 %v3723, %v3947
        %v4016 = vadd.f32 %v3726, %v3950
        %v4017 = vadd.f32 %v3729, %v3953
        %v4018 = vadd.f32 %v3732, %v3956
        %v4019 = vadd.f32 %v3735, %v3959
        %v4020 = vadd.f32 %v3738, %v3962
        %v4021 = vadd.f32 %v3741, %v3965
        %v4022 = vadd.f32 %v3744, %v3968
        %v4023 = vadd.f32 %v3747, %v3971
        %v4024 = vadd.f32 %v3750, %v3974
        %v4025 = vadd.f32 %v3753, %v3977
        %v4026 = vadd.f32 %v3756, %v3980
        %v4027 = vadd.f32 %v3759, %v3983
        %v4028 = vadd.f32 %v3762, %v3986
        %v4029 = vadd.f32 %v3765, %v3989
        %v4030 = vadd.f32 %v3768, %v3992
        %v4031 = vadd.f32 %v3771, %v3995
        %v4032 = vadd.f32 %v3774, %v3998
        %v4033 = vadd.f32 %v3777, %v4001
        %v4034 = vrcp.pop %v4002
        %v4035 = vrcp.pop %v4003
        %v4036 = vrcp.pop %v4004
        %v4037 = vrcp.pop %v4005
        %v4038 = vrcp.pop %v4006
        %v4039 = vrcp.pop %v4007
        %v4040 = vrcp.pop %v4008
        %v4041 = vrcp.pop %v4009
        %v4042 = vrcp.pop %v4010
        %v4043 = vrcp.pop %v4011
        %v4044 = vrcp.pop %v4012
        %v4045 = vrcp.pop %v4013
        %v4046 = vrcp.pop %v4014
        %v4047 = vrcp.pop %v4015
        %v4048 = vrcp.pop %v4016
        %v4049 = vrcp.pop %v4017
        %v4050 = vrcp.pop %v4018
        %v4051 = vrcp.pop %v4019
        %v4052 = vrcp.pop %v4020
        %v4053 = vrcp.pop %v4021
        %v4054 = vrcp.pop %v4022
        %v4055 = vrcp.pop %v4023
        %v4056 = vrcp.pop %v4024
        %v4057 = vrcp.pop %v4025
        %v4058 = vrcp.pop %v4026
        %v4059 = vrcp.pop %v4027
        %v4060 = vrcp.pop %v4028
        %v4061 = vrcp.pop %v4029
        %v4062 = vrcp.pop %v4030
        %v4063 = vrcp.pop %v4031
        %v4064 = vrcp.pop %v4032
        %v4065 = vrcp.pop %v4033
        %v4066 = vmul.f32 %v3459, %v4034
        %v4067 = vmul.f32 %v3461, %v4034
        %v4068 = vmul.f32 %v3463, %v4035
        %v4069 = vmul.f32 %v3465, %v4035
        %v4070 = vmul.f32 %v3467, %v4036
        %v4071 = vmul.f32 %v3469, %v4036
        %v4072 = vmul.f32 %v3471, %v4037
        %v4073 = vmul.f32 %v3473, %v4037
        %v4074 = vmul.f32 %v3475, %v4038
        %v4075 = vmul.f32 %v3477, %v4038
        %v4076 = vmul.f32 %v3479, %v4039
        %v4077 = vmul.f32 %v3481, %v4039
        %v4078 = vmul.f32 %v3483, %v4040
        %v4079 = vmul.f32 %v3485, %v4040
        %v4080 = vmul.f32 %v3487, %v4041
        %v4081 = vmul.f32 %v3489, %v4041
        %v4082 = vmul.f32 %v3491, %v4042
        %v4083 = vmul.f32 %v3493, %v4042
        %v4084 = vmul.f32 %v3495, %v4043
        %v4085 = vmul.f32 %v3497, %v4043
        %v4086 = vmul.f32 %v3499, %v4044
        %v4087 = vmul.f32 %v3501, %v4044
        %v4088 = vmul.f32 %v3503, %v4045
        %v4089 = vmul.f32 %v3505, %v4045
        %v4090 = vmul.f32 %v3507, %v4046
        %v4091 = vmul.f32 %v3509, %v4046
        %v4092 = vmul.f32 %v3511, %v4047
        %v4093 = vmul.f32 %v3513, %v4047
        %v4094 = vmul.f32 %v3515, %v4048
        %v4095 = vmul.f32 %v3517, %v4048
        %v4096 = vmul.f32 %v3519, %v4049
        %v4097 = vmul.f32 %v3521, %v4049
        %v4098 = vmul.f32 %v3523, %v4050
        %v4099 = vmul.f32 %v3525, %v4050
        %v4100 = vmul.f32 %v3527, %v4051
        %v4101 = vmul.f32 %v3529, %v4051
        %v4102 = vmul.f32 %v3531, %v4052
        %v4103 = vmul.f32 %v3533, %v4052
        %v4104 = vmul.f32 %v3535, %v4053
        %v4105 = vmul.f32 %v3537, %v4053
        %v4106 = vmul.f32 %v3539, %v4054
        %v4107 = vmul.f32 %v3541, %v4054
        %v4108 = vmul.f32 %v3543, %v4055
        %v4109 = vmul.f32 %v3545, %v4055
        %v4110 = vmul.f32 %v3547, %v4056
        %v4111 = vmul.f32 %v3549, %v4056
        %v4112 = vmul.f32 %v3551, %v4057
        %v4113 = vmul.f32 %v3553, %v4057
        %v4114 = vmul.f32 %v3555, %v4058
        %v4115 = vmul.f32 %v3557, %v4058
        %v4116 = vmul.f32 %v3559, %v4059
        %v4117 = vmul.f32 %v3561, %v4059
        %v4118 = vmul.f32 %v3563, %v4060
        %v4119 = vmul.f32 %v3565, %v4060
        %v4120 = vmul.f32 %v3567, %v4061
        %v4121 = vmul.f32 %v3569, %v4061
        %v4122 = vmul.f32 %v3571, %v4062
        %v4123 = vmul.f32 %v3573, %v4062
        %v4124 = vmul.f32 %v3575, %v4063
        %v4125 = vmul.f32 %v3577, %v4063
        %v4126 = vmul.f32 %v3579, %v4064
        %v4127 = vmul.f32 %v3581, %v4064
        %v4128 = vmul.f32 %v3583, %v4065
        %v4129 = vmul.f32 %v3585, %v4065
        %v4130 = vpack.c.bf16 %v4068, %v4066
        %v4131 = vpack.c.bf16 %v4069, %v4067
        %v4132 = vpack.c.bf16 %v4072, %v4070
        %v4133 = vpack.c.bf16 %v4073, %v4071
        %v4134 = vpack.c.bf16 %v4076, %v4074
        %v4135 = vpack.c.bf16 %v4077, %v4075
        %v4136 = vpack.c.bf16 %v4080, %v4078
        %v4137 = vpack.c.bf16 %v4081, %v4079
        %v4138 = vpack.c.bf16 %v4084, %v4082
        %v4139 = vpack.c.bf16 %v4085, %v4083
        %v4140 = vpack.c.bf16 %v4088, %v4086
        %v4141 = vpack.c.bf16 %v4089, %v4087
        %v4142 = vpack.c.bf16 %v4092, %v4090
        %v4143 = vpack.c.bf16 %v4093, %v4091
        %v4144 = vpack.c.bf16 %v4096, %v4094
        %v4145 = vpack.c.bf16 %v4097, %v4095
        %v4146 = vpack.c.bf16 %v4100, %v4098
        %v4147 = vpack.c.bf16 %v4101, %v4099
        %v4148 = vpack.c.bf16 %v4104, %v4102
        %v4149 = vpack.c.bf16 %v4105, %v4103
        %v4150 = vpack.c.bf16 %v4108, %v4106
        %v4151 = vpack.c.bf16 %v4109, %v4107
        %v4152 = vpack.c.bf16 %v4112, %v4110
        %v4153 = vpack.c.bf16 %v4113, %v4111
        %v4154 = vpack.c.bf16 %v4116, %v4114
        %v4155 = vpack.c.bf16 %v4117, %v4115
        %v4156 = vpack.c.bf16 %v4120, %v4118
        %v4157 = vpack.c.bf16 %v4121, %v4119
        %v4158 = vpack.c.bf16 %v4124, %v4122
        %v4159 = vpack.c.bf16 %v4125, %v4123
        %v4160 = vpack.c.bf16 %v4128, %v4126
        %v4161 = vpack.c.bf16 %v4129, %v4127
        %v4162 = vmul.f32 %v3619, %v4034
        %v4163 = vmul.f32 %v3621, %v4035
        %v4164 = vmul.f32 %v3623, %v4036
        %v4165 = vmul.f32 %v3625, %v4037
        %v4166 = vmul.f32 %v3627, %v4038
        %v4167 = vmul.f32 %v3629, %v4039
        %v4168 = vmul.f32 %v3631, %v4040
        %v4169 = vmul.f32 %v3633, %v4041
        %v4170 = vmul.f32 %v3635, %v4042
        %v4171 = vmul.f32 %v3637, %v4043
        %v4172 = vmul.f32 %v3639, %v4044
        %v4173 = vmul.f32 %v3641, %v4045
        %v4174 = vmul.f32 %v3643, %v4046
        %v4175 = vmul.f32 %v3645, %v4047
        %v4176 = vmul.f32 %v3647, %v4048
        %v4177 = vmul.f32 %v3649, %v4049
        %v4178 = vmul.f32 %v3651, %v4050
        %v4179 = vmul.f32 %v3653, %v4051
        %v4180 = vmul.f32 %v3655, %v4052
        %v4181 = vmul.f32 %v3657, %v4053
        %v4182 = vmul.f32 %v3659, %v4054
        %v4183 = vmul.f32 %v3661, %v4055
        %v4184 = vmul.f32 %v3663, %v4056
        %v4185 = vmul.f32 %v3665, %v4057
        %v4186 = vmul.f32 %v3667, %v4058
        %v4187 = vmul.f32 %v3669, %v4059
        %v4188 = vmul.f32 %v3671, %v4060
        %v4189 = vmul.f32 %v3673, %v4061
        %v4190 = vmul.f32 %v3675, %v4062
        %v4191 = vmul.f32 %v3677, %v4063
        %v4192 = vmul.f32 %v3679, %v4064
        %v4193 = vmul.f32 %v3681, %v4065
        %v4194 = vpack.c.bf16 %v4163, %v4162
        %v4195 = vpack.c.bf16 %v4165, %v4164
        %v4196 = vpack.c.bf16 %v4167, %v4166
        %v4197 = vpack.c.bf16 %v4169, %v4168
        %v4198 = vpack.c.bf16 %v4171, %v4170
        %v4199 = vpack.c.bf16 %v4173, %v4172
        %v4200 = vpack.c.bf16 %v4175, %v4174
        %v4201 = vpack.c.bf16 %v4177, %v4176
        %v4202 = vpack.c.bf16 %v4179, %v4178
        %v4203 = vpack.c.bf16 %v4181, %v4180
        %v4204 = vpack.c.bf16 %v4183, %v4182
        %v4205 = vpack.c.bf16 %v4185, %v4184
        %v4206 = vpack.c.bf16 %v4187, %v4186
        %v4207 = vpack.c.bf16 %v4189, %v4188
        %v4208 = vpack.c.bf16 %v4191, %v4190
        %v4209 = vpack.c.bf16 %v4193, %v4192
        %4226 = vrot.lane.b32.xlu0 %v966, 96
        %v4227 = vpop.permute.xlu0 %4226
        %4228 = vrot.lane.b32.xlu0 %v967, 96
        %v4229 = vpop.permute.xlu0 %4228
        %4230 = vrot.lane.b32.xlu0 %v968, 96
        %v4231 = vpop.permute.xlu0 %4230
        %4232 = vrot.lane.b32.xlu0 %v969, 96
        %v4233 = vpop.permute.xlu0 %4232
        %4234 = vrot.lane.b32.xlu0 %v970, 96
        %v4235 = vpop.permute.xlu0 %4234
        %4236 = vrot.lane.b32.xlu0 %v971, 96
        %v4237 = vpop.permute.xlu0 %4236
        %4238 = vrot.lane.b32.xlu0 %v972, 96
        %v4239 = vpop.permute.xlu0 %4238
        %4240 = vrot.lane.b32.xlu0 %v973, 96
        %v4241 = vpop.permute.xlu0 %4240
        %4242 = vrot.lane.b32.xlu0 %v974, 96
        %v4243 = vpop.permute.xlu0 %4242
        %4244 = vrot.lane.b32.xlu0 %v975, 96
        %v4245 = vpop.permute.xlu0 %4244
        %4246 = vrot.lane.b32.xlu0 %v976, 96
        %v4247 = vpop.permute.xlu0 %4246
        %4248 = vrot.lane.b32.xlu0 %v977, 96
        %v4249 = vpop.permute.xlu0 %4248
        %4250 = vrot.lane.b32.xlu0 %v978, 96
        %v4251 = vpop.permute.xlu0 %4250
        %4252 = vrot.lane.b32.xlu0 %v979, 96
        %v4253 = vpop.permute.xlu0 %4252
        %4254 = vrot.lane.b32.xlu0 %v980, 96
        %v4255 = vpop.permute.xlu0 %4254
        %4256 = vrot.lane.b32.xlu0 %v981, 96
        %v4257 = vpop.permute.xlu0 %4256
        %4274 = vmatprep.subr.bf16.mxu0 0
        %4275 = vmatpush1.bf16.msra.mxu0 %v4227
        %4276 = vmatprep.subr.bf16.mxu0 0
        %4277 = vmatpush1.bf16.msra.mxu0 %v4229
        %4278 = vmatprep.subr.bf16.mxu0 0
        %4279 = vmatpush1.bf16.msra.mxu0 %v4231
        %4280 = vmatprep.subr.bf16.mxu0 0
        %4281 = vmatpush1.bf16.msra.mxu0 %v4233
        %4282 = vmatprep.subr.bf16.mxu0 0
        %4283 = vmatpush1.bf16.msra.mxu0 %v4235
        %4284 = vmatprep.subr.bf16.mxu0 0
        %4285 = vmatpush1.bf16.msra.mxu0 %v4237
        %4286 = vmatprep.subr.bf16.mxu0 0
        %4287 = vmatpush1.bf16.msra.mxu0 %v4239
        %4288 = vmatprep.subr.bf16.mxu0 0
        %4289 = vmatpush1.bf16.msra.mxu0 %v4241
        %4290 = vmatprep.subr.bf16.mxu0 0
        %4291 = vmatpush1.bf16.msra.mxu0 %v4243
        %4292 = vmatprep.subr.bf16.mxu0 0
        %4293 = vmatpush1.bf16.msra.mxu0 %v4245
        %4294 = vmatprep.subr.bf16.mxu0 0
        %4295 = vmatpush1.bf16.msra.mxu0 %v4247
        %4296 = vmatprep.subr.bf16.mxu0 0
        %4297 = vmatpush1.bf16.msra.mxu0 %v4249
        %4298 = vmatprep.subr.bf16.mxu0 0
        %4299 = vmatpush1.bf16.msra.mxu0 %v4251
        %4300 = vmatprep.subr.bf16.mxu0 0
        %4301 = vmatpush1.bf16.msra.mxu0 %v4253
        %4302 = vmatprep.subr.bf16.mxu0 0
        %4303 = vmatpush1.bf16.msra.mxu0 %v4255
        %4304 = vmatprep.subr.bf16.mxu0 0
        %4305 = vmatpush1.bf16.msra.mxu0 %v4257
        %4306 = vmatprep.mubr.bf16.mxu0 %v4131
        %4307 = vmatmul.mubr.bf16.gmra.mrb[0].mxu0 %v4130
        %v4308 = vpop.f32.mrb[0].mxu0
        %v4309 = vadd.f32 0.0, %v4308
        %v4310 = vpop.f32.mrb[0].mxu0
        %v4311 = vpop.f32.mrb[0].mxu0
        %v4312 = vadd.f32 0.0, %v4311
        %v4313 = vpop.f32.mrb[0].mxu0
        %4314 = vmatprep.mubr.bf16.mxu0 %v4133
        %4315 = vmatmul.mubr.bf16.gmra.mrb[0].mxu0 %v4132
        %v4316 = vpop.f32.mrb[0].mxu0
        %v4317 = vadd.f32 0.0, %v4316
        %v4318 = vpop.f32.mrb[0].mxu0
        %v4319 = vpop.f32.mrb[0].mxu0
        %v4320 = vadd.f32 0.0, %v4319
        %v4321 = vpop.f32.mrb[0].mxu0
        %4322 = vmatprep.mubr.bf16.mxu0 %v4135
        %4323 = vmatmul.mubr.bf16.gmra.mrb[0].mxu0 %v4134
        %v4324 = vpop.f32.mrb[0].mxu0
        %v4325 = vadd.f32 0.0, %v4324
        %v4326 = vpop.f32.mrb[0].mxu0
        %v4327 = vpop.f32.mrb[0].mxu0
        %v4328 = vadd.f32 0.0, %v4327
        %v4329 = vpop.f32.mrb[0].mxu0
        %4330 = vmatprep.mubr.bf16.mxu0 %v4137
        %4331 = vmatmul.mubr.bf16.gmra.mrb[0].mxu0 %v4136
        %v4332 = vpop.f32.mrb[0].mxu0
        %v4333 = vadd.f32 0.0, %v4332
        %v4334 = vpop.f32.mrb[0].mxu0
        %v4335 = vpop.f32.mrb[0].mxu0
        %v4336 = vadd.f32 0.0, %v4335
        %v4337 = vpop.f32.mrb[0].mxu0
        %4338 = vmatprep.mubr.bf16.mxu0 %v4139
        %4339 = vmatmul.mubr.bf16.gmra.mrb[0].mxu0 %v4138
        %v4340 = vpop.f32.mrb[0].mxu0
        %v4341 = vadd.f32 0.0, %v4340
        %v4342 = vpop.f32.mrb[0].mxu0
        %v4343 = vpop.f32.mrb[0].mxu0
        %v4344 = vadd.f32 0.0, %v4343
        %v4345 = vpop.f32.mrb[0].mxu0
        %4346 = vmatprep.mubr.bf16.mxu0 %v4141
        %4347 = vmatmul.mubr.bf16.gmra.mrb[0].mxu0 %v4140
        %v4348 = vpop.f32.mrb[0].mxu0
        %v4349 = vadd.f32 0.0, %v4348
        %v4350 = vpop.f32.mrb[0].mxu0
        %v4351 = vpop.f32.mrb[0].mxu0
        %v4352 = vadd.f32 0.0, %v4351
        %v4353 = vpop.f32.mrb[0].mxu0
        %4354 = vmatprep.mubr.bf16.mxu0 %v4143
        %4355 = vmatmul.mubr.bf16.gmra.mrb[0].mxu0 %v4142
        %v4356 = vpop.f32.mrb[0].mxu0
        %v4357 = vadd.f32 0.0, %v4356
        %v4358 = vpop.f32.mrb[0].mxu0
        %v4359 = vpop.f32.mrb[0].mxu0
        %v4360 = vadd.f32 0.0, %v4359
        %v4361 = vpop.f32.mrb[0].mxu0
        %4362 = vmatprep.mubr.bf16.mxu0 %v4145
        %4363 = vmatmul.mubr.bf16.gmra.mrb[0].mxu0 %v4144
        %v4364 = vpop.f32.mrb[0].mxu0
        %v4365 = vadd.f32 0.0, %v4364
        %v4366 = vpop.f32.mrb[0].mxu0
        %v4367 = vpop.f32.mrb[0].mxu0
        %v4368 = vadd.f32 0.0, %v4367
        %v4369 = vpop.f32.mrb[0].mxu0
        %4370 = vmatprep.mubr.bf16.mxu0 %v4147
        %4371 = vmatmul.mubr.bf16.gmra.mrb[0].mxu0 %v4146
        %v4372 = vpop.f32.mrb[0].mxu0
        %v4373 = vadd.f32 0.0, %v4372
        %v4374 = vpop.f32.mrb[0].mxu0
        %v4375 = vpop.f32.mrb[0].mxu0
        %v4376 = vadd.f32 0.0, %v4375
        %v4377 = vpop.f32.mrb[0].mxu0
        %4378 = vmatprep.mubr.bf16.mxu0 %v4149
        %4379 = vmatmul.mubr.bf16.gmra.mrb[0].mxu0 %v4148
        %v4380 = vpop.f32.mrb[0].mxu0
        %v4381 = vadd.f32 0.0, %v4380
        %v4382 = vpop.f32.mrb[0].mxu0
        %v4383 = vpop.f32.mrb[0].mxu0
        %v4384 = vadd.f32 0.0, %v4383
        %v4385 = vpop.f32.mrb[0].mxu0
        %4386 = vmatprep.mubr.bf16.mxu0 %v4151
        %4387 = vmatmul.mubr.bf16.gmra.mrb[0].mxu0 %v4150
        %v4388 = vpop.f32.mrb[0].mxu0
        %v4389 = vadd.f32 0.0, %v4388
        %v4390 = vpop.f32.mrb[0].mxu0
        %v4391 = vpop.f32.mrb[0].mxu0
        %v4392 = vadd.f32 0.0, %v4391
        %v4393 = vpop.f32.mrb[0].mxu0
        %4394 = vmatprep.mubr.bf16.mxu0 %v4153
        %4395 = vmatmul.mubr.bf16.gmra.mrb[0].mxu0 %v4152
        %v4396 = vpop.f32.mrb[0].mxu0
        %v4397 = vadd.f32 0.0, %v4396
        %v4398 = vpop.f32.mrb[0].mxu0
        %v4399 = vpop.f32.mrb[0].mxu0
        %v4400 = vadd.f32 0.0, %v4399
        %v4401 = vpop.f32.mrb[0].mxu0
        %4402 = vmatprep.mubr.bf16.mxu0 %v4155
        %4403 = vmatmul.mubr.bf16.gmra.mrb[0].mxu0 %v4154
        %v4404 = vpop.f32.mrb[0].mxu0
        %v4405 = vadd.f32 0.0, %v4404
        %v4406 = vpop.f32.mrb[0].mxu0
        %v4407 = vpop.f32.mrb[0].mxu0
        %v4408 = vadd.f32 0.0, %v4407
        %v4409 = vpop.f32.mrb[0].mxu0
        %4410 = vmatprep.mubr.bf16.mxu0 %v4157
        %4411 = vmatmul.mubr.bf16.gmra.mrb[0].mxu0 %v4156
        %v4412 = vpop.f32.mrb[0].mxu0
        %v4413 = vadd.f32 0.0, %v4412
        %v4414 = vpop.f32.mrb[0].mxu0
        %v4415 = vpop.f32.mrb[0].mxu0
        %v4416 = vadd.f32 0.0, %v4415
        %v4417 = vpop.f32.mrb[0].mxu0
        %4418 = vmatprep.mubr.bf16.mxu0 %v4159
        %4419 = vmatmul.mubr.bf16.gmra.mrb[0].mxu0 %v4158
        %v4420 = vpop.f32.mrb[0].mxu0
        %v4421 = vadd.f32 0.0, %v4420
        %v4422 = vpop.f32.mrb[0].mxu0
        %v4423 = vpop.f32.mrb[0].mxu0
        %v4424 = vadd.f32 0.0, %v4423
        %v4425 = vpop.f32.mrb[0].mxu0
        %4426 = vmatprep.mubr.bf16.mxu0 %v4161
        %4427 = vmatmul.mubr.bf16.gmra.mrb[0].mxu0 %v4160
        %v4428 = vpop.f32.mrb[0].mxu0
        %v4429 = vadd.f32 0.0, %v4428
        %v4430 = vpop.f32.mrb[0].mxu0
        %v4431 = vpop.f32.mrb[0].mxu0
        %v4432 = vadd.f32 0.0, %v4431
        %v4433 = vpop.f32.mrb[0].mxu0
        %4434 = vdwg.mxu0
        %v4435 = vpack.c.bf16 %v4312, %v4309
        %v4436 = vpack.c.bf16 %v4320, %v4317
        %v4437 = vpack.c.bf16 %v4328, %v4325
        %v4438 = vpack.c.bf16 %v4336, %v4333
        %v4439 = vpack.c.bf16 %v4344, %v4341
        %v4440 = vpack.c.bf16 %v4352, %v4349
        %v4441 = vpack.c.bf16 %v4360, %v4357
        %v4442 = vpack.c.bf16 %v4368, %v4365
        %v4443 = vpack.c.bf16 %v4376, %v4373
        %v4444 = vpack.c.bf16 %v4384, %v4381
        %v4445 = vpack.c.bf16 %v4392, %v4389
        %v4446 = vpack.c.bf16 %v4400, %v4397
        %v4447 = vpack.c.bf16 %v4408, %v4405
        %v4448 = vpack.c.bf16 %v4416, %v4413
        %v4449 = vpack.c.bf16 %v4424, %v4421
        %v4450 = vpack.c.bf16 %v4432, %v4429
        %v4451 = vld [vmem:[%s4 + $0x10] sm:$0xf]
        %v4452 = vld [vmem:[%s4 + $0x14] sm:$0xf]
        %v4453 = vld [vmem:[%s4 + $0x18] sm:$0xf]
        %v4454 = vld [vmem:[%s4 + $0x1c] sm:$0xf]
        %v4459 = vunpack.c.l.b16 %v4451
        %v4460 = vunpack.c.l.b16 %v4452
        %v4461 = vunpack.c.l.b16 %v4453
        %v4462 = vunpack.c.l.b16 %v4454
        %v4463 = vpack.c.b16 %v4460, %v4459
        %v4464 = vpack.c.b16 %v4462, %v4461
        %v4468 = vsel %vm1304, %v4435, 0
        %v4471 = vsel %vm1304, %v4436, 0
        %v4474 = vsel %vm1304, %v4437, 0
        %v4477 = vsel %vm1304, %v4438, 0
        %v4480 = vsel %vm1304, %v4439, 0
        %v4483 = vsel %vm1304, %v4440, 0
        %v4486 = vsel %vm1304, %v4441, 0
        %v4489 = vsel %vm1304, %v4442, 0
        %v4492 = vsel %vm1304, %v4443, 0
        %v4495 = vsel %vm1304, %v4444, 0
        %v4498 = vsel %vm1304, %v4445, 0
        %v4501 = vsel %vm1304, %v4446, 0
        %v4504 = vsel %vm1304, %v4447, 0
        %v4507 = vsel %vm1304, %v4448, 0
        %v4510 = vsel %vm1304, %v4449, 0
        %v4513 = vsel %vm1304, %v4450, 0
        %4515 = vmatprep.subr.bf16.mxu0 0
        %4516 = vmatpush1.bf16.msra.mxu0 %v4463
        %4517 = vmatprep.subr.bf16.mxu0 0
        %4518 = vmatpush1.bf16.msra.mxu0 %v4464
        %4519 = vmatprep.subr.bf16.mxu0 0
        %4520 = vmatpush1.bf16.msra.mxu0 0
        %4521 = vmatprep.subr.bf16.mxu0 0
        %4522 = vmatpush1.bf16.msra.mxu0 0
        %4523 = vmatprep.subr.bf16.mxu0 0
        %4524 = vmatpush1.bf16.msra.mxu0 0
        %4525 = vmatprep.subr.bf16.mxu0 0
        %4526 = vmatpush1.bf16.msra.mxu0 0
        %4527 = vmatprep.subr.bf16.mxu0 0
        %4528 = vmatpush1.bf16.msra.mxu0 0
        %4529 = vmatprep.subr.bf16.mxu0 0
        %4530 = vmatpush1.bf16.msra.mxu0 0
        %4531 = vmatprep.subr.bf16.mxu0 0
        %4532 = vmatpush1.bf16.msra.mxu0 0
        %4533 = vmatprep.subr.bf16.mxu0 0
        %4534 = vmatpush1.bf16.msra.mxu0 0
        %4535 = vmatprep.subr.bf16.mxu0 0
        %4536 = vmatpush1.bf16.msra.mxu0 0
        %4537 = vmatprep.subr.bf16.mxu0 0
        %4538 = vmatpush1.bf16.msra.mxu0 0
        %4539 = vmatprep.subr.bf16.mxu0 0
        %4540 = vmatpush1.bf16.msra.mxu0 0
        %4541 = vmatprep.subr.bf16.mxu0 0
        %4542 = vmatpush1.bf16.msra.mxu0 0
        %4543 = vmatprep.subr.bf16.mxu0 0
        %4544 = vmatpush1.bf16.msra.mxu0 0
        %4545 = vmatprep.subr.bf16.mxu0 0
        %4546 = vmatpush1.bf16.msra.mxu0 0
        %4547 = vmatprep.mubr.bf16.mxu0 0
        %4548 = vmatmul.mubr.bf16.gmra.mrb[0].mxu0 %v4468
        %v4549 = vpop.f32.mrb[0].mxu0
        %v4550 = vadd.f32 0.0, %v4549
        %v4551 = vpop.f32.mrb[0].mxu0
        %v4552 = vpop.f32.mrb[0].mxu0
        %v4553 = vadd.f32 0.0, %v4552
        %v4554 = vpop.f32.mrb[0].mxu0
        %4555 = vmatprep.mubr.bf16.mxu0 0
        %4556 = vmatmul.mubr.bf16.gmra.mrb[0].mxu0 %v4471
        %v4557 = vpop.f32.mrb[0].mxu0
        %v4558 = vadd.f32 0.0, %v4557
        %v4559 = vpop.f32.mrb[0].mxu0
        %v4560 = vpop.f32.mrb[0].mxu0
        %v4561 = vadd.f32 0.0, %v4560
        %v4562 = vpop.f32.mrb[0].mxu0
        %4563 = vmatprep.mubr.bf16.mxu0 0
        %4564 = vmatmul.mubr.bf16.gmra.mrb[0].mxu0 %v4474
        %v4565 = vpop.f32.mrb[0].mxu0
        %v4566 = vadd.f32 0.0, %v4565
        %v4567 = vpop.f32.mrb[0].mxu0
        %v4568 = vpop.f32.mrb[0].mxu0
        %v4569 = vadd.f32 0.0, %v4568
        %v4570 = vpop.f32.mrb[0].mxu0
        %4571 = vmatprep.mubr.bf16.mxu0 0
        %4572 = vmatmul.mubr.bf16.gmra.mrb[0].mxu0 %v4477
        %v4573 = vpop.f32.mrb[0].mxu0
        %v4574 = vadd.f32 0.0, %v4573
        %v4575 = vpop.f32.mrb[0].mxu0
        %v4576 = vpop.f32.mrb[0].mxu0
        %v4577 = vadd.f32 0.0, %v4576
        %v4578 = vpop.f32.mrb[0].mxu0
        %4579 = vmatprep.mubr.bf16.mxu0 0
        %4580 = vmatmul.mubr.bf16.gmra.mrb[0].mxu0 %v4480
        %v4581 = vpop.f32.mrb[0].mxu0
        %v4582 = vadd.f32 0.0, %v4581
        %v4583 = vpop.f32.mrb[0].mxu0
        %v4584 = vpop.f32.mrb[0].mxu0
        %v4585 = vadd.f32 0.0, %v4584
        %v4586 = vpop.f32.mrb[0].mxu0
        %4587 = vmatprep.mubr.bf16.mxu0 0
        %4588 = vmatmul.mubr.bf16.gmra.mrb[0].mxu0 %v4483
        %v4589 = vpop.f32.mrb[0].mxu0
        %v4590 = vadd.f32 0.0, %v4589
        %v4591 = vpop.f32.mrb[0].mxu0
        %v4592 = vpop.f32.mrb[0].mxu0
        %v4593 = vadd.f32 0.0, %v4592
        %v4594 = vpop.f32.mrb[0].mxu0
        %4595 = vmatprep.mubr.bf16.mxu0 0
        %4596 = vmatmul.mubr.bf16.gmra.mrb[0].mxu0 %v4486
        %v4597 = vpop.f32.mrb[0].mxu0
        %v4598 = vadd.f32 0.0, %v4597
        %v4599 = vpop.f32.mrb[0].mxu0
        %v4600 = vpop.f32.mrb[0].mxu0
        %v4601 = vadd.f32 0.0, %v4600
        %v4602 = vpop.f32.mrb[0].mxu0
        %4603 = vmatprep.mubr.bf16.mxu0 0
        %4604 = vmatmul.mubr.bf16.gmra.mrb[0].mxu0 %v4489
        %v4605 = vpop.f32.mrb[0].mxu0
        %v4606 = vadd.f32 0.0, %v4605
        %v4607 = vpop.f32.mrb[0].mxu0
        %v4608 = vpop.f32.mrb[0].mxu0
        %v4609 = vadd.f32 0.0, %v4608
        %v4610 = vpop.f32.mrb[0].mxu0
        %4611 = vmatprep.mubr.bf16.mxu0 0
        %4612 = vmatmul.mubr.bf16.gmra.mrb[0].mxu0 %v4492
        %v4613 = vpop.f32.mrb[0].mxu0
        %v4614 = vadd.f32 0.0, %v4613
        %v4615 = vpop.f32.mrb[0].mxu0
        %v4616 = vpop.f32.mrb[0].mxu0
        %v4617 = vadd.f32 0.0, %v4616
        %v4618 = vpop.f32.mrb[0].mxu0
        %4619 = vmatprep.mubr.bf16.mxu0 0
        %4620 = vmatmul.mubr.bf16.gmra.mrb[0].mxu0 %v4495
        %v4621 = vpop.f32.mrb[0].mxu0
        %v4622 = vadd.f32 0.0, %v4621
        %v4623 = vpop.f32.mrb[0].mxu0
        %v4624 = vpop.f32.mrb[0].mxu0
        %v4625 = vadd.f32 0.0, %v4624
        %v4626 = vpop.f32.mrb[0].mxu0
        %4627 = vmatprep.mubr.bf16.mxu0 0
        %4628 = vmatmul.mubr.bf16.gmra.mrb[0].mxu0 %v4498
        %v4629 = vpop.f32.mrb[0].mxu0
        %v4630 = vadd.f32 0.0, %v4629
        %v4631 = vpop.f32.mrb[0].mxu0
        %v4632 = vpop.f32.mrb[0].mxu0
        %v4633 = vadd.f32 0.0, %v4632
        %v4634 = vpop.f32.mrb[0].mxu0
        %4635 = vmatprep.mubr.bf16.mxu0 0
        %4636 = vmatmul.mubr.bf16.gmra.mrb[0].mxu0 %v4501
        %v4637 = vpop.f32.mrb[0].mxu0
        %v4638 = vadd.f32 0.0, %v4637
        %v4639 = vpop.f32.mrb[0].mxu0
        %v4640 = vpop.f32.mrb[0].mxu0
        %v4641 = vadd.f32 0.0, %v4640
        %v4642 = vpop.f32.mrb[0].mxu0
        %4643 = vmatprep.mubr.bf16.mxu0 0
        %4644 = vmatmul.mubr.bf16.gmra.mrb[0].mxu0 %v4504
        %v4645 = vpop.f32.mrb[0].mxu0
        %v4646 = vadd.f32 0.0, %v4645
        %v4647 = vpop.f32.mrb[0].mxu0
        %v4648 = vpop.f32.mrb[0].mxu0
        %v4649 = vadd.f32 0.0, %v4648
        %v4650 = vpop.f32.mrb[0].mxu0
        %4651 = vmatprep.mubr.bf16.mxu0 0
        %4652 = vmatmul.mubr.bf16.gmra.mrb[0].mxu0 %v4507
        %v4653 = vpop.f32.mrb[0].mxu0
        %v4654 = vadd.f32 0.0, %v4653
        %v4655 = vpop.f32.mrb[0].mxu0
        %v4656 = vpop.f32.mrb[0].mxu0
        %v4657 = vadd.f32 0.0, %v4656
        %v4658 = vpop.f32.mrb[0].mxu0
        %4659 = vmatprep.mubr.bf16.mxu0 0
        %4660 = vmatmul.mubr.bf16.gmra.mrb[0].mxu0 %v4510
        %v4661 = vpop.f32.mrb[0].mxu0
        %v4662 = vadd.f32 0.0, %v4661
        %v4663 = vpop.f32.mrb[0].mxu0
        %v4664 = vpop.f32.mrb[0].mxu0
        %v4665 = vadd.f32 0.0, %v4664
        %v4666 = vpop.f32.mrb[0].mxu0
        %4667 = vmatprep.mubr.bf16.mxu0 0
        %4668 = vmatmul.mubr.bf16.gmra.mrb[0].mxu0 %v4513
        %v4669 = vpop.f32.mrb[0].mxu0
        %v4670 = vadd.f32 0.0, %v4669
        %v4671 = vpop.f32.mrb[0].mxu0
        %v4672 = vpop.f32.mrb[0].mxu0
        %v4673 = vadd.f32 0.0, %v4672
        %v4674 = vpop.f32.mrb[0].mxu0
        %4675 = vdwg.mxu0
        %v4676 = vadd.f32 %v2851, %v4550
        %v4677 = vadd.f32 %v2854, %v4553
        %v4678 = vadd.f32 %v2859, %v4558
        %v4679 = vadd.f32 %v2862, %v4561
        %v4680 = vadd.f32 %v2867, %v4566
        %v4681 = vadd.f32 %v2870, %v4569
        %v4682 = vadd.f32 %v2875, %v4574
        %v4683 = vadd.f32 %v2878, %v4577
        %v4684 = vadd.f32 %v2883, %v4582
        %v4685 = vadd.f32 %v2886, %v4585
        %v4686 = vadd.f32 %v2891, %v4590
        %v4687 = vadd.f32 %v2894, %v4593
        %v4688 = vadd.f32 %v2899, %v4598
        %v4689 = vadd.f32 %v2902, %v4601
        %v4690 = vadd.f32 %v2907, %v4606
        %v4691 = vadd.f32 %v2910, %v4609
        %v4692 = vadd.f32 %v2915, %v4614
        %v4693 = vadd.f32 %v2918, %v4617
        %v4694 = vadd.f32 %v2923, %v4622
        %v4695 = vadd.f32 %v2926, %v4625
        %v4696 = vadd.f32 %v2931, %v4630
        %v4697 = vadd.f32 %v2934, %v4633
        %v4698 = vadd.f32 %v2939, %v4638
        %v4699 = vadd.f32 %v2942, %v4641
        %v4700 = vadd.f32 %v2947, %v4646
        %v4701 = vadd.f32 %v2950, %v4649
        %v4702 = vadd.f32 %v2955, %v4654
        %v4703 = vadd.f32 %v2958, %v4657
        %v4704 = vadd.f32 %v2963, %v4662
        %v4705 = vadd.f32 %v2966, %v4665
        %v4706 = vadd.f32 %v2971, %v4670
        %v4707 = vadd.f32 %v2974, %v4673
        %s4708 = scalar_lea.vmem %s3, 2
        %v4709 = vld [vmem:[%s4708] sm:$0x3]
        %4726 = vrot.lane.b32.xlu0 %v4194, 124
        %v4727 = vpop.permute.xlu0 %4726
        %4728 = vrot.lane.b32.xlu0 %v4195, 124
        %v4729 = vpop.permute.xlu0 %4728
        %4730 = vrot.lane.b32.xlu0 %v4196, 124
        %v4731 = vpop.permute.xlu0 %4730
        %4732 = vrot.lane.b32.xlu0 %v4197, 124
        %v4733 = vpop.permute.xlu0 %4732
        %4734 = vrot.lane.b32.xlu0 %v4198, 124
        %v4735 = vpop.permute.xlu0 %4734
        %4736 = vrot.lane.b32.xlu0 %v4199, 124
        %v4737 = vpop.permute.xlu0 %4736
        %4738 = vrot.lane.b32.xlu0 %v4200, 124
        %v4739 = vpop.permute.xlu0 %4738
        %4740 = vrot.lane.b32.xlu0 %v4201, 124
        %v4741 = vpop.permute.xlu0 %4740
        %4742 = vrot.lane.b32.xlu0 %v4202, 124
        %v4743 = vpop.permute.xlu0 %4742
        %4744 = vrot.lane.b32.xlu0 %v4203, 124
        %v4745 = vpop.permute.xlu0 %4744
        %4746 = vrot.lane.b32.xlu0 %v4204, 124
        %v4747 = vpop.permute.xlu0 %4746
        %4748 = vrot.lane.b32.xlu0 %v4205, 124
        %v4749 = vpop.permute.xlu0 %4748
        %4750 = vrot.lane.b32.xlu0 %v4206, 124
        %v4751 = vpop.permute.xlu0 %4750
        %4752 = vrot.lane.b32.xlu0 %v4207, 124
        %v4753 = vpop.permute.xlu0 %4752
        %4754 = vrot.lane.b32.xlu0 %v4208, 124
        %v4755 = vpop.permute.xlu0 %4754
        %4756 = vrot.lane.b32.xlu0 %v4209, 124
        %v4757 = vpop.permute.xlu0 %4756
        %v4759 = vsel %vm453, %v4727, 0
        %v4762 = vsel %vm453, %v4729, 0
        %v4765 = vsel %vm453, %v4731, 0
        %v4768 = vsel %vm453, %v4733, 0
        %v4771 = vsel %vm453, %v4735, 0
        %v4774 = vsel %vm453, %v4737, 0
        %v4777 = vsel %vm453, %v4739, 0
        %v4780 = vsel %vm453, %v4741, 0
        %v4783 = vsel %vm453, %v4743, 0
        %v4786 = vsel %vm453, %v4745, 0
        %v4789 = vsel %vm453, %v4747, 0
        %v4792 = vsel %vm453, %v4749, 0
        %v4795 = vsel %vm453, %v4751, 0
        %v4798 = vsel %vm453, %v4753, 0
        %v4801 = vsel %vm453, %v4755, 0
        %v4804 = vsel %vm453, %v4757, 0
        %v4807 = vsel %vm526, %v4709, 0
        %4809 = vmatprep.subr.bf16.mxu0 0
        %4810 = vmatpush1.bf16.msra.mxu0 %v4807
        %4811 = vmatprep.subr.bf16.mxu0 0
        %4812 = vmatpush1.bf16.msra.mxu0 0
        %4813 = vmatprep.subr.bf16.mxu0 0
        %4814 = vmatpush1.bf16.msra.mxu0 0
        %4815 = vmatprep.subr.bf16.mxu0 0
        %4816 = vmatpush1.bf16.msra.mxu0 0
        %4817 = vmatprep.subr.bf16.mxu0 0
        %4818 = vmatpush1.bf16.msra.mxu0 0
        %4819 = vmatprep.subr.bf16.mxu0 0
        %4820 = vmatpush1.bf16.msra.mxu0 0
        %4821 = vmatprep.subr.bf16.mxu0 0
        %4822 = vmatpush1.bf16.msra.mxu0 0
        %4823 = vmatprep.subr.bf16.mxu0 0
        %4824 = vmatpush1.bf16.msra.mxu0 0
        %4825 = vmatprep.subr.bf16.mxu0 0
        %4826 = vmatpush1.bf16.msra.mxu0 0
        %4827 = vmatprep.subr.bf16.mxu0 0
        %4828 = vmatpush1.bf16.msra.mxu0 0
        %4829 = vmatprep.subr.bf16.mxu0 0
        %4830 = vmatpush1.bf16.msra.mxu0 0
        %4831 = vmatprep.subr.bf16.mxu0 0
        %4832 = vmatpush1.bf16.msra.mxu0 0
        %4833 = vmatprep.subr.bf16.mxu0 0
        %4834 = vmatpush1.bf16.msra.mxu0 0
        %4835 = vmatprep.subr.bf16.mxu0 0
        %4836 = vmatpush1.bf16.msra.mxu0 0
        %4837 = vmatprep.subr.bf16.mxu0 0
        %4838 = vmatpush1.bf16.msra.mxu0 0
        %4839 = vmatprep.subr.bf16.mxu0 0
        %4840 = vmatpush1.bf16.msra.mxu0 0
        %4841 = vmatprep.mubr.bf16.mxu0 0
        %4842 = vmatmul.mubr.bf16.gmra.mrb[0].mxu0 %v4759
        %v4843 = vpop.f32.mrb[0].mxu0
        %v4844 = vadd.f32 0.0, %v4843
        %v4845 = vpop.f32.mrb[0].mxu0
        %v4846 = vpop.f32.mrb[0].mxu0
        %v4847 = vadd.f32 0.0, %v4846
        %v4848 = vpop.f32.mrb[0].mxu0
        %4849 = vmatprep.mubr.bf16.mxu0 0
        %4850 = vmatmul.mubr.bf16.gmra.mrb[0].mxu0 %v4762
        %v4851 = vpop.f32.mrb[0].mxu0
        %v4852 = vadd.f32 0.0, %v4851
        %v4853 = vpop.f32.mrb[0].mxu0
        %v4854 = vpop.f32.mrb[0].mxu0
        %v4855 = vadd.f32 0.0, %v4854
        %v4856 = vpop.f32.mrb[0].mxu0
        %4857 = vmatprep.mubr.bf16.mxu0 0
        %4858 = vmatmul.mubr.bf16.gmra.mrb[0].mxu0 %v4765
        %v4859 = vpop.f32.mrb[0].mxu0
        %v4860 = vadd.f32 0.0, %v4859
        %v4861 = vpop.f32.mrb[0].mxu0
        %v4862 = vpop.f32.mrb[0].mxu0
        %v4863 = vadd.f32 0.0, %v4862
        %v4864 = vpop.f32.mrb[0].mxu0
        %4865 = vmatprep.mubr.bf16.mxu0 0
        %4866 = vmatmul.mubr.bf16.gmra.mrb[0].mxu0 %v4768
        %v4867 = vpop.f32.mrb[0].mxu0
        %v4868 = vadd.f32 0.0, %v4867
        %v4869 = vpop.f32.mrb[0].mxu0
        %v4870 = vpop.f32.mrb[0].mxu0
        %v4871 = vadd.f32 0.0, %v4870
        %v4872 = vpop.f32.mrb[0].mxu0
        %4873 = vmatprep.mubr.bf16.mxu0 0
        %4874 = vmatmul.mubr.bf16.gmra.mrb[0].mxu0 %v4771
        %v4875 = vpop.f32.mrb[0].mxu0
        %v4876 = vadd.f32 0.0, %v4875
        %v4877 = vpop.f32.mrb[0].mxu0
        %v4878 = vpop.f32.mrb[0].mxu0
        %v4879 = vadd.f32 0.0, %v4878
        %v4880 = vpop.f32.mrb[0].mxu0
        %4881 = vmatprep.mubr.bf16.mxu0 0
        %4882 = vmatmul.mubr.bf16.gmra.mrb[0].mxu0 %v4774
        %v4883 = vpop.f32.mrb[0].mxu0
        %v4884 = vadd.f32 0.0, %v4883
        %v4885 = vpop.f32.mrb[0].mxu0
        %v4886 = vpop.f32.mrb[0].mxu0
        %v4887 = vadd.f32 0.0, %v4886
        %v4888 = vpop.f32.mrb[0].mxu0
        %4889 = vmatprep.mubr.bf16.mxu0 0
        %4890 = vmatmul.mubr.bf16.gmra.mrb[0].mxu0 %v4777
        %v4891 = vpop.f32.mrb[0].mxu0
        %v4892 = vadd.f32 0.0, %v4891
        %v4893 = vpop.f32.mrb[0].mxu0
        %v4894 = vpop.f32.mrb[0].mxu0
        %v4895 = vadd.f32 0.0, %v4894
        %v4896 = vpop.f32.mrb[0].mxu0
        %4897 = vmatprep.mubr.bf16.mxu0 0
        %4898 = vmatmul.mubr.bf16.gmra.mrb[0].mxu0 %v4780
        %v4899 = vpop.f32.mrb[0].mxu0
        %v4900 = vadd.f32 0.0, %v4899
        %v4901 = vpop.f32.mrb[0].mxu0
        %v4902 = vpop.f32.mrb[0].mxu0
        %v4903 = vadd.f32 0.0, %v4902
        %v4904 = vpop.f32.mrb[0].mxu0
        %4905 = vmatprep.mubr.bf16.mxu0 0
        %4906 = vmatmul.mubr.bf16.gmra.mrb[0].mxu0 %v4783
        %v4907 = vpop.f32.mrb[0].mxu0
        %v4908 = vadd.f32 0.0, %v4907
        %v4909 = vpop.f32.mrb[0].mxu0
        %v4910 = vpop.f32.mrb[0].mxu0
        %v4911 = vadd.f32 0.0, %v4910
        %v4912 = vpop.f32.mrb[0].mxu0
        %4913 = vmatprep.mubr.bf16.mxu0 0
        %4914 = vmatmul.mubr.bf16.gmra.mrb[0].mxu0 %v4786
        %v4915 = vpop.f32.mrb[0].mxu0
        %v4916 = vadd.f32 0.0, %v4915
        %v4917 = vpop.f32.mrb[0].mxu0
        %v4918 = vpop.f32.mrb[0].mxu0
        %v4919 = vadd.f32 0.0, %v4918
        %v4920 = vpop.f32.mrb[0].mxu0
        %4921 = vmatprep.mubr.bf16.mxu0 0
        %4922 = vmatmul.mubr.bf16.gmra.mrb[0].mxu0 %v4789
        %v4923 = vpop.f32.mrb[0].mxu0
        %v4924 = vadd.f32 0.0, %v4923
        %v4925 = vpop.f32.mrb[0].mxu0
        %v4926 = vpop.f32.mrb[0].mxu0
        %v4927 = vadd.f32 0.0, %v4926
        %v4928 = vpop.f32.mrb[0].mxu0
        %4929 = vmatprep.mubr.bf16.mxu0 0
        %4930 = vmatmul.mubr.bf16.gmra.mrb[0].mxu0 %v4792
        %v4931 = vpop.f32.mrb[0].mxu0
        %v4932 = vadd.f32 0.0, %v4931
        %v4933 = vpop.f32.mrb[0].mxu0
        %v4934 = vpop.f32.mrb[0].mxu0
        %v4935 = vadd.f32 0.0, %v4934
        %v4936 = vpop.f32.mrb[0].mxu0
        %4937 = vmatprep.mubr.bf16.mxu0 0
        %4938 = vmatmul.mubr.bf16.gmra.mrb[0].mxu0 %v4795
        %v4939 = vpop.f32.mrb[0].mxu0
        %v4940 = vadd.f32 0.0, %v4939
        %v4941 = vpop.f32.mrb[0].mxu0
        %v4942 = vpop.f32.mrb[0].mxu0
        %v4943 = vadd.f32 0.0, %v4942
        %v4944 = vpop.f32.mrb[0].mxu0
        %4945 = vmatprep.mubr.bf16.mxu0 0
        %4946 = vmatmul.mubr.bf16.gmra.mrb[0].mxu0 %v4798
        %v4947 = vpop.f32.mrb[0].mxu0
        %v4948 = vadd.f32 0.0, %v4947
        %v4949 = vpop.f32.mrb[0].mxu0
        %v4950 = vpop.f32.mrb[0].mxu0
        %v4951 = vadd.f32 0.0, %v4950
        %v4952 = vpop.f32.mrb[0].mxu0
        %4953 = vmatprep.mubr.bf16.mxu0 0
        %4954 = vmatmul.mubr.bf16.gmra.mrb[0].mxu0 %v4801
        %v4955 = vpop.f32.mrb[0].mxu0
        %v4956 = vadd.f32 0.0, %v4955
        %v4957 = vpop.f32.mrb[0].mxu0
        %v4958 = vpop.f32.mrb[0].mxu0
        %v4959 = vadd.f32 0.0, %v4958
        %v4960 = vpop.f32.mrb[0].mxu0
        %4961 = vmatprep.mubr.bf16.mxu0 0
        %4962 = vmatmul.mubr.bf16.gmra.mrb[0].mxu0 %v4804
        %v4963 = vpop.f32.mrb[0].mxu0
        %v4964 = vadd.f32 0.0, %v4963
        %v4965 = vpop.f32.mrb[0].mxu0
        %v4966 = vpop.f32.mrb[0].mxu0
        %v4967 = vadd.f32 0.0, %v4966
        %v4968 = vpop.f32.mrb[0].mxu0
        %4969 = vdwg.mxu0
        %v4970 = vadd.f32 %v4676, %v4844
        %v4971 = vadd.f32 %v4677, %v4847
        %v4972 = vadd.f32 %v4678, %v4852
        %v4973 = vadd.f32 %v4679, %v4855
        %v4974 = vadd.f32 %v4680, %v4860
        %v4975 = vadd.f32 %v4681, %v4863
        %v4976 = vadd.f32 %v4682, %v4868
        %v4977 = vadd.f32 %v4683, %v4871
        %v4978 = vadd.f32 %v4684, %v4876
        %v4979 = vadd.f32 %v4685, %v4879
        %v4980 = vadd.f32 %v4686, %v4884
        %v4981 = vadd.f32 %v4687, %v4887
        %v4982 = vadd.f32 %v4688, %v4892
        %v4983 = vadd.f32 %v4689, %v4895
        %v4984 = vadd.f32 %v4690, %v4900
        %v4985 = vadd.f32 %v4691, %v4903
        %v4986 = vadd.f32 %v4692, %v4908
        %v4987 = vadd.f32 %v4693, %v4911
        %v4988 = vadd.f32 %v4694, %v4916
        %v4989 = vadd.f32 %v4695, %v4919
        %v4990 = vadd.f32 %v4696, %v4924
        %v4991 = vadd.f32 %v4697, %v4927
        %v4992 = vadd.f32 %v4698, %v4932
        %v4993 = vadd.f32 %v4699, %v4935
        %v4994 = vadd.f32 %v4700, %v4940
        %v4995 = vadd.f32 %v4701, %v4943
        %v4996 = vadd.f32 %v4702, %v4948
        %v4997 = vadd.f32 %v4703, %v4951
        %v4998 = vadd.f32 %v4704, %v4956
        %v4999 = vadd.f32 %v4705, %v4959
        %v5000 = vadd.f32 %v4706, %v4964
        %v5001 = vadd.f32 %v4707, %v4967
        %5002 = vrot.lane.b32.xlu0 %v870, 64
        %v5003 = vpop.permute.xlu0 %5002
        %5004 = vrot.lane.b32.xlu0 %v871, 64
        %v5005 = vpop.permute.xlu0 %5004
        %5006 = vrot.lane.b32.xlu0 %v872, 64
        %v5007 = vpop.permute.xlu0 %5006
        %5008 = vrot.lane.b32.xlu0 %v873, 64
        %v5009 = vpop.permute.xlu0 %5008
        %5010 = vrot.lane.b32.xlu0 %v874, 64
        %v5011 = vpop.permute.xlu0 %5010
        %5012 = vrot.lane.b32.xlu0 %v875, 64
        %v5013 = vpop.permute.xlu0 %5012
        %5014 = vrot.lane.b32.xlu0 %v876, 64
        %v5015 = vpop.permute.xlu0 %5014
        %5016 = vrot.lane.b32.xlu0 %v877, 64
        %v5017 = vpop.permute.xlu0 %5016
        %5018 = vrot.lane.b32.xlu0 %v878, 64
        %v5019 = vpop.permute.xlu0 %5018
        %5020 = vrot.lane.b32.xlu0 %v879, 64
        %v5021 = vpop.permute.xlu0 %5020
        %5022 = vrot.lane.b32.xlu0 %v880, 64
        %v5023 = vpop.permute.xlu0 %5022
        %5024 = vrot.lane.b32.xlu0 %v881, 64
        %v5025 = vpop.permute.xlu0 %5024
        %5026 = vrot.lane.b32.xlu0 %v882, 64
        %v5027 = vpop.permute.xlu0 %5026
        %5028 = vrot.lane.b32.xlu0 %v883, 64
        %v5029 = vpop.permute.xlu0 %5028
        %5030 = vrot.lane.b32.xlu0 %v884, 64
        %v5031 = vpop.permute.xlu0 %5030
        %5032 = vrot.lane.b32.xlu0 %v885, 64
        %v5033 = vpop.permute.xlu0 %5032
        %v5035 = vsel %vm1304, %v5003, 0
        %v5038 = vsel %vm1304, %v5005, 0
        %v5041 = vsel %vm1304, %v5007, 0
        %v5044 = vsel %vm1304, %v5009, 0
        %v5047 = vsel %vm1304, %v5011, 0
        %v5050 = vsel %vm1304, %v5013, 0
        %v5053 = vsel %vm1304, %v5015, 0
        %v5056 = vsel %vm1304, %v5017, 0
        %v5059 = vsel %vm1304, %v5019, 0
        %v5062 = vsel %vm1304, %v5021, 0
        %v5065 = vsel %vm1304, %v5023, 0
        %v5068 = vsel %vm1304, %v5025, 0
        %v5071 = vsel %vm1304, %v5027, 0
        %v5074 = vsel %vm1304, %v5029, 0
        %v5077 = vsel %vm1304, %v5031, 0
        %v5080 = vsel %vm1304, %v5033, 0
        %5082 = vmatprep.subr.bf16.mxu0 %v895
        %5083 = vmatpush1.bf16.msra.mxu0 %v894
        %5084 = vmatprep.subr.bf16.mxu0 %v897
        %5085 = vmatpush1.bf16.msra.mxu0 %v896
        %5086 = vmatprep.subr.bf16.mxu0 0
        %5087 = vmatpush1.bf16.msra.mxu0 0
        %5088 = vmatprep.subr.bf16.mxu0 0
        %5089 = vmatpush1.bf16.msra.mxu0 0
        %5090 = vmatprep.subr.bf16.mxu0 0
        %5091 = vmatpush1.bf16.msra.mxu0 0
        %5092 = vmatprep.subr.bf16.mxu0 0
        %5093 = vmatpush1.bf16.msra.mxu0 0
        %5094 = vmatprep.subr.bf16.mxu0 0
        %5095 = vmatpush1.bf16.msra.mxu0 0
        %5096 = vmatprep.subr.bf16.mxu0 0
        %5097 = vmatpush1.bf16.msra.mxu0 0
        %5098 = vmatprep.subr.bf16.mxu0 0
        %5099 = vmatpush1.bf16.msra.mxu0 0
        %5100 = vmatprep.subr.bf16.mxu0 0
        %5101 = vmatpush1.bf16.msra.mxu0 0
        %5102 = vmatprep.subr.bf16.mxu0 0
        %5103 = vmatpush1.bf16.msra.mxu0 0
        %5104 = vmatprep.subr.bf16.mxu0 0
        %5105 = vmatpush1.bf16.msra.mxu0 0
        %5106 = vmatprep.subr.bf16.mxu0 0
        %5107 = vmatpush1.bf16.msra.mxu0 0
        %5108 = vmatprep.subr.bf16.mxu0 0
        %5109 = vmatpush1.bf16.msra.mxu0 0
        %5110 = vmatprep.subr.bf16.mxu0 0
        %5111 = vmatpush1.bf16.msra.mxu0 0
        %5112 = vmatprep.subr.bf16.mxu0 0
        %5113 = vmatpush1.bf16.msra.mxu0 0
        %5114 = vmatprep.mubr.bf16.mxu0 0
        %5115 = vmatmul.mubr.bf16.gmra.mrb[0].mxu0 %v5035
        %v5116 = vpop.f32.mrb[0].mxu0
        %v5117 = vadd.f32 0.0, %v5116
        %v5118 = vpop.f32.mrb[0].mxu0
        %v5119 = vadd.f32 0.0, %v5118
        %v5120 = vpop.f32.mrb[0].mxu0
        %v5121 = vadd.f32 0.0, %v5120
        %v5122 = vpop.f32.mrb[0].mxu0
        %v5123 = vadd.f32 0.0, %v5122
        %5124 = vmatprep.mubr.bf16.mxu0 0
        %5125 = vmatmul.mubr.bf16.gmra.mrb[0].mxu0 %v5038
        %v5126 = vpop.f32.mrb[0].mxu0
        %v5127 = vadd.f32 0.0, %v5126
        %v5128 = vpop.f32.mrb[0].mxu0
        %v5129 = vadd.f32 0.0, %v5128
        %v5130 = vpop.f32.mrb[0].mxu0
        %v5131 = vadd.f32 0.0, %v5130
        %v5132 = vpop.f32.mrb[0].mxu0
        %v5133 = vadd.f32 0.0, %v5132
        %5134 = vmatprep.mubr.bf16.mxu0 0
        %5135 = vmatmul.mubr.bf16.gmra.mrb[0].mxu0 %v5041
        %v5136 = vpop.f32.mrb[0].mxu0
        %v5137 = vadd.f32 0.0, %v5136
        %v5138 = vpop.f32.mrb[0].mxu0
        %v5139 = vadd.f32 0.0, %v5138
        %v5140 = vpop.f32.mrb[0].mxu0
        %v5141 = vadd.f32 0.0, %v5140
        %v5142 = vpop.f32.mrb[0].mxu0
        %v5143 = vadd.f32 0.0, %v5142
        %5144 = vmatprep.mubr.bf16.mxu0 0
        %5145 = vmatmul.mubr.bf16.gmra.mrb[0].mxu0 %v5044
        %v5146 = vpop.f32.mrb[0].mxu0
        %v5147 = vadd.f32 0.0, %v5146
        %v5148 = vpop.f32.mrb[0].mxu0
        %v5149 = vadd.f32 0.0, %v5148
        %v5150 = vpop.f32.mrb[0].mxu0
        %v5151 = vadd.f32 0.0, %v5150
        %v5152 = vpop.f32.mrb[0].mxu0
        %v5153 = vadd.f32 0.0, %v5152
        %5154 = vmatprep.mubr.bf16.mxu0 0
        %5155 = vmatmul.mubr.bf16.gmra.mrb[0].mxu0 %v5047
        %v5156 = vpop.f32.mrb[0].mxu0
        %v5157 = vadd.f32 0.0, %v5156
        %v5158 = vpop.f32.mrb[0].mxu0
        %v5159 = vadd.f32 0.0, %v5158
        %v5160 = vpop.f32.mrb[0].mxu0
        %v5161 = vadd.f32 0.0, %v5160
        %v5162 = vpop.f32.mrb[0].mxu0
        %v5163 = vadd.f32 0.0, %v5162
        %5164 = vmatprep.mubr.bf16.mxu0 0
        %5165 = vmatmul.mubr.bf16.gmra.mrb[0].mxu0 %v5050
        %v5166 = vpop.f32.mrb[0].mxu0
        %v5167 = vadd.f32 0.0, %v5166
        %v5168 = vpop.f32.mrb[0].mxu0
        %v5169 = vadd.f32 0.0, %v5168
        %v5170 = vpop.f32.mrb[0].mxu0
        %v5171 = vadd.f32 0.0, %v5170
        %v5172 = vpop.f32.mrb[0].mxu0
        %v5173 = vadd.f32 0.0, %v5172
        %5174 = vmatprep.mubr.bf16.mxu0 0
        %5175 = vmatmul.mubr.bf16.gmra.mrb[0].mxu0 %v5053
        %v5176 = vpop.f32.mrb[0].mxu0
        %v5177 = vadd.f32 0.0, %v5176
        %v5178 = vpop.f32.mrb[0].mxu0
        %v5179 = vadd.f32 0.0, %v5178
        %v5180 = vpop.f32.mrb[0].mxu0
        %v5181 = vadd.f32 0.0, %v5180
        %v5182 = vpop.f32.mrb[0].mxu0
        %v5183 = vadd.f32 0.0, %v5182
        %5184 = vmatprep.mubr.bf16.mxu0 0
        %5185 = vmatmul.mubr.bf16.gmra.mrb[0].mxu0 %v5056
        %v5186 = vpop.f32.mrb[0].mxu0
        %v5187 = vadd.f32 0.0, %v5186
        %v5188 = vpop.f32.mrb[0].mxu0
        %v5189 = vadd.f32 0.0, %v5188
        %v5190 = vpop.f32.mrb[0].mxu0
        %v5191 = vadd.f32 0.0, %v5190
        %v5192 = vpop.f32.mrb[0].mxu0
        %v5193 = vadd.f32 0.0, %v5192
        %5194 = vmatprep.mubr.bf16.mxu0 0
        %5195 = vmatmul.mubr.bf16.gmra.mrb[0].mxu0 %v5059
        %v5196 = vpop.f32.mrb[0].mxu0
        %v5197 = vadd.f32 0.0, %v5196
        %v5198 = vpop.f32.mrb[0].mxu0
        %v5199 = vadd.f32 0.0, %v5198
        %v5200 = vpop.f32.mrb[0].mxu0
        %v5201 = vadd.f32 0.0, %v5200
        %v5202 = vpop.f32.mrb[0].mxu0
        %v5203 = vadd.f32 0.0, %v5202
        %5204 = vmatprep.mubr.bf16.mxu0 0
        %5205 = vmatmul.mubr.bf16.gmra.mrb[0].mxu0 %v5062
        %v5206 = vpop.f32.mrb[0].mxu0
        %v5207 = vadd.f32 0.0, %v5206
        %v5208 = vpop.f32.mrb[0].mxu0
        %v5209 = vadd.f32 0.0, %v5208
        %v5210 = vpop.f32.mrb[0].mxu0
        %v5211 = vadd.f32 0.0, %v5210
        %v5212 = vpop.f32.mrb[0].mxu0
        %v5213 = vadd.f32 0.0, %v5212
        %5214 = vmatprep.mubr.bf16.mxu0 0
        %5215 = vmatmul.mubr.bf16.gmra.mrb[0].mxu0 %v5065
        %v5216 = vpop.f32.mrb[0].mxu0
        %v5217 = vadd.f32 0.0, %v5216
        %v5218 = vpop.f32.mrb[0].mxu0
        %v5219 = vadd.f32 0.0, %v5218
        %v5220 = vpop.f32.mrb[0].mxu0
        %v5221 = vadd.f32 0.0, %v5220
        %v5222 = vpop.f32.mrb[0].mxu0
        %v5223 = vadd.f32 0.0, %v5222
        %5224 = vmatprep.mubr.bf16.mxu0 0
        %5225 = vmatmul.mubr.bf16.gmra.mrb[0].mxu0 %v5068
        %v5226 = vpop.f32.mrb[0].mxu0
        %v5227 = vadd.f32 0.0, %v5226
        %v5228 = vpop.f32.mrb[0].mxu0
        %v5229 = vadd.f32 0.0, %v5228
        %v5230 = vpop.f32.mrb[0].mxu0
        %v5231 = vadd.f32 0.0, %v5230
        %v5232 = vpop.f32.mrb[0].mxu0
        %v5233 = vadd.f32 0.0, %v5232
        %5234 = vmatprep.mubr.bf16.mxu0 0
        %5235 = vmatmul.mubr.bf16.gmra.mrb[0].mxu0 %v5071
        %v5236 = vpop.f32.mrb[0].mxu0
        %v5237 = vadd.f32 0.0, %v5236
        %v5238 = vpop.f32.mrb[0].mxu0
        %v5239 = vadd.f32 0.0, %v5238
        %v5240 = vpop.f32.mrb[0].mxu0
        %v5241 = vadd.f32 0.0, %v5240
        %v5242 = vpop.f32.mrb[0].mxu0
        %v5243 = vadd.f32 0.0, %v5242
        %5244 = vmatprep.mubr.bf16.mxu0 0
        %5245 = vmatmul.mubr.bf16.gmra.mrb[0].mxu0 %v5074
        %v5246 = vpop.f32.mrb[0].mxu0
        %v5247 = vadd.f32 0.0, %v5246
        %v5248 = vpop.f32.mrb[0].mxu0
        %v5249 = vadd.f32 0.0, %v5248
        %v5250 = vpop.f32.mrb[0].mxu0
        %v5251 = vadd.f32 0.0, %v5250
        %v5252 = vpop.f32.mrb[0].mxu0
        %v5253 = vadd.f32 0.0, %v5252
        %5254 = vmatprep.mubr.bf16.mxu0 0
        %5255 = vmatmul.mubr.bf16.gmra.mrb[0].mxu0 %v5077
        %v5256 = vpop.f32.mrb[0].mxu0
        %v5257 = vadd.f32 0.0, %v5256
        %v5258 = vpop.f32.mrb[0].mxu0
        %v5259 = vadd.f32 0.0, %v5258
        %v5260 = vpop.f32.mrb[0].mxu0
        %v5261 = vadd.f32 0.0, %v5260
        %v5262 = vpop.f32.mrb[0].mxu0
        %v5263 = vadd.f32 0.0, %v5262
        %5264 = vmatprep.mubr.bf16.mxu0 0
        %5265 = vmatmul.mubr.bf16.gmra.mrb[0].mxu0 %v5080
        %v5266 = vpop.f32.mrb[0].mxu0
        %v5267 = vadd.f32 0.0, %v5266
        %v5268 = vpop.f32.mrb[0].mxu0
        %v5269 = vadd.f32 0.0, %v5268
        %v5270 = vpop.f32.mrb[0].mxu0
        %v5271 = vadd.f32 0.0, %v5270
        %v5272 = vpop.f32.mrb[0].mxu0
        %v5273 = vadd.f32 0.0, %v5272
        %5274 = vdwg.mxu0
        %v5275 = vmax.f32 %v5117, %v5119
        %5276 = vmax.xlane.f32.xlu0 %v5275
        %v5277 = vpop.xlane.xlu0 %5276
        %v5278 = vmax.f32 %v5121, %v5123
        %5279 = vmax.xlane.f32.xlu0 %v5278
        %v5280 = vpop.xlane.xlu0 %5279
        %v5281 = vmax.f32 %v5127, %v5129
        %5282 = vmax.xlane.f32.xlu0 %v5281
        %v5283 = vpop.xlane.xlu0 %5282
        %v5284 = vmax.f32 %v5131, %v5133
        %5285 = vmax.xlane.f32.xlu0 %v5284
        %v5286 = vpop.xlane.xlu0 %5285
        %v5287 = vmax.f32 %v5137, %v5139
        %5288 = vmax.xlane.f32.xlu0 %v5287
        %v5289 = vpop.xlane.xlu0 %5288
        %v5290 = vmax.f32 %v5141, %v5143
        %5291 = vmax.xlane.f32.xlu0 %v5290
        %v5292 = vpop.xlane.xlu0 %5291
        %v5293 = vmax.f32 %v5147, %v5149
        %5294 = vmax.xlane.f32.xlu0 %v5293
        %v5295 = vpop.xlane.xlu0 %5294
        %v5296 = vmax.f32 %v5151, %v5153
        %5297 = vmax.xlane.f32.xlu0 %v5296
        %v5298 = vpop.xlane.xlu0 %5297
        %v5299 = vmax.f32 %v5157, %v5159
        %5300 = vmax.xlane.f32.xlu0 %v5299
        %v5301 = vpop.xlane.xlu0 %5300
        %v5302 = vmax.f32 %v5161, %v5163
        %5303 = vmax.xlane.f32.xlu0 %v5302
        %v5304 = vpop.xlane.xlu0 %5303
        %v5305 = vmax.f32 %v5167, %v5169
        %5306 = vmax.xlane.f32.xlu0 %v5305
        %v5307 = vpop.xlane.xlu0 %5306
        %v5308 = vmax.f32 %v5171, %v5173
        %5309 = vmax.xlane.f32.xlu0 %v5308
        %v5310 = vpop.xlane.xlu0 %5309
        %v5311 = vmax.f32 %v5177, %v5179
        %5312 = vmax.xlane.f32.xlu0 %v5311
        %v5313 = vpop.xlane.xlu0 %5312
        %v5314 = vmax.f32 %v5181, %v5183
        %5315 = vmax.xlane.f32.xlu0 %v5314
        %v5316 = vpop.xlane.xlu0 %5315
        %v5317 = vmax.f32 %v5187, %v5189
        %5318 = vmax.xlane.f32.xlu0 %v5317
        %v5319 = vpop.xlane.xlu0 %5318
        %v5320 = vmax.f32 %v5191, %v5193
        %5321 = vmax.xlane.f32.xlu0 %v5320
        %v5322 = vpop.xlane.xlu0 %5321
        %v5323 = vmax.f32 %v5197, %v5199
        %5324 = vmax.xlane.f32.xlu0 %v5323
        %v5325 = vpop.xlane.xlu0 %5324
        %v5326 = vmax.f32 %v5201, %v5203
        %5327 = vmax.xlane.f32.xlu0 %v5326
        %v5328 = vpop.xlane.xlu0 %5327
        %v5329 = vmax.f32 %v5207, %v5209
        %5330 = vmax.xlane.f32.xlu0 %v5329
        %v5331 = vpop.xlane.xlu0 %5330
        %v5332 = vmax.f32 %v5211, %v5213
        %5333 = vmax.xlane.f32.xlu0 %v5332
        %v5334 = vpop.xlane.xlu0 %5333
        %v5335 = vmax.f32 %v5217, %v5219
        %5336 = vmax.xlane.f32.xlu0 %v5335
        %v5337 = vpop.xlane.xlu0 %5336
        %v5338 = vmax.f32 %v5221, %v5223
        %5339 = vmax.xlane.f32.xlu0 %v5338
        %v5340 = vpop.xlane.xlu0 %5339
        %v5341 = vmax.f32 %v5227, %v5229
        %5342 = vmax.xlane.f32.xlu0 %v5341
        %v5343 = vpop.xlane.xlu0 %5342
        %v5344 = vmax.f32 %v5231, %v5233
        %5345 = vmax.xlane.f32.xlu0 %v5344
        %v5346 = vpop.xlane.xlu0 %5345
        %v5347 = vmax.f32 %v5237, %v5239
        %5348 = vmax.xlane.f32.xlu0 %v5347
        %v5349 = vpop.xlane.xlu0 %5348
        %v5350 = vmax.f32 %v5241, %v5243
        %5351 = vmax.xlane.f32.xlu0 %v5350
        %v5352 = vpop.xlane.xlu0 %5351
        %v5353 = vmax.f32 %v5247, %v5249
        %5354 = vmax.xlane.f32.xlu0 %v5353
        %v5355 = vpop.xlane.xlu0 %5354
        %v5356 = vmax.f32 %v5251, %v5253
        %5357 = vmax.xlane.f32.xlu0 %v5356
        %v5358 = vpop.xlane.xlu0 %5357
        %v5359 = vmax.f32 %v5257, %v5259
        %5360 = vmax.xlane.f32.xlu0 %v5359
        %v5361 = vpop.xlane.xlu0 %5360
        %v5362 = vmax.f32 %v5261, %v5263
        %5363 = vmax.xlane.f32.xlu0 %v5362
        %v5364 = vpop.xlane.xlu0 %5363
        %v5365 = vmax.f32 %v5267, %v5269
        %5366 = vmax.xlane.f32.xlu0 %v5365
        %v5367 = vpop.xlane.xlu0 %5366
        %v5368 = vmax.f32 %v5271, %v5273
        %5369 = vmax.xlane.f32.xlu0 %v5368
        %v5370 = vpop.xlane.xlu0 %5369
        %v5371 = vmax.f32 %v5277, %v1210
        %v5372 = vmax.f32 %v5280, %v1213
        %v5373 = vmax.f32 %v5283, %v1216
        %v5374 = vmax.f32 %v5286, %v1219
        %v5375 = vmax.f32 %v5289, %v1222
        %v5376 = vmax.f32 %v5292, %v1225
        %v5377 = vmax.f32 %v5295, %v1228
        %v5378 = vmax.f32 %v5298, %v1231
        %v5379 = vmax.f32 %v5301, %v1234
        %v5380 = vmax.f32 %v5304, %v1237
        %v5381 = vmax.f32 %v5307, %v1240
        %v5382 = vmax.f32 %v5310, %v1243
        %v5383 = vmax.f32 %v5313, %v1246
        %v5384 = vmax.f32 %v5316, %v1249
        %v5385 = vmax.f32 %v5319, %v1252
        %v5386 = vmax.f32 %v5322, %v1255
        %v5387 = vmax.f32 %v5325, %v1258
        %v5388 = vmax.f32 %v5328, %v1261
        %v5389 = vmax.f32 %v5331, %v1264
        %v5390 = vmax.f32 %v5334, %v1267
        %v5391 = vmax.f32 %v5337, %v1270
        %v5392 = vmax.f32 %v5340, %v1273
        %v5393 = vmax.f32 %v5343, %v1276
        %v5394 = vmax.f32 %v5346, %v1279
        %v5395 = vmax.f32 %v5349, %v1282
        %v5396 = vmax.f32 %v5352, %v1285
        %v5397 = vmax.f32 %v5355, %v1288
        %v5398 = vmax.f32 %v5358, %v1291
        %v5399 = vmax.f32 %v5361, %v1294
        %v5400 = vmax.f32 %v5364, %v1297
        %v5401 = vmax.f32 %v5367, %v1300
        %v5402 = vmax.f32 %v5370, %v1303
        %v5403 = vsub.f32 %v5117, %v5371
        %v5404 = vsub.f32 %v5119, %v5371
        %v5405 = vsub.f32 %v5121, %v5372
        %v5406 = vsub.f32 %v5123, %v5372
        %v5407 = vsub.f32 %v5127, %v5373
        %v5408 = vsub.f32 %v5129, %v5373
        %v5409 = vsub.f32 %v5131, %v5374
        %v5410 = vsub.f32 %v5133, %v5374
        %v5411 = vsub.f32 %v5137, %v5375
        %v5412 = vsub.f32 %v5139, %v5375
        %v5413 = vsub.f32 %v5141, %v5376
        %v5414 = vsub.f32 %v5143, %v5376
        %v5415 = vsub.f32 %v5147, %v5377
        %v5416 = vsub.f32 %v5149, %v5377
        %v5417 = vsub.f32 %v5151, %v5378
        %v5418 = vsub.f32 %v5153, %v5378
        %v5419 = vsub.f32 %v5157, %v5379
        %v5420 = vsub.f32 %v5159, %v5379
        %v5421 = vsub.f32 %v5161, %v5380
        %v5422 = vsub.f32 %v5163, %v5380
        %v5423 = vsub.f32 %v5167, %v5381
        %v5424 = vsub.f32 %v5169, %v5381
        %v5425 = vsub.f32 %v5171, %v5382
        %v5426 = vsub.f32 %v5173, %v5382
        %v5427 = vsub.f32 %v5177, %v5383
        %v5428 = vsub.f32 %v5179, %v5383
        %v5429 = vsub.f32 %v5181, %v5384
        %v5430 = vsub.f32 %v5183, %v5384
        %v5431 = vsub.f32 %v5187, %v5385
        %v5432 = vsub.f32 %v5189, %v5385
        %v5433 = vsub.f32 %v5191, %v5386
        %v5434 = vsub.f32 %v5193, %v5386
        %v5435 = vsub.f32 %v5197, %v5387
        %v5436 = vsub.f32 %v5199, %v5387
        %v5437 = vsub.f32 %v5201, %v5388
        %v5438 = vsub.f32 %v5203, %v5388
        %v5439 = vsub.f32 %v5207, %v5389
        %v5440 = vsub.f32 %v5209, %v5389
        %v5441 = vsub.f32 %v5211, %v5390
        %v5442 = vsub.f32 %v5213, %v5390
        %v5443 = vsub.f32 %v5217, %v5391
        %v5444 = vsub.f32 %v5219, %v5391
        %v5445 = vsub.f32 %v5221, %v5392
        %v5446 = vsub.f32 %v5223, %v5392
        %v5447 = vsub.f32 %v5227, %v5393
        %v5448 = vsub.f32 %v5229, %v5393
        %v5449 = vsub.f32 %v5231, %v5394
        %v5450 = vsub.f32 %v5233, %v5394
        %v5451 = vsub.f32 %v5237, %v5395
        %v5452 = vsub.f32 %v5239, %v5395
        %v5453 = vsub.f32 %v5241, %v5396
        %v5454 = vsub.f32 %v5243, %v5396
        %v5455 = vsub.f32 %v5247, %v5397
        %v5456 = vsub.f32 %v5249, %v5397
        %v5457 = vsub.f32 %v5251, %v5398
        %v5458 = vsub.f32 %v5253, %v5398
        %v5459 = vsub.f32 %v5257, %v5399
        %v5460 = vsub.f32 %v5259, %v5399
        %v5461 = vsub.f32 %v5261, %v5400
        %v5462 = vsub.f32 %v5263, %v5400
        %v5463 = vsub.f32 %v5267, %v5401
        %v5464 = vsub.f32 %v5269, %v5401
        %v5465 = vsub.f32 %v5271, %v5402
        %v5466 = vsub.f32 %v5273, %v5402
        %v5467 = vmul.f32 %v5403, 1.442695
        %v5468 = vpow.pop %v5467
        %v5469 = vmul.f32 %v5404, 1.442695
        %v5470 = vpow.pop %v5469
        %v5471 = vmul.f32 %v5405, 1.442695
        %v5472 = vpow.pop %v5471
        %v5473 = vmul.f32 %v5406, 1.442695
        %v5474 = vpow.pop %v5473
        %v5475 = vmul.f32 %v5407, 1.442695
        %v5476 = vpow.pop %v5475
        %v5477 = vmul.f32 %v5408, 1.442695
        %v5478 = vpow.pop %v5477
        %v5479 = vmul.f32 %v5409, 1.442695
        %v5480 = vpow.pop %v5479
        %v5481 = vmul.f32 %v5410, 1.442695
        %v5482 = vpow.pop %v5481
        %v5483 = vmul.f32 %v5411, 1.442695
        %v5484 = vpow.pop %v5483
        %v5485 = vmul.f32 %v5412, 1.442695
        %v5486 = vpow.pop %v5485
        %v5487 = vmul.f32 %v5413, 1.442695
        %v5488 = vpow.pop %v5487
        %v5489 = vmul.f32 %v5414, 1.442695
        %v5490 = vpow.pop %v5489
        %v5491 = vmul.f32 %v5415, 1.442695
        %v5492 = vpow.pop %v5491
        %v5493 = vmul.f32 %v5416, 1.442695
        %v5494 = vpow.pop %v5493
        %v5495 = vmul.f32 %v5417, 1.442695
        %v5496 = vpow.pop %v5495
        %v5497 = vmul.f32 %v5418, 1.442695
        %v5498 = vpow.pop %v5497
        %v5499 = vmul.f32 %v5419, 1.442695
        %v5500 = vpow.pop %v5499
        %v5501 = vmul.f32 %v5420, 1.442695
        %v5502 = vpow.pop %v5501
        %v5503 = vmul.f32 %v5421, 1.442695
        %v5504 = vpow.pop %v5503
        %v5505 = vmul.f32 %v5422, 1.442695
        %v5506 = vpow.pop %v5505
        %v5507 = vmul.f32 %v5423, 1.442695
        %v5508 = vpow.pop %v5507
        %v5509 = vmul.f32 %v5424, 1.442695
        %v5510 = vpow.pop %v5509
        %v5511 = vmul.f32 %v5425, 1.442695
        %v5512 = vpow.pop %v5511
        %v5513 = vmul.f32 %v5426, 1.442695
        %v5514 = vpow.pop %v5513
        %v5515 = vmul.f32 %v5427, 1.442695
        %v5516 = vpow.pop %v5515
        %v5517 = vmul.f32 %v5428, 1.442695
        %v5518 = vpow.pop %v5517
        %v5519 = vmul.f32 %v5429, 1.442695
        %v5520 = vpow.pop %v5519
        %v5521 = vmul.f32 %v5430, 1.442695
        %v5522 = vpow.pop %v5521
        %v5523 = vmul.f32 %v5431, 1.442695
        %v5524 = vpow.pop %v5523
        %v5525 = vmul.f32 %v5432, 1.442695
        %v5526 = vpow.pop %v5525
        %v5527 = vmul.f32 %v5433, 1.442695
        %v5528 = vpow.pop %v5527
        %v5529 = vmul.f32 %v5434, 1.442695
        %v5530 = vpow.pop %v5529
        %v5531 = vmul.f32 %v5435, 1.442695
        %v5532 = vpow.pop %v5531
        %v5533 = vmul.f32 %v5436, 1.442695
        %v5534 = vpow.pop %v5533
        %v5535 = vmul.f32 %v5437, 1.442695
        %v5536 = vpow.pop %v5535
        %v5537 = vmul.f32 %v5438, 1.442695
        %v5538 = vpow.pop %v5537
        %v5539 = vmul.f32 %v5439, 1.442695
        %v5540 = vpow.pop %v5539
        %v5541 = vmul.f32 %v5440, 1.442695
        %v5542 = vpow.pop %v5541
        %v5543 = vmul.f32 %v5441, 1.442695
        %v5544 = vpow.pop %v5543
        %v5545 = vmul.f32 %v5442, 1.442695
        %v5546 = vpow.pop %v5545
        %v5547 = vmul.f32 %v5443, 1.442695
        %v5548 = vpow.pop %v5547
        %v5549 = vmul.f32 %v5444, 1.442695
        %v5550 = vpow.pop %v5549
        %v5551 = vmul.f32 %v5445, 1.442695
        %v5552 = vpow.pop %v5551
        %v5553 = vmul.f32 %v5446, 1.442695
        %v5554 = vpow.pop %v5553
        %v5555 = vmul.f32 %v5447, 1.442695
        %v5556 = vpow.pop %v5555
        %v5557 = vmul.f32 %v5448, 1.442695
        %v5558 = vpow.pop %v5557
        %v5559 = vmul.f32 %v5449, 1.442695
        %v5560 = vpow.pop %v5559
        %v5561 = vmul.f32 %v5450, 1.442695
        %v5562 = vpow.pop %v5561
        %v5563 = vmul.f32 %v5451, 1.442695
        %v5564 = vpow.pop %v5563
        %v5565 = vmul.f32 %v5452, 1.442695
        %v5566 = vpow.pop %v5565
        %v5567 = vmul.f32 %v5453, 1.442695
        %v5568 = vpow.pop %v5567
        %v5569 = vmul.f32 %v5454, 1.442695
        %v5570 = vpow.pop %v5569
        %v5571 = vmul.f32 %v5455, 1.442695
        %v5572 = vpow.pop %v5571
        %v5573 = vmul.f32 %v5456, 1.442695
        %v5574 = vpow.pop %v5573
        %v5575 = vmul.f32 %v5457, 1.442695
        %v5576 = vpow.pop %v5575
        %v5577 = vmul.f32 %v5458, 1.442695
        %v5578 = vpow.pop %v5577
        %v5579 = vmul.f32 %v5459, 1.442695
        %v5580 = vpow.pop %v5579
        %v5581 = vmul.f32 %v5460, 1.442695
        %v5582 = vpow.pop %v5581
        %v5583 = vmul.f32 %v5461, 1.442695
        %v5584 = vpow.pop %v5583
        %v5585 = vmul.f32 %v5462, 1.442695
        %v5586 = vpow.pop %v5585
        %v5587 = vmul.f32 %v5463, 1.442695
        %v5588 = vpow.pop %v5587
        %v5589 = vmul.f32 %v5464, 1.442695
        %v5590 = vpow.pop %v5589
        %v5591 = vmul.f32 %v5465, 1.442695
        %v5592 = vpow.pop %v5591
        %v5593 = vmul.f32 %v5466, 1.442695
        %v5594 = vpow.pop %v5593
        %v5595 = vsub.f32 %v1081, %v5371
        %v5596 = vsub.f32 %v1084, %v5372
        %v5597 = vsub.f32 %v1089, %v5373
        %v5598 = vsub.f32 %v1092, %v5374
        %v5599 = vsub.f32 %v1097, %v5375
        %v5600 = vsub.f32 %v1100, %v5376
        %v5601 = vsub.f32 %v1105, %v5377
        %v5602 = vsub.f32 %v1108, %v5378
        %v5603 = vsub.f32 %v1113, %v5379
        %v5604 = vsub.f32 %v1116, %v5380
        %v5605 = vsub.f32 %v1121, %v5381
        %v5606 = vsub.f32 %v1124, %v5382
        %v5607 = vsub.f32 %v1129, %v5383
        %v5608 = vsub.f32 %v1132, %v5384
        %v5609 = vsub.f32 %v1137, %v5385
        %v5610 = vsub.f32 %v1140, %v5386
        %v5611 = vsub.f32 %v1145, %v5387
        %v5612 = vsub.f32 %v1148, %v5388
        %v5613 = vsub.f32 %v1153, %v5389
        %v5614 = vsub.f32 %v1156, %v5390
        %v5615 = vsub.f32 %v1161, %v5391
        %v5616 = vsub.f32 %v1164, %v5392
        %v5617 = vsub.f32 %v1169, %v5393
        %v5618 = vsub.f32 %v1172, %v5394
        %v5619 = vsub.f32 %v1177, %v5395
        %v5620 = vsub.f32 %v1180, %v5396
        %v5621 = vsub.f32 %v1185, %v5397
        %v5622 = vsub.f32 %v1188, %v5398
        %v5623 = vsub.f32 %v1193, %v5399
        %v5624 = vsub.f32 %v1196, %v5400
        %v5625 = vsub.f32 %v1201, %v5401
        %v5626 = vsub.f32 %v1204, %v5402
        %v5627 = vmul.f32 %v5595, 1.442695
        %v5628 = vpow.pop %v5627
        %v5629 = vmul.f32 %v5596, 1.442695
        %v5630 = vpow.pop %v5629
        %v5631 = vmul.f32 %v5597, 1.442695
        %v5632 = vpow.pop %v5631
        %v5633 = vmul.f32 %v5598, 1.442695
        %v5634 = vpow.pop %v5633
        %v5635 = vmul.f32 %v5599, 1.442695
        %v5636 = vpow.pop %v5635
        %v5637 = vmul.f32 %v5600, 1.442695
        %v5638 = vpow.pop %v5637
        %v5639 = vmul.f32 %v5601, 1.442695
        %v5640 = vpow.pop %v5639
        %v5641 = vmul.f32 %v5602, 1.442695
        %v5642 = vpow.pop %v5641
        %v5643 = vmul.f32 %v5603, 1.442695
        %v5644 = vpow.pop %v5643
        %v5645 = vmul.f32 %v5604, 1.442695
        %v5646 = vpow.pop %v5645
        %v5647 = vmul.f32 %v5605, 1.442695
        %v5648 = vpow.pop %v5647
        %v5649 = vmul.f32 %v5606, 1.442695
        %v5650 = vpow.pop %v5649
        %v5651 = vmul.f32 %v5607, 1.442695
        %v5652 = vpow.pop %v5651
        %v5653 = vmul.f32 %v5608, 1.442695
        %v5654 = vpow.pop %v5653
        %v5655 = vmul.f32 %v5609, 1.442695
        %v5656 = vpow.pop %v5655
        %v5657 = vmul.f32 %v5610, 1.442695
        %v5658 = vpow.pop %v5657
        %v5659 = vmul.f32 %v5611, 1.442695
        %v5660 = vpow.pop %v5659
        %v5661 = vmul.f32 %v5612, 1.442695
        %v5662 = vpow.pop %v5661
        %v5663 = vmul.f32 %v5613, 1.442695
        %v5664 = vpow.pop %v5663
        %v5665 = vmul.f32 %v5614, 1.442695
        %v5666 = vpow.pop %v5665
        %v5667 = vmul.f32 %v5615, 1.442695
        %v5668 = vpow.pop %v5667
        %v5669 = vmul.f32 %v5616, 1.442695
        %v5670 = vpow.pop %v5669
        %v5671 = vmul.f32 %v5617, 1.442695
        %v5672 = vpow.pop %v5671
        %v5673 = vmul.f32 %v5618, 1.442695
        %v5674 = vpow.pop %v5673
        %v5675 = vmul.f32 %v5619, 1.442695
        %v5676 = vpow.pop %v5675
        %v5677 = vmul.f32 %v5620, 1.442695
        %v5678 = vpow.pop %v5677
        %v5679 = vmul.f32 %v5621, 1.442695
        %v5680 = vpow.pop %v5679
        %v5681 = vmul.f32 %v5622, 1.442695
        %v5682 = vpow.pop %v5681
        %v5683 = vmul.f32 %v5623, 1.442695
        %v5684 = vpow.pop %v5683
        %v5685 = vmul.f32 %v5624, 1.442695
        %v5686 = vpow.pop %v5685
        %v5687 = vmul.f32 %v5625, 1.442695
        %v5688 = vpow.pop %v5687
        %v5689 = vmul.f32 %v5626, 1.442695
        %v5690 = vpow.pop %v5689
        %v5691 = vadd.f32 %v5468, %v5470
        %5692 = vadd.xlane.f32.xlu0 %v5691
        %v5693 = vpop.xlane.xlu0 %5692
        %v5694 = vadd.f32 %v5472, %v5474
        %5695 = vadd.xlane.f32.xlu0 %v5694
        %v5696 = vpop.xlane.xlu0 %5695
        %v5697 = vadd.f32 %v5476, %v5478
        %5698 = vadd.xlane.f32.xlu0 %v5697
        %v5699 = vpop.xlane.xlu0 %5698
        %v5700 = vadd.f32 %v5480, %v5482
        %5701 = vadd.xlane.f32.xlu0 %v5700
        %v5702 = vpop.xlane.xlu0 %5701
        %v5703 = vadd.f32 %v5484, %v5486
        %5704 = vadd.xlane.f32.xlu0 %v5703
        %v5705 = vpop.xlane.xlu0 %5704
        %v5706 = vadd.f32 %v5488, %v5490
        %5707 = vadd.xlane.f32.xlu0 %v5706
        %v5708 = vpop.xlane.xlu0 %5707
        %v5709 = vadd.f32 %v5492, %v5494
        %5710 = vadd.xlane.f32.xlu0 %v5709
        %v5711 = vpop.xlane.xlu0 %5710
        %v5712 = vadd.f32 %v5496, %v5498
        %5713 = vadd.xlane.f32.xlu0 %v5712
        %v5714 = vpop.xlane.xlu0 %5713
        %v5715 = vadd.f32 %v5500, %v5502
        %5716 = vadd.xlane.f32.xlu0 %v5715
        %v5717 = vpop.xlane.xlu0 %5716
        %v5718 = vadd.f32 %v5504, %v5506
        %5719 = vadd.xlane.f32.xlu0 %v5718
        %v5720 = vpop.xlane.xlu0 %5719
        %v5721 = vadd.f32 %v5508, %v5510
        %5722 = vadd.xlane.f32.xlu0 %v5721
        %v5723 = vpop.xlane.xlu0 %5722
        %v5724 = vadd.f32 %v5512, %v5514
        %5725 = vadd.xlane.f32.xlu0 %v5724
        %v5726 = vpop.xlane.xlu0 %5725
        %v5727 = vadd.f32 %v5516, %v5518
        %5728 = vadd.xlane.f32.xlu0 %v5727
        %v5729 = vpop.xlane.xlu0 %5728
        %v5730 = vadd.f32 %v5520, %v5522
        %5731 = vadd.xlane.f32.xlu0 %v5730
        %v5732 = vpop.xlane.xlu0 %5731
        %v5733 = vadd.f32 %v5524, %v5526
        %5734 = vadd.xlane.f32.xlu0 %v5733
        %v5735 = vpop.xlane.xlu0 %5734
        %v5736 = vadd.f32 %v5528, %v5530
        %5737 = vadd.xlane.f32.xlu0 %v5736
        %v5738 = vpop.xlane.xlu0 %5737
        %v5739 = vadd.f32 %v5532, %v5534
        %5740 = vadd.xlane.f32.xlu0 %v5739
        %v5741 = vpop.xlane.xlu0 %5740
        %v5742 = vadd.f32 %v5536, %v5538
        %5743 = vadd.xlane.f32.xlu0 %v5742
        %v5744 = vpop.xlane.xlu0 %5743
        %v5745 = vadd.f32 %v5540, %v5542
        %5746 = vadd.xlane.f32.xlu0 %v5745
        %v5747 = vpop.xlane.xlu0 %5746
        %v5748 = vadd.f32 %v5544, %v5546
        %5749 = vadd.xlane.f32.xlu0 %v5748
        %v5750 = vpop.xlane.xlu0 %5749
        %v5751 = vadd.f32 %v5548, %v5550
        %5752 = vadd.xlane.f32.xlu0 %v5751
        %v5753 = vpop.xlane.xlu0 %5752
        %v5754 = vadd.f32 %v5552, %v5554
        %5755 = vadd.xlane.f32.xlu0 %v5754
        %v5756 = vpop.xlane.xlu0 %5755
        %v5757 = vadd.f32 %v5556, %v5558
        %5758 = vadd.xlane.f32.xlu0 %v5757
        %v5759 = vpop.xlane.xlu0 %5758
        %v5760 = vadd.f32 %v5560, %v5562
        %5761 = vadd.xlane.f32.xlu0 %v5760
        %v5762 = vpop.xlane.xlu0 %5761
        %v5763 = vadd.f32 %v5564, %v5566
        %5764 = vadd.xlane.f32.xlu0 %v5763
        %v5765 = vpop.xlane.xlu0 %5764
        %v5766 = vadd.f32 %v5568, %v5570
        %5767 = vadd.xlane.f32.xlu0 %v5766
        %v5768 = vpop.xlane.xlu0 %5767
        %v5769 = vadd.f32 %v5572, %v5574
        %5770 = vadd.xlane.f32.xlu0 %v5769
        %v5771 = vpop.xlane.xlu0 %5770
        %v5772 = vadd.f32 %v5576, %v5578
        %5773 = vadd.xlane.f32.xlu0 %v5772
        %v5774 = vpop.xlane.xlu0 %5773
        %v5775 = vadd.f32 %v5580, %v5582
        %5776 = vadd.xlane.f32.xlu0 %v5775
        %v5777 = vpop.xlane.xlu0 %5776
        %v5778 = vadd.f32 %v5584, %v5586
        %5779 = vadd.xlane.f32.xlu0 %v5778
        %v5780 = vpop.xlane.xlu0 %5779
        %v5781 = vadd.f32 %v5588, %v5590
        %5782 = vadd.xlane.f32.xlu0 %v5781
        %v5783 = vpop.xlane.xlu0 %5782
        %v5784 = vadd.f32 %v5592, %v5594
        %5785 = vadd.xlane.f32.xlu0 %v5784
        %v5786 = vpop.xlane.xlu0 %5785
        %5819 = vrot.lane.b32.xlu0 %v5628, 120
        %v5820 = vpop.permute.xlu0 %5819
        %5821 = vrot.lane.b32.xlu0 %v5630, 120
        %v5822 = vpop.permute.xlu0 %5821
        %5823 = vrot.lane.b32.xlu0 %v5632, 120
        %v5824 = vpop.permute.xlu0 %5823
        %5825 = vrot.lane.b32.xlu0 %v5634, 120
        %v5826 = vpop.permute.xlu0 %5825
        %5827 = vrot.lane.b32.xlu0 %v5636, 120
        %v5828 = vpop.permute.xlu0 %5827
        %5829 = vrot.lane.b32.xlu0 %v5638, 120
        %v5830 = vpop.permute.xlu0 %5829
        %5831 = vrot.lane.b32.xlu0 %v5640, 120
        %v5832 = vpop.permute.xlu0 %5831
        %5833 = vrot.lane.b32.xlu0 %v5642, 120
        %v5834 = vpop.permute.xlu0 %5833
        %5835 = vrot.lane.b32.xlu0 %v5644, 120
        %v5836 = vpop.permute.xlu0 %5835
        %5837 = vrot.lane.b32.xlu0 %v5646, 120
        %v5838 = vpop.permute.xlu0 %5837
        %5839 = vrot.lane.b32.xlu0 %v5648, 120
        %v5840 = vpop.permute.xlu0 %5839
        %5841 = vrot.lane.b32.xlu0 %v5650, 120
        %v5842 = vpop.permute.xlu0 %5841
        %5843 = vrot.lane.b32.xlu0 %v5652, 120
        %v5844 = vpop.permute.xlu0 %5843
        %5845 = vrot.lane.b32.xlu0 %v5654, 120
        %v5846 = vpop.permute.xlu0 %5845
        %5847 = vrot.lane.b32.xlu0 %v5656, 120
        %v5848 = vpop.permute.xlu0 %5847
        %5849 = vrot.lane.b32.xlu0 %v5658, 120
        %v5850 = vpop.permute.xlu0 %5849
        %5851 = vrot.lane.b32.xlu0 %v5660, 120
        %v5852 = vpop.permute.xlu0 %5851
        %5853 = vrot.lane.b32.xlu0 %v5662, 120
        %v5854 = vpop.permute.xlu0 %5853
        %5855 = vrot.lane.b32.xlu0 %v5664, 120
        %v5856 = vpop.permute.xlu0 %5855
        %5857 = vrot.lane.b32.xlu0 %v5666, 120
        %v5858 = vpop.permute.xlu0 %5857
        %5859 = vrot.lane.b32.xlu0 %v5668, 120
        %v5860 = vpop.permute.xlu0 %5859
        %5861 = vrot.lane.b32.xlu0 %v5670, 120
        %v5862 = vpop.permute.xlu0 %5861
        %5863 = vrot.lane.b32.xlu0 %v5672, 120
        %v5864 = vpop.permute.xlu0 %5863
        %5865 = vrot.lane.b32.xlu0 %v5674, 120
        %v5866 = vpop.permute.xlu0 %5865
        %5867 = vrot.lane.b32.xlu0 %v5676, 120
        %v5868 = vpop.permute.xlu0 %5867
        %5869 = vrot.lane.b32.xlu0 %v5678, 120
        %v5870 = vpop.permute.xlu0 %5869
        %5871 = vrot.lane.b32.xlu0 %v5680, 120
        %v5872 = vpop.permute.xlu0 %5871
        %5873 = vrot.lane.b32.xlu0 %v5682, 120
        %v5874 = vpop.permute.xlu0 %5873
        %5875 = vrot.lane.b32.xlu0 %v5684, 120
        %v5876 = vpop.permute.xlu0 %5875
        %5877 = vrot.lane.b32.xlu0 %v5686, 120
        %v5878 = vpop.permute.xlu0 %5877
        %5879 = vrot.lane.b32.xlu0 %v5688, 120
        %v5880 = vpop.permute.xlu0 %5879
        %5881 = vrot.lane.b32.xlu0 %v5690, 120
        %v5882 = vpop.permute.xlu0 %5881
        %v5915 = vsel %vm453, %v5820, 0.0
        %5916 = vadd.xlane.f32.xlu0 %v5915
        %v5917 = vpop.xlane.xlu0 %5916
        %v5918 = vsel %vm453, %v5822, 0.0
        %5919 = vadd.xlane.f32.xlu0 %v5918
        %v5920 = vpop.xlane.xlu0 %5919
        %v5921 = vsel %vm453, %v5824, 0.0
        %5922 = vadd.xlane.f32.xlu0 %v5921
        %v5923 = vpop.xlane.xlu0 %5922
        %v5924 = vsel %vm453, %v5826, 0.0
        %5925 = vadd.xlane.f32.xlu0 %v5924
        %v5926 = vpop.xlane.xlu0 %5925
        %v5927 = vsel %vm453, %v5828, 0.0
        %5928 = vadd.xlane.f32.xlu0 %v5927
        %v5929 = vpop.xlane.xlu0 %5928
        %v5930 = vsel %vm453, %v5830, 0.0
        %5931 = vadd.xlane.f32.xlu0 %v5930
        %v5932 = vpop.xlane.xlu0 %5931
        %v5933 = vsel %vm453, %v5832, 0.0
        %5934 = vadd.xlane.f32.xlu0 %v5933
        %v5935 = vpop.xlane.xlu0 %5934
        %v5936 = vsel %vm453, %v5834, 0.0
        %5937 = vadd.xlane.f32.xlu0 %v5936
        %v5938 = vpop.xlane.xlu0 %5937
        %v5939 = vsel %vm453, %v5836, 0.0
        %5940 = vadd.xlane.f32.xlu0 %v5939
        %v5941 = vpop.xlane.xlu0 %5940
        %v5942 = vsel %vm453, %v5838, 0.0
        %5943 = vadd.xlane.f32.xlu0 %v5942
        %v5944 = vpop.xlane.xlu0 %5943
        %v5945 = vsel %vm453, %v5840, 0.0
        %5946 = vadd.xlane.f32.xlu0 %v5945
        %v5947 = vpop.xlane.xlu0 %5946
        %v5948 = vsel %vm453, %v5842, 0.0
        %5949 = vadd.xlane.f32.xlu0 %v5948
        %v5950 = vpop.xlane.xlu0 %5949
        %v5951 = vsel %vm453, %v5844, 0.0
        %5952 = vadd.xlane.f32.xlu0 %v5951
        %v5953 = vpop.xlane.xlu0 %5952
        %v5954 = vsel %vm453, %v5846, 0.0
        %5955 = vadd.xlane.f32.xlu0 %v5954
        %v5956 = vpop.xlane.xlu0 %5955
        %v5957 = vsel %vm453, %v5848, 0.0
        %5958 = vadd.xlane.f32.xlu0 %v5957
        %v5959 = vpop.xlane.xlu0 %5958
        %v5960 = vsel %vm453, %v5850, 0.0
        %5961 = vadd.xlane.f32.xlu0 %v5960
        %v5962 = vpop.xlane.xlu0 %5961
        %v5963 = vsel %vm453, %v5852, 0.0
        %5964 = vadd.xlane.f32.xlu0 %v5963
        %v5965 = vpop.xlane.xlu0 %5964
        %v5966 = vsel %vm453, %v5854, 0.0
        %5967 = vadd.xlane.f32.xlu0 %v5966
        %v5968 = vpop.xlane.xlu0 %5967
        %v5969 = vsel %vm453, %v5856, 0.0
        %5970 = vadd.xlane.f32.xlu0 %v5969
        %v5971 = vpop.xlane.xlu0 %5970
        %v5972 = vsel %vm453, %v5858, 0.0
        %5973 = vadd.xlane.f32.xlu0 %v5972
        %v5974 = vpop.xlane.xlu0 %5973
        %v5975 = vsel %vm453, %v5860, 0.0
        %5976 = vadd.xlane.f32.xlu0 %v5975
        %v5977 = vpop.xlane.xlu0 %5976
        %v5978 = vsel %vm453, %v5862, 0.0
        %5979 = vadd.xlane.f32.xlu0 %v5978
        %v5980 = vpop.xlane.xlu0 %5979
        %v5981 = vsel %vm453, %v5864, 0.0
        %5982 = vadd.xlane.f32.xlu0 %v5981
        %v5983 = vpop.xlane.xlu0 %5982
        %v5984 = vsel %vm453, %v5866, 0.0
        %5985 = vadd.xlane.f32.xlu0 %v5984
        %v5986 = vpop.xlane.xlu0 %5985
        %v5987 = vsel %vm453, %v5868, 0.0
        %5988 = vadd.xlane.f32.xlu0 %v5987
        %v5989 = vpop.xlane.xlu0 %5988
        %v5990 = vsel %vm453, %v5870, 0.0
        %5991 = vadd.xlane.f32.xlu0 %v5990
        %v5992 = vpop.xlane.xlu0 %5991
        %v5993 = vsel %vm453, %v5872, 0.0
        %5994 = vadd.xlane.f32.xlu0 %v5993
        %v5995 = vpop.xlane.xlu0 %5994
        %v5996 = vsel %vm453, %v5874, 0.0
        %5997 = vadd.xlane.f32.xlu0 %v5996
        %v5998 = vpop.xlane.xlu0 %5997
        %v5999 = vsel %vm453, %v5876, 0.0
        %6000 = vadd.xlane.f32.xlu0 %v5999
        %v6001 = vpop.xlane.xlu0 %6000
        %v6002 = vsel %vm453, %v5878, 0.0
        %6003 = vadd.xlane.f32.xlu0 %v6002
        %v6004 = vpop.xlane.xlu0 %6003
        %v6005 = vsel %vm453, %v5880, 0.0
        %6006 = vadd.xlane.f32.xlu0 %v6005
        %v6007 = vpop.xlane.xlu0 %6006
        %v6008 = vsel %vm453, %v5882, 0.0
        %6009 = vadd.xlane.f32.xlu0 %v6008
        %v6010 = vpop.xlane.xlu0 %6009
        %v6011 = vadd.f32 %v5693, %v5917
        %v6012 = vadd.f32 %v5696, %v5920
        %v6013 = vadd.f32 %v5699, %v5923
        %v6014 = vadd.f32 %v5702, %v5926
        %v6015 = vadd.f32 %v5705, %v5929
        %v6016 = vadd.f32 %v5708, %v5932
        %v6017 = vadd.f32 %v5711, %v5935
        %v6018 = vadd.f32 %v5714, %v5938
        %v6019 = vadd.f32 %v5717, %v5941
        %v6020 = vadd.f32 %v5720, %v5944
        %v6021 = vadd.f32 %v5723, %v5947
        %v6022 = vadd.f32 %v5726, %v5950
        %v6023 = vadd.f32 %v5729, %v5953
        %v6024 = vadd.f32 %v5732, %v5956
        %v6025 = vadd.f32 %v5735, %v5959
        %v6026 = vadd.f32 %v5738, %v5962
        %v6027 = vadd.f32 %v5741, %v5965
        %v6028 = vadd.f32 %v5744, %v5968
        %v6029 = vadd.f32 %v5747, %v5971
        %v6030 = vadd.f32 %v5750, %v5974
        %v6031 = vadd.f32 %v5753, %v5977
        %v6032 = vadd.f32 %v5756, %v5980
        %v6033 = vadd.f32 %v5759, %v5983
        %v6034 = vadd.f32 %v5762, %v5986
        %v6035 = vadd.f32 %v5765, %v5989
        %v6036 = vadd.f32 %v5768, %v5992
        %v6037 = vadd.f32 %v5771, %v5995
        %v6038 = vadd.f32 %v5774, %v5998
        %v6039 = vadd.f32 %v5777, %v6001
        %v6040 = vadd.f32 %v5780, %v6004
        %v6041 = vadd.f32 %v5783, %v6007
        %v6042 = vadd.f32 %v5786, %v6010
        %v6043 = vrcp.pop %v6011
        %v6044 = vrcp.pop %v6012
        %v6045 = vrcp.pop %v6013
        %v6046 = vrcp.pop %v6014
        %v6047 = vrcp.pop %v6015
        %v6048 = vrcp.pop %v6016
        %v6049 = vrcp.pop %v6017
        %v6050 = vrcp.pop %v6018
        %v6051 = vrcp.pop %v6019
        %v6052 = vrcp.pop %v6020
        %v6053 = vrcp.pop %v6021
        %v6054 = vrcp.pop %v6022
        %v6055 = vrcp.pop %v6023
        %v6056 = vrcp.pop %v6024
        %v6057 = vrcp.pop %v6025
        %v6058 = vrcp.pop %v6026
        %v6059 = vrcp.pop %v6027
        %v6060 = vrcp.pop %v6028
        %v6061 = vrcp.pop %v6029
        %v6062 = vrcp.pop %v6030
        %v6063 = vrcp.pop %v6031
        %v6064 = vrcp.pop %v6032
        %v6065 = vrcp.pop %v6033
        %v6066 = vrcp.pop %v6034
        %v6067 = vrcp.pop %v6035
        %v6068 = vrcp.pop %v6036
        %v6069 = vrcp.pop %v6037
        %v6070 = vrcp.pop %v6038
        %v6071 = vrcp.pop %v6039
        %v6072 = vrcp.pop %v6040
        %v6073 = vrcp.pop %v6041
        %v6074 = vrcp.pop %v6042
        %v6075 = vmul.f32 %v5468, %v6043
        %v6076 = vmul.f32 %v5470, %v6043
        %v6077 = vmul.f32 %v5472, %v6044
        %v6078 = vmul.f32 %v5474, %v6044
        %v6079 = vmul.f32 %v5476, %v6045
        %v6080 = vmul.f32 %v5478, %v6045
        %v6081 = vmul.f32 %v5480, %v6046
        %v6082 = vmul.f32 %v5482, %v6046
        %v6083 = vmul.f32 %v5484, %v6047
        %v6084 = vmul.f32 %v5486, %v6047
        %v6085 = vmul.f32 %v5488, %v6048
        %v6086 = vmul.f32 %v5490, %v6048
        %v6087 = vmul.f32 %v5492, %v6049
        %v6088 = vmul.f32 %v5494, %v6049
        %v6089 = vmul.f32 %v5496, %v6050
        %v6090 = vmul.f32 %v5498, %v6050
        %v6091 = vmul.f32 %v5500, %v6051
        %v6092 = vmul.f32 %v5502, %v6051
        %v6093 = vmul.f32 %v5504, %v6052
        %v6094 = vmul.f32 %v5506, %v6052
        %v6095 = vmul.f32 %v5508, %v6053
        %v6096 = vmul.f32 %v5510, %v6053
        %v6097 = vmul.f32 %v5512, %v6054
        %v6098 = vmul.f32 %v5514, %v6054
        %v6099 = vmul.f32 %v5516, %v6055
        %v6100 = vmul.f32 %v5518, %v6055
        %v6101 = vmul.f32 %v5520, %v6056
        %v6102 = vmul.f32 %v5522, %v6056
        %v6103 = vmul.f32 %v5524, %v6057
        %v6104 = vmul.f32 %v5526, %v6057
        %v6105 = vmul.f32 %v5528, %v6058
        %v6106 = vmul.f32 %v5530, %v6058
        %v6107 = vmul.f32 %v5532, %v6059
        %v6108 = vmul.f32 %v5534, %v6059
        %v6109 = vmul.f32 %v5536, %v6060
        %v6110 = vmul.f32 %v5538, %v6060
        %v6111 = vmul.f32 %v5540, %v6061
        %v6112 = vmul.f32 %v5542, %v6061
        %v6113 = vmul.f32 %v5544, %v6062
        %v6114 = vmul.f32 %v5546, %v6062
        %v6115 = vmul.f32 %v5548, %v6063
        %v6116 = vmul.f32 %v5550, %v6063
        %v6117 = vmul.f32 %v5552, %v6064
        %v6118 = vmul.f32 %v5554, %v6064
        %v6119 = vmul.f32 %v5556, %v6065
        %v6120 = vmul.f32 %v5558, %v6065
        %v6121 = vmul.f32 %v5560, %v6066
        %v6122 = vmul.f32 %v5562, %v6066
        %v6123 = vmul.f32 %v5564, %v6067
        %v6124 = vmul.f32 %v5566, %v6067
        %v6125 = vmul.f32 %v5568, %v6068
        %v6126 = vmul.f32 %v5570, %v6068
        %v6127 = vmul.f32 %v5572, %v6069
        %v6128 = vmul.f32 %v5574, %v6069
        %v6129 = vmul.f32 %v5576, %v6070
        %v6130 = vmul.f32 %v5578, %v6070
        %v6131 = vmul.f32 %v5580, %v6071
        %v6132 = vmul.f32 %v5582, %v6071
        %v6133 = vmul.f32 %v5584, %v6072
        %v6134 = vmul.f32 %v5586, %v6072
        %v6135 = vmul.f32 %v5588, %v6073
        %v6136 = vmul.f32 %v5590, %v6073
        %v6137 = vmul.f32 %v5592, %v6074
        %v6138 = vmul.f32 %v5594, %v6074
        %v6139 = vpack.c.bf16 %v6077, %v6075
        %v6140 = vpack.c.bf16 %v6078, %v6076
        %v6141 = vpack.c.bf16 %v6081, %v6079
        %v6142 = vpack.c.bf16 %v6082, %v6080
        %v6143 = vpack.c.bf16 %v6085, %v6083
        %v6144 = vpack.c.bf16 %v6086, %v6084
        %v6145 = vpack.c.bf16 %v6089, %v6087
        %v6146 = vpack.c.bf16 %v6090, %v6088
        %v6147 = vpack.c.bf16 %v6093, %v6091
        %v6148 = vpack.c.bf16 %v6094, %v6092
        %v6149 = vpack.c.bf16 %v6097, %v6095
        %v6150 = vpack.c.bf16 %v6098, %v6096
        %v6151 = vpack.c.bf16 %v6101, %v6099
        %v6152 = vpack.c.bf16 %v6102, %v6100
        %v6153 = vpack.c.bf16 %v6105, %v6103
        %v6154 = vpack.c.bf16 %v6106, %v6104
        %v6155 = vpack.c.bf16 %v6109, %v6107
        %v6156 = vpack.c.bf16 %v6110, %v6108
        %v6157 = vpack.c.bf16 %v6113, %v6111
        %v6158 = vpack.c.bf16 %v6114, %v6112
        %v6159 = vpack.c.bf16 %v6117, %v6115
        %v6160 = vpack.c.bf16 %v6118, %v6116
        %v6161 = vpack.c.bf16 %v6121, %v6119
        %v6162 = vpack.c.bf16 %v6122, %v6120
        %v6163 = vpack.c.bf16 %v6125, %v6123
        %v6164 = vpack.c.bf16 %v6126, %v6124
        %v6165 = vpack.c.bf16 %v6129, %v6127
        %v6166 = vpack.c.bf16 %v6130, %v6128
        %v6167 = vpack.c.bf16 %v6133, %v6131
        %v6168 = vpack.c.bf16 %v6134, %v6132
        %v6169 = vpack.c.bf16 %v6137, %v6135
        %v6170 = vpack.c.bf16 %v6138, %v6136
        %v6171 = vmul.f32 %v5628, %v6043
        %v6172 = vmul.f32 %v5630, %v6044
        %v6173 = vmul.f32 %v5632, %v6045
        %v6174 = vmul.f32 %v5634, %v6046
        %v6175 = vmul.f32 %v5636, %v6047
        %v6176 = vmul.f32 %v5638, %v6048
        %v6177 = vmul.f32 %v5640, %v6049
        %v6178 = vmul.f32 %v5642, %v6050
        %v6179 = vmul.f32 %v5644, %v6051
        %v6180 = vmul.f32 %v5646, %v6052
        %v6181 = vmul.f32 %v5648, %v6053
        %v6182 = vmul.f32 %v5650, %v6054
        %v6183 = vmul.f32 %v5652, %v6055
        %v6184 = vmul.f32 %v5654, %v6056
        %v6185 = vmul.f32 %v5656, %v6057
        %v6186 = vmul.f32 %v5658, %v6058
        %v6187 = vmul.f32 %v5660, %v6059
        %v6188 = vmul.f32 %v5662, %v6060
        %v6189 = vmul.f32 %v5664, %v6061
        %v6190 = vmul.f32 %v5666, %v6062
        %v6191 = vmul.f32 %v5668, %v6063
        %v6192 = vmul.f32 %v5670, %v6064
        %v6193 = vmul.f32 %v5672, %v6065
        %v6194 = vmul.f32 %v5674, %v6066
        %v6195 = vmul.f32 %v5676, %v6067
        %v6196 = vmul.f32 %v5678, %v6068
        %v6197 = vmul.f32 %v5680, %v6069
        %v6198 = vmul.f32 %v5682, %v6070
        %v6199 = vmul.f32 %v5684, %v6071
        %v6200 = vmul.f32 %v5686, %v6072
        %v6201 = vmul.f32 %v5688, %v6073
        %v6202 = vmul.f32 %v5690, %v6074
        %v6203 = vpack.c.bf16 %v6172, %v6171
        %v6204 = vpack.c.bf16 %v6174, %v6173
        %v6205 = vpack.c.bf16 %v6176, %v6175
        %v6206 = vpack.c.bf16 %v6178, %v6177
        %v6207 = vpack.c.bf16 %v6180, %v6179
        %v6208 = vpack.c.bf16 %v6182, %v6181
        %v6209 = vpack.c.bf16 %v6184, %v6183
        %v6210 = vpack.c.bf16 %v6186, %v6185
        %v6211 = vpack.c.bf16 %v6188, %v6187
        %v6212 = vpack.c.bf16 %v6190, %v6189
        %v6213 = vpack.c.bf16 %v6192, %v6191
        %v6214 = vpack.c.bf16 %v6194, %v6193
        %v6215 = vpack.c.bf16 %v6196, %v6195
        %v6216 = vpack.c.bf16 %v6198, %v6197
        %v6217 = vpack.c.bf16 %v6200, %v6199
        %v6218 = vpack.c.bf16 %v6202, %v6201
        %6219 = vrot.lane.b32.xlu0 %v966, 64
        %v6220 = vpop.permute.xlu0 %6219
        %6221 = vrot.lane.b32.xlu0 %v967, 64
        %v6222 = vpop.permute.xlu0 %6221
        %6223 = vrot.lane.b32.xlu0 %v968, 64
        %v6224 = vpop.permute.xlu0 %6223
        %6225 = vrot.lane.b32.xlu0 %v969, 64
        %v6226 = vpop.permute.xlu0 %6225
        %6227 = vrot.lane.b32.xlu0 %v970, 64
        %v6228 = vpop.permute.xlu0 %6227
        %6229 = vrot.lane.b32.xlu0 %v971, 64
        %v6230 = vpop.permute.xlu0 %6229
        %6231 = vrot.lane.b32.xlu0 %v972, 64
        %v6232 = vpop.permute.xlu0 %6231
        %6233 = vrot.lane.b32.xlu0 %v973, 64
        %v6234 = vpop.permute.xlu0 %6233
        %6235 = vrot.lane.b32.xlu0 %v974, 64
        %v6236 = vpop.permute.xlu0 %6235
        %6237 = vrot.lane.b32.xlu0 %v975, 64
        %v6238 = vpop.permute.xlu0 %6237
        %6239 = vrot.lane.b32.xlu0 %v976, 64
        %v6240 = vpop.permute.xlu0 %6239
        %6241 = vrot.lane.b32.xlu0 %v977, 64
        %v6242 = vpop.permute.xlu0 %6241
        %6243 = vrot.lane.b32.xlu0 %v978, 64
        %v6244 = vpop.permute.xlu0 %6243
        %6245 = vrot.lane.b32.xlu0 %v979, 64
        %v6246 = vpop.permute.xlu0 %6245
        %6247 = vrot.lane.b32.xlu0 %v980, 64
        %v6248 = vpop.permute.xlu0 %6247
        %6249 = vrot.lane.b32.xlu0 %v981, 64
        %v6250 = vpop.permute.xlu0 %6249
        %6267 = vmatprep.subr.bf16.mxu0 0
        %6268 = vmatpush1.bf16.msra.mxu0 %v6220
        %6269 = vmatprep.subr.bf16.mxu0 0
        %6270 = vmatpush1.bf16.msra.mxu0 %v6222
        %6271 = vmatprep.subr.bf16.mxu0 0
        %6272 = vmatpush1.bf16.msra.mxu0 %v6224
        %6273 = vmatprep.subr.bf16.mxu0 0
        %6274 = vmatpush1.bf16.msra.mxu0 %v6226
        %6275 = vmatprep.subr.bf16.mxu0 0
        %6276 = vmatpush1.bf16.msra.mxu0 %v6228
        %6277 = vmatprep.subr.bf16.mxu0 0
        %6278 = vmatpush1.bf16.msra.mxu0 %v6230
        %6279 = vmatprep.subr.bf16.mxu0 0
        %6280 = vmatpush1.bf16.msra.mxu0 %v6232
        %6281 = vmatprep.subr.bf16.mxu0 0
        %6282 = vmatpush1.bf16.msra.mxu0 %v6234
        %6283 = vmatprep.subr.bf16.mxu0 0
        %6284 = vmatpush1.bf16.msra.mxu0 %v6236
        %6285 = vmatprep.subr.bf16.mxu0 0
        %6286 = vmatpush1.bf16.msra.mxu0 %v6238
        %6287 = vmatprep.subr.bf16.mxu0 0
        %6288 = vmatpush1.bf16.msra.mxu0 %v6240
        %6289 = vmatprep.subr.bf16.mxu0 0
        %6290 = vmatpush1.bf16.msra.mxu0 %v6242
        %6291 = vmatprep.subr.bf16.mxu0 0
        %6292 = vmatpush1.bf16.msra.mxu0 %v6244
        %6293 = vmatprep.subr.bf16.mxu0 0
        %6294 = vmatpush1.bf16.msra.mxu0 %v6246
        %6295 = vmatprep.subr.bf16.mxu0 0
        %6296 = vmatpush1.bf16.msra.mxu0 %v6248
        %6297 = vmatprep.subr.bf16.mxu0 0
        %6298 = vmatpush1.bf16.msra.mxu0 %v6250
        %6299 = vmatprep.mubr.bf16.mxu0 %v6140
        %6300 = vmatmul.mubr.bf16.gmra.mrb[0].mxu0 %v6139
        %v6301 = vpop.f32.mrb[0].mxu0
        %v6302 = vadd.f32 0.0, %v6301
        %v6303 = vpop.f32.mrb[0].mxu0
        %v6304 = vpop.f32.mrb[0].mxu0
        %v6305 = vadd.f32 0.0, %v6304
        %v6306 = vpop.f32.mrb[0].mxu0
        %6307 = vmatprep.mubr.bf16.mxu0 %v6142
        %6308 = vmatmul.mubr.bf16.gmra.mrb[0].mxu0 %v6141
        %v6309 = vpop.f32.mrb[0].mxu0
        %v6310 = vadd.f32 0.0, %v6309
        %v6311 = vpop.f32.mrb[0].mxu0
        %v6312 = vpop.f32.mrb[0].mxu0
        %v6313 = vadd.f32 0.0, %v6312
        %v6314 = vpop.f32.mrb[0].mxu0
        %6315 = vmatprep.mubr.bf16.mxu0 %v6144
        %6316 = vmatmul.mubr.bf16.gmra.mrb[0].mxu0 %v6143
        %v6317 = vpop.f32.mrb[0].mxu0
        %v6318 = vadd.f32 0.0, %v6317
        %v6319 = vpop.f32.mrb[0].mxu0
        %v6320 = vpop.f32.mrb[0].mxu0
        %v6321 = vadd.f32 0.0, %v6320
        %v6322 = vpop.f32.mrb[0].mxu0
        %6323 = vmatprep.mubr.bf16.mxu0 %v6146
        %6324 = vmatmul.mubr.bf16.gmra.mrb[0].mxu0 %v6145
        %v6325 = vpop.f32.mrb[0].mxu0
        %v6326 = vadd.f32 0.0, %v6325
        %v6327 = vpop.f32.mrb[0].mxu0
        %v6328 = vpop.f32.mrb[0].mxu0
        %v6329 = vadd.f32 0.0, %v6328
        %v6330 = vpop.f32.mrb[0].mxu0
        %6331 = vmatprep.mubr.bf16.mxu0 %v6148
        %6332 = vmatmul.mubr.bf16.gmra.mrb[0].mxu0 %v6147
        %v6333 = vpop.f32.mrb[0].mxu0
        %v6334 = vadd.f32 0.0, %v6333
        %v6335 = vpop.f32.mrb[0].mxu0
        %v6336 = vpop.f32.mrb[0].mxu0
        %v6337 = vadd.f32 0.0, %v6336
        %v6338 = vpop.f32.mrb[0].mxu0
        %6339 = vmatprep.mubr.bf16.mxu0 %v6150
        %6340 = vmatmul.mubr.bf16.gmra.mrb[0].mxu0 %v6149
        %v6341 = vpop.f32.mrb[0].mxu0
        %v6342 = vadd.f32 0.0, %v6341
        %v6343 = vpop.f32.mrb[0].mxu0
        %v6344 = vpop.f32.mrb[0].mxu0
        %v6345 = vadd.f32 0.0, %v6344
        %v6346 = vpop.f32.mrb[0].mxu0
        %6347 = vmatprep.mubr.bf16.mxu0 %v6152
        %6348 = vmatmul.mubr.bf16.gmra.mrb[0].mxu0 %v6151
        %v6349 = vpop.f32.mrb[0].mxu0
        %v6350 = vadd.f32 0.0, %v6349
        %v6351 = vpop.f32.mrb[0].mxu0
        %v6352 = vpop.f32.mrb[0].mxu0
        %v6353 = vadd.f32 0.0, %v6352
        %v6354 = vpop.f32.mrb[0].mxu0
        %6355 = vmatprep.mubr.bf16.mxu0 %v6154
        %6356 = vmatmul.mubr.bf16.gmra.mrb[0].mxu0 %v6153
        %v6357 = vpop.f32.mrb[0].mxu0
        %v6358 = vadd.f32 0.0, %v6357
        %v6359 = vpop.f32.mrb[0].mxu0
        %v6360 = vpop.f32.mrb[0].mxu0
        %v6361 = vadd.f32 0.0, %v6360
        %v6362 = vpop.f32.mrb[0].mxu0
        %6363 = vmatprep.mubr.bf16.mxu0 %v6156
        %6364 = vmatmul.mubr.bf16.gmra.mrb[0].mxu0 %v6155
        %v6365 = vpop.f32.mrb[0].mxu0
        %v6366 = vadd.f32 0.0, %v6365
        %v6367 = vpop.f32.mrb[0].mxu0
        %v6368 = vpop.f32.mrb[0].mxu0
        %v6369 = vadd.f32 0.0, %v6368
        %v6370 = vpop.f32.mrb[0].mxu0
        %6371 = vmatprep.mubr.bf16.mxu0 %v6158
        %6372 = vmatmul.mubr.bf16.gmra.mrb[0].mxu0 %v6157
        %v6373 = vpop.f32.mrb[0].mxu0
        %v6374 = vadd.f32 0.0, %v6373
        %v6375 = vpop.f32.mrb[0].mxu0
        %v6376 = vpop.f32.mrb[0].mxu0
        %v6377 = vadd.f32 0.0, %v6376
        %v6378 = vpop.f32.mrb[0].mxu0
        %6379 = vmatprep.mubr.bf16.mxu0 %v6160
        %6380 = vmatmul.mubr.bf16.gmra.mrb[0].mxu0 %v6159
        %v6381 = vpop.f32.mrb[0].mxu0
        %v6382 = vadd.f32 0.0, %v6381
        %v6383 = vpop.f32.mrb[0].mxu0
        %v6384 = vpop.f32.mrb[0].mxu0
        %v6385 = vadd.f32 0.0, %v6384
        %v6386 = vpop.f32.mrb[0].mxu0
        %6387 = vmatprep.mubr.bf16.mxu0 %v6162
        %6388 = vmatmul.mubr.bf16.gmra.mrb[0].mxu0 %v6161
        %v6389 = vpop.f32.mrb[0].mxu0
        %v6390 = vadd.f32 0.0, %v6389
        %v6391 = vpop.f32.mrb[0].mxu0
        %v6392 = vpop.f32.mrb[0].mxu0
        %v6393 = vadd.f32 0.0, %v6392
        %v6394 = vpop.f32.mrb[0].mxu0
        %6395 = vmatprep.mubr.bf16.mxu0 %v6164
        %6396 = vmatmul.mubr.bf16.gmra.mrb[0].mxu0 %v6163
        %v6397 = vpop.f32.mrb[0].mxu0
        %v6398 = vadd.f32 0.0, %v6397
        %v6399 = vpop.f32.mrb[0].mxu0
        %v6400 = vpop.f32.mrb[0].mxu0
        %v6401 = vadd.f32 0.0, %v6400
        %v6402 = vpop.f32.mrb[0].mxu0
        %6403 = vmatprep.mubr.bf16.mxu0 %v6166
        %6404 = vmatmul.mubr.bf16.gmra.mrb[0].mxu0 %v6165
        %v6405 = vpop.f32.mrb[0].mxu0
        %v6406 = vadd.f32 0.0, %v6405
        %v6407 = vpop.f32.mrb[0].mxu0
        %v6408 = vpop.f32.mrb[0].mxu0
        %v6409 = vadd.f32 0.0, %v6408
        %v6410 = vpop.f32.mrb[0].mxu0
        %6411 = vmatprep.mubr.bf16.mxu0 %v6168
        %6412 = vmatmul.mubr.bf16.gmra.mrb[0].mxu0 %v6167
        %v6413 = vpop.f32.mrb[0].mxu0
        %v6414 = vadd.f32 0.0, %v6413
        %v6415 = vpop.f32.mrb[0].mxu0
        %v6416 = vpop.f32.mrb[0].mxu0
        %v6417 = vadd.f32 0.0, %v6416
        %v6418 = vpop.f32.mrb[0].mxu0
        %6419 = vmatprep.mubr.bf16.mxu0 %v6170
        %6420 = vmatmul.mubr.bf16.gmra.mrb[0].mxu0 %v6169
        %v6421 = vpop.f32.mrb[0].mxu0
        %v6422 = vadd.f32 0.0, %v6421
        %v6423 = vpop.f32.mrb[0].mxu0
        %v6424 = vpop.f32.mrb[0].mxu0
        %v6425 = vadd.f32 0.0, %v6424
        %v6426 = vpop.f32.mrb[0].mxu0
        %6427 = vdwg.mxu0
        %v6428 = vpack.c.bf16 %v6305, %v6302
        %v6429 = vpack.c.bf16 %v6313, %v6310
        %v6430 = vpack.c.bf16 %v6321, %v6318
        %v6431 = vpack.c.bf16 %v6329, %v6326
        %v6432 = vpack.c.bf16 %v6337, %v6334
        %v6433 = vpack.c.bf16 %v6345, %v6342
        %v6434 = vpack.c.bf16 %v6353, %v6350
        %v6435 = vpack.c.bf16 %v6361, %v6358
        %v6436 = vpack.c.bf16 %v6369, %v6366
        %v6437 = vpack.c.bf16 %v6377, %v6374
        %v6438 = vpack.c.bf16 %v6385, %v6382
        %v6439 = vpack.c.bf16 %v6393, %v6390
        %v6440 = vpack.c.bf16 %v6401, %v6398
        %v6441 = vpack.c.bf16 %v6409, %v6406
        %v6442 = vpack.c.bf16 %v6417, %v6414
        %v6443 = vpack.c.bf16 %v6425, %v6422
        %v6444 = vld [vmem:[%s4 + $0x20] sm:$0xf]
        %v6445 = vld [vmem:[%s4 + $0x24] sm:$0xf]
        %v6446 = vld [vmem:[%s4 + $0x28] sm:$0xf]
        %v6447 = vld [vmem:[%s4 + $0x2c] sm:$0xf]
        %v6452 = vunpack.c.l.b16 %v6444
        %v6453 = vunpack.c.l.b16 %v6445
        %v6454 = vunpack.c.l.b16 %v6446
        %v6455 = vunpack.c.l.b16 %v6447
        %v6456 = vpack.c.b16 %v6453, %v6452
        %v6457 = vpack.c.b16 %v6455, %v6454
        %v6461 = vsel %vm1304, %v6428, 0
        %v6464 = vsel %vm1304, %v6429, 0
        %v6467 = vsel %vm1304, %v6430, 0
        %v6470 = vsel %vm1304, %v6431, 0
        %v6473 = vsel %vm1304, %v6432, 0
        %v6476 = vsel %vm1304, %v6433, 0
        %v6479 = vsel %vm1304, %v6434, 0
        %v6482 = vsel %vm1304, %v6435, 0
        %v6485 = vsel %vm1304, %v6436, 0
        %v6488 = vsel %vm1304, %v6437, 0
        %v6491 = vsel %vm1304, %v6438, 0
        %v6494 = vsel %vm1304, %v6439, 0
        %v6497 = vsel %vm1304, %v6440, 0
        %v6500 = vsel %vm1304, %v6441, 0
        %v6503 = vsel %vm1304, %v6442, 0
        %v6506 = vsel %vm1304, %v6443, 0
        %6508 = vmatprep.subr.bf16.mxu0 0
        %6509 = vmatpush1.bf16.msra.mxu0 %v6456
        %6510 = vmatprep.subr.bf16.mxu0 0
        %6511 = vmatpush1.bf16.msra.mxu0 %v6457
        %6512 = vmatprep.subr.bf16.mxu0 0
        %6513 = vmatpush1.bf16.msra.mxu0 0
        %6514 = vmatprep.subr.bf16.mxu0 0
        %6515 = vmatpush1.bf16.msra.mxu0 0
        %6516 = vmatprep.subr.bf16.mxu0 0
        %6517 = vmatpush1.bf16.msra.mxu0 0
        %6518 = vmatprep.subr.bf16.mxu0 0
        %6519 = vmatpush1.bf16.msra.mxu0 0
        %6520 = vmatprep.subr.bf16.mxu0 0
        %6521 = vmatpush1.bf16.msra.mxu0 0
        %6522 = vmatprep.subr.bf16.mxu0 0
        %6523 = vmatpush1.bf16.msra.mxu0 0
        %6524 = vmatprep.subr.bf16.mxu0 0
        %6525 = vmatpush1.bf16.msra.mxu0 0
        %6526 = vmatprep.subr.bf16.mxu0 0
        %6527 = vmatpush1.bf16.msra.mxu0 0
        %6528 = vmatprep.subr.bf16.mxu0 0
        %6529 = vmatpush1.bf16.msra.mxu0 0
        %6530 = vmatprep.subr.bf16.mxu0 0
        %6531 = vmatpush1.bf16.msra.mxu0 0
        %6532 = vmatprep.subr.bf16.mxu0 0
        %6533 = vmatpush1.bf16.msra.mxu0 0
        %6534 = vmatprep.subr.bf16.mxu0 0
        %6535 = vmatpush1.bf16.msra.mxu0 0
        %6536 = vmatprep.subr.bf16.mxu0 0
        %6537 = vmatpush1.bf16.msra.mxu0 0
        %6538 = vmatprep.subr.bf16.mxu0 0
        %6539 = vmatpush1.bf16.msra.mxu0 0
        %6540 = vmatprep.mubr.bf16.mxu0 0
        %6541 = vmatmul.mubr.bf16.gmra.mrb[0].mxu0 %v6461
        %v6542 = vpop.f32.mrb[0].mxu0
        %v6543 = vadd.f32 0.0, %v6542
        %v6544 = vpop.f32.mrb[0].mxu0
        %v6545 = vpop.f32.mrb[0].mxu0
        %v6546 = vadd.f32 0.0, %v6545
        %v6547 = vpop.f32.mrb[0].mxu0
        %6548 = vmatprep.mubr.bf16.mxu0 0
        %6549 = vmatmul.mubr.bf16.gmra.mrb[0].mxu0 %v6464
        %v6550 = vpop.f32.mrb[0].mxu0
        %v6551 = vadd.f32 0.0, %v6550
        %v6552 = vpop.f32.mrb[0].mxu0
        %v6553 = vpop.f32.mrb[0].mxu0
        %v6554 = vadd.f32 0.0, %v6553
        %v6555 = vpop.f32.mrb[0].mxu0
        %6556 = vmatprep.mubr.bf16.mxu0 0
        %6557 = vmatmul.mubr.bf16.gmra.mrb[0].mxu0 %v6467
        %v6558 = vpop.f32.mrb[0].mxu0
        %v6559 = vadd.f32 0.0, %v6558
        %v6560 = vpop.f32.mrb[0].mxu0
        %v6561 = vpop.f32.mrb[0].mxu0
        %v6562 = vadd.f32 0.0, %v6561
        %v6563 = vpop.f32.mrb[0].mxu0
        %6564 = vmatprep.mubr.bf16.mxu0 0
        %6565 = vmatmul.mubr.bf16.gmra.mrb[0].mxu0 %v6470
        %v6566 = vpop.f32.mrb[0].mxu0
        %v6567 = vadd.f32 0.0, %v6566
        %v6568 = vpop.f32.mrb[0].mxu0
        %v6569 = vpop.f32.mrb[0].mxu0
        %v6570 = vadd.f32 0.0, %v6569
        %v6571 = vpop.f32.mrb[0].mxu0
        %6572 = vmatprep.mubr.bf16.mxu0 0
        %6573 = vmatmul.mubr.bf16.gmra.mrb[0].mxu0 %v6473
        %v6574 = vpop.f32.mrb[0].mxu0
        %v6575 = vadd.f32 0.0, %v6574
        %v6576 = vpop.f32.mrb[0].mxu0
        %v6577 = vpop.f32.mrb[0].mxu0
        %v6578 = vadd.f32 0.0, %v6577
        %v6579 = vpop.f32.mrb[0].mxu0
        %6580 = vmatprep.mubr.bf16.mxu0 0
        %6581 = vmatmul.mubr.bf16.gmra.mrb[0].mxu0 %v6476
        %v6582 = vpop.f32.mrb[0].mxu0
        %v6583 = vadd.f32 0.0, %v6582
        %v6584 = vpop.f32.mrb[0].mxu0
        %v6585 = vpop.f32.mrb[0].mxu0
        %v6586 = vadd.f32 0.0, %v6585
        %v6587 = vpop.f32.mrb[0].mxu0
        %6588 = vmatprep.mubr.bf16.mxu0 0
        %6589 = vmatmul.mubr.bf16.gmra.mrb[0].mxu0 %v6479
        %v6590 = vpop.f32.mrb[0].mxu0
        %v6591 = vadd.f32 0.0, %v6590
        %v6592 = vpop.f32.mrb[0].mxu0
        %v6593 = vpop.f32.mrb[0].mxu0
        %v6594 = vadd.f32 0.0, %v6593
        %v6595 = vpop.f32.mrb[0].mxu0
        %6596 = vmatprep.mubr.bf16.mxu0 0
        %6597 = vmatmul.mubr.bf16.gmra.mrb[0].mxu0 %v6482
        %v6598 = vpop.f32.mrb[0].mxu0
        %v6599 = vadd.f32 0.0, %v6598
        %v6600 = vpop.f32.mrb[0].mxu0
        %v6601 = vpop.f32.mrb[0].mxu0
        %v6602 = vadd.f32 0.0, %v6601
        %v6603 = vpop.f32.mrb[0].mxu0
        %6604 = vmatprep.mubr.bf16.mxu0 0
        %6605 = vmatmul.mubr.bf16.gmra.mrb[0].mxu0 %v6485
        %v6606 = vpop.f32.mrb[0].mxu0
        %v6607 = vadd.f32 0.0, %v6606
        %v6608 = vpop.f32.mrb[0].mxu0
        %v6609 = vpop.f32.mrb[0].mxu0
        %v6610 = vadd.f32 0.0, %v6609
        %v6611 = vpop.f32.mrb[0].mxu0
        %6612 = vmatprep.mubr.bf16.mxu0 0
        %6613 = vmatmul.mubr.bf16.gmra.mrb[0].mxu0 %v6488
        %v6614 = vpop.f32.mrb[0].mxu0
        %v6615 = vadd.f32 0.0, %v6614
        %v6616 = vpop.f32.mrb[0].mxu0
        %v6617 = vpop.f32.mrb[0].mxu0
        %v6618 = vadd.f32 0.0, %v6617
        %v6619 = vpop.f32.mrb[0].mxu0
        %6620 = vmatprep.mubr.bf16.mxu0 0
        %6621 = vmatmul.mubr.bf16.gmra.mrb[0].mxu0 %v6491
        %v6622 = vpop.f32.mrb[0].mxu0
        %v6623 = vadd.f32 0.0, %v6622
        %v6624 = vpop.f32.mrb[0].mxu0
        %v6625 = vpop.f32.mrb[0].mxu0
        %v6626 = vadd.f32 0.0, %v6625
        %v6627 = vpop.f32.mrb[0].mxu0
        %6628 = vmatprep.mubr.bf16.mxu0 0
        %6629 = vmatmul.mubr.bf16.gmra.mrb[0].mxu0 %v6494
        %v6630 = vpop.f32.mrb[0].mxu0
        %v6631 = vadd.f32 0.0, %v6630
        %v6632 = vpop.f32.mrb[0].mxu0
        %v6633 = vpop.f32.mrb[0].mxu0
        %v6634 = vadd.f32 0.0, %v6633
        %v6635 = vpop.f32.mrb[0].mxu0
        %6636 = vmatprep.mubr.bf16.mxu0 0
        %6637 = vmatmul.mubr.bf16.gmra.mrb[0].mxu0 %v6497
        %v6638 = vpop.f32.mrb[0].mxu0
        %v6639 = vadd.f32 0.0, %v6638
        %v6640 = vpop.f32.mrb[0].mxu0
        %v6641 = vpop.f32.mrb[0].mxu0
        %v6642 = vadd.f32 0.0, %v6641
        %v6643 = vpop.f32.mrb[0].mxu0
        %6644 = vmatprep.mubr.bf16.mxu0 0
        %6645 = vmatmul.mubr.bf16.gmra.mrb[0].mxu0 %v6500
        %v6646 = vpop.f32.mrb[0].mxu0
        %v6647 = vadd.f32 0.0, %v6646
        %v6648 = vpop.f32.mrb[0].mxu0
        %v6649 = vpop.f32.mrb[0].mxu0
        %v6650 = vadd.f32 0.0, %v6649
        %v6651 = vpop.f32.mrb[0].mxu0
        %6652 = vmatprep.mubr.bf16.mxu0 0
        %6653 = vmatmul.mubr.bf16.gmra.mrb[0].mxu0 %v6503
        %v6654 = vpop.f32.mrb[0].mxu0
        %v6655 = vadd.f32 0.0, %v6654
        %v6656 = vpop.f32.mrb[0].mxu0
        %v6657 = vpop.f32.mrb[0].mxu0
        %v6658 = vadd.f32 0.0, %v6657
        %v6659 = vpop.f32.mrb[0].mxu0
        %6660 = vmatprep.mubr.bf16.mxu0 0
        %6661 = vmatmul.mubr.bf16.gmra.mrb[0].mxu0 %v6506
        %v6662 = vpop.f32.mrb[0].mxu0
        %v6663 = vadd.f32 0.0, %v6662
        %v6664 = vpop.f32.mrb[0].mxu0
        %v6665 = vpop.f32.mrb[0].mxu0
        %v6666 = vadd.f32 0.0, %v6665
        %v6667 = vpop.f32.mrb[0].mxu0
        %6668 = vdwg.mxu0
        %v6669 = vadd.f32 %v4970, %v6543
        %v6670 = vadd.f32 %v4971, %v6546
        %v6671 = vadd.f32 %v4972, %v6551
        %v6672 = vadd.f32 %v4973, %v6554
        %v6673 = vadd.f32 %v4974, %v6559
        %v6674 = vadd.f32 %v4975, %v6562
        %v6675 = vadd.f32 %v4976, %v6567
        %v6676 = vadd.f32 %v4977, %v6570
        %v6677 = vadd.f32 %v4978, %v6575
        %v6678 = vadd.f32 %v4979, %v6578
        %v6679 = vadd.f32 %v4980, %v6583
        %v6680 = vadd.f32 %v4981, %v6586
        %v6681 = vadd.f32 %v4982, %v6591
        %v6682 = vadd.f32 %v4983, %v6594
        %v6683 = vadd.f32 %v4984, %v6599
        %v6684 = vadd.f32 %v4985, %v6602
        %v6685 = vadd.f32 %v4986, %v6607
        %v6686 = vadd.f32 %v4987, %v6610
        %v6687 = vadd.f32 %v4988, %v6615
        %v6688 = vadd.f32 %v4989, %v6618
        %v6689 = vadd.f32 %v4990, %v6623
        %v6690 = vadd.f32 %v4991, %v6626
        %v6691 = vadd.f32 %v4992, %v6631
        %v6692 = vadd.f32 %v4993, %v6634
        %v6693 = vadd.f32 %v4994, %v6639
        %v6694 = vadd.f32 %v4995, %v6642
        %v6695 = vadd.f32 %v4996, %v6647
        %v6696 = vadd.f32 %v4997, %v6650
        %v6697 = vadd.f32 %v4998, %v6655
        %v6698 = vadd.f32 %v4999, %v6658
        %v6699 = vadd.f32 %v5000, %v6663
        %v6700 = vadd.f32 %v5001, %v6666
        %s6701 = scalar_lea.vmem %s3, 4
        %v6702 = vld [vmem:[%s6701] sm:$0x3]
        %6719 = vrot.lane.b32.xlu0 %v6203, 120
        %v6720 = vpop.permute.xlu0 %6719
        %6721 = vrot.lane.b32.xlu0 %v6204, 120
        %v6722 = vpop.permute.xlu0 %6721
        %6723 = vrot.lane.b32.xlu0 %v6205, 120
        %v6724 = vpop.permute.xlu0 %6723
        %6725 = vrot.lane.b32.xlu0 %v6206, 120
        %v6726 = vpop.permute.xlu0 %6725
        %6727 = vrot.lane.b32.xlu0 %v6207, 120
        %v6728 = vpop.permute.xlu0 %6727
        %6729 = vrot.lane.b32.xlu0 %v6208, 120
        %v6730 = vpop.permute.xlu0 %6729
        %6731 = vrot.lane.b32.xlu0 %v6209, 120
        %v6732 = vpop.permute.xlu0 %6731
        %6733 = vrot.lane.b32.xlu0 %v6210, 120
        %v6734 = vpop.permute.xlu0 %6733
        %6735 = vrot.lane.b32.xlu0 %v6211, 120
        %v6736 = vpop.permute.xlu0 %6735
        %6737 = vrot.lane.b32.xlu0 %v6212, 120
        %v6738 = vpop.permute.xlu0 %6737
        %6739 = vrot.lane.b32.xlu0 %v6213, 120
        %v6740 = vpop.permute.xlu0 %6739
        %6741 = vrot.lane.b32.xlu0 %v6214, 120
        %v6742 = vpop.permute.xlu0 %6741
        %6743 = vrot.lane.b32.xlu0 %v6215, 120
        %v6744 = vpop.permute.xlu0 %6743
        %6745 = vrot.lane.b32.xlu0 %v6216, 120
        %v6746 = vpop.permute.xlu0 %6745
        %6747 = vrot.lane.b32.xlu0 %v6217, 120
        %v6748 = vpop.permute.xlu0 %6747
        %6749 = vrot.lane.b32.xlu0 %v6218, 120
        %v6750 = vpop.permute.xlu0 %6749
        %v6752 = vsel %vm453, %v6720, 0
        %v6755 = vsel %vm453, %v6722, 0
        %v6758 = vsel %vm453, %v6724, 0
        %v6761 = vsel %vm453, %v6726, 0
        %v6764 = vsel %vm453, %v6728, 0
        %v6767 = vsel %vm453, %v6730, 0
        %v6770 = vsel %vm453, %v6732, 0
        %v6773 = vsel %vm453, %v6734, 0
        %v6776 = vsel %vm453, %v6736, 0
        %v6779 = vsel %vm453, %v6738, 0
        %v6782 = vsel %vm453, %v6740, 0
        %v6785 = vsel %vm453, %v6742, 0
        %v6788 = vsel %vm453, %v6744, 0
        %v6791 = vsel %vm453, %v6746, 0
        %v6794 = vsel %vm453, %v6748, 0
        %v6797 = vsel %vm453, %v6750, 0
        %v6800 = vsel %vm526, %v6702, 0
        %6802 = vmatprep.subr.bf16.mxu0 0
        %6803 = vmatpush1.bf16.msra.mxu0 %v6800
        %6804 = vmatprep.subr.bf16.mxu0 0
        %6805 = vmatpush1.bf16.msra.mxu0 0
        %6806 = vmatprep.subr.bf16.mxu0 0
        %6807 = vmatpush1.bf16.msra.mxu0 0
        %6808 = vmatprep.subr.bf16.mxu0 0
        %6809 = vmatpush1.bf16.msra.mxu0 0
        %6810 = vmatprep.subr.bf16.mxu0 0
        %6811 = vmatpush1.bf16.msra.mxu0 0
        %6812 = vmatprep.subr.bf16.mxu0 0
        %6813 = vmatpush1.bf16.msra.mxu0 0
        %6814 = vmatprep.subr.bf16.mxu0 0
        %6815 = vmatpush1.bf16.msra.mxu0 0
        %6816 = vmatprep.subr.bf16.mxu0 0
        %6817 = vmatpush1.bf16.msra.mxu0 0
        %6818 = vmatprep.subr.bf16.mxu0 0
        %6819 = vmatpush1.bf16.msra.mxu0 0
        %6820 = vmatprep.subr.bf16.mxu0 0
        %6821 = vmatpush1.bf16.msra.mxu0 0
        %6822 = vmatprep.subr.bf16.mxu0 0
        %6823 = vmatpush1.bf16.msra.mxu0 0
        %6824 = vmatprep.subr.bf16.mxu0 0
        %6825 = vmatpush1.bf16.msra.mxu0 0
        %6826 = vmatprep.subr.bf16.mxu0 0
        %6827 = vmatpush1.bf16.msra.mxu0 0
        %6828 = vmatprep.subr.bf16.mxu0 0
        %6829 = vmatpush1.bf16.msra.mxu0 0
        %6830 = vmatprep.subr.bf16.mxu0 0
        %6831 = vmatpush1.bf16.msra.mxu0 0
        %6832 = vmatprep.subr.bf16.mxu0 0
        %6833 = vmatpush1.bf16.msra.mxu0 0
        %6834 = vmatprep.mubr.bf16.mxu0 0
        %6835 = vmatmul.mubr.bf16.gmra.mrb[0].mxu0 %v6752
        %v6836 = vpop.f32.mrb[0].mxu0
        %v6837 = vadd.f32 0.0, %v6836
        %v6838 = vpop.f32.mrb[0].mxu0
        %v6839 = vpop.f32.mrb[0].mxu0
        %v6840 = vadd.f32 0.0, %v6839
        %v6841 = vpop.f32.mrb[0].mxu0
        %6842 = vmatprep.mubr.bf16.mxu0 0
        %6843 = vmatmul.mubr.bf16.gmra.mrb[0].mxu0 %v6755
        %v6844 = vpop.f32.mrb[0].mxu0
        %v6845 = vadd.f32 0.0, %v6844
        %v6846 = vpop.f32.mrb[0].mxu0
        %v6847 = vpop.f32.mrb[0].mxu0
        %v6848 = vadd.f32 0.0, %v6847
        %v6849 = vpop.f32.mrb[0].mxu0
        %6850 = vmatprep.mubr.bf16.mxu0 0
        %6851 = vmatmul.mubr.bf16.gmra.mrb[0].mxu0 %v6758
        %v6852 = vpop.f32.mrb[0].mxu0
        %v6853 = vadd.f32 0.0, %v6852
        %v6854 = vpop.f32.mrb[0].mxu0
        %v6855 = vpop.f32.mrb[0].mxu0
        %v6856 = vadd.f32 0.0, %v6855
        %v6857 = vpop.f32.mrb[0].mxu0
        %6858 = vmatprep.mubr.bf16.mxu0 0
        %6859 = vmatmul.mubr.bf16.gmra.mrb[0].mxu0 %v6761
        %v6860 = vpop.f32.mrb[0].mxu0
        %v6861 = vadd.f32 0.0, %v6860
        %v6862 = vpop.f32.mrb[0].mxu0
        %v6863 = vpop.f32.mrb[0].mxu0
        %v6864 = vadd.f32 0.0, %v6863
        %v6865 = vpop.f32.mrb[0].mxu0
        %6866 = vmatprep.mubr.bf16.mxu0 0
        %6867 = vmatmul.mubr.bf16.gmra.mrb[0].mxu0 %v6764
        %v6868 = vpop.f32.mrb[0].mxu0
        %v6869 = vadd.f32 0.0, %v6868
        %v6870 = vpop.f32.mrb[0].mxu0
        %v6871 = vpop.f32.mrb[0].mxu0
        %v6872 = vadd.f32 0.0, %v6871
        %v6873 = vpop.f32.mrb[0].mxu0
        %6874 = vmatprep.mubr.bf16.mxu0 0
        %6875 = vmatmul.mubr.bf16.gmra.mrb[0].mxu0 %v6767
        %v6876 = vpop.f32.mrb[0].mxu0
        %v6877 = vadd.f32 0.0, %v6876
        %v6878 = vpop.f32.mrb[0].mxu0
        %v6879 = vpop.f32.mrb[0].mxu0
        %v6880 = vadd.f32 0.0, %v6879
        %v6881 = vpop.f32.mrb[0].mxu0
        %6882 = vmatprep.mubr.bf16.mxu0 0
        %6883 = vmatmul.mubr.bf16.gmra.mrb[0].mxu0 %v6770
        %v6884 = vpop.f32.mrb[0].mxu0
        %v6885 = vadd.f32 0.0, %v6884
        %v6886 = vpop.f32.mrb[0].mxu0
        %v6887 = vpop.f32.mrb[0].mxu0
        %v6888 = vadd.f32 0.0, %v6887
        %v6889 = vpop.f32.mrb[0].mxu0
        %6890 = vmatprep.mubr.bf16.mxu0 0
        %6891 = vmatmul.mubr.bf16.gmra.mrb[0].mxu0 %v6773
        %v6892 = vpop.f32.mrb[0].mxu0
        %v6893 = vadd.f32 0.0, %v6892
        %v6894 = vpop.f32.mrb[0].mxu0
        %v6895 = vpop.f32.mrb[0].mxu0
        %v6896 = vadd.f32 0.0, %v6895
        %v6897 = vpop.f32.mrb[0].mxu0
        %6898 = vmatprep.mubr.bf16.mxu0 0
        %6899 = vmatmul.mubr.bf16.gmra.mrb[0].mxu0 %v6776
        %v6900 = vpop.f32.mrb[0].mxu0
        %v6901 = vadd.f32 0.0, %v6900
        %v6902 = vpop.f32.mrb[0].mxu0
        %v6903 = vpop.f32.mrb[0].mxu0
        %v6904 = vadd.f32 0.0, %v6903
        %v6905 = vpop.f32.mrb[0].mxu0
        %6906 = vmatprep.mubr.bf16.mxu0 0
        %6907 = vmatmul.mubr.bf16.gmra.mrb[0].mxu0 %v6779
        %v6908 = vpop.f32.mrb[0].mxu0
        %v6909 = vadd.f32 0.0, %v6908
        %v6910 = vpop.f32.mrb[0].mxu0
        %v6911 = vpop.f32.mrb[0].mxu0
        %v6912 = vadd.f32 0.0, %v6911
        %v6913 = vpop.f32.mrb[0].mxu0
        %6914 = vmatprep.mubr.bf16.mxu0 0
        %6915 = vmatmul.mubr.bf16.gmra.mrb[0].mxu0 %v6782
        %v6916 = vpop.f32.mrb[0].mxu0
        %v6917 = vadd.f32 0.0, %v6916
        %v6918 = vpop.f32.mrb[0].mxu0
        %v6919 = vpop.f32.mrb[0].mxu0
        %v6920 = vadd.f32 0.0, %v6919
        %v6921 = vpop.f32.mrb[0].mxu0
        %6922 = vmatprep.mubr.bf16.mxu0 0
        %6923 = vmatmul.mubr.bf16.gmra.mrb[0].mxu0 %v6785
        %v6924 = vpop.f32.mrb[0].mxu0
        %v6925 = vadd.f32 0.0, %v6924
        %v6926 = vpop.f32.mrb[0].mxu0
        %v6927 = vpop.f32.mrb[0].mxu0
        %v6928 = vadd.f32 0.0, %v6927
        %v6929 = vpop.f32.mrb[0].mxu0
        %6930 = vmatprep.mubr.bf16.mxu0 0
        %6931 = vmatmul.mubr.bf16.gmra.mrb[0].mxu0 %v6788
        %v6932 = vpop.f32.mrb[0].mxu0
        %v6933 = vadd.f32 0.0, %v6932
        %v6934 = vpop.f32.mrb[0].mxu0
        %v6935 = vpop.f32.mrb[0].mxu0
        %v6936 = vadd.f32 0.0, %v6935
        %v6937 = vpop.f32.mrb[0].mxu0
        %6938 = vmatprep.mubr.bf16.mxu0 0
        %6939 = vmatmul.mubr.bf16.gmra.mrb[0].mxu0 %v6791
        %v6940 = vpop.f32.mrb[0].mxu0
        %v6941 = vadd.f32 0.0, %v6940
        %v6942 = vpop.f32.mrb[0].mxu0
        %v6943 = vpop.f32.mrb[0].mxu0
        %v6944 = vadd.f32 0.0, %v6943
        %v6945 = vpop.f32.mrb[0].mxu0
        %6946 = vmatprep.mubr.bf16.mxu0 0
        %6947 = vmatmul.mubr.bf16.gmra.mrb[0].mxu0 %v6794
        %v6948 = vpop.f32.mrb[0].mxu0
        %v6949 = vadd.f32 0.0, %v6948
        %v6950 = vpop.f32.mrb[0].mxu0
        %v6951 = vpop.f32.mrb[0].mxu0
        %v6952 = vadd.f32 0.0, %v6951
        %v6953 = vpop.f32.mrb[0].mxu0
        %6954 = vmatprep.mubr.bf16.mxu0 0
        %6955 = vmatmul.mubr.bf16.gmra.mrb[0].mxu0 %v6797
        %v6956 = vpop.f32.mrb[0].mxu0
        %v6957 = vadd.f32 0.0, %v6956
        %v6958 = vpop.f32.mrb[0].mxu0
        %v6959 = vpop.f32.mrb[0].mxu0
        %v6960 = vadd.f32 0.0, %v6959
        %v6961 = vpop.f32.mrb[0].mxu0
        %6962 = vdwg.mxu0
        %v6963 = vadd.f32 %v6669, %v6837
        %v6964 = vadd.f32 %v6670, %v6840
        %v6965 = vadd.f32 %v6671, %v6845
        %v6966 = vadd.f32 %v6672, %v6848
        %v6967 = vadd.f32 %v6673, %v6853
        %v6968 = vadd.f32 %v6674, %v6856
        %v6969 = vadd.f32 %v6675, %v6861
        %v6970 = vadd.f32 %v6676, %v6864
        %v6971 = vadd.f32 %v6677, %v6869
        %v6972 = vadd.f32 %v6678, %v6872
        %v6973 = vadd.f32 %v6679, %v6877
        %v6974 = vadd.f32 %v6680, %v6880
        %v6975 = vadd.f32 %v6681, %v6885
        %v6976 = vadd.f32 %v6682, %v6888
        %v6977 = vadd.f32 %v6683, %v6893
        %v6978 = vadd.f32 %v6684, %v6896
        %v6979 = vadd.f32 %v6685, %v6901
        %v6980 = vadd.f32 %v6686, %v6904
        %v6981 = vadd.f32 %v6687, %v6909
        %v6982 = vadd.f32 %v6688, %v6912
        %v6983 = vadd.f32 %v6689, %v6917
        %v6984 = vadd.f32 %v6690, %v6920
        %v6985 = vadd.f32 %v6691, %v6925
        %v6986 = vadd.f32 %v6692, %v6928
        %v6987 = vadd.f32 %v6693, %v6933
        %v6988 = vadd.f32 %v6694, %v6936
        %v6989 = vadd.f32 %v6695, %v6941
        %v6990 = vadd.f32 %v6696, %v6944
        %v6991 = vadd.f32 %v6697, %v6949
        %v6992 = vadd.f32 %v6698, %v6952
        %v6993 = vadd.f32 %v6699, %v6957
        %v6994 = vadd.f32 %v6700, %v6960
        %6995 = vrot.lane.b32.xlu0 %v870, 32
        %v6996 = vpop.permute.xlu0 %6995
        %6997 = vrot.lane.b32.xlu0 %v871, 32
        %v6998 = vpop.permute.xlu0 %6997
        %6999 = vrot.lane.b32.xlu0 %v872, 32
        %v7000 = vpop.permute.xlu0 %6999
        %7001 = vrot.lane.b32.xlu0 %v873, 32
        %v7002 = vpop.permute.xlu0 %7001
        %7003 = vrot.lane.b32.xlu0 %v874, 32
        %v7004 = vpop.permute.xlu0 %7003
        %7005 = vrot.lane.b32.xlu0 %v875, 32
        %v7006 = vpop.permute.xlu0 %7005
        %7007 = vrot.lane.b32.xlu0 %v876, 32
        %v7008 = vpop.permute.xlu0 %7007
        %7009 = vrot.lane.b32.xlu0 %v877, 32
        %v7010 = vpop.permute.xlu0 %7009
        %7011 = vrot.lane.b32.xlu0 %v878, 32
        %v7012 = vpop.permute.xlu0 %7011
        %7013 = vrot.lane.b32.xlu0 %v879, 32
        %v7014 = vpop.permute.xlu0 %7013
        %7015 = vrot.lane.b32.xlu0 %v880, 32
        %v7016 = vpop.permute.xlu0 %7015
        %7017 = vrot.lane.b32.xlu0 %v881, 32
        %v7018 = vpop.permute.xlu0 %7017
        %7019 = vrot.lane.b32.xlu0 %v882, 32
        %v7020 = vpop.permute.xlu0 %7019
        %7021 = vrot.lane.b32.xlu0 %v883, 32
        %v7022 = vpop.permute.xlu0 %7021
        %7023 = vrot.lane.b32.xlu0 %v884, 32
        %v7024 = vpop.permute.xlu0 %7023
        %7025 = vrot.lane.b32.xlu0 %v885, 32
        %v7026 = vpop.permute.xlu0 %7025
        %v7028 = vsel %vm1304, %v6996, 0
        %v7031 = vsel %vm1304, %v6998, 0
        %v7034 = vsel %vm1304, %v7000, 0
        %v7037 = vsel %vm1304, %v7002, 0
        %v7040 = vsel %vm1304, %v7004, 0
        %v7043 = vsel %vm1304, %v7006, 0
        %v7046 = vsel %vm1304, %v7008, 0
        %v7049 = vsel %vm1304, %v7010, 0
        %v7052 = vsel %vm1304, %v7012, 0
        %v7055 = vsel %vm1304, %v7014, 0
        %v7058 = vsel %vm1304, %v7016, 0
        %v7061 = vsel %vm1304, %v7018, 0
        %v7064 = vsel %vm1304, %v7020, 0
        %v7067 = vsel %vm1304, %v7022, 0
        %v7070 = vsel %vm1304, %v7024, 0
        %v7073 = vsel %vm1304, %v7026, 0
        %7075 = vmatprep.subr.bf16.mxu0 %v899
        %7076 = vmatpush1.bf16.msra.mxu0 %v898
        %7077 = vmatprep.subr.bf16.mxu0 %v901
        %7078 = vmatpush1.bf16.msra.mxu0 %v900
        %7079 = vmatprep.subr.bf16.mxu0 0
        %7080 = vmatpush1.bf16.msra.mxu0 0
        %7081 = vmatprep.subr.bf16.mxu0 0
        %7082 = vmatpush1.bf16.msra.mxu0 0
        %7083 = vmatprep.subr.bf16.mxu0 0
        %7084 = vmatpush1.bf16.msra.mxu0 0
        %7085 = vmatprep.subr.bf16.mxu0 0
        %7086 = vmatpush1.bf16.msra.mxu0 0
        %7087 = vmatprep.subr.bf16.mxu0 0
        %7088 = vmatpush1.bf16.msra.mxu0 0
        %7089 = vmatprep.subr.bf16.mxu0 0
        %7090 = vmatpush1.bf16.msra.mxu0 0
        %7091 = vmatprep.subr.bf16.mxu0 0
        %7092 = vmatpush1.bf16.msra.mxu0 0
        %7093 = vmatprep.subr.bf16.mxu0 0
        %7094 = vmatpush1.bf16.msra.mxu0 0
        %7095 = vmatprep.subr.bf16.mxu0 0
        %7096 = vmatpush1.bf16.msra.mxu0 0
        %7097 = vmatprep.subr.bf16.mxu0 0
        %7098 = vmatpush1.bf16.msra.mxu0 0
        %7099 = vmatprep.subr.bf16.mxu0 0
        %7100 = vmatpush1.bf16.msra.mxu0 0
        %7101 = vmatprep.subr.bf16.mxu0 0
        %7102 = vmatpush1.bf16.msra.mxu0 0
        %7103 = vmatprep.subr.bf16.mxu0 0
        %7104 = vmatpush1.bf16.msra.mxu0 0
        %7105 = vmatprep.subr.bf16.mxu0 0
        %7106 = vmatpush1.bf16.msra.mxu0 0
        %7107 = vmatprep.mubr.bf16.mxu0 0
        %7108 = vmatmul.mubr.bf16.gmra.mrb[0].mxu0 %v7028
        %v7109 = vpop.f32.mrb[0].mxu0
        %v7110 = vadd.f32 0.0, %v7109
        %v7111 = vpop.f32.mrb[0].mxu0
        %v7112 = vadd.f32 0.0, %v7111
        %v7113 = vpop.f32.mrb[0].mxu0
        %v7114 = vadd.f32 0.0, %v7113
        %v7115 = vpop.f32.mrb[0].mxu0
        %v7116 = vadd.f32 0.0, %v7115
        %7117 = vmatprep.mubr.bf16.mxu0 0
        %7118 = vmatmul.mubr.bf16.gmra.mrb[0].mxu0 %v7031
        %v7119 = vpop.f32.mrb[0].mxu0
        %v7120 = vadd.f32 0.0, %v7119
        %v7121 = vpop.f32.mrb[0].mxu0
        %v7122 = vadd.f32 0.0, %v7121
        %v7123 = vpop.f32.mrb[0].mxu0
        %v7124 = vadd.f32 0.0, %v7123
        %v7125 = vpop.f32.mrb[0].mxu0
        %v7126 = vadd.f32 0.0, %v7125
        %7127 = vmatprep.mubr.bf16.mxu0 0
        %7128 = vmatmul.mubr.bf16.gmra.mrb[0].mxu0 %v7034
        %v7129 = vpop.f32.mrb[0].mxu0
        %v7130 = vadd.f32 0.0, %v7129
        %v7131 = vpop.f32.mrb[0].mxu0
        %v7132 = vadd.f32 0.0, %v7131
        %v7133 = vpop.f32.mrb[0].mxu0
        %v7134 = vadd.f32 0.0, %v7133
        %v7135 = vpop.f32.mrb[0].mxu0
        %v7136 = vadd.f32 0.0, %v7135
        %7137 = vmatprep.mubr.bf16.mxu0 0
        %7138 = vmatmul.mubr.bf16.gmra.mrb[0].mxu0 %v7037
        %v7139 = vpop.f32.mrb[0].mxu0
        %v7140 = vadd.f32 0.0, %v7139
        %v7141 = vpop.f32.mrb[0].mxu0
        %v7142 = vadd.f32 0.0, %v7141
        %v7143 = vpop.f32.mrb[0].mxu0
        %v7144 = vadd.f32 0.0, %v7143
        %v7145 = vpop.f32.mrb[0].mxu0
        %v7146 = vadd.f32 0.0, %v7145
        %7147 = vmatprep.mubr.bf16.mxu0 0
        %7148 = vmatmul.mubr.bf16.gmra.mrb[0].mxu0 %v7040
        %v7149 = vpop.f32.mrb[0].mxu0
        %v7150 = vadd.f32 0.0, %v7149
        %v7151 = vpop.f32.mrb[0].mxu0
        %v7152 = vadd.f32 0.0, %v7151
        %v7153 = vpop.f32.mrb[0].mxu0
        %v7154 = vadd.f32 0.0, %v7153
        %v7155 = vpop.f32.mrb[0].mxu0
        %v7156 = vadd.f32 0.0, %v7155
        %7157 = vmatprep.mubr.bf16.mxu0 0
        %7158 = vmatmul.mubr.bf16.gmra.mrb[0].mxu0 %v7043
        %v7159 = vpop.f32.mrb[0].mxu0
        %v7160 = vadd.f32 0.0, %v7159
        %v7161 = vpop.f32.mrb[0].mxu0
        %v7162 = vadd.f32 0.0, %v7161
        %v7163 = vpop.f32.mrb[0].mxu0
        %v7164 = vadd.f32 0.0, %v7163
        %v7165 = vpop.f32.mrb[0].mxu0
        %v7166 = vadd.f32 0.0, %v7165
        %7167 = vmatprep.mubr.bf16.mxu0 0
        %7168 = vmatmul.mubr.bf16.gmra.mrb[0].mxu0 %v7046
        %v7169 = vpop.f32.mrb[0].mxu0
        %v7170 = vadd.f32 0.0, %v7169
        %v7171 = vpop.f32.mrb[0].mxu0
        %v7172 = vadd.f32 0.0, %v7171
        %v7173 = vpop.f32.mrb[0].mxu0
        %v7174 = vadd.f32 0.0, %v7173
        %v7175 = vpop.f32.mrb[0].mxu0
        %v7176 = vadd.f32 0.0, %v7175
        %7177 = vmatprep.mubr.bf16.mxu0 0
        %7178 = vmatmul.mubr.bf16.gmra.mrb[0].mxu0 %v7049
        %v7179 = vpop.f32.mrb[0].mxu0
        %v7180 = vadd.f32 0.0, %v7179
        %v7181 = vpop.f32.mrb[0].mxu0
        %v7182 = vadd.f32 0.0, %v7181
        %v7183 = vpop.f32.mrb[0].mxu0
        %v7184 = vadd.f32 0.0, %v7183
        %v7185 = vpop.f32.mrb[0].mxu0
        %v7186 = vadd.f32 0.0, %v7185
        %7187 = vmatprep.mubr.bf16.mxu0 0
        %7188 = vmatmul.mubr.bf16.gmra.mrb[0].mxu0 %v7052
        %v7189 = vpop.f32.mrb[0].mxu0
        %v7190 = vadd.f32 0.0, %v7189
        %v7191 = vpop.f32.mrb[0].mxu0
        %v7192 = vadd.f32 0.0, %v7191
        %v7193 = vpop.f32.mrb[0].mxu0
        %v7194 = vadd.f32 0.0, %v7193
        %v7195 = vpop.f32.mrb[0].mxu0
        %v7196 = vadd.f32 0.0, %v7195
        %7197 = vmatprep.mubr.bf16.mxu0 0
        %7198 = vmatmul.mubr.bf16.gmra.mrb[0].mxu0 %v7055
        %v7199 = vpop.f32.mrb[0].mxu0
        %v7200 = vadd.f32 0.0, %v7199
        %v7201 = vpop.f32.mrb[0].mxu0
        %v7202 = vadd.f32 0.0, %v7201
        %v7203 = vpop.f32.mrb[0].mxu0
        %v7204 = vadd.f32 0.0, %v7203
        %v7205 = vpop.f32.mrb[0].mxu0
        %v7206 = vadd.f32 0.0, %v7205
        %7207 = vmatprep.mubr.bf16.mxu0 0
        %7208 = vmatmul.mubr.bf16.gmra.mrb[0].mxu0 %v7058
        %v7209 = vpop.f32.mrb[0].mxu0
        %v7210 = vadd.f32 0.0, %v7209
        %v7211 = vpop.f32.mrb[0].mxu0
        %v7212 = vadd.f32 0.0, %v7211
        %v7213 = vpop.f32.mrb[0].mxu0
        %v7214 = vadd.f32 0.0, %v7213
        %v7215 = vpop.f32.mrb[0].mxu0
        %v7216 = vadd.f32 0.0, %v7215
        %7217 = vmatprep.mubr.bf16.mxu0 0
        %7218 = vmatmul.mubr.bf16.gmra.mrb[0].mxu0 %v7061
        %v7219 = vpop.f32.mrb[0].mxu0
        %v7220 = vadd.f32 0.0, %v7219
        %v7221 = vpop.f32.mrb[0].mxu0
        %v7222 = vadd.f32 0.0, %v7221
        %v7223 = vpop.f32.mrb[0].mxu0
        %v7224 = vadd.f32 0.0, %v7223
        %v7225 = vpop.f32.mrb[0].mxu0
        %v7226 = vadd.f32 0.0, %v7225
        %7227 = vmatprep.mubr.bf16.mxu0 0
        %7228 = vmatmul.mubr.bf16.gmra.mrb[0].mxu0 %v7064
        %v7229 = vpop.f32.mrb[0].mxu0
        %v7230 = vadd.f32 0.0, %v7229
        %v7231 = vpop.f32.mrb[0].mxu0
        %v7232 = vadd.f32 0.0, %v7231
        %v7233 = vpop.f32.mrb[0].mxu0
        %v7234 = vadd.f32 0.0, %v7233
        %v7235 = vpop.f32.mrb[0].mxu0
        %v7236 = vadd.f32 0.0, %v7235
        %7237 = vmatprep.mubr.bf16.mxu0 0
        %7238 = vmatmul.mubr.bf16.gmra.mrb[0].mxu0 %v7067
        %v7239 = vpop.f32.mrb[0].mxu0
        %v7240 = vadd.f32 0.0, %v7239
        %v7241 = vpop.f32.mrb[0].mxu0
        %v7242 = vadd.f32 0.0, %v7241
        %v7243 = vpop.f32.mrb[0].mxu0
        %v7244 = vadd.f32 0.0, %v7243
        %v7245 = vpop.f32.mrb[0].mxu0
        %v7246 = vadd.f32 0.0, %v7245
        %7247 = vmatprep.mubr.bf16.mxu0 0
        %7248 = vmatmul.mubr.bf16.gmra.mrb[0].mxu0 %v7070
        %v7249 = vpop.f32.mrb[0].mxu0
        %v7250 = vadd.f32 0.0, %v7249
        %v7251 = vpop.f32.mrb[0].mxu0
        %v7252 = vadd.f32 0.0, %v7251
        %v7253 = vpop.f32.mrb[0].mxu0
        %v7254 = vadd.f32 0.0, %v7253
        %v7255 = vpop.f32.mrb[0].mxu0
        %v7256 = vadd.f32 0.0, %v7255
        %7257 = vmatprep.mubr.bf16.mxu0 0
        %7258 = vmatmul.mubr.bf16.gmra.mrb[0].mxu0 %v7073
        %v7259 = vpop.f32.mrb[0].mxu0
        %v7260 = vadd.f32 0.0, %v7259
        %v7261 = vpop.f32.mrb[0].mxu0
        %v7262 = vadd.f32 0.0, %v7261
        %v7263 = vpop.f32.mrb[0].mxu0
        %v7264 = vadd.f32 0.0, %v7263
        %v7265 = vpop.f32.mrb[0].mxu0
        %v7266 = vadd.f32 0.0, %v7265
        %7267 = vdwg.mxu0
        %v7268 = vmax.f32 %v7110, %v7112
        %7269 = vmax.xlane.f32.xlu0 %v7268
        %v7270 = vpop.xlane.xlu0 %7269
        %v7271 = vmax.f32 %v7114, %v7116
        %7272 = vmax.xlane.f32.xlu0 %v7271
        %v7273 = vpop.xlane.xlu0 %7272
        %v7274 = vmax.f32 %v7120, %v7122
        %7275 = vmax.xlane.f32.xlu0 %v7274
        %v7276 = vpop.xlane.xlu0 %7275
        %v7277 = vmax.f32 %v7124, %v7126
        %7278 = vmax.xlane.f32.xlu0 %v7277
        %v7279 = vpop.xlane.xlu0 %7278
        %v7280 = vmax.f32 %v7130, %v7132
        %7281 = vmax.xlane.f32.xlu0 %v7280
        %v7282 = vpop.xlane.xlu0 %7281
        %v7283 = vmax.f32 %v7134, %v7136
        %7284 = vmax.xlane.f32.xlu0 %v7283
        %v7285 = vpop.xlane.xlu0 %7284
        %v7286 = vmax.f32 %v7140, %v7142
        %7287 = vmax.xlane.f32.xlu0 %v7286
        %v7288 = vpop.xlane.xlu0 %7287
        %v7289 = vmax.f32 %v7144, %v7146
        %7290 = vmax.xlane.f32.xlu0 %v7289
        %v7291 = vpop.xlane.xlu0 %7290
        %v7292 = vmax.f32 %v7150, %v7152
        %7293 = vmax.xlane.f32.xlu0 %v7292
        %v7294 = vpop.xlane.xlu0 %7293
        %v7295 = vmax.f32 %v7154, %v7156
        %7296 = vmax.xlane.f32.xlu0 %v7295
        %v7297 = vpop.xlane.xlu0 %7296
        %v7298 = vmax.f32 %v7160, %v7162
        %7299 = vmax.xlane.f32.xlu0 %v7298
        %v7300 = vpop.xlane.xlu0 %7299
        %v7301 = vmax.f32 %v7164, %v7166
        %7302 = vmax.xlane.f32.xlu0 %v7301
        %v7303 = vpop.xlane.xlu0 %7302
        %v7304 = vmax.f32 %v7170, %v7172
        %7305 = vmax.xlane.f32.xlu0 %v7304
        %v7306 = vpop.xlane.xlu0 %7305
        %v7307 = vmax.f32 %v7174, %v7176
        %7308 = vmax.xlane.f32.xlu0 %v7307
        %v7309 = vpop.xlane.xlu0 %7308
        %v7310 = vmax.f32 %v7180, %v7182
        %7311 = vmax.xlane.f32.xlu0 %v7310
        %v7312 = vpop.xlane.xlu0 %7311
        %v7313 = vmax.f32 %v7184, %v7186
        %7314 = vmax.xlane.f32.xlu0 %v7313
        %v7315 = vpop.xlane.xlu0 %7314
        %v7316 = vmax.f32 %v7190, %v7192
        %7317 = vmax.xlane.f32.xlu0 %v7316
        %v7318 = vpop.xlane.xlu0 %7317
        %v7319 = vmax.f32 %v7194, %v7196
        %7320 = vmax.xlane.f32.xlu0 %v7319
        %v7321 = vpop.xlane.xlu0 %7320
        %v7322 = vmax.f32 %v7200, %v7202
        %7323 = vmax.xlane.f32.xlu0 %v7322
        %v7324 = vpop.xlane.xlu0 %7323
        %v7325 = vmax.f32 %v7204, %v7206
        %7326 = vmax.xlane.f32.xlu0 %v7325
        %v7327 = vpop.xlane.xlu0 %7326
        %v7328 = vmax.f32 %v7210, %v7212
        %7329 = vmax.xlane.f32.xlu0 %v7328
        %v7330 = vpop.xlane.xlu0 %7329
        %v7331 = vmax.f32 %v7214, %v7216
        %7332 = vmax.xlane.f32.xlu0 %v7331
        %v7333 = vpop.xlane.xlu0 %7332
        %v7334 = vmax.f32 %v7220, %v7222
        %7335 = vmax.xlane.f32.xlu0 %v7334
        %v7336 = vpop.xlane.xlu0 %7335
        %v7337 = vmax.f32 %v7224, %v7226
        %7338 = vmax.xlane.f32.xlu0 %v7337
        %v7339 = vpop.xlane.xlu0 %7338
        %v7340 = vmax.f32 %v7230, %v7232
        %7341 = vmax.xlane.f32.xlu0 %v7340
        %v7342 = vpop.xlane.xlu0 %7341
        %v7343 = vmax.f32 %v7234, %v7236
        %7344 = vmax.xlane.f32.xlu0 %v7343
        %v7345 = vpop.xlane.xlu0 %7344
        %v7346 = vmax.f32 %v7240, %v7242
        %7347 = vmax.xlane.f32.xlu0 %v7346
        %v7348 = vpop.xlane.xlu0 %7347
        %v7349 = vmax.f32 %v7244, %v7246
        %7350 = vmax.xlane.f32.xlu0 %v7349
        %v7351 = vpop.xlane.xlu0 %7350
        %v7352 = vmax.f32 %v7250, %v7252
        %7353 = vmax.xlane.f32.xlu0 %v7352
        %v7354 = vpop.xlane.xlu0 %7353
        %v7355 = vmax.f32 %v7254, %v7256
        %7356 = vmax.xlane.f32.xlu0 %v7355
        %v7357 = vpop.xlane.xlu0 %7356
        %v7358 = vmax.f32 %v7260, %v7262
        %7359 = vmax.xlane.f32.xlu0 %v7358
        %v7360 = vpop.xlane.xlu0 %7359
        %v7361 = vmax.f32 %v7264, %v7266
        %7362 = vmax.xlane.f32.xlu0 %v7361
        %v7363 = vpop.xlane.xlu0 %7362
        %v7364 = vmax.f32 %v7270, %v1210
        %v7365 = vmax.f32 %v7273, %v1213
        %v7366 = vmax.f32 %v7276, %v1216
        %v7367 = vmax.f32 %v7279, %v1219
        %v7368 = vmax.f32 %v7282, %v1222
        %v7369 = vmax.f32 %v7285, %v1225
        %v7370 = vmax.f32 %v7288, %v1228
        %v7371 = vmax.f32 %v7291, %v1231
        %v7372 = vmax.f32 %v7294, %v1234
        %v7373 = vmax.f32 %v7297, %v1237
        %v7374 = vmax.f32 %v7300, %v1240
        %v7375 = vmax.f32 %v7303, %v1243
        %v7376 = vmax.f32 %v7306, %v1246
        %v7377 = vmax.f32 %v7309, %v1249
        %v7378 = vmax.f32 %v7312, %v1252
        %v7379 = vmax.f32 %v7315, %v1255
        %v7380 = vmax.f32 %v7318, %v1258
        %v7381 = vmax.f32 %v7321, %v1261
        %v7382 = vmax.f32 %v7324, %v1264
        %v7383 = vmax.f32 %v7327, %v1267
        %v7384 = vmax.f32 %v7330, %v1270
        %v7385 = vmax.f32 %v7333, %v1273
        %v7386 = vmax.f32 %v7336, %v1276
        %v7387 = vmax.f32 %v7339, %v1279
        %v7388 = vmax.f32 %v7342, %v1282
        %v7389 = vmax.f32 %v7345, %v1285
        %v7390 = vmax.f32 %v7348, %v1288
        %v7391 = vmax.f32 %v7351, %v1291
        %v7392 = vmax.f32 %v7354, %v1294
        %v7393 = vmax.f32 %v7357, %v1297
        %v7394 = vmax.f32 %v7360, %v1300
        %v7395 = vmax.f32 %v7363, %v1303
        %v7396 = vsub.f32 %v7110, %v7364
        %v7397 = vsub.f32 %v7112, %v7364
        %v7398 = vsub.f32 %v7114, %v7365
        %v7399 = vsub.f32 %v7116, %v7365
        %v7400 = vsub.f32 %v7120, %v7366
        %v7401 = vsub.f32 %v7122, %v7366
        %v7402 = vsub.f32 %v7124, %v7367
        %v7403 = vsub.f32 %v7126, %v7367
        %v7404 = vsub.f32 %v7130, %v7368
        %v7405 = vsub.f32 %v7132, %v7368
        %v7406 = vsub.f32 %v7134, %v7369
        %v7407 = vsub.f32 %v7136, %v7369
        %v7408 = vsub.f32 %v7140, %v7370
        %v7409 = vsub.f32 %v7142, %v7370
        %v7410 = vsub.f32 %v7144, %v7371
        %v7411 = vsub.f32 %v7146, %v7371
        %v7412 = vsub.f32 %v7150, %v7372
        %v7413 = vsub.f32 %v7152, %v7372
        %v7414 = vsub.f32 %v7154, %v7373
        %v7415 = vsub.f32 %v7156, %v7373
        %v7416 = vsub.f32 %v7160, %v7374
        %v7417 = vsub.f32 %v7162, %v7374
        %v7418 = vsub.f32 %v7164, %v7375
        %v7419 = vsub.f32 %v7166, %v7375
        %v7420 = vsub.f32 %v7170, %v7376
        %v7421 = vsub.f32 %v7172, %v7376
        %v7422 = vsub.f32 %v7174, %v7377
        %v7423 = vsub.f32 %v7176, %v7377
        %v7424 = vsub.f32 %v7180, %v7378
        %v7425 = vsub.f32 %v7182, %v7378
        %v7426 = vsub.f32 %v7184, %v7379
        %v7427 = vsub.f32 %v7186, %v7379
        %v7428 = vsub.f32 %v7190, %v7380
        %v7429 = vsub.f32 %v7192, %v7380
        %v7430 = vsub.f32 %v7194, %v7381
        %v7431 = vsub.f32 %v7196, %v7381
        %v7432 = vsub.f32 %v7200, %v7382
        %v7433 = vsub.f32 %v7202, %v7382
        %v7434 = vsub.f32 %v7204, %v7383
        %v7435 = vsub.f32 %v7206, %v7383
        %v7436 = vsub.f32 %v7210, %v7384
        %v7437 = vsub.f32 %v7212, %v7384
        %v7438 = vsub.f32 %v7214, %v7385
        %v7439 = vsub.f32 %v7216, %v7385
        %v7440 = vsub.f32 %v7220, %v7386
        %v7441 = vsub.f32 %v7222, %v7386
        %v7442 = vsub.f32 %v7224, %v7387
        %v7443 = vsub.f32 %v7226, %v7387
        %v7444 = vsub.f32 %v7230, %v7388
        %v7445 = vsub.f32 %v7232, %v7388
        %v7446 = vsub.f32 %v7234, %v7389
        %v7447 = vsub.f32 %v7236, %v7389
        %v7448 = vsub.f32 %v7240, %v7390
        %v7449 = vsub.f32 %v7242, %v7390
        %v7450 = vsub.f32 %v7244, %v7391
        %v7451 = vsub.f32 %v7246, %v7391
        %v7452 = vsub.f32 %v7250, %v7392
        %v7453 = vsub.f32 %v7252, %v7392
        %v7454 = vsub.f32 %v7254, %v7393
        %v7455 = vsub.f32 %v7256, %v7393
        %v7456 = vsub.f32 %v7260, %v7394
        %v7457 = vsub.f32 %v7262, %v7394
        %v7458 = vsub.f32 %v7264, %v7395
        %v7459 = vsub.f32 %v7266, %v7395
        %v7460 = vmul.f32 %v7396, 1.442695
        %v7461 = vpow.pop %v7460
        %v7462 = vmul.f32 %v7397, 1.442695
        %v7463 = vpow.pop %v7462
        %v7464 = vmul.f32 %v7398, 1.442695
        %v7465 = vpow.pop %v7464
        %v7466 = vmul.f32 %v7399, 1.442695
        %v7467 = vpow.pop %v7466
        %v7468 = vmul.f32 %v7400, 1.442695
        %v7469 = vpow.pop %v7468
        %v7470 = vmul.f32 %v7401, 1.442695
        %v7471 = vpow.pop %v7470
        %v7472 = vmul.f32 %v7402, 1.442695
        %v7473 = vpow.pop %v7472
        %v7474 = vmul.f32 %v7403, 1.442695
        %v7475 = vpow.pop %v7474
        %v7476 = vmul.f32 %v7404, 1.442695
        %v7477 = vpow.pop %v7476
        %v7478 = vmul.f32 %v7405, 1.442695
        %v7479 = vpow.pop %v7478
        %v7480 = vmul.f32 %v7406, 1.442695
        %v7481 = vpow.pop %v7480
        %v7482 = vmul.f32 %v7407, 1.442695
        %v7483 = vpow.pop %v7482
        %v7484 = vmul.f32 %v7408, 1.442695
        %v7485 = vpow.pop %v7484
        %v7486 = vmul.f32 %v7409, 1.442695
        %v7487 = vpow.pop %v7486
        %v7488 = vmul.f32 %v7410, 1.442695
        %v7489 = vpow.pop %v7488
        %v7490 = vmul.f32 %v7411, 1.442695
        %v7491 = vpow.pop %v7490
        %v7492 = vmul.f32 %v7412, 1.442695
        %v7493 = vpow.pop %v7492
        %v7494 = vmul.f32 %v7413, 1.442695
        %v7495 = vpow.pop %v7494
        %v7496 = vmul.f32 %v7414, 1.442695
        %v7497 = vpow.pop %v7496
        %v7498 = vmul.f32 %v7415, 1.442695
        %v7499 = vpow.pop %v7498
        %v7500 = vmul.f32 %v7416, 1.442695
        %v7501 = vpow.pop %v7500
        %v7502 = vmul.f32 %v7417, 1.442695
        %v7503 = vpow.pop %v7502
        %v7504 = vmul.f32 %v7418, 1.442695
        %v7505 = vpow.pop %v7504
        %v7506 = vmul.f32 %v7419, 1.442695
        %v7507 = vpow.pop %v7506
        %v7508 = vmul.f32 %v7420, 1.442695
        %v7509 = vpow.pop %v7508
        %v7510 = vmul.f32 %v7421, 1.442695
        %v7511 = vpow.pop %v7510
        %v7512 = vmul.f32 %v7422, 1.442695
        %v7513 = vpow.pop %v7512
        %v7514 = vmul.f32 %v7423, 1.442695
        %v7515 = vpow.pop %v7514
        %v7516 = vmul.f32 %v7424, 1.442695
        %v7517 = vpow.pop %v7516
        %v7518 = vmul.f32 %v7425, 1.442695
        %v7519 = vpow.pop %v7518
        %v7520 = vmul.f32 %v7426, 1.442695
        %v7521 = vpow.pop %v7520
        %v7522 = vmul.f32 %v7427, 1.442695
        %v7523 = vpow.pop %v7522
        %v7524 = vmul.f32 %v7428, 1.442695
        %v7525 = vpow.pop %v7524
        %v7526 = vmul.f32 %v7429, 1.442695
        %v7527 = vpow.pop %v7526
        %v7528 = vmul.f32 %v7430, 1.442695
        %v7529 = vpow.pop %v7528
        %v7530 = vmul.f32 %v7431, 1.442695
        %v7531 = vpow.pop %v7530
        %v7532 = vmul.f32 %v7432, 1.442695
        %v7533 = vpow.pop %v7532
        %v7534 = vmul.f32 %v7433, 1.442695
        %v7535 = vpow.pop %v7534
        %v7536 = vmul.f32 %v7434, 1.442695
        %v7537 = vpow.pop %v7536
        %v7538 = vmul.f32 %v7435, 1.442695
        %v7539 = vpow.pop %v7538
        %v7540 = vmul.f32 %v7436, 1.442695
        %v7541 = vpow.pop %v7540
        %v7542 = vmul.f32 %v7437, 1.442695
        %v7543 = vpow.pop %v7542
        %v7544 = vmul.f32 %v7438, 1.442695
        %v7545 = vpow.pop %v7544
        %v7546 = vmul.f32 %v7439, 1.442695
        %v7547 = vpow.pop %v7546
        %v7548 = vmul.f32 %v7440, 1.442695
        %v7549 = vpow.pop %v7548
        %v7550 = vmul.f32 %v7441, 1.442695
        %v7551 = vpow.pop %v7550
        %v7552 = vmul.f32 %v7442, 1.442695
        %v7553 = vpow.pop %v7552
        %v7554 = vmul.f32 %v7443, 1.442695
        %v7555 = vpow.pop %v7554
        %v7556 = vmul.f32 %v7444, 1.442695
        %v7557 = vpow.pop %v7556
        %v7558 = vmul.f32 %v7445, 1.442695
        %v7559 = vpow.pop %v7558
        %v7560 = vmul.f32 %v7446, 1.442695
        %v7561 = vpow.pop %v7560
        %v7562 = vmul.f32 %v7447, 1.442695
        %v7563 = vpow.pop %v7562
        %v7564 = vmul.f32 %v7448, 1.442695
        %v7565 = vpow.pop %v7564
        %v7566 = vmul.f32 %v7449, 1.442695
        %v7567 = vpow.pop %v7566
        %v7568 = vmul.f32 %v7450, 1.442695
        %v7569 = vpow.pop %v7568
        %v7570 = vmul.f32 %v7451, 1.442695
        %v7571 = vpow.pop %v7570
        %v7572 = vmul.f32 %v7452, 1.442695
        %v7573 = vpow.pop %v7572
        %v7574 = vmul.f32 %v7453, 1.442695
        %v7575 = vpow.pop %v7574
        %v7576 = vmul.f32 %v7454, 1.442695
        %v7577 = vpow.pop %v7576
        %v7578 = vmul.f32 %v7455, 1.442695
        %v7579 = vpow.pop %v7578
        %v7580 = vmul.f32 %v7456, 1.442695
        %v7581 = vpow.pop %v7580
        %v7582 = vmul.f32 %v7457, 1.442695
        %v7583 = vpow.pop %v7582
        %v7584 = vmul.f32 %v7458, 1.442695
        %v7585 = vpow.pop %v7584
        %v7586 = vmul.f32 %v7459, 1.442695
        %v7587 = vpow.pop %v7586
        %v7588 = vsub.f32 %v1081, %v7364
        %v7589 = vsub.f32 %v1084, %v7365
        %v7590 = vsub.f32 %v1089, %v7366
        %v7591 = vsub.f32 %v1092, %v7367
        %v7592 = vsub.f32 %v1097, %v7368
        %v7593 = vsub.f32 %v1100, %v7369
        %v7594 = vsub.f32 %v1105, %v7370
        %v7595 = vsub.f32 %v1108, %v7371
        %v7596 = vsub.f32 %v1113, %v7372
        %v7597 = vsub.f32 %v1116, %v7373
        %v7598 = vsub.f32 %v1121, %v7374
        %v7599 = vsub.f32 %v1124, %v7375
        %v7600 = vsub.f32 %v1129, %v7376
        %v7601 = vsub.f32 %v1132, %v7377
        %v7602 = vsub.f32 %v1137, %v7378
        %v7603 = vsub.f32 %v1140, %v7379
        %v7604 = vsub.f32 %v1145, %v7380
        %v7605 = vsub.f32 %v1148, %v7381
        %v7606 = vsub.f32 %v1153, %v7382
        %v7607 = vsub.f32 %v1156, %v7383
        %v7608 = vsub.f32 %v1161, %v7384
        %v7609 = vsub.f32 %v1164, %v7385
        %v7610 = vsub.f32 %v1169, %v7386
        %v7611 = vsub.f32 %v1172, %v7387
        %v7612 = vsub.f32 %v1177, %v7388
        %v7613 = vsub.f32 %v1180, %v7389
        %v7614 = vsub.f32 %v1185, %v7390
        %v7615 = vsub.f32 %v1188, %v7391
        %v7616 = vsub.f32 %v1193, %v7392
        %v7617 = vsub.f32 %v1196, %v7393
        %v7618 = vsub.f32 %v1201, %v7394
        %v7619 = vsub.f32 %v1204, %v7395
        %v7620 = vmul.f32 %v7588, 1.442695
        %v7621 = vpow.pop %v7620
        %v7622 = vmul.f32 %v7589, 1.442695
        %v7623 = vpow.pop %v7622
        %v7624 = vmul.f32 %v7590, 1.442695
        %v7625 = vpow.pop %v7624
        %v7626 = vmul.f32 %v7591, 1.442695
        %v7627 = vpow.pop %v7626
        %v7628 = vmul.f32 %v7592, 1.442695
        %v7629 = vpow.pop %v7628
        %v7630 = vmul.f32 %v7593, 1.442695
        %v7631 = vpow.pop %v7630
        %v7632 = vmul.f32 %v7594, 1.442695
        %v7633 = vpow.pop %v7632
        %v7634 = vmul.f32 %v7595, 1.442695
        %v7635 = vpow.pop %v7634
        %v7636 = vmul.f32 %v7596, 1.442695
        %v7637 = vpow.pop %v7636
        %v7638 = vmul.f32 %v7597, 1.442695
        %v7639 = vpow.pop %v7638
        %v7640 = vmul.f32 %v7598, 1.442695
        %v7641 = vpow.pop %v7640
        %v7642 = vmul.f32 %v7599, 1.442695
        %v7643 = vpow.pop %v7642
        %v7644 = vmul.f32 %v7600, 1.442695
        %v7645 = vpow.pop %v7644
        %v7646 = vmul.f32 %v7601, 1.442695
        %v7647 = vpow.pop %v7646
        %v7648 = vmul.f32 %v7602, 1.442695
        %v7649 = vpow.pop %v7648
        %v7650 = vmul.f32 %v7603, 1.442695
        %v7651 = vpow.pop %v7650
        %v7652 = vmul.f32 %v7604, 1.442695
        %v7653 = vpow.pop %v7652
        %v7654 = vmul.f32 %v7605, 1.442695
        %v7655 = vpow.pop %v7654
        %v7656 = vmul.f32 %v7606, 1.442695
        %v7657 = vpow.pop %v7656
        %v7658 = vmul.f32 %v7607, 1.442695
        %v7659 = vpow.pop %v7658
        %v7660 = vmul.f32 %v7608, 1.442695
        %v7661 = vpow.pop %v7660
        %v7662 = vmul.f32 %v7609, 1.442695
        %v7663 = vpow.pop %v7662
        %v7664 = vmul.f32 %v7610, 1.442695
        %v7665 = vpow.pop %v7664
        %v7666 = vmul.f32 %v7611, 1.442695
        %v7667 = vpow.pop %v7666
        %v7668 = vmul.f32 %v7612, 1.442695
        %v7669 = vpow.pop %v7668
        %v7670 = vmul.f32 %v7613, 1.442695
        %v7671 = vpow.pop %v7670
        %v7672 = vmul.f32 %v7614, 1.442695
        %v7673 = vpow.pop %v7672
        %v7674 = vmul.f32 %v7615, 1.442695
        %v7675 = vpow.pop %v7674
        %v7676 = vmul.f32 %v7616, 1.442695
        %v7677 = vpow.pop %v7676
        %v7678 = vmul.f32 %v7617, 1.442695
        %v7679 = vpow.pop %v7678
        %v7680 = vmul.f32 %v7618, 1.442695
        %v7681 = vpow.pop %v7680
        %v7682 = vmul.f32 %v7619, 1.442695
        %v7683 = vpow.pop %v7682
        %v7684 = vadd.f32 %v7461, %v7463
        %7685 = vadd.xlane.f32.xlu0 %v7684
        %v7686 = vpop.xlane.xlu0 %7685
        %v7687 = vadd.f32 %v7465, %v7467
        %7688 = vadd.xlane.f32.xlu0 %v7687
        %v7689 = vpop.xlane.xlu0 %7688
        %v7690 = vadd.f32 %v7469, %v7471
        %7691 = vadd.xlane.f32.xlu0 %v7690
        %v7692 = vpop.xlane.xlu0 %7691
        %v7693 = vadd.f32 %v7473, %v7475
        %7694 = vadd.xlane.f32.xlu0 %v7693
        %v7695 = vpop.xlane.xlu0 %7694
        %v7696 = vadd.f32 %v7477, %v7479
        %7697 = vadd.xlane.f32.xlu0 %v7696
        %v7698 = vpop.xlane.xlu0 %7697
        %v7699 = vadd.f32 %v7481, %v7483
        %7700 = vadd.xlane.f32.xlu0 %v7699
        %v7701 = vpop.xlane.xlu0 %7700
        %v7702 = vadd.f32 %v7485, %v7487
        %7703 = vadd.xlane.f32.xlu0 %v7702
        %v7704 = vpop.xlane.xlu0 %7703
        %v7705 = vadd.f32 %v7489, %v7491
        %7706 = vadd.xlane.f32.xlu0 %v7705
        %v7707 = vpop.xlane.xlu0 %7706
        %v7708 = vadd.f32 %v7493, %v7495
        %7709 = vadd.xlane.f32.xlu0 %v7708
        %v7710 = vpop.xlane.xlu0 %7709
        %v7711 = vadd.f32 %v7497, %v7499
        %7712 = vadd.xlane.f32.xlu0 %v7711
        %v7713 = vpop.xlane.xlu0 %7712
        %v7714 = vadd.f32 %v7501, %v7503
        %7715 = vadd.xlane.f32.xlu0 %v7714
        %v7716 = vpop.xlane.xlu0 %7715
        %v7717 = vadd.f32 %v7505, %v7507
        %7718 = vadd.xlane.f32.xlu0 %v7717
        %v7719 = vpop.xlane.xlu0 %7718
        %v7720 = vadd.f32 %v7509, %v7511
        %7721 = vadd.xlane.f32.xlu0 %v7720
        %v7722 = vpop.xlane.xlu0 %7721
        %v7723 = vadd.f32 %v7513, %v7515
        %7724 = vadd.xlane.f32.xlu0 %v7723
        %v7725 = vpop.xlane.xlu0 %7724
        %v7726 = vadd.f32 %v7517, %v7519
        %7727 = vadd.xlane.f32.xlu0 %v7726
        %v7728 = vpop.xlane.xlu0 %7727
        %v7729 = vadd.f32 %v7521, %v7523
        %7730 = vadd.xlane.f32.xlu0 %v7729
        %v7731 = vpop.xlane.xlu0 %7730
        %v7732 = vadd.f32 %v7525, %v7527
        %7733 = vadd.xlane.f32.xlu0 %v7732
        %v7734 = vpop.xlane.xlu0 %7733
        %v7735 = vadd.f32 %v7529, %v7531
        %7736 = vadd.xlane.f32.xlu0 %v7735
        %v7737 = vpop.xlane.xlu0 %7736
        %v7738 = vadd.f32 %v7533, %v7535
        %7739 = vadd.xlane.f32.xlu0 %v7738
        %v7740 = vpop.xlane.xlu0 %7739
        %v7741 = vadd.f32 %v7537, %v7539
        %7742 = vadd.xlane.f32.xlu0 %v7741
        %v7743 = vpop.xlane.xlu0 %7742
        %v7744 = vadd.f32 %v7541, %v7543
        %7745 = vadd.xlane.f32.xlu0 %v7744
        %v7746 = vpop.xlane.xlu0 %7745
        %v7747 = vadd.f32 %v7545, %v7547
        %7748 = vadd.xlane.f32.xlu0 %v7747
        %v7749 = vpop.xlane.xlu0 %7748
        %v7750 = vadd.f32 %v7549, %v7551
        %7751 = vadd.xlane.f32.xlu0 %v7750
        %v7752 = vpop.xlane.xlu0 %7751
        %v7753 = vadd.f32 %v7553, %v7555
        %7754 = vadd.xlane.f32.xlu0 %v7753
        %v7755 = vpop.xlane.xlu0 %7754
        %v7756 = vadd.f32 %v7557, %v7559
        %7757 = vadd.xlane.f32.xlu0 %v7756
        %v7758 = vpop.xlane.xlu0 %7757
        %v7759 = vadd.f32 %v7561, %v7563
        %7760 = vadd.xlane.f32.xlu0 %v7759
        %v7761 = vpop.xlane.xlu0 %7760
        %v7762 = vadd.f32 %v7565, %v7567
        %7763 = vadd.xlane.f32.xlu0 %v7762
        %v7764 = vpop.xlane.xlu0 %7763
        %v7765 = vadd.f32 %v7569, %v7571
        %7766 = vadd.xlane.f32.xlu0 %v7765
        %v7767 = vpop.xlane.xlu0 %7766
        %v7768 = vadd.f32 %v7573, %v7575
        %7769 = vadd.xlane.f32.xlu0 %v7768
        %v7770 = vpop.xlane.xlu0 %7769
        %v7771 = vadd.f32 %v7577, %v7579
        %7772 = vadd.xlane.f32.xlu0 %v7771
        %v7773 = vpop.xlane.xlu0 %7772
        %v7774 = vadd.f32 %v7581, %v7583
        %7775 = vadd.xlane.f32.xlu0 %v7774
        %v7776 = vpop.xlane.xlu0 %7775
        %v7777 = vadd.f32 %v7585, %v7587
        %7778 = vadd.xlane.f32.xlu0 %v7777
        %v7779 = vpop.xlane.xlu0 %7778
        %7812 = vrot.lane.b32.xlu0 %v7621, 116
        %v7813 = vpop.permute.xlu0 %7812
        %7814 = vrot.lane.b32.xlu0 %v7623, 116
        %v7815 = vpop.permute.xlu0 %7814
        %7816 = vrot.lane.b32.xlu0 %v7625, 116
        %v7817 = vpop.permute.xlu0 %7816
        %7818 = vrot.lane.b32.xlu0 %v7627, 116
        %v7819 = vpop.permute.xlu0 %7818
        %7820 = vrot.lane.b32.xlu0 %v7629, 116
        %v7821 = vpop.permute.xlu0 %7820
        %7822 = vrot.lane.b32.xlu0 %v7631, 116
        %v7823 = vpop.permute.xlu0 %7822
        %7824 = vrot.lane.b32.xlu0 %v7633, 116
        %v7825 = vpop.permute.xlu0 %7824
        %7826 = vrot.lane.b32.xlu0 %v7635, 116
        %v7827 = vpop.permute.xlu0 %7826
        %7828 = vrot.lane.b32.xlu0 %v7637, 116
        %v7829 = vpop.permute.xlu0 %7828
        %7830 = vrot.lane.b32.xlu0 %v7639, 116
        %v7831 = vpop.permute.xlu0 %7830
        %7832 = vrot.lane.b32.xlu0 %v7641, 116
        %v7833 = vpop.permute.xlu0 %7832
        %7834 = vrot.lane.b32.xlu0 %v7643, 116
        %v7835 = vpop.permute.xlu0 %7834
        %7836 = vrot.lane.b32.xlu0 %v7645, 116
        %v7837 = vpop.permute.xlu0 %7836
        %7838 = vrot.lane.b32.xlu0 %v7647, 116
        %v7839 = vpop.permute.xlu0 %7838
        %7840 = vrot.lane.b32.xlu0 %v7649, 116
        %v7841 = vpop.permute.xlu0 %7840
        %7842 = vrot.lane.b32.xlu0 %v7651, 116
        %v7843 = vpop.permute.xlu0 %7842
        %7844 = vrot.lane.b32.xlu0 %v7653, 116
        %v7845 = vpop.permute.xlu0 %7844
        %7846 = vrot.lane.b32.xlu0 %v7655, 116
        %v7847 = vpop.permute.xlu0 %7846
        %7848 = vrot.lane.b32.xlu0 %v7657, 116
        %v7849 = vpop.permute.xlu0 %7848
        %7850 = vrot.lane.b32.xlu0 %v7659, 116
        %v7851 = vpop.permute.xlu0 %7850
        %7852 = vrot.lane.b32.xlu0 %v7661, 116
        %v7853 = vpop.permute.xlu0 %7852
        %7854 = vrot.lane.b32.xlu0 %v7663, 116
        %v7855 = vpop.permute.xlu0 %7854
        %7856 = vrot.lane.b32.xlu0 %v7665, 116
        %v7857 = vpop.permute.xlu0 %7856
        %7858 = vrot.lane.b32.xlu0 %v7667, 116
        %v7859 = vpop.permute.xlu0 %7858
        %7860 = vrot.lane.b32.xlu0 %v7669, 116
        %v7861 = vpop.permute.xlu0 %7860
        %7862 = vrot.lane.b32.xlu0 %v7671, 116
        %v7863 = vpop.permute.xlu0 %7862
        %7864 = vrot.lane.b32.xlu0 %v7673, 116
        %v7865 = vpop.permute.xlu0 %7864
        %7866 = vrot.lane.b32.xlu0 %v7675, 116
        %v7867 = vpop.permute.xlu0 %7866
        %7868 = vrot.lane.b32.xlu0 %v7677, 116
        %v7869 = vpop.permute.xlu0 %7868
        %7870 = vrot.lane.b32.xlu0 %v7679, 116
        %v7871 = vpop.permute.xlu0 %7870
        %7872 = vrot.lane.b32.xlu0 %v7681, 116
        %v7873 = vpop.permute.xlu0 %7872
        %7874 = vrot.lane.b32.xlu0 %v7683, 116
        %v7875 = vpop.permute.xlu0 %7874
        %v7908 = vsel %vm453, %v7813, 0.0
        %7909 = vadd.xlane.f32.xlu0 %v7908
        %v7910 = vpop.xlane.xlu0 %7909
        %v7911 = vsel %vm453, %v7815, 0.0
        %7912 = vadd.xlane.f32.xlu0 %v7911
        %v7913 = vpop.xlane.xlu0 %7912
        %v7914 = vsel %vm453, %v7817, 0.0
        %7915 = vadd.xlane.f32.xlu0 %v7914
        %v7916 = vpop.xlane.xlu0 %7915
        %v7917 = vsel %vm453, %v7819, 0.0
        %7918 = vadd.xlane.f32.xlu0 %v7917
        %v7919 = vpop.xlane.xlu0 %7918
        %v7920 = vsel %vm453, %v7821, 0.0
        %7921 = vadd.xlane.f32.xlu0 %v7920
        %v7922 = vpop.xlane.xlu0 %7921
        %v7923 = vsel %vm453, %v7823, 0.0
        %7924 = vadd.xlane.f32.xlu0 %v7923
        %v7925 = vpop.xlane.xlu0 %7924
        %v7926 = vsel %vm453, %v7825, 0.0
        %7927 = vadd.xlane.f32.xlu0 %v7926
        %v7928 = vpop.xlane.xlu0 %7927
        %v7929 = vsel %vm453, %v7827, 0.0
        %7930 = vadd.xlane.f32.xlu0 %v7929
        %v7931 = vpop.xlane.xlu0 %7930
        %v7932 = vsel %vm453, %v7829, 0.0
        %7933 = vadd.xlane.f32.xlu0 %v7932
        %v7934 = vpop.xlane.xlu0 %7933
        %v7935 = vsel %vm453, %v7831, 0.0
        %7936 = vadd.xlane.f32.xlu0 %v7935
        %v7937 = vpop.xlane.xlu0 %7936
        %v7938 = vsel %vm453, %v7833, 0.0
        %7939 = vadd.xlane.f32.xlu0 %v7938
        %v7940 = vpop.xlane.xlu0 %7939
        %v7941 = vsel %vm453, %v7835, 0.0
        %7942 = vadd.xlane.f32.xlu0 %v7941
        %v7943 = vpop.xlane.xlu0 %7942
        %v7944 = vsel %vm453, %v7837, 0.0
        %7945 = vadd.xlane.f32.xlu0 %v7944
        %v7946 = vpop.xlane.xlu0 %7945
        %v7947 = vsel %vm453, %v7839, 0.0
        %7948 = vadd.xlane.f32.xlu0 %v7947
        %v7949 = vpop.xlane.xlu0 %7948
        %v7950 = vsel %vm453, %v7841, 0.0
        %7951 = vadd.xlane.f32.xlu0 %v7950
        %v7952 = vpop.xlane.xlu0 %7951
        %v7953 = vsel %vm453, %v7843, 0.0
        %7954 = vadd.xlane.f32.xlu0 %v7953
        %v7955 = vpop.xlane.xlu0 %7954
        %v7956 = vsel %vm453, %v7845, 0.0
        %7957 = vadd.xlane.f32.xlu0 %v7956
        %v7958 = vpop.xlane.xlu0 %7957
        %v7959 = vsel %vm453, %v7847, 0.0
        %7960 = vadd.xlane.f32.xlu0 %v7959
        %v7961 = vpop.xlane.xlu0 %7960
        %v7962 = vsel %vm453, %v7849, 0.0
        %7963 = vadd.xlane.f32.xlu0 %v7962
        %v7964 = vpop.xlane.xlu0 %7963
        %v7965 = vsel %vm453, %v7851, 0.0
        %7966 = vadd.xlane.f32.xlu0 %v7965
        %v7967 = vpop.xlane.xlu0 %7966
        %v7968 = vsel %vm453, %v7853, 0.0
        %7969 = vadd.xlane.f32.xlu0 %v7968
        %v7970 = vpop.xlane.xlu0 %7969
        %v7971 = vsel %vm453, %v7855, 0.0
        %7972 = vadd.xlane.f32.xlu0 %v7971
        %v7973 = vpop.xlane.xlu0 %7972
        %v7974 = vsel %vm453, %v7857, 0.0
        %7975 = vadd.xlane.f32.xlu0 %v7974
        %v7976 = vpop.xlane.xlu0 %7975
        %v7977 = vsel %vm453, %v7859, 0.0
        %7978 = vadd.xlane.f32.xlu0 %v7977
        %v7979 = vpop.xlane.xlu0 %7978
        %v7980 = vsel %vm453, %v7861, 0.0
        %7981 = vadd.xlane.f32.xlu0 %v7980
        %v7982 = vpop.xlane.xlu0 %7981
        %v7983 = vsel %vm453, %v7863, 0.0
        %7984 = vadd.xlane.f32.xlu0 %v7983
        %v7985 = vpop.xlane.xlu0 %7984
        %v7986 = vsel %vm453, %v7865, 0.0
        %7987 = vadd.xlane.f32.xlu0 %v7986
        %v7988 = vpop.xlane.xlu0 %7987
        %v7989 = vsel %vm453, %v7867, 0.0
        %7990 = vadd.xlane.f32.xlu0 %v7989
        %v7991 = vpop.xlane.xlu0 %7990
        %v7992 = vsel %vm453, %v7869, 0.0
        %7993 = vadd.xlane.f32.xlu0 %v7992
        %v7994 = vpop.xlane.xlu0 %7993
        %v7995 = vsel %vm453, %v7871, 0.0
        %7996 = vadd.xlane.f32.xlu0 %v7995
        %v7997 = vpop.xlane.xlu0 %7996
        %v7998 = vsel %vm453, %v7873, 0.0
        %7999 = vadd.xlane.f32.xlu0 %v7998
        %v8000 = vpop.xlane.xlu0 %7999
        %v8001 = vsel %vm453, %v7875, 0.0
        %8002 = vadd.xlane.f32.xlu0 %v8001
        %v8003 = vpop.xlane.xlu0 %8002
        %v8004 = vadd.f32 %v7686, %v7910
        %v8005 = vadd.f32 %v7689, %v7913
        %v8006 = vadd.f32 %v7692, %v7916
        %v8007 = vadd.f32 %v7695, %v7919
        %v8008 = vadd.f32 %v7698, %v7922
        %v8009 = vadd.f32 %v7701, %v7925
        %v8010 = vadd.f32 %v7704, %v7928
        %v8011 = vadd.f32 %v7707, %v7931
        %v8012 = vadd.f32 %v7710, %v7934
        %v8013 = vadd.f32 %v7713, %v7937
        %v8014 = vadd.f32 %v7716, %v7940
        %v8015 = vadd.f32 %v7719, %v7943
        %v8016 = vadd.f32 %v7722, %v7946
        %v8017 = vadd.f32 %v7725, %v7949
        %v8018 = vadd.f32 %v7728, %v7952
        %v8019 = vadd.f32 %v7731, %v7955
        %v8020 = vadd.f32 %v7734, %v7958
        %v8021 = vadd.f32 %v7737, %v7961
        %v8022 = vadd.f32 %v7740, %v7964
        %v8023 = vadd.f32 %v7743, %v7967
        %v8024 = vadd.f32 %v7746, %v7970
        %v8025 = vadd.f32 %v7749, %v7973
        %v8026 = vadd.f32 %v7752, %v7976
        %v8027 = vadd.f32 %v7755, %v7979
        %v8028 = vadd.f32 %v7758, %v7982
        %v8029 = vadd.f32 %v7761, %v7985
        %v8030 = vadd.f32 %v7764, %v7988
        %v8031 = vadd.f32 %v7767, %v7991
        %v8032 = vadd.f32 %v7770, %v7994
        %v8033 = vadd.f32 %v7773, %v7997
        %v8034 = vadd.f32 %v7776, %v8000
        %v8035 = vadd.f32 %v7779, %v8003
        %v8036 = vrcp.pop %v8004
        %v8037 = vrcp.pop %v8005
        %v8038 = vrcp.pop %v8006
        %v8039 = vrcp.pop %v8007
        %v8040 = vrcp.pop %v8008
        %v8041 = vrcp.pop %v8009
        %v8042 = vrcp.pop %v8010
        %v8043 = vrcp.pop %v8011
        %v8044 = vrcp.pop %v8012
        %v8045 = vrcp.pop %v8013
        %v8046 = vrcp.pop %v8014
        %v8047 = vrcp.pop %v8015
        %v8048 = vrcp.pop %v8016
        %v8049 = vrcp.pop %v8017
        %v8050 = vrcp.pop %v8018
        %v8051 = vrcp.pop %v8019
        %v8052 = vrcp.pop %v8020
        %v8053 = vrcp.pop %v8021
        %v8054 = vrcp.pop %v8022
        %v8055 = vrcp.pop %v8023
        %v8056 = vrcp.pop %v8024
        %v8057 = vrcp.pop %v8025
        %v8058 = vrcp.pop %v8026
        %v8059 = vrcp.pop %v8027
        %v8060 = vrcp.pop %v8028
        %v8061 = vrcp.pop %v8029
        %v8062 = vrcp.pop %v8030
        %v8063 = vrcp.pop %v8031
        %v8064 = vrcp.pop %v8032
        %v8065 = vrcp.pop %v8033
        %v8066 = vrcp.pop %v8034
        %v8067 = vrcp.pop %v8035
        %v8068 = vmul.f32 %v7461, %v8036
        %v8069 = vmul.f32 %v7463, %v8036
        %v8070 = vmul.f32 %v7465, %v8037
        %v8071 = vmul.f32 %v7467, %v8037
        %v8072 = vmul.f32 %v7469, %v8038
        %v8073 = vmul.f32 %v7471, %v8038
        %v8074 = vmul.f32 %v7473, %v8039
        %v8075 = vmul.f32 %v7475, %v8039
        %v8076 = vmul.f32 %v7477, %v8040
        %v8077 = vmul.f32 %v7479, %v8040
        %v8078 = vmul.f32 %v7481, %v8041
        %v8079 = vmul.f32 %v7483, %v8041
        %v8080 = vmul.f32 %v7485, %v8042
        %v8081 = vmul.f32 %v7487, %v8042
        %v8082 = vmul.f32 %v7489, %v8043
        %v8083 = vmul.f32 %v7491, %v8043
        %v8084 = vmul.f32 %v7493, %v8044
        %v8085 = vmul.f32 %v7495, %v8044
        %v8086 = vmul.f32 %v7497, %v8045
        %v8087 = vmul.f32 %v7499, %v8045
        %v8088 = vmul.f32 %v7501, %v8046
        %v8089 = vmul.f32 %v7503, %v8046
        %v8090 = vmul.f32 %v7505, %v8047
        %v8091 = vmul.f32 %v7507, %v8047
        %v8092 = vmul.f32 %v7509, %v8048
        %v8093 = vmul.f32 %v7511, %v8048
        %v8094 = vmul.f32 %v7513, %v8049
        %v8095 = vmul.f32 %v7515, %v8049
        %v8096 = vmul.f32 %v7517, %v8050
        %v8097 = vmul.f32 %v7519, %v8050
        %v8098 = vmul.f32 %v7521, %v8051
        %v8099 = vmul.f32 %v7523, %v8051
        %v8100 = vmul.f32 %v7525, %v8052
        %v8101 = vmul.f32 %v7527, %v8052
        %v8102 = vmul.f32 %v7529, %v8053
        %v8103 = vmul.f32 %v7531, %v8053
        %v8104 = vmul.f32 %v7533, %v8054
        %v8105 = vmul.f32 %v7535, %v8054
        %v8106 = vmul.f32 %v7537, %v8055
        %v8107 = vmul.f32 %v7539, %v8055
        %v8108 = vmul.f32 %v7541, %v8056
        %v8109 = vmul.f32 %v7543, %v8056
        %v8110 = vmul.f32 %v7545, %v8057
        %v8111 = vmul.f32 %v7547, %v8057
        %v8112 = vmul.f32 %v7549, %v8058
        %v8113 = vmul.f32 %v7551, %v8058
        %v8114 = vmul.f32 %v7553, %v8059
        %v8115 = vmul.f32 %v7555, %v8059
        %v8116 = vmul.f32 %v7557, %v8060
        %v8117 = vmul.f32 %v7559, %v8060
        %v8118 = vmul.f32 %v7561, %v8061
        %v8119 = vmul.f32 %v7563, %v8061
        %v8120 = vmul.f32 %v7565, %v8062
        %v8121 = vmul.f32 %v7567, %v8062
        %v8122 = vmul.f32 %v7569, %v8063
        %v8123 = vmul.f32 %v7571, %v8063
        %v8124 = vmul.f32 %v7573, %v8064
        %v8125 = vmul.f32 %v7575, %v8064
        %v8126 = vmul.f32 %v7577, %v8065
        %v8127 = vmul.f32 %v7579, %v8065
        %v8128 = vmul.f32 %v7581, %v8066
        %v8129 = vmul.f32 %v7583, %v8066
        %v8130 = vmul.f32 %v7585, %v8067
        %v8131 = vmul.f32 %v7587, %v8067
        %v8132 = vpack.c.bf16 %v8070, %v8068
        %v8133 = vpack.c.bf16 %v8071, %v8069
        %v8134 = vpack.c.bf16 %v8074, %v8072
        %v8135 = vpack.c.bf16 %v8075, %v8073
        %v8136 = vpack.c.bf16 %v8078, %v8076
        %v8137 = vpack.c.bf16 %v8079, %v8077
        %v8138 = vpack.c.bf16 %v8082, %v8080
        %v8139 = vpack.c.bf16 %v8083, %v8081
        %v8140 = vpack.c.bf16 %v8086, %v8084
        %v8141 = vpack.c.bf16 %v8087, %v8085
        %v8142 = vpack.c.bf16 %v8090, %v8088
        %v8143 = vpack.c.bf16 %v8091, %v8089
        %v8144 = vpack.c.bf16 %v8094, %v8092
        %v8145 = vpack.c.bf16 %v8095, %v8093
        %v8146 = vpack.c.bf16 %v8098, %v8096
        %v8147 = vpack.c.bf16 %v8099, %v8097
        %v8148 = vpack.c.bf16 %v8102, %v8100
        %v8149 = vpack.c.bf16 %v8103, %v8101
        %v8150 = vpack.c.bf16 %v8106, %v8104
        %v8151 = vpack.c.bf16 %v8107, %v8105
        %v8152 = vpack.c.bf16 %v8110, %v8108
        %v8153 = vpack.c.bf16 %v8111, %v8109
        %v8154 = vpack.c.bf16 %v8114, %v8112
        %v8155 = vpack.c.bf16 %v8115, %v8113
        %v8156 = vpack.c.bf16 %v8118, %v8116
        %v8157 = vpack.c.bf16 %v8119, %v8117
        %v8158 = vpack.c.bf16 %v8122, %v8120
        %v8159 = vpack.c.bf16 %v8123, %v8121
        %v8160 = vpack.c.bf16 %v8126, %v8124
        %v8161 = vpack.c.bf16 %v8127, %v8125
        %v8162 = vpack.c.bf16 %v8130, %v8128
        %v8163 = vpack.c.bf16 %v8131, %v8129
        %v8164 = vmul.f32 %v7621, %v8036
        %v8165 = vmul.f32 %v7623, %v8037
        %v8166 = vmul.f32 %v7625, %v8038
        %v8167 = vmul.f32 %v7627, %v8039
        %v8168 = vmul.f32 %v7629, %v8040
        %v8169 = vmul.f32 %v7631, %v8041
        %v8170 = vmul.f32 %v7633, %v8042
        %v8171 = vmul.f32 %v7635, %v8043
        %v8172 = vmul.f32 %v7637, %v8044
        %v8173 = vmul.f32 %v7639, %v8045
        %v8174 = vmul.f32 %v7641, %v8046
        %v8175 = vmul.f32 %v7643, %v8047
        %v8176 = vmul.f32 %v7645, %v8048
        %v8177 = vmul.f32 %v7647, %v8049
        %v8178 = vmul.f32 %v7649, %v8050
        %v8179 = vmul.f32 %v7651, %v8051
        %v8180 = vmul.f32 %v7653, %v8052
        %v8181 = vmul.f32 %v7655, %v8053
        %v8182 = vmul.f32 %v7657, %v8054
        %v8183 = vmul.f32 %v7659, %v8055
        %v8184 = vmul.f32 %v7661, %v8056
        %v8185 = vmul.f32 %v7663, %v8057
        %v8186 = vmul.f32 %v7665, %v8058
        %v8187 = vmul.f32 %v7667, %v8059
        %v8188 = vmul.f32 %v7669, %v8060
        %v8189 = vmul.f32 %v7671, %v8061
        %v8190 = vmul.f32 %v7673, %v8062
        %v8191 = vmul.f32 %v7675, %v8063
        %v8192 = vmul.f32 %v7677, %v8064
        %v8193 = vmul.f32 %v7679, %v8065
        %v8194 = vmul.f32 %v7681, %v8066
        %v8195 = vmul.f32 %v7683, %v8067
        %v8196 = vpack.c.bf16 %v8165, %v8164
        %v8197 = vpack.c.bf16 %v8167, %v8166
        %v8198 = vpack.c.bf16 %v8169, %v8168
        %v8199 = vpack.c.bf16 %v8171, %v8170
        %v8200 = vpack.c.bf16 %v8173, %v8172
        %v8201 = vpack.c.bf16 %v8175, %v8174
        %v8202 = vpack.c.bf16 %v8177, %v8176
        %v8203 = vpack.c.bf16 %v8179, %v8178
        %v8204 = vpack.c.bf16 %v8181, %v8180
        %v8205 = vpack.c.bf16 %v8183, %v8182
        %v8206 = vpack.c.bf16 %v8185, %v8184
        %v8207 = vpack.c.bf16 %v8187, %v8186
        %v8208 = vpack.c.bf16 %v8189, %v8188
        %v8209 = vpack.c.bf16 %v8191, %v8190
        %v8210 = vpack.c.bf16 %v8193, %v8192
        %v8211 = vpack.c.bf16 %v8195, %v8194
        %8212 = vrot.lane.b32.xlu0 %v966, 32
        %v8213 = vpop.permute.xlu0 %8212
        %8214 = vrot.lane.b32.xlu0 %v967, 32
        %v8215 = vpop.permute.xlu0 %8214
        %8216 = vrot.lane.b32.xlu0 %v968, 32
        %v8217 = vpop.permute.xlu0 %8216
        %8218 = vrot.lane.b32.xlu0 %v969, 32
        %v8219 = vpop.permute.xlu0 %8218
        %8220 = vrot.lane.b32.xlu0 %v970, 32
        %v8221 = vpop.permute.xlu0 %8220
        %8222 = vrot.lane.b32.xlu0 %v971, 32
        %v8223 = vpop.permute.xlu0 %8222
        %8224 = vrot.lane.b32.xlu0 %v972, 32
        %v8225 = vpop.permute.xlu0 %8224
        %8226 = vrot.lane.b32.xlu0 %v973, 32
        %v8227 = vpop.permute.xlu0 %8226
        %8228 = vrot.lane.b32.xlu0 %v974, 32
        %v8229 = vpop.permute.xlu0 %8228
        %8230 = vrot.lane.b32.xlu0 %v975, 32
        %v8231 = vpop.permute.xlu0 %8230
        %8232 = vrot.lane.b32.xlu0 %v976, 32
        %v8233 = vpop.permute.xlu0 %8232
        %8234 = vrot.lane.b32.xlu0 %v977, 32
        %v8235 = vpop.permute.xlu0 %8234
        %8236 = vrot.lane.b32.xlu0 %v978, 32
        %v8237 = vpop.permute.xlu0 %8236
        %8238 = vrot.lane.b32.xlu0 %v979, 32
        %v8239 = vpop.permute.xlu0 %8238
        %8240 = vrot.lane.b32.xlu0 %v980, 32
        %v8241 = vpop.permute.xlu0 %8240
        %8242 = vrot.lane.b32.xlu0 %v981, 32
        %v8243 = vpop.permute.xlu0 %8242
        %8260 = vmatprep.subr.bf16.mxu0 0
        %8261 = vmatpush1.bf16.msra.mxu0 %v8213
        %8262 = vmatprep.subr.bf16.mxu0 0
        %8263 = vmatpush1.bf16.msra.mxu0 %v8215
        %8264 = vmatprep.subr.bf16.mxu0 0
        %8265 = vmatpush1.bf16.msra.mxu0 %v8217
        %8266 = vmatprep.subr.bf16.mxu0 0
        %8267 = vmatpush1.bf16.msra.mxu0 %v8219
        %8268 = vmatprep.subr.bf16.mxu0 0
        %8269 = vmatpush1.bf16.msra.mxu0 %v8221
        %8270 = vmatprep.subr.bf16.mxu0 0
        %8271 = vmatpush1.bf16.msra.mxu0 %v8223
        %8272 = vmatprep.subr.bf16.mxu0 0
        %8273 = vmatpush1.bf16.msra.mxu0 %v8225
        %8274 = vmatprep.subr.bf16.mxu0 0
        %8275 = vmatpush1.bf16.msra.mxu0 %v8227
        %8276 = vmatprep.subr.bf16.mxu0 0
        %8277 = vmatpush1.bf16.msra.mxu0 %v8229
        %8278 = vmatprep.subr.bf16.mxu0 0
        %8279 = vmatpush1.bf16.msra.mxu0 %v8231
        %8280 = vmatprep.subr.bf16.mxu0 0
        %8281 = vmatpush1.bf16.msra.mxu0 %v8233
        %8282 = vmatprep.subr.bf16.mxu0 0
        %8283 = vmatpush1.bf16.msra.mxu0 %v8235
        %8284 = vmatprep.subr.bf16.mxu0 0
        %8285 = vmatpush1.bf16.msra.mxu0 %v8237
        %8286 = vmatprep.subr.bf16.mxu0 0
        %8287 = vmatpush1.bf16.msra.mxu0 %v8239
        %8288 = vmatprep.subr.bf16.mxu0 0
        %8289 = vmatpush1.bf16.msra.mxu0 %v8241
        %8290 = vmatprep.subr.bf16.mxu0 0
        %8291 = vmatpush1.bf16.msra.mxu0 %v8243
        %8292 = vmatprep.mubr.bf16.mxu0 %v8133
        %8293 = vmatmul.mubr.bf16.gmra.mrb[0].mxu0 %v8132
        %v8294 = vpop.f32.mrb[0].mxu0
        %v8295 = vadd.f32 0.0, %v8294
        %v8296 = vpop.f32.mrb[0].mxu0
        %v8297 = vpop.f32.mrb[0].mxu0
        %v8298 = vadd.f32 0.0, %v8297
        %v8299 = vpop.f32.mrb[0].mxu0
        %8300 = vmatprep.mubr.bf16.mxu0 %v8135
        %8301 = vmatmul.mubr.bf16.gmra.mrb[0].mxu0 %v8134
        %v8302 = vpop.f32.mrb[0].mxu0
        %v8303 = vadd.f32 0.0, %v8302
        %v8304 = vpop.f32.mrb[0].mxu0
        %v8305 = vpop.f32.mrb[0].mxu0
        %v8306 = vadd.f32 0.0, %v8305
        %v8307 = vpop.f32.mrb[0].mxu0
        %8308 = vmatprep.mubr.bf16.mxu0 %v8137
        %8309 = vmatmul.mubr.bf16.gmra.mrb[0].mxu0 %v8136
        %v8310 = vpop.f32.mrb[0].mxu0
        %v8311 = vadd.f32 0.0, %v8310
        %v8312 = vpop.f32.mrb[0].mxu0
        %v8313 = vpop.f32.mrb[0].mxu0
        %v8314 = vadd.f32 0.0, %v8313
        %v8315 = vpop.f32.mrb[0].mxu0
        %8316 = vmatprep.mubr.bf16.mxu0 %v8139
        %8317 = vmatmul.mubr.bf16.gmra.mrb[0].mxu0 %v8138
        %v8318 = vpop.f32.mrb[0].mxu0
        %v8319 = vadd.f32 0.0, %v8318
        %v8320 = vpop.f32.mrb[0].mxu0
        %v8321 = vpop.f32.mrb[0].mxu0
        %v8322 = vadd.f32 0.0, %v8321
        %v8323 = vpop.f32.mrb[0].mxu0
        %8324 = vmatprep.mubr.bf16.mxu0 %v8141
        %8325 = vmatmul.mubr.bf16.gmra.mrb[0].mxu0 %v8140
        %v8326 = vpop.f32.mrb[0].mxu0
        %v8327 = vadd.f32 0.0, %v8326
        %v8328 = vpop.f32.mrb[0].mxu0
        %v8329 = vpop.f32.mrb[0].mxu0
        %v8330 = vadd.f32 0.0, %v8329
        %v8331 = vpop.f32.mrb[0].mxu0
        %8332 = vmatprep.mubr.bf16.mxu0 %v8143
        %8333 = vmatmul.mubr.bf16.gmra.mrb[0].mxu0 %v8142
        %v8334 = vpop.f32.mrb[0].mxu0
        %v8335 = vadd.f32 0.0, %v8334
        %v8336 = vpop.f32.mrb[0].mxu0
        %v8337 = vpop.f32.mrb[0].mxu0
        %v8338 = vadd.f32 0.0, %v8337
        %v8339 = vpop.f32.mrb[0].mxu0
        %8340 = vmatprep.mubr.bf16.mxu0 %v8145
        %8341 = vmatmul.mubr.bf16.gmra.mrb[0].mxu0 %v8144
        %v8342 = vpop.f32.mrb[0].mxu0
        %v8343 = vadd.f32 0.0, %v8342
        %v8344 = vpop.f32.mrb[0].mxu0
        %v8345 = vpop.f32.mrb[0].mxu0
        %v8346 = vadd.f32 0.0, %v8345
        %v8347 = vpop.f32.mrb[0].mxu0
        %8348 = vmatprep.mubr.bf16.mxu0 %v8147
        %8349 = vmatmul.mubr.bf16.gmra.mrb[0].mxu0 %v8146
        %v8350 = vpop.f32.mrb[0].mxu0
        %v8351 = vadd.f32 0.0, %v8350
        %v8352 = vpop.f32.mrb[0].mxu0
        %v8353 = vpop.f32.mrb[0].mxu0
        %v8354 = vadd.f32 0.0, %v8353
        %v8355 = vpop.f32.mrb[0].mxu0
        %8356 = vmatprep.mubr.bf16.mxu0 %v8149
        %8357 = vmatmul.mubr.bf16.gmra.mrb[0].mxu0 %v8148
        %v8358 = vpop.f32.mrb[0].mxu0
        %v8359 = vadd.f32 0.0, %v8358
        %v8360 = vpop.f32.mrb[0].mxu0
        %v8361 = vpop.f32.mrb[0].mxu0
        %v8362 = vadd.f32 0.0, %v8361
        %v8363 = vpop.f32.mrb[0].mxu0
        %8364 = vmatprep.mubr.bf16.mxu0 %v8151
        %8365 = vmatmul.mubr.bf16.gmra.mrb[0].mxu0 %v8150
        %v8366 = vpop.f32.mrb[0].mxu0
        %v8367 = vadd.f32 0.0, %v8366
        %v8368 = vpop.f32.mrb[0].mxu0
        %v8369 = vpop.f32.mrb[0].mxu0
        %v8370 = vadd.f32 0.0, %v8369
        %v8371 = vpop.f32.mrb[0].mxu0
        %8372 = vmatprep.mubr.bf16.mxu0 %v8153
        %8373 = vmatmul.mubr.bf16.gmra.mrb[0].mxu0 %v8152
        %v8374 = vpop.f32.mrb[0].mxu0
        %v8375 = vadd.f32 0.0, %v8374
        %v8376 = vpop.f32.mrb[0].mxu0
        %v8377 = vpop.f32.mrb[0].mxu0
        %v8378 = vadd.f32 0.0, %v8377
        %v8379 = vpop.f32.mrb[0].mxu0
        %8380 = vmatprep.mubr.bf16.mxu0 %v8155
        %8381 = vmatmul.mubr.bf16.gmra.mrb[0].mxu0 %v8154
        %v8382 = vpop.f32.mrb[0].mxu0
        %v8383 = vadd.f32 0.0, %v8382
        %v8384 = vpop.f32.mrb[0].mxu0
        %v8385 = vpop.f32.mrb[0].mxu0
        %v8386 = vadd.f32 0.0, %v8385
        %v8387 = vpop.f32.mrb[0].mxu0
        %8388 = vmatprep.mubr.bf16.mxu0 %v8157
        %8389 = vmatmul.mubr.bf16.gmra.mrb[0].mxu0 %v8156
        %v8390 = vpop.f32.mrb[0].mxu0
        %v8391 = vadd.f32 0.0, %v8390
        %v8392 = vpop.f32.mrb[0].mxu0
        %v8393 = vpop.f32.mrb[0].mxu0
        %v8394 = vadd.f32 0.0, %v8393
        %v8395 = vpop.f32.mrb[0].mxu0
        %8396 = vmatprep.mubr.bf16.mxu0 %v8159
        %8397 = vmatmul.mubr.bf16.gmra.mrb[0].mxu0 %v8158
        %v8398 = vpop.f32.mrb[0].mxu0
        %v8399 = vadd.f32 0.0, %v8398
        %v8400 = vpop.f32.mrb[0].mxu0
        %v8401 = vpop.f32.mrb[0].mxu0
        %v8402 = vadd.f32 0.0, %v8401
        %v8403 = vpop.f32.mrb[0].mxu0
        %8404 = vmatprep.mubr.bf16.mxu0 %v8161
        %8405 = vmatmul.mubr.bf16.gmra.mrb[0].mxu0 %v8160
        %v8406 = vpop.f32.mrb[0].mxu0
        %v8407 = vadd.f32 0.0, %v8406
        %v8408 = vpop.f32.mrb[0].mxu0
        %v8409 = vpop.f32.mrb[0].mxu0
        %v8410 = vadd.f32 0.0, %v8409
        %v8411 = vpop.f32.mrb[0].mxu0
        %8412 = vmatprep.mubr.bf16.mxu0 %v8163
        %8413 = vmatmul.mubr.bf16.gmra.mrb[0].mxu0 %v8162
        %v8414 = vpop.f32.mrb[0].mxu0
        %v8415 = vadd.f32 0.0, %v8414
        %v8416 = vpop.f32.mrb[0].mxu0
        %v8417 = vpop.f32.mrb[0].mxu0
        %v8418 = vadd.f32 0.0, %v8417
        %v8419 = vpop.f32.mrb[0].mxu0
        %8420 = vdwg.mxu0
        %v8421 = vpack.c.bf16 %v8298, %v8295
        %v8422 = vpack.c.bf16 %v8306, %v8303
        %v8423 = vpack.c.bf16 %v8314, %v8311
        %v8424 = vpack.c.bf16 %v8322, %v8319
        %v8425 = vpack.c.bf16 %v8330, %v8327
        %v8426 = vpack.c.bf16 %v8338, %v8335
        %v8427 = vpack.c.bf16 %v8346, %v8343
        %v8428 = vpack.c.bf16 %v8354, %v8351
        %v8429 = vpack.c.bf16 %v8362, %v8359
        %v8430 = vpack.c.bf16 %v8370, %v8367
        %v8431 = vpack.c.bf16 %v8378, %v8375
        %v8432 = vpack.c.bf16 %v8386, %v8383
        %v8433 = vpack.c.bf16 %v8394, %v8391
        %v8434 = vpack.c.bf16 %v8402, %v8399
        %v8435 = vpack.c.bf16 %v8410, %v8407
        %v8436 = vpack.c.bf16 %v8418, %v8415
        %v8437 = vld [vmem:[%s4 + $0x30] sm:$0xf]
        %v8438 = vld [vmem:[%s4 + $0x34] sm:$0xf]
        %v8439 = vld [vmem:[%s4 + $0x38] sm:$0xf]
        %v8440 = vld [vmem:[%s4 + $0x3c] sm:$0xf]
        %v8445 = vunpack.c.l.b16 %v8437
        %v8446 = vunpack.c.l.b16 %v8438
        %v8447 = vunpack.c.l.b16 %v8439
        %v8448 = vunpack.c.l.b16 %v8440
        %v8449 = vpack.c.b16 %v8446, %v8445
        %v8450 = vpack.c.b16 %v8448, %v8447
        %v8454 = vsel %vm1304, %v8421, 0
        %v8457 = vsel %vm1304, %v8422, 0
        %v8460 = vsel %vm1304, %v8423, 0
        %v8463 = vsel %vm1304, %v8424, 0
        %v8466 = vsel %vm1304, %v8425, 0
        %v8469 = vsel %vm1304, %v8426, 0
        %v8472 = vsel %vm1304, %v8427, 0
        %v8475 = vsel %vm1304, %v8428, 0
        %v8478 = vsel %vm1304, %v8429, 0
        %v8481 = vsel %vm1304, %v8430, 0
        %v8484 = vsel %vm1304, %v8431, 0
        %v8487 = vsel %vm1304, %v8432, 0
        %v8490 = vsel %vm1304, %v8433, 0
        %v8493 = vsel %vm1304, %v8434, 0
        %v8496 = vsel %vm1304, %v8435, 0
        %v8499 = vsel %vm1304, %v8436, 0
        %8501 = vmatprep.subr.bf16.mxu0 0
        %8502 = vmatpush1.bf16.msra.mxu0 %v8449
        %8503 = vmatprep.subr.bf16.mxu0 0
        %8504 = vmatpush1.bf16.msra.mxu0 %v8450
        %8505 = vmatprep.subr.bf16.mxu0 0
        %8506 = vmatpush1.bf16.msra.mxu0 0
        %8507 = vmatprep.subr.bf16.mxu0 0
        %8508 = vmatpush1.bf16.msra.mxu0 0
        %8509 = vmatprep.subr.bf16.mxu0 0
        %8510 = vmatpush1.bf16.msra.mxu0 0
        %8511 = vmatprep.subr.bf16.mxu0 0
        %8512 = vmatpush1.bf16.msra.mxu0 0
        %8513 = vmatprep.subr.bf16.mxu0 0
        %8514 = vmatpush1.bf16.msra.mxu0 0
        %8515 = vmatprep.subr.bf16.mxu0 0
        %8516 = vmatpush1.bf16.msra.mxu0 0
        %8517 = vmatprep.subr.bf16.mxu0 0
        %8518 = vmatpush1.bf16.msra.mxu0 0
        %8519 = vmatprep.subr.bf16.mxu0 0
        %8520 = vmatpush1.bf16.msra.mxu0 0
        %8521 = vmatprep.subr.bf16.mxu0 0
        %8522 = vmatpush1.bf16.msra.mxu0 0
        %8523 = vmatprep.subr.bf16.mxu0 0
        %8524 = vmatpush1.bf16.msra.mxu0 0
        %8525 = vmatprep.subr.bf16.mxu0 0
        %8526 = vmatpush1.bf16.msra.mxu0 0
        %8527 = vmatprep.subr.bf16.mxu0 0
        %8528 = vmatpush1.bf16.msra.mxu0 0
        %8529 = vmatprep.subr.bf16.mxu0 0
        %8530 = vmatpush1.bf16.msra.mxu0 0
        %8531 = vmatprep.subr.bf16.mxu0 0
        %8532 = vmatpush1.bf16.msra.mxu0 0
        %8533 = vmatprep.mubr.bf16.mxu0 0
        %8534 = vmatmul.mubr.bf16.gmra.mrb[0].mxu0 %v8454
        %v8535 = vpop.f32.mrb[0].mxu0
        %v8536 = vadd.f32 0.0, %v8535
        %v8537 = vpop.f32.mrb[0].mxu0
        %v8538 = vpop.f32.mrb[0].mxu0
        %v8539 = vadd.f32 0.0, %v8538
        %v8540 = vpop.f32.mrb[0].mxu0
        %8541 = vmatprep.mubr.bf16.mxu0 0
        %8542 = vmatmul.mubr.bf16.gmra.mrb[0].mxu0 %v8457
        %v8543 = vpop.f32.mrb[0].mxu0
        %v8544 = vadd.f32 0.0, %v8543
        %v8545 = vpop.f32.mrb[0].mxu0
        %v8546 = vpop.f32.mrb[0].mxu0
        %v8547 = vadd.f32 0.0, %v8546
        %v8548 = vpop.f32.mrb[0].mxu0
        %8549 = vmatprep.mubr.bf16.mxu0 0
        %8550 = vmatmul.mubr.bf16.gmra.mrb[0].mxu0 %v8460
        %v8551 = vpop.f32.mrb[0].mxu0
        %v8552 = vadd.f32 0.0, %v8551
        %v8553 = vpop.f32.mrb[0].mxu0
        %v8554 = vpop.f32.mrb[0].mxu0
        %v8555 = vadd.f32 0.0, %v8554
        %v8556 = vpop.f32.mrb[0].mxu0
        %8557 = vmatprep.mubr.bf16.mxu0 0
        %8558 = vmatmul.mubr.bf16.gmra.mrb[0].mxu0 %v8463
        %v8559 = vpop.f32.mrb[0].mxu0
        %v8560 = vadd.f32 0.0, %v8559
        %v8561 = vpop.f32.mrb[0].mxu0
        %v8562 = vpop.f32.mrb[0].mxu0
        %v8563 = vadd.f32 0.0, %v8562
        %v8564 = vpop.f32.mrb[0].mxu0
        %8565 = vmatprep.mubr.bf16.mxu0 0
        %8566 = vmatmul.mubr.bf16.gmra.mrb[0].mxu0 %v8466
        %v8567 = vpop.f32.mrb[0].mxu0
        %v8568 = vadd.f32 0.0, %v8567
        %v8569 = vpop.f32.mrb[0].mxu0
        %v8570 = vpop.f32.mrb[0].mxu0
        %v8571 = vadd.f32 0.0, %v8570
        %v8572 = vpop.f32.mrb[0].mxu0
        %8573 = vmatprep.mubr.bf16.mxu0 0
        %8574 = vmatmul.mubr.bf16.gmra.mrb[0].mxu0 %v8469
        %v8575 = vpop.f32.mrb[0].mxu0
        %v8576 = vadd.f32 0.0, %v8575
        %v8577 = vpop.f32.mrb[0].mxu0
        %v8578 = vpop.f32.mrb[0].mxu0
        %v8579 = vadd.f32 0.0, %v8578
        %v8580 = vpop.f32.mrb[0].mxu0
        %8581 = vmatprep.mubr.bf16.mxu0 0
        %8582 = vmatmul.mubr.bf16.gmra.mrb[0].mxu0 %v8472
        %v8583 = vpop.f32.mrb[0].mxu0
        %v8584 = vadd.f32 0.0, %v8583
        %v8585 = vpop.f32.mrb[0].mxu0
        %v8586 = vpop.f32.mrb[0].mxu0
        %v8587 = vadd.f32 0.0, %v8586
        %v8588 = vpop.f32.mrb[0].mxu0
        %8589 = vmatprep.mubr.bf16.mxu0 0
        %8590 = vmatmul.mubr.bf16.gmra.mrb[0].mxu0 %v8475
        %v8591 = vpop.f32.mrb[0].mxu0
        %v8592 = vadd.f32 0.0, %v8591
        %v8593 = vpop.f32.mrb[0].mxu0
        %v8594 = vpop.f32.mrb[0].mxu0
        %v8595 = vadd.f32 0.0, %v8594
        %v8596 = vpop.f32.mrb[0].mxu0
        %8597 = vmatprep.mubr.bf16.mxu0 0
        %8598 = vmatmul.mubr.bf16.gmra.mrb[0].mxu0 %v8478
        %v8599 = vpop.f32.mrb[0].mxu0
        %v8600 = vadd.f32 0.0, %v8599
        %v8601 = vpop.f32.mrb[0].mxu0
        %v8602 = vpop.f32.mrb[0].mxu0
        %v8603 = vadd.f32 0.0, %v8602
        %v8604 = vpop.f32.mrb[0].mxu0
        %8605 = vmatprep.mubr.bf16.mxu0 0
        %8606 = vmatmul.mubr.bf16.gmra.mrb[0].mxu0 %v8481
        %v8607 = vpop.f32.mrb[0].mxu0
        %v8608 = vadd.f32 0.0, %v8607
        %v8609 = vpop.f32.mrb[0].mxu0
        %v8610 = vpop.f32.mrb[0].mxu0
        %v8611 = vadd.f32 0.0, %v8610
        %v8612 = vpop.f32.mrb[0].mxu0
        %8613 = vmatprep.mubr.bf16.mxu0 0
        %8614 = vmatmul.mubr.bf16.gmra.mrb[0].mxu0 %v8484
        %v8615 = vpop.f32.mrb[0].mxu0
        %v8616 = vadd.f32 0.0, %v8615
        %v8617 = vpop.f32.mrb[0].mxu0
        %v8618 = vpop.f32.mrb[0].mxu0
        %v8619 = vadd.f32 0.0, %v8618
        %v8620 = vpop.f32.mrb[0].mxu0
        %8621 = vmatprep.mubr.bf16.mxu0 0
        %8622 = vmatmul.mubr.bf16.gmra.mrb[0].mxu0 %v8487
        %v8623 = vpop.f32.mrb[0].mxu0
        %v8624 = vadd.f32 0.0, %v8623
        %v8625 = vpop.f32.mrb[0].mxu0
        %v8626 = vpop.f32.mrb[0].mxu0
        %v8627 = vadd.f32 0.0, %v8626
        %v8628 = vpop.f32.mrb[0].mxu0
        %8629 = vmatprep.mubr.bf16.mxu0 0
        %8630 = vmatmul.mubr.bf16.gmra.mrb[0].mxu0 %v8490
        %v8631 = vpop.f32.mrb[0].mxu0
        %v8632 = vadd.f32 0.0, %v8631
        %v8633 = vpop.f32.mrb[0].mxu0
        %v8634 = vpop.f32.mrb[0].mxu0
        %v8635 = vadd.f32 0.0, %v8634
        %v8636 = vpop.f32.mrb[0].mxu0
        %8637 = vmatprep.mubr.bf16.mxu0 0
        %8638 = vmatmul.mubr.bf16.gmra.mrb[0].mxu0 %v8493
        %v8639 = vpop.f32.mrb[0].mxu0
        %v8640 = vadd.f32 0.0, %v8639
        %v8641 = vpop.f32.mrb[0].mxu0
        %v8642 = vpop.f32.mrb[0].mxu0
        %v8643 = vadd.f32 0.0, %v8642
        %v8644 = vpop.f32.mrb[0].mxu0
        %8645 = vmatprep.mubr.bf16.mxu0 0
        %8646 = vmatmul.mubr.bf16.gmra.mrb[0].mxu0 %v8496
        %v8647 = vpop.f32.mrb[0].mxu0
        %v8648 = vadd.f32 0.0, %v8647
        %v8649 = vpop.f32.mrb[0].mxu0
        %v8650 = vpop.f32.mrb[0].mxu0
        %v8651 = vadd.f32 0.0, %v8650
        %v8652 = vpop.f32.mrb[0].mxu0
        %8653 = vmatprep.mubr.bf16.mxu0 0
        %8654 = vmatmul.mubr.bf16.gmra.mrb[0].mxu0 %v8499
        %v8655 = vpop.f32.mrb[0].mxu0
        %v8656 = vadd.f32 0.0, %v8655
        %v8657 = vpop.f32.mrb[0].mxu0
        %v8658 = vpop.f32.mrb[0].mxu0
        %v8659 = vadd.f32 0.0, %v8658
        %v8660 = vpop.f32.mrb[0].mxu0
        %8661 = vdwg.mxu0
        %v8662 = vadd.f32 %v6963, %v8536
        %v8663 = vadd.f32 %v6964, %v8539
        %v8664 = vadd.f32 %v6965, %v8544
        %v8665 = vadd.f32 %v6966, %v8547
        %v8666 = vadd.f32 %v6967, %v8552
        %v8667 = vadd.f32 %v6968, %v8555
        %v8668 = vadd.f32 %v6969, %v8560
        %v8669 = vadd.f32 %v6970, %v8563
        %v8670 = vadd.f32 %v6971, %v8568
        %v8671 = vadd.f32 %v6972, %v8571
        %v8672 = vadd.f32 %v6973, %v8576
        %v8673 = vadd.f32 %v6974, %v8579
        %v8674 = vadd.f32 %v6975, %v8584
        %v8675 = vadd.f32 %v6976, %v8587
        %v8676 = vadd.f32 %v6977, %v8592
        %v8677 = vadd.f32 %v6978, %v8595
        %v8678 = vadd.f32 %v6979, %v8600
        %v8679 = vadd.f32 %v6980, %v8603
        %v8680 = vadd.f32 %v6981, %v8608
        %v8681 = vadd.f32 %v6982, %v8611
        %v8682 = vadd.f32 %v6983, %v8616
        %v8683 = vadd.f32 %v6984, %v8619
        %v8684 = vadd.f32 %v6985, %v8624
        %v8685 = vadd.f32 %v6986, %v8627
        %v8686 = vadd.f32 %v6987, %v8632
        %v8687 = vadd.f32 %v6988, %v8635
        %v8688 = vadd.f32 %v6989, %v8640
        %v8689 = vadd.f32 %v6990, %v8643
        %v8690 = vadd.f32 %v6991, %v8648
        %v8691 = vadd.f32 %v6992, %v8651
        %v8692 = vadd.f32 %v6993, %v8656
        %v8693 = vadd.f32 %v6994, %v8659
        %s8694 = scalar_lea.vmem %s3, 6
        %v8695 = vld [vmem:[%s8694] sm:$0x3]
        %8712 = vrot.lane.b32.xlu0 %v8196, 116
        %v8713 = vpop.permute.xlu0 %8712
        %8714 = vrot.lane.b32.xlu0 %v8197, 116
        %v8715 = vpop.permute.xlu0 %8714
        %8716 = vrot.lane.b32.xlu0 %v8198, 116
        %v8717 = vpop.permute.xlu0 %8716
        %8718 = vrot.lane.b32.xlu0 %v8199, 116
        %v8719 = vpop.permute.xlu0 %8718
        %8720 = vrot.lane.b32.xlu0 %v8200, 116
        %v8721 = vpop.permute.xlu0 %8720
        %8722 = vrot.lane.b32.xlu0 %v8201, 116
        %v8723 = vpop.permute.xlu0 %8722
        %8724 = vrot.lane.b32.xlu0 %v8202, 116
        %v8725 = vpop.permute.xlu0 %8724
        %8726 = vrot.lane.b32.xlu0 %v8203, 116
        %v8727 = vpop.permute.xlu0 %8726
        %8728 = vrot.lane.b32.xlu0 %v8204, 116
        %v8729 = vpop.permute.xlu0 %8728
        %8730 = vrot.lane.b32.xlu0 %v8205, 116
        %v8731 = vpop.permute.xlu0 %8730
        %8732 = vrot.lane.b32.xlu0 %v8206, 116
        %v8733 = vpop.permute.xlu0 %8732
        %8734 = vrot.lane.b32.xlu0 %v8207, 116
        %v8735 = vpop.permute.xlu0 %8734
        %8736 = vrot.lane.b32.xlu0 %v8208, 116
        %v8737 = vpop.permute.xlu0 %8736
        %8738 = vrot.lane.b32.xlu0 %v8209, 116
        %v8739 = vpop.permute.xlu0 %8738
        %8740 = vrot.lane.b32.xlu0 %v8210, 116
        %v8741 = vpop.permute.xlu0 %8740
        %8742 = vrot.lane.b32.xlu0 %v8211, 116
        %v8743 = vpop.permute.xlu0 %8742
        %v8745 = vsel %vm453, %v8713, 0
        %v8748 = vsel %vm453, %v8715, 0
        %v8751 = vsel %vm453, %v8717, 0
        %v8754 = vsel %vm453, %v8719, 0
        %v8757 = vsel %vm453, %v8721, 0
        %v8760 = vsel %vm453, %v8723, 0
        %v8763 = vsel %vm453, %v8725, 0
        %v8766 = vsel %vm453, %v8727, 0
        %v8769 = vsel %vm453, %v8729, 0
        %v8772 = vsel %vm453, %v8731, 0
        %v8775 = vsel %vm453, %v8733, 0
        %v8778 = vsel %vm453, %v8735, 0
        %v8781 = vsel %vm453, %v8737, 0
        %v8784 = vsel %vm453, %v8739, 0
        %v8787 = vsel %vm453, %v8741, 0
        %v8790 = vsel %vm453, %v8743, 0
        %v8793 = vsel %vm526, %v8695, 0
        %8795 = vmatprep.subr.bf16.mxu0 0
        %8796 = vmatpush1.bf16.msra.mxu0 %v8793
        %8797 = vmatprep.subr.bf16.mxu0 0
        %8798 = vmatpush1.bf16.msra.mxu0 0
        %8799 = vmatprep.subr.bf16.mxu0 0
        %8800 = vmatpush1.bf16.msra.mxu0 0
        %8801 = vmatprep.subr.bf16.mxu0 0
        %8802 = vmatpush1.bf16.msra.mxu0 0
        %8803 = vmatprep.subr.bf16.mxu0 0
        %8804 = vmatpush1.bf16.msra.mxu0 0
        %8805 = vmatprep.subr.bf16.mxu0 0
        %8806 = vmatpush1.bf16.msra.mxu0 0
        %8807 = vmatprep.subr.bf16.mxu0 0
        %8808 = vmatpush1.bf16.msra.mxu0 0
        %8809 = vmatprep.subr.bf16.mxu0 0
        %8810 = vmatpush1.bf16.msra.mxu0 0
        %8811 = vmatprep.subr.bf16.mxu0 0
        %8812 = vmatpush1.bf16.msra.mxu0 0
        %8813 = vmatprep.subr.bf16.mxu0 0
        %8814 = vmatpush1.bf16.msra.mxu0 0
        %8815 = vmatprep.subr.bf16.mxu0 0
        %8816 = vmatpush1.bf16.msra.mxu0 0
        %8817 = vmatprep.subr.bf16.mxu0 0
        %8818 = vmatpush1.bf16.msra.mxu0 0
        %8819 = vmatprep.subr.bf16.mxu0 0
        %8820 = vmatpush1.bf16.msra.mxu0 0
        %8821 = vmatprep.subr.bf16.mxu0 0
        %8822 = vmatpush1.bf16.msra.mxu0 0
        %8823 = vmatprep.subr.bf16.mxu0 0
        %8824 = vmatpush1.bf16.msra.mxu0 0
        %8825 = vmatprep.subr.bf16.mxu0 0
        %8826 = vmatpush1.bf16.msra.mxu0 0
        %8827 = vmatprep.mubr.bf16.mxu0 0
        %8828 = vmatmul.mubr.bf16.gmra.mrb[0].mxu0 %v8745
        %v8829 = vpop.f32.mrb[0].mxu0
        %v8830 = vadd.f32 0.0, %v8829
        %v8831 = vpop.f32.mrb[0].mxu0
        %v8832 = vpop.f32.mrb[0].mxu0
        %v8833 = vadd.f32 0.0, %v8832
        %v8834 = vpop.f32.mrb[0].mxu0
        %8835 = vmatprep.mubr.bf16.mxu0 0
        %8836 = vmatmul.mubr.bf16.gmra.mrb[0].mxu0 %v8748
        %v8837 = vpop.f32.mrb[0].mxu0
        %v8838 = vadd.f32 0.0, %v8837
        %v8839 = vpop.f32.mrb[0].mxu0
        %v8840 = vpop.f32.mrb[0].mxu0
        %v8841 = vadd.f32 0.0, %v8840
        %v8842 = vpop.f32.mrb[0].mxu0
        %8843 = vmatprep.mubr.bf16.mxu0 0
        %8844 = vmatmul.mubr.bf16.gmra.mrb[0].mxu0 %v8751
        %v8845 = vpop.f32.mrb[0].mxu0
        %v8846 = vadd.f32 0.0, %v8845
        %v8847 = vpop.f32.mrb[0].mxu0
        %v8848 = vpop.f32.mrb[0].mxu0
        %v8849 = vadd.f32 0.0, %v8848
        %v8850 = vpop.f32.mrb[0].mxu0
        %8851 = vmatprep.mubr.bf16.mxu0 0
        %8852 = vmatmul.mubr.bf16.gmra.mrb[0].mxu0 %v8754
        %v8853 = vpop.f32.mrb[0].mxu0
        %v8854 = vadd.f32 0.0, %v8853
        %v8855 = vpop.f32.mrb[0].mxu0
        %v8856 = vpop.f32.mrb[0].mxu0
        %v8857 = vadd.f32 0.0, %v8856
        %v8858 = vpop.f32.mrb[0].mxu0
        %8859 = vmatprep.mubr.bf16.mxu0 0
        %8860 = vmatmul.mubr.bf16.gmra.mrb[0].mxu0 %v8757
        %v8861 = vpop.f32.mrb[0].mxu0
        %v8862 = vadd.f32 0.0, %v8861
        %v8863 = vpop.f32.mrb[0].mxu0
        %v8864 = vpop.f32.mrb[0].mxu0
        %v8865 = vadd.f32 0.0, %v8864
        %v8866 = vpop.f32.mrb[0].mxu0
        %8867 = vmatprep.mubr.bf16.mxu0 0
        %8868 = vmatmul.mubr.bf16.gmra.mrb[0].mxu0 %v8760
        %v8869 = vpop.f32.mrb[0].mxu0
        %v8870 = vadd.f32 0.0, %v8869
        %v8871 = vpop.f32.mrb[0].mxu0
        %v8872 = vpop.f32.mrb[0].mxu0
        %v8873 = vadd.f32 0.0, %v8872
        %v8874 = vpop.f32.mrb[0].mxu0
        %8875 = vmatprep.mubr.bf16.mxu0 0
        %8876 = vmatmul.mubr.bf16.gmra.mrb[0].mxu0 %v8763
        %v8877 = vpop.f32.mrb[0].mxu0
        %v8878 = vadd.f32 0.0, %v8877
        %v8879 = vpop.f32.mrb[0].mxu0
        %v8880 = vpop.f32.mrb[0].mxu0
        %v8881 = vadd.f32 0.0, %v8880
        %v8882 = vpop.f32.mrb[0].mxu0
        %8883 = vmatprep.mubr.bf16.mxu0 0
        %8884 = vmatmul.mubr.bf16.gmra.mrb[0].mxu0 %v8766
        %v8885 = vpop.f32.mrb[0].mxu0
        %v8886 = vadd.f32 0.0, %v8885
        %v8887 = vpop.f32.mrb[0].mxu0
        %v8888 = vpop.f32.mrb[0].mxu0
        %v8889 = vadd.f32 0.0, %v8888
        %v8890 = vpop.f32.mrb[0].mxu0
        %8891 = vmatprep.mubr.bf16.mxu0 0
        %8892 = vmatmul.mubr.bf16.gmra.mrb[0].mxu0 %v8769
        %v8893 = vpop.f32.mrb[0].mxu0
        %v8894 = vadd.f32 0.0, %v8893
        %v8895 = vpop.f32.mrb[0].mxu0
        %v8896 = vpop.f32.mrb[0].mxu0
        %v8897 = vadd.f32 0.0, %v8896
        %v8898 = vpop.f32.mrb[0].mxu0
        %8899 = vmatprep.mubr.bf16.mxu0 0
        %8900 = vmatmul.mubr.bf16.gmra.mrb[0].mxu0 %v8772
        %v8901 = vpop.f32.mrb[0].mxu0
        %v8902 = vadd.f32 0.0, %v8901
        %v8903 = vpop.f32.mrb[0].mxu0
        %v8904 = vpop.f32.mrb[0].mxu0
        %v8905 = vadd.f32 0.0, %v8904
        %v8906 = vpop.f32.mrb[0].mxu0
        %8907 = vmatprep.mubr.bf16.mxu0 0
        %8908 = vmatmul.mubr.bf16.gmra.mrb[0].mxu0 %v8775
        %v8909 = vpop.f32.mrb[0].mxu0
        %v8910 = vadd.f32 0.0, %v8909
        %v8911 = vpop.f32.mrb[0].mxu0
        %v8912 = vpop.f32.mrb[0].mxu0
        %v8913 = vadd.f32 0.0, %v8912
        %v8914 = vpop.f32.mrb[0].mxu0
        %8915 = vmatprep.mubr.bf16.mxu0 0
        %8916 = vmatmul.mubr.bf16.gmra.mrb[0].mxu0 %v8778
        %v8917 = vpop.f32.mrb[0].mxu0
        %v8918 = vadd.f32 0.0, %v8917
        %v8919 = vpop.f32.mrb[0].mxu0
        %v8920 = vpop.f32.mrb[0].mxu0
        %v8921 = vadd.f32 0.0, %v8920
        %v8922 = vpop.f32.mrb[0].mxu0
        %8923 = vmatprep.mubr.bf16.mxu0 0
        %8924 = vmatmul.mubr.bf16.gmra.mrb[0].mxu0 %v8781
        %v8925 = vpop.f32.mrb[0].mxu0
        %v8926 = vadd.f32 0.0, %v8925
        %v8927 = vpop.f32.mrb[0].mxu0
        %v8928 = vpop.f32.mrb[0].mxu0
        %v8929 = vadd.f32 0.0, %v8928
        %v8930 = vpop.f32.mrb[0].mxu0
        %8931 = vmatprep.mubr.bf16.mxu0 0
        %8932 = vmatmul.mubr.bf16.gmra.mrb[0].mxu0 %v8784
        %v8933 = vpop.f32.mrb[0].mxu0
        %v8934 = vadd.f32 0.0, %v8933
        %v8935 = vpop.f32.mrb[0].mxu0
        %v8936 = vpop.f32.mrb[0].mxu0
        %v8937 = vadd.f32 0.0, %v8936
        %v8938 = vpop.f32.mrb[0].mxu0
        %8939 = vmatprep.mubr.bf16.mxu0 0
        %8940 = vmatmul.mubr.bf16.gmra.mrb[0].mxu0 %v8787
        %v8941 = vpop.f32.mrb[0].mxu0
        %v8942 = vadd.f32 0.0, %v8941
        %v8943 = vpop.f32.mrb[0].mxu0
        %v8944 = vpop.f32.mrb[0].mxu0
        %v8945 = vadd.f32 0.0, %v8944
        %v8946 = vpop.f32.mrb[0].mxu0
        %8947 = vmatprep.mubr.bf16.mxu0 0
        %8948 = vmatmul.mubr.bf16.gmra.mrb[0].mxu0 %v8790
        %v8949 = vpop.f32.mrb[0].mxu0
        %v8950 = vadd.f32 0.0, %v8949
        %v8951 = vpop.f32.mrb[0].mxu0
        %v8952 = vpop.f32.mrb[0].mxu0
        %v8953 = vadd.f32 0.0, %v8952
        %v8954 = vpop.f32.mrb[0].mxu0
        %8955 = vdwg.mxu0
        %v8956 = vadd.f32 %v8662, %v8830
        %v8957 = vadd.f32 %v8663, %v8833
        %v8958 = vadd.f32 %v8664, %v8838
        %v8959 = vadd.f32 %v8665, %v8841
        %v8960 = vadd.f32 %v8666, %v8846
        %v8961 = vadd.f32 %v8667, %v8849
        %v8962 = vadd.f32 %v8668, %v8854
        %v8963 = vadd.f32 %v8669, %v8857
        %v8964 = vadd.f32 %v8670, %v8862
        %v8965 = vadd.f32 %v8671, %v8865
        %v8966 = vadd.f32 %v8672, %v8870
        %v8967 = vadd.f32 %v8673, %v8873
        %v8968 = vadd.f32 %v8674, %v8878
        %v8969 = vadd.f32 %v8675, %v8881
        %v8970 = vadd.f32 %v8676, %v8886
        %v8971 = vadd.f32 %v8677, %v8889
        %v8972 = vadd.f32 %v8678, %v8894
        %v8973 = vadd.f32 %v8679, %v8897
        %v8974 = vadd.f32 %v8680, %v8902
        %v8975 = vadd.f32 %v8681, %v8905
        %v8976 = vadd.f32 %v8682, %v8910
        %v8977 = vadd.f32 %v8683, %v8913
        %v8978 = vadd.f32 %v8684, %v8918
        %v8979 = vadd.f32 %v8685, %v8921
        %v8980 = vadd.f32 %v8686, %v8926
        %v8981 = vadd.f32 %v8687, %v8929
        %v8982 = vadd.f32 %v8688, %v8934
        %v8983 = vadd.f32 %v8689, %v8937
        %v8984 = vadd.f32 %v8690, %v8942
        %v8985 = vadd.f32 %v8691, %v8945
        %v8986 = vadd.f32 %v8692, %v8950
        %v8987 = vadd.f32 %v8693, %v8953
        %8988 = vxpose.xlu0.b32.start [1/16] %v8956, 128
        %8989 = vxpose.xlu0.b32.cont [2/16] %v8957, 128
        %8990 = vxpose.xlu0.b32.cont [3/16] %v8958, 128
        %8991 = vxpose.xlu0.b32.cont [4/16] %v8959, 128
        %8992 = vxpose.xlu0.b32.cont [5/16] %v8960, 128
        %8993 = vxpose.xlu0.b32.cont [6/16] %v8961, 128
        %8994 = vxpose.xlu0.b32.cont [7/16] %v8962, 128
        %8995 = vxpose.xlu0.b32.cont [8/16] %v8963, 128
        %8996 = vxpose.xlu0.b32.cont [9/16] %v8964, 128
        %8997 = vxpose.xlu0.b32.cont [10/16] %v8965, 128
        %8998 = vxpose.xlu0.b32.cont [11/16] %v8966, 128
        %8999 = vxpose.xlu0.b32.cont [12/16] %v8967, 128
        %9000 = vxpose.xlu0.b32.cont [13/16] %v8968, 128
        %9001 = vxpose.xlu0.b32.cont [14/16] %v8969, 128
        %9002 = vxpose.xlu0.b32.cont [15/16] %v8970, 128
        %9003 = vxpose.xlu0.b32.end [16/16] %v8971, 128
        %v9004 = vpop.trf.xlu0
        %v9005 = vpop.trf.xlu0
        %v9006 = vpop.trf.xlu0
        %v9007 = vpop.trf.xlu0
        %v9008 = vpop.trf.xlu0
        %v9009 = vpop.trf.xlu0
        %v9010 = vpop.trf.xlu0
        %v9011 = vpop.trf.xlu0
        %v9012 = vpop.trf.xlu0
        %v9013 = vpop.trf.xlu0
        %v9014 = vpop.trf.xlu0
        %v9015 = vpop.trf.xlu0
        %v9016 = vpop.trf.xlu0
        %v9017 = vpop.trf.xlu0
        %v9018 = vpop.trf.xlu0
        %v9019 = vpop.trf.xlu0
        %9020 = vxpose.xlu0.b32.start [1/16] %v8972, 128
        %9021 = vxpose.xlu0.b32.cont [2/16] %v8973, 128
        %9022 = vxpose.xlu0.b32.cont [3/16] %v8974, 128
        %9023 = vxpose.xlu0.b32.cont [4/16] %v8975, 128
        %9024 = vxpose.xlu0.b32.cont [5/16] %v8976, 128
        %9025 = vxpose.xlu0.b32.cont [6/16] %v8977, 128
        %9026 = vxpose.xlu0.b32.cont [7/16] %v8978, 128
        %9027 = vxpose.xlu0.b32.cont [8/16] %v8979, 128
        %9028 = vxpose.xlu0.b32.cont [9/16] %v8980, 128
        %9029 = vxpose.xlu0.b32.cont [10/16] %v8981, 128
        %9030 = vxpose.xlu0.b32.cont [11/16] %v8982, 128
        %9031 = vxpose.xlu0.b32.cont [12/16] %v8983, 128
        %9032 = vxpose.xlu0.b32.cont [13/16] %v8984, 128
        %9033 = vxpose.xlu0.b32.cont [14/16] %v8985, 128
        %9034 = vxpose.xlu0.b32.cont [15/16] %v8986, 128
        %9035 = vxpose.xlu0.b32.end [16/16] %v8987, 128
        %v9036 = vpop.trf.xlu0
        %v9037 = vpop.trf.xlu0
        %v9038 = vpop.trf.xlu0
        %v9039 = vpop.trf.xlu0
        %v9040 = vpop.trf.xlu0
        %v9041 = vpop.trf.xlu0
        %v9042 = vpop.trf.xlu0
        %v9043 = vpop.trf.xlu0
        %v9044 = vpop.trf.xlu0
        %v9045 = vpop.trf.xlu0
        %v9046 = vpop.trf.xlu0
        %v9047 = vpop.trf.xlu0
        %v9048 = vpop.trf.xlu0
        %v9049 = vpop.trf.xlu0
        %v9050 = vpop.trf.xlu0
        %v9051 = vpop.trf.xlu0
        %v9052 = vld [vmem:[%s5] sm:$0xf]
        %9054 = vset.pattern.permute.xlu0 0
        %9055 = vperm.xlu0 %9054, %v9052
        %v9056 = vpop.permute.xlu0 %9055
        %v9058 = vadd.f32 %v9004, %v9056
        %v9059 = vadd.f32 %v9036, %v9056
        %v9062 = vcombine.low %v9058, %v9059
        %9064 = vst [vmem:[%s244] sm:$0xff] %v9062
        %s9065 = sand.u32 %s159, 1
        %s9066 = scalar_lea.sflag [#allocation3], %s9065
        %s9067 = sand.u32 %s159, 1
        %s9068 = smul.addr %s9067, 8
        %s9069 = scalar_lea.vmem [#allocation2], %s9068
        // Predicated region
        $region45: #{tpu_custom_call.1} parent=43 // pred_check
          %p9070 = pneg %p169
        $region46: #{tpu_custom_call.1} parent=43 // pred_check_branch
          %9072 = sbr.rel (%p9070) target = $region48
        $region47: #{tpu_custom_call.1} parent=43 // pred_region
          %s9074 = ssub.s32 128, 128
          %9075 = vsyncadd %s9066, %s9074
          %s9076 = smul.addr %s20, 2
          %s9077 = smul.addr %s9076, 64
          %s9078 = scalar_lea.hbm %s6, %s9077
          %s9080 = sshll.u32 %s9069, 4
          %s9081 = int_to_ptr.vmem [resolvable:$true] %s9080
          %9083 = dma.vmem_to_hbm [thread:$0]  %s9081, 128, %s9078, %s9066
        $region48: #{tpu_custom_call.1} parent=43 // pred_fallthru
          _
      $region44: #{tpu_custom_call.1} parent=5 // pred_fallthru
        _
      %p9084 = scmp.le.s32.totalorder 2, %s15
      // Predicated region
      $region49: #{tpu_custom_call.1} parent=5 // pred_check
        %p9085 = pneg %p9084
      $region50: #{tpu_custom_call.1} parent=5 // pred_check_branch
        %9087 = sbr.rel (%p9085) target = $region52
      $region51: #{tpu_custom_call.1} parent=5 // pred_region
        %s9088 = ssub.s32 %s15, 2
        // Predicated region
        $region53: #{tpu_custom_call.1} parent=51 // pred_check
          %p9089 = pneg %p175
        $region54: #{tpu_custom_call.1} parent=51 // pred_check_branch
          %9091 = sbr.rel (%p9089) target = $region56
        $region55: #{tpu_custom_call.1} parent=51 // pred_region
          %s9092 = sand.u32 %s160, 1
          %s9093 = scalar_lea.sflag [#allocation3], %s9092
          %s9094 = sand.u32 %s160, 1
          %s9095 = smul.addr %s9094, 8
          %s9096 = scalar_lea.vmem [#allocation2], %s9095
          %9097 = dma.done %s9093, 128
        $region56: #{tpu_custom_call.1} parent=51 // pred_fallthru
          _
      $region52: #{tpu_custom_call.1} parent=5 // pred_fallthru
        _
    $region6: #{tpu_custom_call.1} parent=1 // loop_footer
      %s19 = sadd.s32 1, %s15
    $region7: #{tpu_custom_call.1} parent=1 // loop_footer_branch
      %14 = sbr.rel target = $region3
    $region8: #{tpu_custom_call.1} parent=1 // loop_exit
      _
    %9098 = vsyncpa [#allocation3], 1
    %s9099 = scalar_lea.sflag [#allocation3], 1
    %9100 = vsyncpa %s9099, 1

</llo_original>
